<compile_context>
chip_gen: v7x
topology: tpu7x:2x2x1
jax: 0.10.0
libtpu: 0.0.40
codegen_flags: <defaults>
</compile_context>

<pallas_src>
import jax
import jax.numpy as jnp
from jax.experimental import pallas as pl
from jax.experimental.pallas import tpu as pltpu


def _sigmoid_ref(x):
    return 1.0 / (1.0 + jnp.exp(-x))


def _actor_head_kernel(
    z_ref, h0_ref,
    w1_ref, b1_ref, w2_ref, b2_ref,
    wih_ref, whh_ref, bih_ref, bhh_ref,
    wmu_ref, bmu_ref,
    mu_ref, hlast_ref,
    gi_ref, hseq_ref,
):
    T, BB, GH = gi_ref.shape
    H = hlast_ref.shape[-1]
    D = z_ref.shape[-1]
    Apad = mu_ref.shape[-1]
    TB = T * BB
    f32 = jnp.float32

    def sigmoid(x):
        # exp + approx reciprocal both run on the EUP slot -> VALU stays free
        # inside the serial GRU loop.  approx=False gives <1e-4 f32 parity.
        return pl.reciprocal(1.0 + jnp.exp(-x), approx=True)

    # ---- hoisted (T*BB)-row matmuls: trunk + GRU input projection ----------
    z = z_ref[...].reshape(TB, D)                                   # (TB, D)
    x = jnp.tanh(
        jnp.dot(z, w1_ref[...], preferred_element_type=f32) + b1_ref[...]
    )                                                               # (TB, 512)
    logits = jnp.tanh(
        jnp.dot(x.astype(w2_ref.dtype), w2_ref[...],
                preferred_element_type=f32) + b2_ref[...]
    )                                                               # (TB, 256)
    gi = jnp.dot(logits.astype(wih_ref.dtype), wih_ref[...],
                 preferred_element_type=f32) + bih_ref[...]         # (TB, 3H)
    gi_ref[...] = gi.reshape(T, BB, GH)

    # ---- sequential GRU recurrence (PyTorch gate order r, z, n) ------------
    # Only the (BB, H) x (H, 3H) matmul + gate math remain per step.
    def step(t, h):
        gi_t = gi_ref[t]                                            # (BB, 3H)
        gh = jnp.dot(h.astype(whh_ref.dtype), whh_ref[...],
                     preferred_element_type=f32) + bhh_ref[...]
        r = sigmoid(gi_t[:, 0:H] + gh[:, 0:H])
        u = sigmoid(gi_t[:, H:2 * H] + gh[:, H:2 * H])
        n = jnp.tanh(gi_t[:, 2 * H:] + r * gh[:, 2 * H:])
        h_new = (1.0 - u) * n + u * h
        hseq_ref[t] = h_new
        return h_new

    h_last = jax.lax.fori_loop(0, T, step, h0_ref[...].astype(f32), unroll=True)
    hlast_ref[...] = h_last                                         # write once

    # ---- mu head: one lane-dense (TB, H) x (H, 128) matmul after the loop --
    h_seq = hseq_ref[...].reshape(TB, H)
    mu = jnp.dot(h_seq.astype(wmu_ref.dtype), wmu_ref[...],
                 preferred_element_type=f32) + bmu_ref[...]
    mu_ref[...] = mu.reshape(T, BB, Apad).astype(mu_ref.dtype)


def recurrent_actor_head(z, h0, params, *, compute_dtype=jnp.float32,
                         batch_block=None):
    """z: [T, B, middle_dim] share-feature sequence, h0: [B, hidden] GRU state.

    compute_dtype=jnp.bfloat16 casts weights + dot operands (f32 accumulation,
    f32 gate math) — the recommended setting for v5e/v6e/v7x MXUs.
    batch_block shards the batch across the grid ("parallel" -> v7x 2-TC).
    """
    T, B, D = z.shape
    H = h0.shape[-1]
    Apad = params["w_mu_p"].shape[1]
    A = params["out_dim"]
    G = params["w_ih"].shape[1]          # 3 * H

    bb = B if batch_block is None else batch_block
    assert B % bb == 0 and (bb % 8 == 0 or bb == B), "batch_block must tile B"
    nb = B // bb

    cd = compute_dtype
    z_c = z.astype(cd)
    args = (
        z_c, h0.astype(jnp.float32),
        params["w_fc1"].astype(cd), params["b_fc1"],
        params["w_fc2"].astype(cd), params["b_fc2"],
        params["w_ih"].astype(cd), params["w_hh"].astype(cd),
        params["b_ih"], params["b_hh"],
        params["w_mu_p"].astype(cd), params["b_mu_p"],
    )

    const2d = lambda j: (0, 0)
    in_specs = [
        pl.BlockSpec((T, bb, D), lambda j: (0, j, 0)),     # per-shard z
        pl.BlockSpec((bb, H), lambda j: (j, 0)),           # per-shard h0
    ] + [pl.BlockSpec(a.shape, const2d) for a in args[2:]]  # resident weights

    out_shape = (
        jax.ShapeDtypeStruct((T, B, Apad), jnp.float32),   # mu (lane-padded)
        jax.ShapeDtypeStruct((B, H), jnp.float32),         # final hidden state
    )
    out_specs = (
        pl.BlockSpec((T, bb, Apad), lambda j: (0, j, 0)),
        pl.BlockSpec((bb, H), lambda j: (j, 0)),
    )

    F1 = params["w_fc1"].shape[1]
    F2 = params["w_fc2"].shape[1]
    flops = 2 * T * B * (D * F1 + F1 * F2 + F2 * G + H * G + H * Apad)
    transcendentals = T * B * (F1 + F2 + 3 * H)
    bytes_accessed = int(sum(int(a.size) * a.dtype.itemsize for a in args)
                         + 4 * (T * B * Apad + B * H))

    mu_pad, h_last = pl.pallas_call(
        _actor_head_kernel,
        out_shape=out_shape,
        grid=(nb,),
        in_specs=in_specs,
        out_specs=out_specs,
        scratch_shapes=[
            pltpu.VMEM((T, bb, G), jnp.float32),   # hoisted gi for all t
            pltpu.VMEM((T, bb, H), jnp.float32),   # hidden-state sequence
        ],
        compiler_params=pltpu.CompilerParams(
            # Batch shards are independent (the GRU recurs over time INSIDE the
            # body) -> grid axis is parallel and can split across v7x's 2 TCs.
            dimension_semantics=("parallel",),
        ),
        cost_estimate=pl.CostEstimate(
            flops=flops,
            transcendentals=transcendentals,
            bytes_accessed=bytes_accessed,
        ),
    )(*args)

    mu = mu_pad[:, :, :A]
    # PyTorch's `self.sigma.view(...).exp()` broadcast == per-action-dim exp.
    sigma = jnp.broadcast_to(jnp.exp(params["sigma"]).reshape(1, 1, A), mu.shape)
    return mu, sigma, h_last


def _reference_head(z, h0, params):
    """Pure-JAX reference (HIGHEST-precision matmuls) of the same forward pass."""
    prec = jax.lax.Precision.HIGHEST
    H = h0.shape[-1]
    A = params["out_dim"]

    x = jnp.tanh(jnp.dot(z, params["w_fc1"], precision=prec) + params["b_fc1"])
    logits = jnp.tanh(jnp.dot(x, params["w_fc2"], precision=prec) + params["b_fc2"])

    def step(h, l_t):
        gi = jnp.dot(l_t, params["w_ih"], precision=prec) + params["b_ih"]
        gh = jnp.dot(h, params["w_hh"], precision=prec) + params["b_hh"]
        r = _sigmoid_ref(gi[:, 0:H] + gh[:, 0:H])
        u = _sigmoid_ref(gi[:, H:2 * H] + gh[:, H:2 * H])
        n = jnp.tanh(gi[:, 2 * H:3 * H] + r * gh[:, 2 * H:3 * H])
        h_new = (1.0 - u) * n + u * h
        return h_new, h_new

    h_last, outs = jax.lax.scan(step, h0, logits)
    mu = jnp.dot(outs, params["w_mu_p"][:, :A], precision=prec) + params["b_mu_p"][:, :A]
    sigma = jnp.broadcast_to(jnp.exp(params["sigma"]).reshape(1, 1, A), mu.shape)
    return mu, sigma, h_last


def init_params(key, middle_dim, out_dim, fc1_out=512, hidden=256):
    """Deterministic init mirroring the module (orth_init fc1/fc2/mu, GRU default)."""
    ks = jax.random.split(key, 7)
    orth = jax.nn.initializers.orthogonal

    w_fc1 = orth()(ks[0], (middle_dim, fc1_out), jnp.float32)
    w_fc2 = orth()(ks[1], (fc1_out, hidden), jnp.float32)
    w_mu = orth(0.01)(ks[2], (hidden, out_dim), jnp.float32)
    b_fc1 = jnp.zeros((1, fc1_out), jnp.float32)
    b_fc2 = jnp.zeros((1, hidden), jnp.float32)
    b_mu = jnp.zeros((1, out_dim), jnp.float32)

    bound = 1.0 / (hidden ** 0.5)
    w_ih = jax.random.uniform(ks[3], (hidden, 3 * hidden), jnp.float32, -bound, bound)
    w_hh = jax.random.uniform(ks[4], (hidden, 3 * hidden), jnp.float32, -bound, bound)
    b_ih = jax.random.uniform(ks[5], (1, 3 * hidden), jnp.float32, -bound, bound)
    b_hh = jax.random.uniform(ks[6], (1, 3 * hidden), jnp.float32, -bound, bound)

    sigma = jnp.full((out_dim,), -0.1, jnp.float32)

    # Pad the mu head to a 128-lane multiple ONCE (lane-dense stores in-kernel).
    a_pad = ((out_dim + 127) // 128) * 128
    w_mu_p = jnp.zeros((hidden, a_pad), jnp.float32).at[:, :out_dim].set(w_mu)
    b_mu_p = jnp.zeros((1, a_pad), jnp.float32).at[:, :out_dim].set(b_mu)

    return dict(
        w_fc1=w_fc1, b_fc1=b_fc1, w_fc2=w_fc2, b_fc2=b_fc2,
        w_ih=w_ih, w_hh=w_hh, b_ih=b_ih, b_hh=b_hh,
        w_mu_p=w_mu_p, b_mu_p=b_mu_p, sigma=sigma, out_dim=out_dim,
    )


if __name__ == "__main__":
    key = jax.random.PRNGKey(0)
    k_z, k_p = jax.random.split(key)

    T, B = 8, 32           # sequence length, batch (T*batch_block = 128 MXU rows)
    middle_dim = 512       # share() feature width fed to fc1 (module default)
    hidden = 256           # hidden_layer_size: fc2 out / GRU in / GRU hidden
    out_dim = 2            # action dimension

    params = init_params(k_p, middle_dim, out_dim, fc1_out=512, hidden=hidden)
    z = jax.random.normal(k_z, (T, B, middle_dim), dtype=jnp.float32)
    h0 = jnp.zeros((B, hidden), jnp.float32)   # rnn_hidden = None -> zeros

    # --- f32 compute path (tolerance covers the approx EUP reciprocal) ------
    mu, sigma, h_last = recurrent_actor_head(z, h0, params, batch_block=16)
    mu, sigma, h_last = jax.block_until_ready((mu, sigma, h_last))

    mu_ref, sigma_ref, h_ref = _reference_head(z, h0, params)

    assert mu.shape == (T, B, out_dim)
    assert sigma.shape == (T, B, out_dim)
    assert h_last.shape == (B, hidden)
    assert jnp.allclose(mu, mu_ref, atol=1e-2, rtol=1e-2)
    assert jnp.allclose(h_last, h_ref, atol=1e-2, rtol=1e-2)
    assert jnp.allclose(sigma, sigma_ref, atol=1e-5, rtol=1e-5)

    # --- bf16 weights/activations path (v5e/v6e/v7x feedback): f32 accumulate,
    #     bf16-class tolerance ------------------------------------------------
    mu_b, sigma_b, h_b = recurrent_actor_head(
        z, h0, params, compute_dtype=jnp.bfloat16, batch_block=16)
    mu_b, sigma_b, h_b = jax.block_until_ready((mu_b, sigma_b, h_b))
    assert jnp.allclose(mu_b, mu_ref, atol=2e-2, rtol=2e-2)
    assert jnp.allclose(h_b, h_ref, atol=1e-1, rtol=1e-1)
    assert jnp.allclose(sigma_b, sigma_ref, atol=1e-5, rtol=1e-5)

    print("KERNEL_OK")
</pallas_src>

<mosaic_0001>
module attributes {stable_mosaic.version = 11 : i64} {
  func.func @_actor_head_kernel(%arg0: i32, %arg1: memref<8x16x512xf32, #tpu.memory_space<vmem>>, %arg2: memref<16x256xf32, #tpu.memory_space<vmem>>, %arg3: memref<512x512xf32, #tpu.memory_space<vmem>>, %arg4: memref<1x512xf32, #tpu.memory_space<vmem>>, %arg5: memref<512x256xf32, #tpu.memory_space<vmem>>, %arg6: memref<1x256xf32, #tpu.memory_space<vmem>>, %arg7: memref<256x768xf32, #tpu.memory_space<vmem>>, %arg8: memref<256x768xf32, #tpu.memory_space<vmem>>, %arg9: memref<1x768xf32, #tpu.memory_space<vmem>>, %arg10: memref<1x768xf32, #tpu.memory_space<vmem>>, %arg11: memref<256x128xf32, #tpu.memory_space<vmem>>, %arg12: memref<1x128xf32, #tpu.memory_space<vmem>>, %arg13: memref<8x16x128xf32, #tpu.memory_space<vmem>>, %arg14: memref<16x256xf32, #tpu.memory_space<vmem>>, %arg15: memref<8x16x768xf32, #tpu.memory_space<vmem>>, %arg16: memref<8x16x256xf32, #tpu.memory_space<vmem>>) attributes {dimension_semantics = [#tpu.dimension_semantics<parallel>], iteration_bounds = array<i64: 2>, scalar_prefetch = 0 : i64, scratch_operands = 2 : i64, tpu.core_type = #tpu.core_type<tc>, window_params = [{transform_indices = @transform_0, window_bounds = array<i64: 8, 16, 512>}, {transform_indices = @transform_1, window_bounds = array<i64: 16, 256>}, {pipeline_mode = #tpu.pipeline_mode<synchronous>, transform_indices = @transform_2, window_bounds = array<i64: 512, 512>}, {pipeline_mode = #tpu.pipeline_mode<synchronous>, transform_indices = @transform_3, window_bounds = array<i64: 1, 512>}, {pipeline_mode = #tpu.pipeline_mode<synchronous>, transform_indices = @transform_4, window_bounds = array<i64: 512, 256>}, {pipeline_mode = #tpu.pipeline_mode<synchronous>, transform_indices = @transform_5, window_bounds = array<i64: 1, 256>}, {pipeline_mode = #tpu.pipeline_mode<synchronous>, transform_indices = @transform_6, window_bounds = array<i64: 256, 768>}, {pipeline_mode = #tpu.pipeline_mode<synchronous>, transform_indices = @transform_7, window_bounds = array<i64: 256, 768>}, {pipeline_mode = #tpu.pipeline_mode<synchronous>, transform_indices = @transform_8, window_bounds = array<i64: 1, 768>}, {pipeline_mode = #tpu.pipeline_mode<synchronous>, transform_indices = @transform_9, window_bounds = array<i64: 1, 768>}, {pipeline_mode = #tpu.pipeline_mode<synchronous>, transform_indices = @transform_10, window_bounds = array<i64: 256, 128>}, {pipeline_mode = #tpu.pipeline_mode<synchronous>, transform_indices = @transform_11, window_bounds = array<i64: 1, 128>}, {transform_indices = @transform_12, window_bounds = array<i64: 8, 16, 128>}, {transform_indices = @transform_13, window_bounds = array<i64: 16, 256>}]} {
    %c0 = arith.constant 0 : index
    %c0_0 = arith.constant 0 : index
    %c0_1 = arith.constant 0 : index
    %0 = vector.load %arg1[%c0, %c0_0, %c0_1] : memref<8x16x512xf32, #tpu.memory_space<vmem>>, vector<8x16x512xf32>
    %1 = vector.shape_cast %0 : vector<8x16x512xf32> to vector<128x512xf32>
    %c0_2 = arith.constant 0 : index
    %c0_3 = arith.constant 0 : index
    %2 = vector.load %arg3[%c0_2, %c0_3] : memref<512x512xf32, #tpu.memory_space<vmem>>, vector<512x512xf32>
    %cst = arith.constant dense<0.000000e+00> : vector<128x512xf32>
    %3 = tpu.matmul %1, %2, %cst {dimension_numbers = #tpu.dot_dimension_numbers<[1], [0], [0], [1], [0, 0, 1, 1], [], []>} : vector<128x512xf32>, vector<512x512xf32>, vector<128x512xf32> -> vector<128x512xf32>
    %c0_4 = arith.constant 0 : index
    %c0_5 = arith.constant 0 : index
    %4 = vector.load %arg4[%c0_4, %c0_5] : memref<1x512xf32, #tpu.memory_space<vmem>>, vector<1x512xf32>
    %5 = vector.broadcast %4 : vector<1x512xf32> to vector<128x512xf32>
    %6 = arith.addf %3, %5 : vector<128x512xf32>
    %7 = math.tanh %6 : vector<128x512xf32>
    %c0_6 = arith.constant 0 : index
    %c0_7 = arith.constant 0 : index
    %8 = vector.load %arg5[%c0_6, %c0_7] : memref<512x256xf32, #tpu.memory_space<vmem>>, vector<512x256xf32>
    %cst_8 = arith.constant dense<0.000000e+00> : vector<128x256xf32>
    %9 = tpu.matmul %7, %8, %cst_8 {dimension_numbers = #tpu.dot_dimension_numbers<[1], [0], [0], [1], [0, 0, 1, 1], [], []>} : vector<128x512xf32>, vector<512x256xf32>, vector<128x256xf32> -> vector<128x256xf32>
    %c0_9 = arith.constant 0 : index
    %c0_10 = arith.constant 0 : index
    %10 = vector.load %arg6[%c0_9, %c0_10] : memref<1x256xf32, #tpu.memory_space<vmem>>, vector<1x256xf32>
    %11 = vector.broadcast %10 : vector<1x256xf32> to vector<128x256xf32>
    %12 = arith.addf %9, %11 : vector<128x256xf32>
    %13 = math.tanh %12 : vector<128x256xf32>
    %c0_11 = arith.constant 0 : index
    %c0_12 = arith.constant 0 : index
    %14 = vector.load %arg7[%c0_11, %c0_12] : memref<256x768xf32, #tpu.memory_space<vmem>>, vector<256x768xf32>
    %cst_13 = arith.constant dense<0.000000e+00> : vector<128x768xf32>
    %15 = tpu.matmul %13, %14, %cst_13 {dimension_numbers = #tpu.dot_dimension_numbers<[1], [0], [0], [1], [0, 0, 1, 1], [], []>} : vector<128x256xf32>, vector<256x768xf32>, vector<128x768xf32> -> vector<128x768xf32>
    %c0_14 = arith.constant 0 : index
    %c0_15 = arith.constant 0 : index
    %16 = vector.load %arg9[%c0_14, %c0_15] : memref<1x768xf32, #tpu.memory_space<vmem>>, vector<1x768xf32>
    %17 = vector.broadcast %16 : vector<1x768xf32> to vector<128x768xf32>
    %18 = arith.addf %15, %17 : vector<128x768xf32>
    %19 = vector.shape_cast %18 : vector<128x768xf32> to vector<8x16x768xf32>
    %c0_16 = arith.constant 0 : index
    %c0_17 = arith.constant 0 : index
    %c0_18 = arith.constant 0 : index
    %20 = vector.load %arg15[%c0_16, %c0_17, %c0_18] : memref<8x16x768xf32, #tpu.memory_space<vmem>>, vector<8x16x768xf32>
    tpu.vector_store %arg15[%c0_16, %c0_17, %c0_18], %19 {strides = array<i32>} : memref<8x16x768xf32, #tpu.memory_space<vmem>>, vector<8x16x768xf32>,
    %c0_19 = arith.constant 0 : index
    %c0_20 = arith.constant 0 : index
    %21 = vector.load %arg2[%c0_19, %c0_20] : memref<16x256xf32, #tpu.memory_space<vmem>>, vector<16x256xf32>
    %c0_i32 = arith.constant 0 : i32
    %22 = arith.index_cast %c0_i32 : i32 to index
    %c0_21 = arith.constant 0 : index
    %c0_22 = arith.constant 0 : index
    %23 = vector.load %arg15[%22, %c0_21, %c0_22] : memref<8x16x768xf32, #tpu.memory_space<vmem>>, vector<1x16x768xf32>
    %24 = vector.shape_cast %23 : vector<1x16x768xf32> to vector<16x768xf32>
    %c0_23 = arith.constant 0 : index
    %c0_24 = arith.constant 0 : index
    %25 = vector.load %arg8[%c0_23, %c0_24] : memref<256x768xf32, #tpu.memory_space<vmem>>, vector<256x768xf32>
    %cst_25 = arith.constant dense<0.000000e+00> : vector<16x768xf32>
    %26 = tpu.matmul %21, %25, %cst_25 {dimension_numbers = #tpu.dot_dimension_numbers<[1], [0], [0], [1], [0, 0, 1, 1], [], []>} : vector<16x256xf32>, vector<256x768xf32>, vector<16x768xf32> -> vector<16x768xf32>
    %c0_26 = arith.constant 0 : index
    %c0_27 = arith.constant 0 : index
    %27 = vector.load %arg10[%c0_26, %c0_27] : memref<1x768xf32, #tpu.memory_space<vmem>>, vector<1x768xf32>
    %28 = vector.broadcast %27 : vector<1x768xf32> to vector<16x768xf32>
    %29 = arith.addf %26, %28 : vector<16x768xf32>
    %30 = vector.extract_strided_slice %24 {offsets = [0, 0], sizes = [16, 256], strides = [1, 1]} : vector<16x768xf32> to vector<16x256xf32>
    %31 = vector.extract_strided_slice %29 {offsets = [0, 0], sizes = [16, 256], strides = [1, 1]} : vector<16x768xf32> to vector<16x256xf32>
    %32 = arith.addf %30, %31 : vector<16x256xf32>
    %cst_28 = arith.constant 0.000000e+00 : f32
    %33 = vector.broadcast %cst_28 : f32 to vector<16x256xf32>
    %34 = arith.subf %33, %32 : vector<16x256xf32>
    %35 = math.exp %34 : vector<16x256xf32>
    %cst_29 = arith.constant 1.000000e+00 : f32
    %36 = vector.broadcast %cst_29 : f32 to vector<16x256xf32>
    %37 = arith.addf %36, %35 : vector<16x256xf32>
    %38 = tpu.reciprocal %37 {approx = true} : vector<16x256xf32> -> vector<16x256xf32>
    %39 = vector.extract_strided_slice %24 {offsets = [0, 256], sizes = [16, 256], strides = [1, 1]} : vector<16x768xf32> to vector<16x256xf32>
    %40 = vector.extract_strided_slice %29 {offsets = [0, 256], sizes = [16, 256], strides = [1, 1]} : vector<16x768xf32> to vector<16x256xf32>
    %41 = arith.addf %39, %40 : vector<16x256xf32>
    %cst_30 = arith.constant 0.000000e+00 : f32
    %42 = vector.broadcast %cst_30 : f32 to vector<16x256xf32>
    %43 = arith.subf %42, %41 : vector<16x256xf32>
    %44 = math.exp %43 : vector<16x256xf32>
    %cst_31 = arith.constant 1.000000e+00 : f32
    %45 = vector.broadcast %cst_31 : f32 to vector<16x256xf32>
    %46 = arith.addf %45, %44 : vector<16x256xf32>
    %47 = tpu.reciprocal %46 {approx = true} : vector<16x256xf32> -> vector<16x256xf32>
    %48 = vector.extract_strided_slice %24 {offsets = [0, 512], sizes = [16, 256], strides = [1, 1]} : vector<16x768xf32> to vector<16x256xf32>
    %49 = vector.extract_strided_slice %29 {offsets = [0, 512], sizes = [16, 256], strides = [1, 1]} : vector<16x768xf32> to vector<16x256xf32>
    %50 = arith.mulf %38, %49 : vector<16x256xf32>
    %51 = arith.addf %48, %50 : vector<16x256xf32>
    %52 = math.tanh %51 : vector<16x256xf32>
    %cst_32 = arith.constant 1.000000e+00 : f32
    %53 = vector.broadcast %cst_32 : f32 to vector<16x256xf32>
    %54 = arith.subf %53, %47 : vector<16x256xf32>
    %55 = arith.mulf %54, %52 : vector<16x256xf32>
    %56 = arith.mulf %47, %21 : vector<16x256xf32>
    %57 = arith.addf %55, %56 : vector<16x256xf32>
    %58 = arith.index_cast %c0_i32 : i32 to index
    %c0_33 = arith.constant 0 : index
    %c0_34 = arith.constant 0 : index
    %59 = vector.load %arg16[%58, %c0_33, %c0_34] : memref<8x16x256xf32, #tpu.memory_space<vmem>>, vector<1x16x256xf32>
    %60 = vector.shape_cast %59 : vector<1x16x256xf32> to vector<16x256xf32>
    %61 = vector.shape_cast %57 : vector<16x256xf32> to vector<1x16x256xf32>
    tpu.vector_store %arg16[%58, %c0_33, %c0_34], %61 {strides = array<i32>} : memref<8x16x256xf32, #tpu.memory_space<vmem>>, vector<1x16x256xf32>,
    %c1_i32 = arith.constant 1 : i32
    %62 = arith.index_cast %c1_i32 : i32 to index
    %c0_35 = arith.constant 0 : index
    %c0_36 = arith.constant 0 : index
    %63 = vector.load %arg15[%62, %c0_35, %c0_36] : memref<8x16x768xf32, #tpu.memory_space<vmem>>, vector<1x16x768xf32>
    %64 = vector.shape_cast %63 : vector<1x16x768xf32> to vector<16x768xf32>
    %c0_37 = arith.constant 0 : index
    %c0_38 = arith.constant 0 : index
    %65 = vector.load %arg8[%c0_37, %c0_38] : memref<256x768xf32, #tpu.memory_space<vmem>>, vector<256x768xf32>
    %cst_39 = arith.constant dense<0.000000e+00> : vector<16x768xf32>
    %66 = tpu.matmul %57, %65, %cst_39 {dimension_numbers = #tpu.dot_dimension_numbers<[1], [0], [0], [1], [0, 0, 1, 1], [], []>} : vector<16x256xf32>, vector<256x768xf32>, vector<16x768xf32> -> vector<16x768xf32>
    %c0_40 = arith.constant 0 : index
    %c0_41 = arith.constant 0 : index
    %67 = vector.load %arg10[%c0_40, %c0_41] : memref<1x768xf32, #tpu.memory_space<vmem>>, vector<1x768xf32>
    %68 = vector.broadcast %67 : vector<1x768xf32> to vector<16x768xf32>
    %69 = arith.addf %66, %68 : vector<16x768xf32>
    %70 = vector.extract_strided_slice %64 {offsets = [0, 0], sizes = [16, 256], strides = [1, 1]} : vector<16x768xf32> to vector<16x256xf32>
    %71 = vector.extract_strided_slice %69 {offsets = [0, 0], sizes = [16, 256], strides = [1, 1]} : vector<16x768xf32> to vector<16x256xf32>
    %72 = arith.addf %70, %71 : vector<16x256xf32>
    %cst_42 = arith.constant 0.000000e+00 : f32
    %73 = vector.broadcast %cst_42 : f32 to vector<16x256xf32>
    %74 = arith.subf %73, %72 : vector<16x256xf32>
    %75 = math.exp %74 : vector<16x256xf32>
    %cst_43 = arith.constant 1.000000e+00 : f32
    %76 = vector.broadcast %cst_43 : f32 to vector<16x256xf32>
    %77 = arith.addf %76, %75 : vector<16x256xf32>
    %78 = tpu.reciprocal %77 {approx = true} : vector<16x256xf32> -> vector<16x256xf32>
    %79 = vector.extract_strided_slice %64 {offsets = [0, 256], sizes = [16, 256], strides = [1, 1]} : vector<16x768xf32> to vector<16x256xf32>
    %80 = vector.extract_strided_slice %69 {offsets = [0, 256], sizes = [16, 256], strides = [1, 1]} : vector<16x768xf32> to vector<16x256xf32>
    %81 = arith.addf %79, %80 : vector<16x256xf32>
    %cst_44 = arith.constant 0.000000e+00 : f32
    %82 = vector.broadcast %cst_44 : f32 to vector<16x256xf32>
    %83 = arith.subf %82, %81 : vector<16x256xf32>
    %84 = math.exp %83 : vector<16x256xf32>
    %cst_45 = arith.constant 1.000000e+00 : f32
    %85 = vector.broadcast %cst_45 : f32 to vector<16x256xf32>
    %86 = arith.addf %85, %84 : vector<16x256xf32>
    %87 = tpu.reciprocal %86 {approx = true} : vector<16x256xf32> -> vector<16x256xf32>
    %88 = vector.extract_strided_slice %64 {offsets = [0, 512], sizes = [16, 256], strides = [1, 1]} : vector<16x768xf32> to vector<16x256xf32>
    %89 = vector.extract_strided_slice %69 {offsets = [0, 512], sizes = [16, 256], strides = [1, 1]} : vector<16x768xf32> to vector<16x256xf32>
    %90 = arith.mulf %78, %89 : vector<16x256xf32>
    %91 = arith.addf %88, %90 : vector<16x256xf32>
    %92 = math.tanh %91 : vector<16x256xf32>
    %cst_46 = arith.constant 1.000000e+00 : f32
    %93 = vector.broadcast %cst_46 : f32 to vector<16x256xf32>
    %94 = arith.subf %93, %87 : vector<16x256xf32>
    %95 = arith.mulf %94, %92 : vector<16x256xf32>
    %96 = arith.mulf %87, %57 : vector<16x256xf32>
    %97 = arith.addf %95, %96 : vector<16x256xf32>
    %98 = arith.index_cast %c1_i32 : i32 to index
    %c0_47 = arith.constant 0 : index
    %c0_48 = arith.constant 0 : index
    %99 = vector.load %arg16[%98, %c0_47, %c0_48] : memref<8x16x256xf32, #tpu.memory_space<vmem>>, vector<1x16x256xf32>
    %100 = vector.shape_cast %99 : vector<1x16x256xf32> to vector<16x256xf32>
    %101 = vector.shape_cast %97 : vector<16x256xf32> to vector<1x16x256xf32>
    tpu.vector_store %arg16[%98, %c0_47, %c0_48], %101 {strides = array<i32>} : memref<8x16x256xf32, #tpu.memory_space<vmem>>, vector<1x16x256xf32>,
    %c2_i32 = arith.constant 2 : i32
    %102 = arith.index_cast %c2_i32 : i32 to index
    %c0_49 = arith.constant 0 : index
    %c0_50 = arith.constant 0 : index
    %103 = vector.load %arg15[%102, %c0_49, %c0_50] : memref<8x16x768xf32, #tpu.memory_space<vmem>>, vector<1x16x768xf32>
    %104 = vector.shape_cast %103 : vector<1x16x768xf32> to vector<16x768xf32>
    %c0_51 = arith.constant 0 : index
    %c0_52 = arith.constant 0 : index
    %105 = vector.load %arg8[%c0_51, %c0_52] : memref<256x768xf32, #tpu.memory_space<vmem>>, vector<256x768xf32>
    %cst_53 = arith.constant dense<0.000000e+00> : vector<16x768xf32>
    %106 = tpu.matmul %97, %105, %cst_53 {dimension_numbers = #tpu.dot_dimension_numbers<[1], [0], [0], [1], [0, 0, 1, 1], [], []>} : vector<16x256xf32>, vector<256x768xf32>, vector<16x768xf32> -> vector<16x768xf32>
    %c0_54 = arith.constant 0 : index
    %c0_55 = arith.constant 0 : index
    %107 = vector.load %arg10[%c0_54, %c0_55] : memref<1x768xf32, #tpu.memory_space<vmem>>, vector<1x768xf32>
    %108 = vector.broadcast %107 : vector<1x768xf32> to vector<16x768xf32>
    %109 = arith.addf %106, %108 : vector<16x768xf32>
    %110 = vector.extract_strided_slice %104 {offsets = [0, 0], sizes = [16, 256], strides = [1, 1]} : vector<16x768xf32> to vector<16x256xf32>
    %111 = vector.extract_strided_slice %109 {offsets = [0, 0], sizes = [16, 256], strides = [1, 1]} : vector<16x768xf32> to vector<16x256xf32>
    %112 = arith.addf %110, %111 : vector<16x256xf32>
    %cst_56 = arith.constant 0.000000e+00 : f32
    %113 = vector.broadcast %cst_56 : f32 to vector<16x256xf32>
    %114 = arith.subf %113, %112 : vector<16x256xf32>
    %115 = math.exp %114 : vector<16x256xf32>
    %cst_57 = arith.constant 1.000000e+00 : f32
    %116 = vector.broadcast %cst_57 : f32 to vector<16x256xf32>
    %117 = arith.addf %116, %115 : vector<16x256xf32>
    %118 = tpu.reciprocal %117 {approx = true} : vector<16x256xf32> -> vector<16x256xf32>
    %119 = vector.extract_strided_slice %104 {offsets = [0, 256], sizes = [16, 256], strides = [1, 1]} : vector<16x768xf32> to vector<16x256xf32>
    %120 = vector.extract_strided_slice %109 {offsets = [0, 256], sizes = [16, 256], strides = [1, 1]} : vector<16x768xf32> to vector<16x256xf32>
    %121 = arith.addf %119, %120 : vector<16x256xf32>
    %cst_58 = arith.constant 0.000000e+00 : f32
    %122 = vector.broadcast %cst_58 : f32 to vector<16x256xf32>
    %123 = arith.subf %122, %121 : vector<16x256xf32>
    %124 = math.exp %123 : vector<16x256xf32>
    %cst_59 = arith.constant 1.000000e+00 : f32
    %125 = vector.broadcast %cst_59 : f32 to vector<16x256xf32>
    %126 = arith.addf %125, %124 : vector<16x256xf32>
    %127 = tpu.reciprocal %126 {approx = true} : vector<16x256xf32> -> vector<16x256xf32>
    %128 = vector.extract_strided_slice %104 {offsets = [0, 512], sizes = [16, 256], strides = [1, 1]} : vector<16x768xf32> to vector<16x256xf32>
    %129 = vector.extract_strided_slice %109 {offsets = [0, 512], sizes = [16, 256], strides = [1, 1]} : vector<16x768xf32> to vector<16x256xf32>
    %130 = arith.mulf %118, %129 : vector<16x256xf32>
    %131 = arith.addf %128, %130 : vector<16x256xf32>
    %132 = math.tanh %131 : vector<16x256xf32>
    %cst_60 = arith.constant 1.000000e+00 : f32
    %133 = vector.broadcast %cst_60 : f32 to vector<16x256xf32>
    %134 = arith.subf %133, %127 : vector<16x256xf32>
    %135 = arith.mulf %134, %132 : vector<16x256xf32>
    %136 = arith.mulf %127, %97 : vector<16x256xf32>
    %137 = arith.addf %135, %136 : vector<16x256xf32>
    %138 = arith.index_cast %c2_i32 : i32 to index
    %c0_61 = arith.constant 0 : index
    %c0_62 = arith.constant 0 : index
    %139 = vector.load %arg16[%138, %c0_61, %c0_62] : memref<8x16x256xf32, #tpu.memory_space<vmem>>, vector<1x16x256xf32>
    %140 = vector.shape_cast %139 : vector<1x16x256xf32> to vector<16x256xf32>
    %141 = vector.shape_cast %137 : vector<16x256xf32> to vector<1x16x256xf32>
    tpu.vector_store %arg16[%138, %c0_61, %c0_62], %141 {strides = array<i32>} : memref<8x16x256xf32, #tpu.memory_space<vmem>>, vector<1x16x256xf32>,
    %c3_i32 = arith.constant 3 : i32
    %142 = arith.index_cast %c3_i32 : i32 to index
    %c0_63 = arith.constant 0 : index
    %c0_64 = arith.constant 0 : index
    %143 = vector.load %arg15[%142, %c0_63, %c0_64] : memref<8x16x768xf32, #tpu.memory_space<vmem>>, vector<1x16x768xf32>
    %144 = vector.shape_cast %143 : vector<1x16x768xf32> to vector<16x768xf32>
    %c0_65 = arith.constant 0 : index
    %c0_66 = arith.constant 0 : index
    %145 = vector.load %arg8[%c0_65, %c0_66] : memref<256x768xf32, #tpu.memory_space<vmem>>, vector<256x768xf32>
    %cst_67 = arith.constant dense<0.000000e+00> : vector<16x768xf32>
    %146 = tpu.matmul %137, %145, %cst_67 {dimension_numbers = #tpu.dot_dimension_numbers<[1], [0], [0], [1], [0, 0, 1, 1], [], []>} : vector<16x256xf32>, vector<256x768xf32>, vector<16x768xf32> -> vector<16x768xf32>
    %c0_68 = arith.constant 0 : index
    %c0_69 = arith.constant 0 : index
    %147 = vector.load %arg10[%c0_68, %c0_69] : memref<1x768xf32, #tpu.memory_space<vmem>>, vector<1x768xf32>
    %148 = vector.broadcast %147 : vector<1x768xf32> to vector<16x768xf32>
    %149 = arith.addf %146, %148 : vector<16x768xf32>
    %150 = vector.extract_strided_slice %144 {offsets = [0, 0], sizes = [16, 256], strides = [1, 1]} : vector<16x768xf32> to vector<16x256xf32>
    %151 = vector.extract_strided_slice %149 {offsets = [0, 0], sizes = [16, 256], strides = [1, 1]} : vector<16x768xf32> to vector<16x256xf32>
    %152 = arith.addf %150, %151 : vector<16x256xf32>
    %cst_70 = arith.constant 0.000000e+00 : f32
    %153 = vector.broadcast %cst_70 : f32 to vector<16x256xf32>
    %154 = arith.subf %153, %152 : vector<16x256xf32>
    %155 = math.exp %154 : vector<16x256xf32>
    %cst_71 = arith.constant 1.000000e+00 : f32
    %156 = vector.broadcast %cst_71 : f32 to vector<16x256xf32>
    %157 = arith.addf %156, %155 : vector<16x256xf32>
    %158 = tpu.reciprocal %157 {approx = true} : vector<16x256xf32> -> vector<16x256xf32>
    %159 = vector.extract_strided_slice %144 {offsets = [0, 256], sizes = [16, 256], strides = [1, 1]} : vector<16x768xf32> to vector<16x256xf32>
    %160 = vector.extract_strided_slice %149 {offsets = [0, 256], sizes = [16, 256], strides = [1, 1]} : vector<16x768xf32> to vector<16x256xf32>
    %161 = arith.addf %159, %160 : vector<16x256xf32>
    %cst_72 = arith.constant 0.000000e+00 : f32
    %162 = vector.broadcast %cst_72 : f32 to vector<16x256xf32>
    %163 = arith.subf %162, %161 : vector<16x256xf32>
    %164 = math.exp %163 : vector<16x256xf32>
    %cst_73 = arith.constant 1.000000e+00 : f32
    %165 = vector.broadcast %cst_73 : f32 to vector<16x256xf32>
    %166 = arith.addf %165, %164 : vector<16x256xf32>
    %167 = tpu.reciprocal %166 {approx = true} : vector<16x256xf32> -> vector<16x256xf32>
    %168 = vector.extract_strided_slice %144 {offsets = [0, 512], sizes = [16, 256], strides = [1, 1]} : vector<16x768xf32> to vector<16x256xf32>
    %169 = vector.extract_strided_slice %149 {offsets = [0, 512], sizes = [16, 256], strides = [1, 1]} : vector<16x768xf32> to vector<16x256xf32>
    %170 = arith.mulf %158, %169 : vector<16x256xf32>
    %171 = arith.addf %168, %170 : vector<16x256xf32>
    %172 = math.tanh %171 : vector<16x256xf32>
    %cst_74 = arith.constant 1.000000e+00 : f32
    %173 = vector.broadcast %cst_74 : f32 to vector<16x256xf32>
    %174 = arith.subf %173, %167 : vector<16x256xf32>
    %175 = arith.mulf %174, %172 : vector<16x256xf32>
    %176 = arith.mulf %167, %137 : vector<16x256xf32>
    %177 = arith.addf %175, %176 : vector<16x256xf32>
    %178 = arith.index_cast %c3_i32 : i32 to index
    %c0_75 = arith.constant 0 : index
    %c0_76 = arith.constant 0 : index
    %179 = vector.load %arg16[%178, %c0_75, %c0_76] : memref<8x16x256xf32, #tpu.memory_space<vmem>>, vector<1x16x256xf32>
    %180 = vector.shape_cast %179 : vector<1x16x256xf32> to vector<16x256xf32>
    %181 = vector.shape_cast %177 : vector<16x256xf32> to vector<1x16x256xf32>
    tpu.vector_store %arg16[%178, %c0_75, %c0_76], %181 {strides = array<i32>} : memref<8x16x256xf32, #tpu.memory_space<vmem>>, vector<1x16x256xf32>,
    %c4_i32 = arith.constant 4 : i32
    %182 = arith.index_cast %c4_i32 : i32 to index
    %c0_77 = arith.constant 0 : index
    %c0_78 = arith.constant 0 : index
    %183 = vector.load %arg15[%182, %c0_77, %c0_78] : memref<8x16x768xf32, #tpu.memory_space<vmem>>, vector<1x16x768xf32>
    %184 = vector.shape_cast %183 : vector<1x16x768xf32> to vector<16x768xf32>
    %c0_79 = arith.constant 0 : index
    %c0_80 = arith.constant 0 : index
    %185 = vector.load %arg8[%c0_79, %c0_80] : memref<256x768xf32, #tpu.memory_space<vmem>>, vector<256x768xf32>
    %cst_81 = arith.constant dense<0.000000e+00> : vector<16x768xf32>
    %186 = tpu.matmul %177, %185, %cst_81 {dimension_numbers = #tpu.dot_dimension_numbers<[1], [0], [0], [1], [0, 0, 1, 1], [], []>} : vector<16x256xf32>, vector<256x768xf32>, vector<16x768xf32> -> vector<16x768xf32>
    %c0_82 = arith.constant 0 : index
    %c0_83 = arith.constant 0 : index
    %187 = vector.load %arg10[%c0_82, %c0_83] : memref<1x768xf32, #tpu.memory_space<vmem>>, vector<1x768xf32>
    %188 = vector.broadcast %187 : vector<1x768xf32> to vector<16x768xf32>
    %189 = arith.addf %186, %188 : vector<16x768xf32>
    %190 = vector.extract_strided_slice %184 {offsets = [0, 0], sizes = [16, 256], strides = [1, 1]} : vector<16x768xf32> to vector<16x256xf32>
    %191 = vector.extract_strided_slice %189 {offsets = [0, 0], sizes = [16, 256], strides = [1, 1]} : vector<16x768xf32> to vector<16x256xf32>
    %192 = arith.addf %190, %191 : vector<16x256xf32>
    %cst_84 = arith.constant 0.000000e+00 : f32
    %193 = vector.broadcast %cst_84 : f32 to vector<16x256xf32>
    %194 = arith.subf %193, %192 : vector<16x256xf32>
    %195 = math.exp %194 : vector<16x256xf32>
    %cst_85 = arith.constant 1.000000e+00 : f32
    %196 = vector.broadcast %cst_85 : f32 to vector<16x256xf32>
    %197 = arith.addf %196, %195 : vector<16x256xf32>
    %198 = tpu.reciprocal %197 {approx = true} : vector<16x256xf32> -> vector<16x256xf32>
    %199 = vector.extract_strided_slice %184 {offsets = [0, 256], sizes = [16, 256], strides = [1, 1]} : vector<16x768xf32> to vector<16x256xf32>
    %200 = vector.extract_strided_slice %189 {offsets = [0, 256], sizes = [16, 256], strides = [1, 1]} : vector<16x768xf32> to vector<16x256xf32>
    %201 = arith.addf %199, %200 : vector<16x256xf32>
    %cst_86 = arith.constant 0.000000e+00 : f32
    %202 = vector.broadcast %cst_86 : f32 to vector<16x256xf32>
    %203 = arith.subf %202, %201 : vector<16x256xf32>
    %204 = math.exp %203 : vector<16x256xf32>
    %cst_87 = arith.constant 1.000000e+00 : f32
    %205 = vector.broadcast %cst_87 : f32 to vector<16x256xf32>
    %206 = arith.addf %205, %204 : vector<16x256xf32>
    %207 = tpu.reciprocal %206 {approx = true} : vector<16x256xf32> -> vector<16x256xf32>
    %208 = vector.extract_strided_slice %184 {offsets = [0, 512], sizes = [16, 256], strides = [1, 1]} : vector<16x768xf32> to vector<16x256xf32>
    %209 = vector.extract_strided_slice %189 {offsets = [0, 512], sizes = [16, 256], strides = [1, 1]} : vector<16x768xf32> to vector<16x256xf32>
    %210 = arith.mulf %198, %209 : vector<16x256xf32>
    %211 = arith.addf %208, %210 : vector<16x256xf32>
    %212 = math.tanh %211 : vector<16x256xf32>
    %cst_88 = arith.constant 1.000000e+00 : f32
    %213 = vector.broadcast %cst_88 : f32 to vector<16x256xf32>
    %214 = arith.subf %213, %207 : vector<16x256xf32>
    %215 = arith.mulf %214, %212 : vector<16x256xf32>
    %216 = arith.mulf %207, %177 : vector<16x256xf32>
    %217 = arith.addf %215, %216 : vector<16x256xf32>
    %218 = arith.index_cast %c4_i32 : i32 to index
    %c0_89 = arith.constant 0 : index
    %c0_90 = arith.constant 0 : index
    %219 = vector.load %arg16[%218, %c0_89, %c0_90] : memref<8x16x256xf32, #tpu.memory_space<vmem>>, vector<1x16x256xf32>
    %220 = vector.shape_cast %219 : vector<1x16x256xf32> to vector<16x256xf32>
    %221 = vector.shape_cast %217 : vector<16x256xf32> to vector<1x16x256xf32>
    tpu.vector_store %arg16[%218, %c0_89, %c0_90], %221 {strides = array<i32>} : memref<8x16x256xf32, #tpu.memory_space<vmem>>, vector<1x16x256xf32>,
    %c5_i32 = arith.constant 5 : i32
    %222 = arith.index_cast %c5_i32 : i32 to index
    %c0_91 = arith.constant 0 : index
    %c0_92 = arith.constant 0 : index
    %223 = vector.load %arg15[%222, %c0_91, %c0_92] : memref<8x16x768xf32, #tpu.memory_space<vmem>>, vector<1x16x768xf32>
    %224 = vector.shape_cast %223 : vector<1x16x768xf32> to vector<16x768xf32>
    %c0_93 = arith.constant 0 : index
    %c0_94 = arith.constant 0 : index
    %225 = vector.load %arg8[%c0_93, %c0_94] : memref<256x768xf32, #tpu.memory_space<vmem>>, vector<256x768xf32>
    %cst_95 = arith.constant dense<0.000000e+00> : vector<16x768xf32>
    %226 = tpu.matmul %217, %225, %cst_95 {dimension_numbers = #tpu.dot_dimension_numbers<[1], [0], [0], [1], [0, 0, 1, 1], [], []>} : vector<16x256xf32>, vector<256x768xf32>, vector<16x768xf32> -> vector<16x768xf32>
    %c0_96 = arith.constant 0 : index
    %c0_97 = arith.constant 0 : index
    %227 = vector.load %arg10[%c0_96, %c0_97] : memref<1x768xf32, #tpu.memory_space<vmem>>, vector<1x768xf32>
    %228 = vector.broadcast %227 : vector<1x768xf32> to vector<16x768xf32>
    %229 = arith.addf %226, %228 : vector<16x768xf32>
    %230 = vector.extract_strided_slice %224 {offsets = [0, 0], sizes = [16, 256], strides = [1, 1]} : vector<16x768xf32> to vector<16x256xf32>
    %231 = vector.extract_strided_slice %229 {offsets = [0, 0], sizes = [16, 256], strides = [1, 1]} : vector<16x768xf32> to vector<16x256xf32>
    %232 = arith.addf %230, %231 : vector<16x256xf32>
    %cst_98 = arith.constant 0.000000e+00 : f32
    %233 = vector.broadcast %cst_98 : f32 to vector<16x256xf32>
    %234 = arith.subf %233, %232 : vector<16x256xf32>
    %235 = math.exp %234 : vector<16x256xf32>
    %cst_99 = arith.constant 1.000000e+00 : f32
    %236 = vector.broadcast %cst_99 : f32 to vector<16x256xf32>
    %237 = arith.addf %236, %235 : vector<16x256xf32>
    %238 = tpu.reciprocal %237 {approx = true} : vector<16x256xf32> -> vector<16x256xf32>
    %239 = vector.extract_strided_slice %224 {offsets = [0, 256], sizes = [16, 256], strides = [1, 1]} : vector<16x768xf32> to vector<16x256xf32>
    %240 = vector.extract_strided_slice %229 {offsets = [0, 256], sizes = [16, 256], strides = [1, 1]} : vector<16x768xf32> to vector<16x256xf32>
    %241 = arith.addf %239, %240 : vector<16x256xf32>
    %cst_100 = arith.constant 0.000000e+00 : f32
    %242 = vector.broadcast %cst_100 : f32 to vector<16x256xf32>
    %243 = arith.subf %242, %241 : vector<16x256xf32>
    %244 = math.exp %243 : vector<16x256xf32>
    %cst_101 = arith.constant 1.000000e+00 : f32
    %245 = vector.broadcast %cst_101 : f32 to vector<16x256xf32>
    %246 = arith.addf %245, %244 : vector<16x256xf32>
    %247 = tpu.reciprocal %246 {approx = true} : vector<16x256xf32> -> vector<16x256xf32>
    %248 = vector.extract_strided_slice %224 {offsets = [0, 512], sizes = [16, 256], strides = [1, 1]} : vector<16x768xf32> to vector<16x256xf32>
    %249 = vector.extract_strided_slice %229 {offsets = [0, 512], sizes = [16, 256], strides = [1, 1]} : vector<16x768xf32> to vector<16x256xf32>
    %250 = arith.mulf %238, %249 : vector<16x256xf32>
    %251 = arith.addf %248, %250 : vector<16x256xf32>
    %252 = math.tanh %251 : vector<16x256xf32>
    %cst_102 = arith.constant 1.000000e+00 : f32
    %253 = vector.broadcast %cst_102 : f32 to vector<16x256xf32>
    %254 = arith.subf %253, %247 : vector<16x256xf32>
    %255 = arith.mulf %254, %252 : vector<16x256xf32>
    %256 = arith.mulf %247, %217 : vector<16x256xf32>
    %257 = arith.addf %255, %256 : vector<16x256xf32>
    %258 = arith.index_cast %c5_i32 : i32 to index
    %c0_103 = arith.constant 0 : index
    %c0_104 = arith.constant 0 : index
    %259 = vector.load %arg16[%258, %c0_103, %c0_104] : memref<8x16x256xf32, #tpu.memory_space<vmem>>, vector<1x16x256xf32>
    %260 = vector.shape_cast %259 : vector<1x16x256xf32> to vector<16x256xf32>
    %261 = vector.shape_cast %257 : vector<16x256xf32> to vector<1x16x256xf32>
    tpu.vector_store %arg16[%258, %c0_103, %c0_104], %261 {strides = array<i32>} : memref<8x16x256xf32, #tpu.memory_space<vmem>>, vector<1x16x256xf32>,
    %c6_i32 = arith.constant 6 : i32
    %262 = arith.index_cast %c6_i32 : i32 to index
    %c0_105 = arith.constant 0 : index
    %c0_106 = arith.constant 0 : index
    %263 = vector.load %arg15[%262, %c0_105, %c0_106] : memref<8x16x768xf32, #tpu.memory_space<vmem>>, vector<1x16x768xf32>
    %264 = vector.shape_cast %263 : vector<1x16x768xf32> to vector<16x768xf32>
    %c0_107 = arith.constant 0 : index
    %c0_108 = arith.constant 0 : index
    %265 = vector.load %arg8[%c0_107, %c0_108] : memref<256x768xf32, #tpu.memory_space<vmem>>, vector<256x768xf32>
    %cst_109 = arith.constant dense<0.000000e+00> : vector<16x768xf32>
    %266 = tpu.matmul %257, %265, %cst_109 {dimension_numbers = #tpu.dot_dimension_numbers<[1], [0], [0], [1], [0, 0, 1, 1], [], []>} : vector<16x256xf32>, vector<256x768xf32>, vector<16x768xf32> -> vector<16x768xf32>
    %c0_110 = arith.constant 0 : index
    %c0_111 = arith.constant 0 : index
    %267 = vector.load %arg10[%c0_110, %c0_111] : memref<1x768xf32, #tpu.memory_space<vmem>>, vector<1x768xf32>
    %268 = vector.broadcast %267 : vector<1x768xf32> to vector<16x768xf32>
    %269 = arith.addf %266, %268 : vector<16x768xf32>
    %270 = vector.extract_strided_slice %264 {offsets = [0, 0], sizes = [16, 256], strides = [1, 1]} : vector<16x768xf32> to vector<16x256xf32>
    %271 = vector.extract_strided_slice %269 {offsets = [0, 0], sizes = [16, 256], strides = [1, 1]} : vector<16x768xf32> to vector<16x256xf32>
    %272 = arith.addf %270, %271 : vector<16x256xf32>
    %cst_112 = arith.constant 0.000000e+00 : f32
    %273 = vector.broadcast %cst_112 : f32 to vector<16x256xf32>
    %274 = arith.subf %273, %272 : vector<16x256xf32>
    %275 = math.exp %274 : vector<16x256xf32>
    %cst_113 = arith.constant 1.000000e+00 : f32
    %276 = vector.broadcast %cst_113 : f32 to vector<16x256xf32>
    %277 = arith.addf %276, %275 : vector<16x256xf32>
    %278 = tpu.reciprocal %277 {approx = true} : vector<16x256xf32> -> vector<16x256xf32>
    %279 = vector.extract_strided_slice %264 {offsets = [0, 256], sizes = [16, 256], strides = [1, 1]} : vector<16x768xf32> to vector<16x256xf32>
    %280 = vector.extract_strided_slice %269 {offsets = [0, 256], sizes = [16, 256], strides = [1, 1]} : vector<16x768xf32> to vector<16x256xf32>
    %281 = arith.addf %279, %280 : vector<16x256xf32>
    %cst_114 = arith.constant 0.000000e+00 : f32
    %282 = vector.broadcast %cst_114 : f32 to vector<16x256xf32>
    %283 = arith.subf %282, %281 : vector<16x256xf32>
    %284 = math.exp %283 : vector<16x256xf32>
    %cst_115 = arith.constant 1.000000e+00 : f32
    %285 = vector.broadcast %cst_115 : f32 to vector<16x256xf32>
    %286 = arith.addf %285, %284 : vector<16x256xf32>
    %287 = tpu.reciprocal %286 {approx = true} : vector<16x256xf32> -> vector<16x256xf32>
    %288 = vector.extract_strided_slice %264 {offsets = [0, 512], sizes = [16, 256], strides = [1, 1]} : vector<16x768xf32> to vector<16x256xf32>
    %289 = vector.extract_strided_slice %269 {offsets = [0, 512], sizes = [16, 256], strides = [1, 1]} : vector<16x768xf32> to vector<16x256xf32>
    %290 = arith.mulf %278, %289 : vector<16x256xf32>
    %291 = arith.addf %288, %290 : vector<16x256xf32>
    %292 = math.tanh %291 : vector<16x256xf32>
    %cst_116 = arith.constant 1.000000e+00 : f32
    %293 = vector.broadcast %cst_116 : f32 to vector<16x256xf32>
    %294 = arith.subf %293, %287 : vector<16x256xf32>
    %295 = arith.mulf %294, %292 : vector<16x256xf32>
    %296 = arith.mulf %287, %257 : vector<16x256xf32>
    %297 = arith.addf %295, %296 : vector<16x256xf32>
    %298 = arith.index_cast %c6_i32 : i32 to index
    %c0_117 = arith.constant 0 : index
    %c0_118 = arith.constant 0 : index
    %299 = vector.load %arg16[%298, %c0_117, %c0_118] : memref<8x16x256xf32, #tpu.memory_space<vmem>>, vector<1x16x256xf32>
    %300 = vector.shape_cast %299 : vector<1x16x256xf32> to vector<16x256xf32>
    %301 = vector.shape_cast %297 : vector<16x256xf32> to vector<1x16x256xf32>
    tpu.vector_store %arg16[%298, %c0_117, %c0_118], %301 {strides = array<i32>} : memref<8x16x256xf32, #tpu.memory_space<vmem>>, vector<1x16x256xf32>,
    %c7_i32 = arith.constant 7 : i32
    %302 = arith.index_cast %c7_i32 : i32 to index
    %c0_119 = arith.constant 0 : index
    %c0_120 = arith.constant 0 : index
    %303 = vector.load %arg15[%302, %c0_119, %c0_120] : memref<8x16x768xf32, #tpu.memory_space<vmem>>, vector<1x16x768xf32>
    %304 = vector.shape_cast %303 : vector<1x16x768xf32> to vector<16x768xf32>
    %c0_121 = arith.constant 0 : index
    %c0_122 = arith.constant 0 : index
    %305 = vector.load %arg8[%c0_121, %c0_122] : memref<256x768xf32, #tpu.memory_space<vmem>>, vector<256x768xf32>
    %cst_123 = arith.constant dense<0.000000e+00> : vector<16x768xf32>
    %306 = tpu.matmul %297, %305, %cst_123 {dimension_numbers = #tpu.dot_dimension_numbers<[1], [0], [0], [1], [0, 0, 1, 1], [], []>} : vector<16x256xf32>, vector<256x768xf32>, vector<16x768xf32> -> vector<16x768xf32>
    %c0_124 = arith.constant 0 : index
    %c0_125 = arith.constant 0 : index
    %307 = vector.load %arg10[%c0_124, %c0_125] : memref<1x768xf32, #tpu.memory_space<vmem>>, vector<1x768xf32>
    %308 = vector.broadcast %307 : vector<1x768xf32> to vector<16x768xf32>
    %309 = arith.addf %306, %308 : vector<16x768xf32>
    %310 = vector.extract_strided_slice %304 {offsets = [0, 0], sizes = [16, 256], strides = [1, 1]} : vector<16x768xf32> to vector<16x256xf32>
    %311 = vector.extract_strided_slice %309 {offsets = [0, 0], sizes = [16, 256], strides = [1, 1]} : vector<16x768xf32> to vector<16x256xf32>
    %312 = arith.addf %310, %311 : vector<16x256xf32>
    %cst_126 = arith.constant 0.000000e+00 : f32
    %313 = vector.broadcast %cst_126 : f32 to vector<16x256xf32>
    %314 = arith.subf %313, %312 : vector<16x256xf32>
    %315 = math.exp %314 : vector<16x256xf32>
    %cst_127 = arith.constant 1.000000e+00 : f32
    %316 = vector.broadcast %cst_127 : f32 to vector<16x256xf32>
    %317 = arith.addf %316, %315 : vector<16x256xf32>
    %318 = tpu.reciprocal %317 {approx = true} : vector<16x256xf32> -> vector<16x256xf32>
    %319 = vector.extract_strided_slice %304 {offsets = [0, 256], sizes = [16, 256], strides = [1, 1]} : vector<16x768xf32> to vector<16x256xf32>
    %320 = vector.extract_strided_slice %309 {offsets = [0, 256], sizes = [16, 256], strides = [1, 1]} : vector<16x768xf32> to vector<16x256xf32>
    %321 = arith.addf %319, %320 : vector<16x256xf32>
    %cst_128 = arith.constant 0.000000e+00 : f32
    %322 = vector.broadcast %cst_128 : f32 to vector<16x256xf32>
    %323 = arith.subf %322, %321 : vector<16x256xf32>
    %324 = math.exp %323 : vector<16x256xf32>
    %cst_129 = arith.constant 1.000000e+00 : f32
    %325 = vector.broadcast %cst_129 : f32 to vector<16x256xf32>
    %326 = arith.addf %325, %324 : vector<16x256xf32>
    %327 = tpu.reciprocal %326 {approx = true} : vector<16x256xf32> -> vector<16x256xf32>
    %328 = vector.extract_strided_slice %304 {offsets = [0, 512], sizes = [16, 256], strides = [1, 1]} : vector<16x768xf32> to vector<16x256xf32>
    %329 = vector.extract_strided_slice %309 {offsets = [0, 512], sizes = [16, 256], strides = [1, 1]} : vector<16x768xf32> to vector<16x256xf32>
    %330 = arith.mulf %318, %329 : vector<16x256xf32>
    %331 = arith.addf %328, %330 : vector<16x256xf32>
    %332 = math.tanh %331 : vector<16x256xf32>
    %cst_130 = arith.constant 1.000000e+00 : f32
    %333 = vector.broadcast %cst_130 : f32 to vector<16x256xf32>
    %334 = arith.subf %333, %327 : vector<16x256xf32>
    %335 = arith.mulf %334, %332 : vector<16x256xf32>
    %336 = arith.mulf %327, %297 : vector<16x256xf32>
    %337 = arith.addf %335, %336 : vector<16x256xf32>
    %338 = arith.index_cast %c7_i32 : i32 to index
    %c0_131 = arith.constant 0 : index
    %c0_132 = arith.constant 0 : index
    %339 = vector.load %arg16[%338, %c0_131, %c0_132] : memref<8x16x256xf32, #tpu.memory_space<vmem>>, vector<1x16x256xf32>
    %340 = vector.shape_cast %339 : vector<1x16x256xf32> to vector<16x256xf32>
    %341 = vector.shape_cast %337 : vector<16x256xf32> to vector<1x16x256xf32>
    tpu.vector_store %arg16[%338, %c0_131, %c0_132], %341 {strides = array<i32>} : memref<8x16x256xf32, #tpu.memory_space<vmem>>, vector<1x16x256xf32>,
    %c8_i32 = arith.constant 8 : i32
    %c0_133 = arith.constant 0 : index
    %c0_134 = arith.constant 0 : index
    %342 = vector.load %arg14[%c0_133, %c0_134] : memref<16x256xf32, #tpu.memory_space<vmem>>, vector<16x256xf32>
    tpu.vector_store %arg14[%c0_133, %c0_134], %337 {strides = array<i32>} : memref<16x256xf32, #tpu.memory_space<vmem>>, vector<16x256xf32>,
    %c0_135 = arith.constant 0 : index
    %c0_136 = arith.constant 0 : index
    %c0_137 = arith.constant 0 : index
    %343 = vector.load %arg16[%c0_135, %c0_136, %c0_137] : memref<8x16x256xf32, #tpu.memory_space<vmem>>, vector<8x16x256xf32>
    %344 = vector.shape_cast %343 : vector<8x16x256xf32> to vector<128x256xf32>
    %c0_138 = arith.constant 0 : index
    %c0_139 = arith.constant 0 : index
    %345 = vector.load %arg11[%c0_138, %c0_139] : memref<256x128xf32, #tpu.memory_space<vmem>>, vector<256x128xf32>
    %cst_140 = arith.constant dense<0.000000e+00> : vector<128x128xf32>
    %346 = tpu.matmul %344, %345, %cst_140 {dimension_numbers = #tpu.dot_dimension_numbers<[1], [0], [0], [1], [0, 0, 1, 1], [], []>} : vector<128x256xf32>, vector<256x128xf32>, vector<128x128xf32> -> vector<128x128xf32>
    %c0_141 = arith.constant 0 : index
    %c0_142 = arith.constant 0 : index
    %347 = vector.load %arg12[%c0_141, %c0_142] : memref<1x128xf32, #tpu.memory_space<vmem>>, vector<1x128xf32>
    %348 = vector.broadcast %347 : vector<1x128xf32> to vector<128x128xf32>
    %349 = arith.addf %346, %348 : vector<128x128xf32>
    %350 = vector.shape_cast %349 : vector<128x128xf32> to vector<8x16x128xf32>
    %c0_143 = arith.constant 0 : index
    %c0_144 = arith.constant 0 : index
    %c0_145 = arith.constant 0 : index
    %351 = vector.load %arg13[%c0_143, %c0_144, %c0_145] : memref<8x16x128xf32, #tpu.memory_space<vmem>>, vector<8x16x128xf32>
    tpu.vector_store %arg13[%c0_143, %c0_144, %c0_145], %350 {strides = array<i32>} : memref<8x16x128xf32, #tpu.memory_space<vmem>>, vector<8x16x128xf32>,
    return
  }
  func.func @transform_0(%arg0: i32) -> (i32, i32, i32) {
    %c0_i32 = arith.constant 0 : i32
    %c0_i32_0 = arith.constant 0 : i32
    %c0_i32_1 = arith.constant 0 : i32
    return %c0_i32, %arg0, %c0_i32_0 : i32, i32, i32
  }
  func.func @transform_1(%arg0: i32) -> (i32, i32) {
    %c0_i32 = arith.constant 0 : i32
    %c0_i32_0 = arith.constant 0 : i32
    return %arg0, %c0_i32 : i32, i32
  }
  func.func @transform_2(%arg0: i32) -> (i32, i32) {
    %c0_i32 = arith.constant 0 : i32
    %c0_i32_0 = arith.constant 0 : i32
    %c0_i32_1 = arith.constant 0 : i32
    return %c0_i32, %c0_i32_0 : i32, i32
  }
  func.func @transform_3(%arg0: i32) -> (i32, i32) {
    %c0_i32 = arith.constant 0 : i32
    %c0_i32_0 = arith.constant 0 : i32
    %c0_i32_1 = arith.constant 0 : i32
    return %c0_i32, %c0_i32_0 : i32, i32
  }
  func.func @transform_4(%arg0: i32) -> (i32, i32) {
    %c0_i32 = arith.constant 0 : i32
    %c0_i32_0 = arith.constant 0 : i32
    %c0_i32_1 = arith.constant 0 : i32
    return %c0_i32, %c0_i32_0 : i32, i32
  }
  func.func @transform_5(%arg0: i32) -> (i32, i32) {
    %c0_i32 = arith.constant 0 : i32
    %c0_i32_0 = arith.constant 0 : i32
    %c0_i32_1 = arith.constant 0 : i32
    return %c0_i32, %c0_i32_0 : i32, i32
  }
  func.func @transform_6(%arg0: i32) -> (i32, i32) {
    %c0_i32 = arith.constant 0 : i32
    %c0_i32_0 = arith.constant 0 : i32
    %c0_i32_1 = arith.constant 0 : i32
    return %c0_i32, %c0_i32_0 : i32, i32
  }
  func.func @transform_7(%arg0: i32) -> (i32, i32) {
    %c0_i32 = arith.constant 0 : i32
    %c0_i32_0 = arith.constant 0 : i32
    %c0_i32_1 = arith.constant 0 : i32
    return %c0_i32, %c0_i32_0 : i32, i32
  }
  func.func @transform_8(%arg0: i32) -> (i32, i32) {
    %c0_i32 = arith.constant 0 : i32
    %c0_i32_0 = arith.constant 0 : i32
    %c0_i32_1 = arith.constant 0 : i32
    return %c0_i32, %c0_i32_0 : i32, i32
  }
  func.func @transform_9(%arg0: i32) -> (i32, i32) {
    %c0_i32 = arith.constant 0 : i32
    %c0_i32_0 = arith.constant 0 : i32
    %c0_i32_1 = arith.constant 0 : i32
    return %c0_i32, %c0_i32_0 : i32, i32
  }
  func.func @transform_10(%arg0: i32) -> (i32, i32) {
    %c0_i32 = arith.constant 0 : i32
    %c0_i32_0 = arith.constant 0 : i32
    %c0_i32_1 = arith.constant 0 : i32
    return %c0_i32, %c0_i32_0 : i32, i32
  }
  func.func @transform_11(%arg0: i32) -> (i32, i32) {
    %c0_i32 = arith.constant 0 : i32
    %c0_i32_0 = arith.constant 0 : i32
    %c0_i32_1 = arith.constant 0 : i32
    return %c0_i32, %c0_i32_0 : i32, i32
  }
  func.func @transform_12(%arg0: i32) -> (i32, i32, i32) {
    %c0_i32 = arith.constant 0 : i32
    %c0_i32_0 = arith.constant 0 : i32
    %c0_i32_1 = arith.constant 0 : i32
    return %c0_i32, %arg0, %c0_i32_0 : i32, i32, i32
  }
  func.func @transform_13(%arg0: i32) -> (i32, i32) {
    %c0_i32 = arith.constant 0 : i32
    %c0_i32_0 = arith.constant 0 : i32
    return %arg0, %c0_i32 : i32, i32
  }
}

</mosaic_0001>

<llo_original>
// kernel: tpu_custom_call.1
$region0: #{tpu_custom_call.1}
  #allocation0 [shape = 'u32[]', space=smem, size = 0x4, offset = 0x4, fixed_abs, tag = 'smem constant byte address 0x4 - core index']
  #allocation1 [shape = 'u32[144,128]{1,0:T(1,128)}', space=vmem, size = 0x12000, scoped, tag = 'internal scratch']
  #allocation2 [shape = 'f32[8,16,768]{2,1,0:T(8,128)}', space=vmem, size = 0x60000, scoped, tag = 'scratch operand']
  #allocation3 [shape = 'f32[8,16,256]{2,1,0:T(8,128)}', space=vmem, size = 0x20000, scoped, tag = 'scratch operand']
  #allocation21 [shape = 's32[]', space=sflag, size = 0x4, offset = 0, fixed_abs, tag = 'sflag constant byte address 0x0 - dummy sync flag']
  #allocation23 [shape = 's32[]', space=sflag, size = 0x4, offset = 0, fixed_abs, tag = 'sflag constant byte address 0x0 - dummy sync flag']
  %s0 = inlined_call_operand.hbm [shape: f32[8,32,512], index: 0, kind: input, shape index: {}]
  %s1 = inlined_call_operand.hbm [shape: f32[32,256], index: 1, kind: input, shape index: {}]
  %s2 = inlined_call_operand.hbm [shape: f32[512,512], index: 2, kind: input, shape index: {}]
  %s3 = inlined_call_operand.hbm [shape: f32[1,512], index: 3, kind: input, shape index: {}]
  %s4 = inlined_call_operand.hbm [shape: f32[512,256], index: 4, kind: input, shape index: {}]
  %s5 = inlined_call_operand.vmem [shape: f32[1,256], index: 5, kind: input, shape index: {}]
  %s6 = inlined_call_operand.hbm [shape: f32[256,768], index: 6, kind: input, shape index: {}]
  %s7 = inlined_call_operand.hbm [shape: f32[256,768], index: 7, kind: input, shape index: {}]
  %s8 = inlined_call_operand.vmem [shape: f32[1,768], index: 8, kind: input, shape index: {}]
  %s9 = inlined_call_operand.vmem [shape: f32[1,768], index: 9, kind: input, shape index: {}]
  %s10 = inlined_call_operand.hbm [shape: f32[256,128], index: 10, kind: input, shape index: {}]
  %s11 = inlined_call_operand.vmem [shape: f32[1,128], index: 11, kind: input, shape index: {}]
  %s12 = inlined_call_operand.hbm [shape: f32[8,32,128], index: 12, kind: output, shape index: {0}]
  %s13 = inlined_call_operand.hbm [shape: f32[32,256], index: 13, kind: output, shape index: {1}]
  %14 = xla_tuple %s12, %s13
  %s15 = sld [smem:[#allocation0]]
  $region121: #{tpu_custom_call.1} parent=0
    _
  %s17 = ssub.s32 1, %s15
  %s18 = scalar_select 0, %s17, %s15
  $region1: #{tpu_custom_call.1} parent=0
    #allocation4 [shape = 'u8[524288]{0}', space=vmem, size = 0x80000, scoped, tag = 'input window, operand 0']
    #allocation5 [shape = 's32[2]{0}', space=sflag, size = 0x8, scoped, tag = 'scoped memory for tpu_custom_call.1']
    #allocation6 [shape = 's32[2]{0}', space=sflag, size = 0x8, scoped, tag = 'scoped memory for tpu_custom_call.1']
    #allocation7 [shape = 'u8[32768]{0}', space=vmem, size = 0x8000, scoped, tag = 'input window, operand 1']
    #allocation8 [shape = 's32[2]{0}', space=sflag, size = 0x8, scoped, tag = 'scoped memory for tpu_custom_call.1']
    #allocation9 [shape = 'u8[1048576]{0}', space=vmem, size = 0x100000, scoped, tag = 'input window, operand 2, single buffered']
    #allocation10 [shape = 'u8[2048]{0}', space=vmem, size = 0x800, scoped, tag = 'input window, operand 3, single buffered']
    #allocation11 [shape = 's32[1]{0}', space=sflag, size = 0x4, scoped, tag = 'scoped memory for tpu_custom_call.1']
    #allocation12 [shape = 'u8[524288]{0}', space=vmem, size = 0x80000, scoped, tag = 'input window, operand 4, single buffered']
    #allocation13 [shape = 'u8[786432]{0}', space=vmem, size = 0xc0000, scoped, tag = 'input window, operand 6, single buffered']
    #allocation14 [shape = 's32[1]{0}', space=sflag, size = 0x4, scoped, tag = 'scoped memory for tpu_custom_call.1']
    #allocation15 [shape = 'u8[786432]{0}', space=vmem, size = 0xc0000, scoped, tag = 'input window, operand 7, single buffered']
    #allocation16 [shape = 'u8[131072]{0}', space=vmem, size = 0x20000, scoped, tag = 'input window, operand 10, single buffered']
    #allocation17 [shape = 's32[1]{0}', space=sflag, size = 0x4, scoped, tag = 'scoped memory for tpu_custom_call.1']
    #allocation18 [shape = 'u8[131072]{0}', space=vmem, size = 0x20000, scoped, tag = 'output window, operand 0']
    #allocation19 [shape = 'u8[32768]{0}', space=vmem, size = 0x8000, scoped, tag = 'output window, operand 1']
    #allocation20 [shape = 's32[2]{0}', space=sflag, size = 0x8, scoped, tag = 'scoped memory for tpu_custom_call.1']
    %19 = vsyncpa [#allocation5], 0
    %s20 = scalar_lea.sflag [#allocation5], 1
    %21 = vsyncpa %s20, 0
    %22 = vsyncpa [#allocation8], 0
    %s23 = scalar_lea.sflag [#allocation8], 1
    %24 = vsyncpa %s23, 0
    %25 = vsyncpa [#allocation11], 0
    %26 = vsyncpa [#allocation14], 0
    %27 = vsyncpa [#allocation17], 0
    %28 = vsyncpa [#allocation6], 0
    %s29 = scalar_lea.sflag [#allocation6], 1
    %30 = vsyncpa %s29, 0
    %31 = vsyncpa [#allocation20], 0
    %s32 = scalar_lea.sflag [#allocation20], 1
    %33 = vsyncpa %s32, 0
    loop: start=0, step=1, limit=4
    $region2: #{tpu_custom_call.1} parent=1 // loop_pre_header
      _
    $region3: #{tpu_custom_call.1} parent=1 // loop_header
      %s35 = sphi 0, %s39
      %p36 = scmp.ge.s32.totalorder %s35, 4
      %s45 = sphi 0, %s47
      %s48 = sphi 0, %s45
      %s49 = sphi 0, %s48
      %s65 = sphi 0, %s49
      %s71 = sphi 0, %s73
      %s74 = sphi 0, %s71
      %s75 = sphi 0, %s74
      %s91 = sphi 0, %s75
      %s95 = sphi 0, %s95
      %s97 = sphi 0, %s95
      %s98 = sphi 0, %s97
      %s112 = sphi 0, %s98
      %s116 = sphi 0, %s116
      %s118 = sphi 0, %s116
      %s119 = sphi 0, %s118
      %s133 = sphi 0, %s119
      %s137 = sphi 0, %s137
      %s139 = sphi 0, %s137
      %s140 = sphi 0, %s139
      %s154 = sphi 0, %s140
      %s158 = sphi 0, %s158
      %s160 = sphi 0, %s158
      %s161 = sphi 0, %s160
      %s175 = sphi 0, %s161
      %s179 = sphi 0, %s179
      %s181 = sphi 0, %s179
      %s182 = sphi 0, %s181
      %s196 = sphi 0, %s182
      %s200 = sphi 0, %s200
      %s202 = sphi 0, %s200
      %s203 = sphi 0, %s202
      %s217 = sphi 0, %s203
      %s221 = sphi 0, %s221
      %s223 = sphi 0, %s221
      %s224 = sphi 0, %s223
      %s238 = sphi 0, %s224
      %s242 = sphi 0, %s242
      %s244 = sphi 0, %s242
      %s245 = sphi 0, %s244
      %s259 = sphi 0, %s245
      %s263 = sphi 0, %s263
      %s265 = sphi 0, %s263
      %s266 = sphi 0, %s265
      %s280 = sphi 0, %s266
      %s284 = sphi 0, %s284
      %s286 = sphi 0, %s284
      %s287 = sphi 0, %s286
      %s301 = sphi 0, %s287
      %s307 = sphi 0, %s309
      %s310 = sphi 0, %s307
      %s311 = sphi 0, %s310
      %s327 = sphi 0, %s311
      %s333 = sphi 0, %s335
      %s336 = sphi 0, %s333
      %s337 = sphi 0, %s336
      %s353 = sphi 0, %s337
    $region4: #{tpu_custom_call.1} parent=1 // loop_header_branch
      %38 = sbr.rel (%p36) target = $region8
    $region5: #{tpu_custom_call.1} parent=1 // loop_body
      %s40 = ssub.s32 %s35, 1
      %s41 = ssub.s32 %s35, 2
      %s42 = sadd.s32 %s35, 1
      %s43 = ssub.s32 %s35, %s42
      %p44 = scmp.eq.s32.totalorder %s43, 0
      %s46 = sadd.s32 %s45, 1
      %s47 = scalar_select %p44, %s45, %s46
      %p50 = pneg %p44
      %p51 = scmp.eq.s32.totalorder %s35, 1
      %p52 = por %p50, %p51
      %p53 = scmp.ne.s32.totalorder %s45, %s48
      %p54 = scmp.eq.s32.totalorder %s35, 0
      %p55 = por %p53, %p54
      %p56 = scmp.ne.s32.totalorder %s45, %s48
      %p57 = scmp.eq.s32.totalorder %s40, 1
      %p58 = por %p56, %p57
      %p59 = scmp.ne.s32.totalorder %s48, %s49
      %p60 = scmp.eq.s32.totalorder %s40, 0
      %p61 = por %p59, %p60
      %p62 = scmp.ne.s32.totalorder %s48, %s49
      %p63 = scmp.eq.s32.totalorder %s41, 1
      %p64 = por %p62, %p63
      %p66 = scmp.ne.s32.totalorder %s49, %s65
      %p67 = scmp.eq.s32.totalorder %s41, 0
      %p68 = por %p66, %p67
      %s69 = ssub.s32 %s35, %s42
      %p70 = scmp.eq.s32.totalorder %s69, 0
      %s72 = sadd.s32 %s71, 1
      %s73 = scalar_select %p70, %s71, %s72
      %p76 = pneg %p70
      %p77 = scmp.eq.s32.totalorder %s35, 1
      %p78 = por %p76, %p77
      %p79 = scmp.ne.s32.totalorder %s71, %s74
      %p80 = scmp.eq.s32.totalorder %s35, 0
      %p81 = por %p79, %p80
      %p82 = scmp.ne.s32.totalorder %s71, %s74
      %p83 = scmp.eq.s32.totalorder %s40, 1
      %p84 = por %p82, %p83
      %p85 = scmp.ne.s32.totalorder %s74, %s75
      %p86 = scmp.eq.s32.totalorder %s40, 0
      %p87 = por %p85, %p86
      %p88 = scmp.ne.s32.totalorder %s74, %s75
      %p89 = scmp.eq.s32.totalorder %s41, 1
      %p90 = por %p88, %p89
      %p92 = scmp.ne.s32.totalorder %s75, %s91
      %p93 = scmp.eq.s32.totalorder %s41, 0
      %p94 = por %p92, %p93
      %s96 = sadd.s32 %s95, 1
      %p99 = scmp.eq.s32.totalorder %s35, 1
      %p100 = scmp.ne.s32.totalorder %s95, %s97
      %p101 = scmp.eq.s32.totalorder %s35, 0
      %p102 = por %p100, %p101
      %p103 = scmp.ne.s32.totalorder %s95, %s97
      %p104 = scmp.eq.s32.totalorder %s40, 1
      %p105 = por %p103, %p104
      %p106 = scmp.ne.s32.totalorder %s97, %s98
      %p107 = scmp.eq.s32.totalorder %s40, 0
      %p108 = por %p106, %p107
      %p109 = scmp.ne.s32.totalorder %s97, %s98
      %p110 = scmp.eq.s32.totalorder %s41, 1
      %p111 = por %p109, %p110
      %p113 = scmp.ne.s32.totalorder %s98, %s112
      %p114 = scmp.eq.s32.totalorder %s41, 0
      %p115 = por %p113, %p114
      %s117 = sadd.s32 %s116, 1
      %p120 = scmp.eq.s32.totalorder %s35, 1
      %p121 = scmp.ne.s32.totalorder %s116, %s118
      %p122 = scmp.eq.s32.totalorder %s35, 0
      %p123 = por %p121, %p122
      %p124 = scmp.ne.s32.totalorder %s116, %s118
      %p125 = scmp.eq.s32.totalorder %s40, 1
      %p126 = por %p124, %p125
      %p127 = scmp.ne.s32.totalorder %s118, %s119
      %p128 = scmp.eq.s32.totalorder %s40, 0
      %p129 = por %p127, %p128
      %p130 = scmp.ne.s32.totalorder %s118, %s119
      %p131 = scmp.eq.s32.totalorder %s41, 1
      %p132 = por %p130, %p131
      %p134 = scmp.ne.s32.totalorder %s119, %s133
      %p135 = scmp.eq.s32.totalorder %s41, 0
      %p136 = por %p134, %p135
      %s138 = sadd.s32 %s137, 1
      %p141 = scmp.eq.s32.totalorder %s35, 1
      %p142 = scmp.ne.s32.totalorder %s137, %s139
      %p143 = scmp.eq.s32.totalorder %s35, 0
      %p144 = por %p142, %p143
      %p145 = scmp.ne.s32.totalorder %s137, %s139
      %p146 = scmp.eq.s32.totalorder %s40, 1
      %p147 = por %p145, %p146
      %p148 = scmp.ne.s32.totalorder %s139, %s140
      %p149 = scmp.eq.s32.totalorder %s40, 0
      %p150 = por %p148, %p149
      %p151 = scmp.ne.s32.totalorder %s139, %s140
      %p152 = scmp.eq.s32.totalorder %s41, 1
      %p153 = por %p151, %p152
      %p155 = scmp.ne.s32.totalorder %s140, %s154
      %p156 = scmp.eq.s32.totalorder %s41, 0
      %p157 = por %p155, %p156
      %s159 = sadd.s32 %s158, 1
      %p162 = scmp.eq.s32.totalorder %s35, 1
      %p163 = scmp.ne.s32.totalorder %s158, %s160
      %p164 = scmp.eq.s32.totalorder %s35, 0
      %p165 = por %p163, %p164
      %p166 = scmp.ne.s32.totalorder %s158, %s160
      %p167 = scmp.eq.s32.totalorder %s40, 1
      %p168 = por %p166, %p167
      %p169 = scmp.ne.s32.totalorder %s160, %s161
      %p170 = scmp.eq.s32.totalorder %s40, 0
      %p171 = por %p169, %p170
      %p172 = scmp.ne.s32.totalorder %s160, %s161
      %p173 = scmp.eq.s32.totalorder %s41, 1
      %p174 = por %p172, %p173
      %p176 = scmp.ne.s32.totalorder %s161, %s175
      %p177 = scmp.eq.s32.totalorder %s41, 0
      %p178 = por %p176, %p177
      %s180 = sadd.s32 %s179, 1
      %p183 = scmp.eq.s32.totalorder %s35, 1
      %p184 = scmp.ne.s32.totalorder %s179, %s181
      %p185 = scmp.eq.s32.totalorder %s35, 0
      %p186 = por %p184, %p185
      %p187 = scmp.ne.s32.totalorder %s179, %s181
      %p188 = scmp.eq.s32.totalorder %s40, 1
      %p189 = por %p187, %p188
      %p190 = scmp.ne.s32.totalorder %s181, %s182
      %p191 = scmp.eq.s32.totalorder %s40, 0
      %p192 = por %p190, %p191
      %p193 = scmp.ne.s32.totalorder %s181, %s182
      %p194 = scmp.eq.s32.totalorder %s41, 1
      %p195 = por %p193, %p194
      %p197 = scmp.ne.s32.totalorder %s182, %s196
      %p198 = scmp.eq.s32.totalorder %s41, 0
      %p199 = por %p197, %p198
      %s201 = sadd.s32 %s200, 1
      %p204 = scmp.eq.s32.totalorder %s35, 1
      %p205 = scmp.ne.s32.totalorder %s200, %s202
      %p206 = scmp.eq.s32.totalorder %s35, 0
      %p207 = por %p205, %p206
      %p208 = scmp.ne.s32.totalorder %s200, %s202
      %p209 = scmp.eq.s32.totalorder %s40, 1
      %p210 = por %p208, %p209
      %p211 = scmp.ne.s32.totalorder %s202, %s203
      %p212 = scmp.eq.s32.totalorder %s40, 0
      %p213 = por %p211, %p212
      %p214 = scmp.ne.s32.totalorder %s202, %s203
      %p215 = scmp.eq.s32.totalorder %s41, 1
      %p216 = por %p214, %p215
      %p218 = scmp.ne.s32.totalorder %s203, %s217
      %p219 = scmp.eq.s32.totalorder %s41, 0
      %p220 = por %p218, %p219
      %s222 = sadd.s32 %s221, 1
      %p225 = scmp.eq.s32.totalorder %s35, 1
      %p226 = scmp.ne.s32.totalorder %s221, %s223
      %p227 = scmp.eq.s32.totalorder %s35, 0
      %p228 = por %p226, %p227
      %p229 = scmp.ne.s32.totalorder %s221, %s223
      %p230 = scmp.eq.s32.totalorder %s40, 1
      %p231 = por %p229, %p230
      %p232 = scmp.ne.s32.totalorder %s223, %s224
      %p233 = scmp.eq.s32.totalorder %s40, 0
      %p234 = por %p232, %p233
      %p235 = scmp.ne.s32.totalorder %s223, %s224
      %p236 = scmp.eq.s32.totalorder %s41, 1
      %p237 = por %p235, %p236
      %p239 = scmp.ne.s32.totalorder %s224, %s238
      %p240 = scmp.eq.s32.totalorder %s41, 0
      %p241 = por %p239, %p240
      %s243 = sadd.s32 %s242, 1
      %p246 = scmp.eq.s32.totalorder %s35, 1
      %p247 = scmp.ne.s32.totalorder %s242, %s244
      %p248 = scmp.eq.s32.totalorder %s35, 0
      %p249 = por %p247, %p248
      %p250 = scmp.ne.s32.totalorder %s242, %s244
      %p251 = scmp.eq.s32.totalorder %s40, 1
      %p252 = por %p250, %p251
      %p253 = scmp.ne.s32.totalorder %s244, %s245
      %p254 = scmp.eq.s32.totalorder %s40, 0
      %p255 = por %p253, %p254
      %p256 = scmp.ne.s32.totalorder %s244, %s245
      %p257 = scmp.eq.s32.totalorder %s41, 1
      %p258 = por %p256, %p257
      %p260 = scmp.ne.s32.totalorder %s245, %s259
      %p261 = scmp.eq.s32.totalorder %s41, 0
      %p262 = por %p260, %p261
      %s264 = sadd.s32 %s263, 1
      %p267 = scmp.eq.s32.totalorder %s35, 1
      %p268 = scmp.ne.s32.totalorder %s263, %s265
      %p269 = scmp.eq.s32.totalorder %s35, 0
      %p270 = por %p268, %p269
      %p271 = scmp.ne.s32.totalorder %s263, %s265
      %p272 = scmp.eq.s32.totalorder %s40, 1
      %p273 = por %p271, %p272
      %p274 = scmp.ne.s32.totalorder %s265, %s266
      %p275 = scmp.eq.s32.totalorder %s40, 0
      %p276 = por %p274, %p275
      %p277 = scmp.ne.s32.totalorder %s265, %s266
      %p278 = scmp.eq.s32.totalorder %s41, 1
      %p279 = por %p277, %p278
      %p281 = scmp.ne.s32.totalorder %s266, %s280
      %p282 = scmp.eq.s32.totalorder %s41, 0
      %p283 = por %p281, %p282
      %s285 = sadd.s32 %s284, 1
      %p288 = scmp.eq.s32.totalorder %s35, 1
      %p289 = scmp.ne.s32.totalorder %s284, %s286
      %p290 = scmp.eq.s32.totalorder %s35, 0
      %p291 = por %p289, %p290
      %p292 = scmp.ne.s32.totalorder %s284, %s286
      %p293 = scmp.eq.s32.totalorder %s40, 1
      %p294 = por %p292, %p293
      %p295 = scmp.ne.s32.totalorder %s286, %s287
      %p296 = scmp.eq.s32.totalorder %s40, 0
      %p297 = por %p295, %p296
      %p298 = scmp.ne.s32.totalorder %s286, %s287
      %p299 = scmp.eq.s32.totalorder %s41, 1
      %p300 = por %p298, %p299
      %p302 = scmp.ne.s32.totalorder %s287, %s301
      %p303 = scmp.eq.s32.totalorder %s41, 0
      %p304 = por %p302, %p303
      %s305 = ssub.s32 %s35, %s42
      %p306 = scmp.eq.s32.totalorder %s305, 0
      %s308 = sadd.s32 %s307, 1
      %s309 = scalar_select %p306, %s307, %s308
      %p312 = pneg %p306
      %p313 = scmp.eq.s32.totalorder %s35, 1
      %p314 = por %p312, %p313
      %p315 = scmp.ne.s32.totalorder %s307, %s310
      %p316 = scmp.eq.s32.totalorder %s35, 0
      %p317 = por %p315, %p316
      %p318 = scmp.ne.s32.totalorder %s307, %s310
      %p319 = scmp.eq.s32.totalorder %s40, 1
      %p320 = por %p318, %p319
      %p321 = scmp.ne.s32.totalorder %s310, %s311
      %p322 = scmp.eq.s32.totalorder %s40, 0
      %p323 = por %p321, %p322
      %p324 = scmp.ne.s32.totalorder %s310, %s311
      %p325 = scmp.eq.s32.totalorder %s41, 1
      %p326 = por %p324, %p325
      %p328 = scmp.ne.s32.totalorder %s311, %s327
      %p329 = scmp.eq.s32.totalorder %s41, 0
      %p330 = por %p328, %p329
      %s331 = ssub.s32 %s35, %s42
      %p332 = scmp.eq.s32.totalorder %s331, 0
      %s334 = sadd.s32 %s333, 1
      %s335 = scalar_select %p332, %s333, %s334
      %p338 = pneg %p332
      %p339 = scmp.eq.s32.totalorder %s35, 1
      %p340 = por %p338, %p339
      %p341 = scmp.ne.s32.totalorder %s333, %s336
      %p342 = scmp.eq.s32.totalorder %s35, 0
      %p343 = por %p341, %p342
      %p344 = scmp.ne.s32.totalorder %s333, %s336
      %p345 = scmp.eq.s32.totalorder %s40, 1
      %p346 = por %p344, %p345
      %p347 = scmp.ne.s32.totalorder %s336, %s337
      %p348 = scmp.eq.s32.totalorder %s40, 0
      %p349 = por %p347, %p348
      %p350 = scmp.ne.s32.totalorder %s336, %s337
      %p351 = scmp.eq.s32.totalorder %s41, 1
      %p352 = por %p350, %p351
      %p354 = scmp.ne.s32.totalorder %s337, %s353
      %p355 = scmp.eq.s32.totalorder %s41, 0
      %p356 = por %p354, %p355
      %p357 = scmp.le.s32.totalorder 1, %s35
      %p358 = scmp.lt.s32.totalorder %s35, 3
      %p359 = pnand %p357, %p358
      %p360 = pneg %p359
      // Predicated region
      $region9: #{tpu_custom_call.1} parent=5 // pred_check
        _
      $region10: #{tpu_custom_call.1} parent=5 // pred_check_branch
        %362 = sbr.rel (%p359) target = $region12
      $region11: #{tpu_custom_call.1} parent=5 // pred_region
        %s363 = ssub.s32 %s35, 1
        // Predicated region
        $region13: #{tpu_custom_call.1} parent=11 // pred_check
          %p364 = pneg %p108
        $region14: #{tpu_custom_call.1} parent=11 // pred_check_branch
          %366 = sbr.rel (%p364) target = $region16
        $region15: #{tpu_custom_call.1} parent=11 // pred_region
          %s368 = ssub.s32 32768, 32768
          %369 = vsyncadd [#allocation8], %s368
          %s370 = sshll.u32 [#allocation9], 4
          %s371 = int_to_ptr.vmem [resolvable:$true] %s370
          %376 = dma.hbm_to_vmem [thread:$0]  %s2, 32768, %s371, [#allocation8], 512, 512, 32
        $region16: #{tpu_custom_call.1} parent=11 // pred_fallthru
          _
        // Predicated region
        $region17: #{tpu_custom_call.1} parent=11 // pred_check
          %p377 = pneg %p129
        $region18: #{tpu_custom_call.1} parent=11 // pred_check_branch
          %379 = sbr.rel (%p377) target = $region20
        $region19: #{tpu_custom_call.1} parent=11 // pred_region
          %s381 = ssub.s32 64, 64
          %382 = vsyncadd [#allocation11], %s381
          %s384 = sshll.u32 [#allocation10], 4
          %s385 = int_to_ptr.vmem [resolvable:$true] %s384
          %387 = dma.hbm_to_vmem [thread:$0]  %s3, 64, %s385, [#allocation11]
        $region20: #{tpu_custom_call.1} parent=11 // pred_fallthru
          _
        // Predicated region
        $region21: #{tpu_custom_call.1} parent=11 // pred_check
          %p388 = pneg %p150
        $region22: #{tpu_custom_call.1} parent=11 // pred_check_branch
          %390 = sbr.rel (%p388) target = $region24
        $region23: #{tpu_custom_call.1} parent=11 // pred_region
          %s392 = ssub.s32 16384, 16384
          %393 = vsyncadd [#allocation11], %s392
          %s394 = sshll.u32 [#allocation12], 4
          %s395 = int_to_ptr.vmem [resolvable:$true] %s394
          %400 = dma.hbm_to_vmem [thread:$0]  %s4, 16384, %s395, [#allocation11], 256, 256, 16
        $region24: #{tpu_custom_call.1} parent=11 // pred_fallthru
          _
        // Predicated region
        $region25: #{tpu_custom_call.1} parent=11 // pred_check
          %p401 = pneg %p171
        $region26: #{tpu_custom_call.1} parent=11 // pred_check_branch
          %403 = sbr.rel (%p401) target = $region28
        $region27: #{tpu_custom_call.1} parent=11 // pred_region
          _
        $region28: #{tpu_custom_call.1} parent=11 // pred_fallthru
          _
        // Predicated region
        $region29: #{tpu_custom_call.1} parent=11 // pred_check
          %p404 = pneg %p192
        $region30: #{tpu_custom_call.1} parent=11 // pred_check_branch
          %406 = sbr.rel (%p404) target = $region32
        $region31: #{tpu_custom_call.1} parent=11 // pred_region
          %s408 = ssub.s32 24576, 24576
          %409 = vsyncadd [#allocation14], %s408
          %s410 = sshll.u32 [#allocation13], 4
          %s411 = int_to_ptr.vmem [resolvable:$true] %s410
          %416 = dma.hbm_to_vmem [thread:$0]  %s6, 24576, %s411, [#allocation14], 768, 768, 48
        $region32: #{tpu_custom_call.1} parent=11 // pred_fallthru
          _
        // Predicated region
        $region33: #{tpu_custom_call.1} parent=11 // pred_check
          %p417 = pneg %p213
        $region34: #{tpu_custom_call.1} parent=11 // pred_check_branch
          %419 = sbr.rel (%p417) target = $region36
        $region35: #{tpu_custom_call.1} parent=11 // pred_region
          %s421 = ssub.s32 24576, 24576
          %422 = vsyncadd [#allocation14], %s421
          %s423 = sshll.u32 [#allocation15], 4
          %s424 = int_to_ptr.vmem [resolvable:$true] %s423
          %429 = dma.hbm_to_vmem [thread:$0]  %s7, 24576, %s424, [#allocation14], 768, 768, 48
        $region36: #{tpu_custom_call.1} parent=11 // pred_fallthru
          _
        // Predicated region
        $region37: #{tpu_custom_call.1} parent=11 // pred_check
          %p430 = pneg %p234
        $region38: #{tpu_custom_call.1} parent=11 // pred_check_branch
          %432 = sbr.rel (%p430) target = $region40
        $region39: #{tpu_custom_call.1} parent=11 // pred_region
          _
        $region40: #{tpu_custom_call.1} parent=11 // pred_fallthru
          _
        // Predicated region
        $region41: #{tpu_custom_call.1} parent=11 // pred_check
          %p433 = pneg %p255
        $region42: #{tpu_custom_call.1} parent=11 // pred_check_branch
          %435 = sbr.rel (%p433) target = $region44
        $region43: #{tpu_custom_call.1} parent=11 // pred_region
          _
        $region44: #{tpu_custom_call.1} parent=11 // pred_fallthru
          _
        // Predicated region
        $region45: #{tpu_custom_call.1} parent=11 // pred_check
          %p436 = pneg %p276
        $region46: #{tpu_custom_call.1} parent=11 // pred_check_branch
          %438 = sbr.rel (%p436) target = $region48
        $region47: #{tpu_custom_call.1} parent=11 // pred_region
          %s440 = ssub.s32 4096, 4096
          %441 = vsyncadd [#allocation17], %s440
          %s442 = sshll.u32 [#allocation16], 4
          %s443 = int_to_ptr.vmem [resolvable:$true] %s442
          %448 = dma.hbm_to_vmem [thread:$0]  %s10, 4096, %s443, [#allocation17], 128, 128, 8
        $region48: #{tpu_custom_call.1} parent=11 // pred_fallthru
          _
        // Predicated region
        $region49: #{tpu_custom_call.1} parent=11 // pred_check
          %p449 = pneg %p297
        $region50: #{tpu_custom_call.1} parent=11 // pred_check_branch
          %451 = sbr.rel (%p449) target = $region52
        $region51: #{tpu_custom_call.1} parent=11 // pred_region
          _
        $region52: #{tpu_custom_call.1} parent=11 // pred_fallthru
          _
      $region12: #{tpu_custom_call.1} parent=5 // pred_fallthru
        _
      %p452 = scmp.lt.s32.totalorder %s35, 2
      // Predicated region
      $region53: #{tpu_custom_call.1} parent=5 // pred_check
        %p453 = pneg %p452
      $region54: #{tpu_custom_call.1} parent=5 // pred_check_branch
        %455 = sbr.rel (%p453) target = $region56
      $region55: #{tpu_custom_call.1} parent=5 // pred_region
        // Predicated region
        $region57: #{tpu_custom_call.1} parent=55 // pred_check
          %p456 = pneg %p55
        $region58: #{tpu_custom_call.1} parent=55 // pred_check_branch
          %458 = sbr.rel (%p456) target = $region60
        $region59: #{tpu_custom_call.1} parent=55 // pred_region
          #allocation22 [shape = 'u32[6]{0}', space=smem, size = 0x18, scoped, tag = 'DMA stride descriptor']
          %s459 = sand.u32 %s45, 1
          %s460 = scalar_lea.sflag [#allocation5], %s459
          %s461 = sand.u32 %s45, 1
          %s462 = smul.addr %s461, 512
          %s463 = scalar_lea.vmem [#allocation4], %s462
          %s464 = smul.u32 2, %s35
          %s466 = ssub.s32 8192, 8192
          %467 = vsyncadd %s460, %s466
          %s468 = smul.addr %s464, 4
          %s469 = smul.addr %s468, 128
          %s470 = scalar_lea.hbm %s0, %s469
          %s472 = sshll.u32 1, 14
          %s473 = sxor.u32 4294967295, %s472
          %s475 = sld [smem:[#allocation0]]
          %s476 = sadd.s32 2, %s475
          %s478 = sshll.u32 7, 26
          %s479 = sxor.u32 4294967295, %s478
          %s480 = sand.u32 0, %s479
          %s481 = sshll.u32 %s476, 26
          %s482 = sor.u32 %s480, %s481
          %s483 = sshll.u32 %s463, 4
          %s484 = int_to_ptr.vmem [resolvable:$true] %s483
          %490 = sst [smem:[#allocation22]] 2048
          %s491 = scalar_lea.smem [#allocation22], 1
          %492 = sst [smem:[%s491]] 1024
          %s493 = scalar_lea.smem [#allocation22], 2
          %494 = sst [smem:[%s493]] 2
          %s495 = scalar_lea.smem [#allocation22], 3
          %496 = sst [smem:[%s495]] 512
          %s497 = scalar_lea.smem [#allocation22], 4
          %498 = sst [smem:[%s497]] 512
          %s499 = scalar_lea.smem [#allocation22], 5
          %500 = sst [smem:[%s499]] 32
          %502 = dma.general %s470, 8192, %s484, %s460, [#allocation21], [#allocation22], %s482, 0
        $region60: #{tpu_custom_call.1} parent=55 // pred_fallthru
          _
        // Predicated region
        $region61: #{tpu_custom_call.1} parent=55 // pred_check
          %p503 = pneg %p81
        $region62: #{tpu_custom_call.1} parent=55 // pred_check_branch
          %505 = sbr.rel (%p503) target = $region64
        $region63: #{tpu_custom_call.1} parent=55 // pred_region
          %s506 = sand.u32 %s35, 1
          %s507 = scalar_lea.sflag [#allocation8], %s506
          %s508 = sand.u32 %s71, 1
          %s509 = smul.addr %s508, 32
          %s510 = scalar_lea.vmem [#allocation7], %s509
          %s511 = smul.u32 2, %s35
          %s513 = ssub.s32 512, 512
          %514 = vsyncadd %s507, %s513
          %s515 = smul.addr %s511, 2
          %s516 = smul.addr %s515, 128
          %s517 = scalar_lea.hbm %s1, %s516
          %s518 = sshll.u32 %s510, 4
          %s519 = int_to_ptr.vmem [resolvable:$true] %s518
          %524 = dma.hbm_to_vmem [thread:$0]  %s517, 512, %s519, %s507, 256, 256, 16
        $region64: #{tpu_custom_call.1} parent=55 // pred_fallthru
          _
      $region56: #{tpu_custom_call.1} parent=5 // pred_fallthru
        _
      %p525 = scmp.le.s32.totalorder 1, %s35
      %p526 = scmp.lt.s32.totalorder %s35, 3
      %p527 = pnand %p525, %p526
      %p528 = pneg %p527
      // Predicated region
      $region65: #{tpu_custom_call.1} parent=5 // pred_check
        _
      $region66: #{tpu_custom_call.1} parent=5 // pred_check_branch
        %530 = sbr.rel (%p527) target = $region68
      $region67: #{tpu_custom_call.1} parent=5 // pred_region
        %s531 = ssub.s32 %s35, 1
        %s532 = sand.u32 %s48, 1
        %s533 = scalar_lea.sflag [#allocation5], %s532
        %s534 = sand.u32 %s48, 1
        %s535 = smul.addr %s534, 512
        %s536 = scalar_lea.vmem [#allocation4], %s535
        // Predicated region
        $region69: #{tpu_custom_call.1} parent=67 // pred_check
          %p537 = pneg %p61
        $region70: #{tpu_custom_call.1} parent=67 // pred_check_branch
          %539 = sbr.rel (%p537) target = $region72
        $region71: #{tpu_custom_call.1} parent=67 // pred_region
          %540 = dma.done %s533, 8192
        $region72: #{tpu_custom_call.1} parent=67 // pred_fallthru
          _
        %s541 = sand.u32 %s40, 1
        %s542 = scalar_lea.sflag [#allocation8], %s541
        %s543 = sand.u32 %s74, 1
        %s544 = smul.addr %s543, 32
        %s545 = scalar_lea.vmem [#allocation7], %s544
        // Predicated region
        $region73: #{tpu_custom_call.1} parent=67 // pred_check
          %p546 = pneg %p87
        $region74: #{tpu_custom_call.1} parent=67 // pred_check_branch
          %548 = sbr.rel (%p546) target = $region76
        $region75: #{tpu_custom_call.1} parent=67 // pred_region
          %549 = dma.done %s542, 512
        $region76: #{tpu_custom_call.1} parent=67 // pred_fallthru
          _
        // Predicated region
        $region77: #{tpu_custom_call.1} parent=67 // pred_check
          %p550 = pneg %p108
        $region78: #{tpu_custom_call.1} parent=67 // pred_check_branch
          %552 = sbr.rel (%p550) target = $region80
        $region79: #{tpu_custom_call.1} parent=67 // pred_region
          %553 = dma.done [#allocation8], 32768
        $region80: #{tpu_custom_call.1} parent=67 // pred_fallthru
          _
        // Predicated region
        $region81: #{tpu_custom_call.1} parent=67 // pred_check
          %p554 = pneg %p129
        $region82: #{tpu_custom_call.1} parent=67 // pred_check_branch
          %556 = sbr.rel (%p554) target = $region84
        $region83: #{tpu_custom_call.1} parent=67 // pred_region
          %557 = dma.done [#allocation11], 64
        $region84: #{tpu_custom_call.1} parent=67 // pred_fallthru
          _
        // Predicated region
        $region85: #{tpu_custom_call.1} parent=67 // pred_check
          %p558 = pneg %p150
        $region86: #{tpu_custom_call.1} parent=67 // pred_check_branch
          %560 = sbr.rel (%p558) target = $region88
        $region87: #{tpu_custom_call.1} parent=67 // pred_region
          %561 = dma.done [#allocation11], 16384
        $region88: #{tpu_custom_call.1} parent=67 // pred_fallthru
          _
        // Predicated region
        $region89: #{tpu_custom_call.1} parent=67 // pred_check
          %p562 = pneg %p192
        $region90: #{tpu_custom_call.1} parent=67 // pred_check_branch
          %564 = sbr.rel (%p562) target = $region92
        $region91: #{tpu_custom_call.1} parent=67 // pred_region
          %565 = dma.done [#allocation14], 24576
        $region92: #{tpu_custom_call.1} parent=67 // pred_fallthru
          _
        // Predicated region
        $region93: #{tpu_custom_call.1} parent=67 // pred_check
          %p566 = pneg %p213
        $region94: #{tpu_custom_call.1} parent=67 // pred_check_branch
          %568 = sbr.rel (%p566) target = $region96
        $region95: #{tpu_custom_call.1} parent=67 // pred_region
          %569 = dma.done [#allocation14], 24576
        $region96: #{tpu_custom_call.1} parent=67 // pred_fallthru
          _
        // Predicated region
        $region97: #{tpu_custom_call.1} parent=67 // pred_check
          %p570 = pneg %p276
        $region98: #{tpu_custom_call.1} parent=67 // pred_check_branch
          %572 = sbr.rel (%p570) target = $region100
        $region99: #{tpu_custom_call.1} parent=67 // pred_region
          %573 = dma.done [#allocation17], 4096
        $region100: #{tpu_custom_call.1} parent=67 // pred_fallthru
          _
        %s574 = sand.u32 %s48, 1
        %s575 = scalar_lea.sflag [#allocation5], %s574
        %s576 = sand.u32 %s48, 1
        %s577 = smul.addr %s576, 512
        %s578 = scalar_lea.vmem [#allocation4], %s577
        %p579 = pneg %p61
        %p580 = pneg %p58
        %s581 = sand.u32 %s40, 1
        %s582 = scalar_lea.sflag [#allocation8], %s581
        %s583 = sand.u32 %s74, 1
        %s584 = smul.addr %s583, 32
        %s585 = scalar_lea.vmem [#allocation7], %s584
        %p586 = pneg %p87
        %p587 = pneg %p84
        %p588 = pneg %p108
        %p589 = pneg %p105
        %p590 = pneg %p129
        %p591 = pneg %p126
        %p592 = pneg %p150
        %p593 = pneg %p147
        %p594 = pneg %p171
        %p595 = pneg %p168
        %p596 = pneg %p192
        %p597 = pneg %p189
        %p598 = pneg %p213
        %p599 = pneg %p210
        %p600 = pneg %p234
        %p601 = pneg %p231
        %p602 = pneg %p255
        %p603 = pneg %p252
        %p604 = pneg %p276
        %p605 = pneg %p273
        %p606 = pneg %p297
        %p607 = pneg %p294
        %p608 = pneg %p323
        %p609 = pneg %p320
        %s610 = sand.u32 %s310, 1
        %s611 = scalar_lea.sflag [#allocation6], %s610
        %s612 = sand.u32 %s310, 1
        %s613 = smul.addr %s612, 128
        %s614 = scalar_lea.vmem [#allocation18], %s613
        %p615 = pneg %p349
        %p616 = pneg %p346
        %s617 = sand.u32 %s336, 1
        %s618 = scalar_lea.sflag [#allocation20], %s617
        %s619 = sand.u32 %s336, 1
        %s620 = smul.addr %s619, 32
        %s621 = scalar_lea.vmem [#allocation19], %s620
        %s622 = smul.u32 2, %s40
        %s623 = smul.u32 2, %s40
        %s624 = smul.u32 2, %s40
        %s625 = smul.u32 2, %s40
        %v626 = vld [vmem:[%s536] sm:$0xff]
        %v627 = vld [vmem:[%s536 + $0x8] sm:$0xff]
        %v628 = vld [vmem:[%s536 + $0x10] sm:$0xff]
        %v629 = vld [vmem:[%s536 + $0x18] sm:$0xff]
        %v630 = vld [vmem:[%s536 + $0x20] sm:$0xff]
        %v631 = vld [vmem:[%s536 + $0x28] sm:$0xff]
        %v632 = vld [vmem:[%s536 + $0x30] sm:$0xff]
        %v633 = vld [vmem:[%s536 + $0x38] sm:$0xff]
        %v634 = vld [vmem:[%s536 + $0x40] sm:$0xff]
        %v635 = vld [vmem:[%s536 + $0x48] sm:$0xff]
        %v636 = vld [vmem:[%s536 + $0x50] sm:$0xff]
        %v637 = vld [vmem:[%s536 + $0x58] sm:$0xff]
        %v638 = vld [vmem:[%s536 + $0x60] sm:$0xff]
        %v639 = vld [vmem:[%s536 + $0x68] sm:$0xff]
        %v640 = vld [vmem:[%s536 + $0x70] sm:$0xff]
        %v641 = vld [vmem:[%s536 + $0x78] sm:$0xff]
        %v642 = vld [vmem:[%s536 + $0x80] sm:$0xff]
        %v643 = vld [vmem:[%s536 + $0x88] sm:$0xff]
        %v644 = vld [vmem:[%s536 + $0x90] sm:$0xff]
        %v645 = vld [vmem:[%s536 + $0x98] sm:$0xff]
        %v646 = vld [vmem:[%s536 + $0xa0] sm:$0xff]
        %v647 = vld [vmem:[%s536 + $0xa8] sm:$0xff]
        %v648 = vld [vmem:[%s536 + $0xb0] sm:$0xff]
        %v649 = vld [vmem:[%s536 + $0xb8] sm:$0xff]
        %v650 = vld [vmem:[%s536 + $0xc0] sm:$0xff]
        %v651 = vld [vmem:[%s536 + $0xc8] sm:$0xff]
        %v652 = vld [vmem:[%s536 + $0xd0] sm:$0xff]
        %v653 = vld [vmem:[%s536 + $0xd8] sm:$0xff]
        %v654 = vld [vmem:[%s536 + $0xe0] sm:$0xff]
        %v655 = vld [vmem:[%s536 + $0xe8] sm:$0xff]
        %v656 = vld [vmem:[%s536 + $0xf0] sm:$0xff]
        %v657 = vld [vmem:[%s536 + $0xf8] sm:$0xff]
        %v658 = vld [vmem:[%s536 + $0x100] sm:$0xff]
        %v659 = vld [vmem:[%s536 + $0x108] sm:$0xff]
        %v660 = vld [vmem:[%s536 + $0x110] sm:$0xff]
        %v661 = vld [vmem:[%s536 + $0x118] sm:$0xff]
        %v662 = vld [vmem:[%s536 + $0x120] sm:$0xff]
        %v663 = vld [vmem:[%s536 + $0x128] sm:$0xff]
        %v664 = vld [vmem:[%s536 + $0x130] sm:$0xff]
        %v665 = vld [vmem:[%s536 + $0x138] sm:$0xff]
        %v666 = vld [vmem:[%s536 + $0x140] sm:$0xff]
        %v667 = vld [vmem:[%s536 + $0x148] sm:$0xff]
        %v668 = vld [vmem:[%s536 + $0x150] sm:$0xff]
        %v669 = vld [vmem:[%s536 + $0x158] sm:$0xff]
        %v670 = vld [vmem:[%s536 + $0x160] sm:$0xff]
        %v671 = vld [vmem:[%s536 + $0x168] sm:$0xff]
        %v672 = vld [vmem:[%s536 + $0x170] sm:$0xff]
        %v673 = vld [vmem:[%s536 + $0x178] sm:$0xff]
        %v674 = vld [vmem:[%s536 + $0x180] sm:$0xff]
        %v675 = vld [vmem:[%s536 + $0x188] sm:$0xff]
        %v676 = vld [vmem:[%s536 + $0x190] sm:$0xff]
        %v677 = vld [vmem:[%s536 + $0x198] sm:$0xff]
        %v678 = vld [vmem:[%s536 + $0x1a0] sm:$0xff]
        %v679 = vld [vmem:[%s536 + $0x1a8] sm:$0xff]
        %v680 = vld [vmem:[%s536 + $0x1b0] sm:$0xff]
        %v681 = vld [vmem:[%s536 + $0x1b8] sm:$0xff]
        %v682 = vld [vmem:[%s536 + $0x1c0] sm:$0xff]
        %v683 = vld [vmem:[%s536 + $0x1c8] sm:$0xff]
        %v684 = vld [vmem:[%s536 + $0x1d0] sm:$0xff]
        %v685 = vld [vmem:[%s536 + $0x1d8] sm:$0xff]
        %v686 = vld [vmem:[%s536 + $0x1e0] sm:$0xff]
        %v687 = vld [vmem:[%s536 + $0x1e8] sm:$0xff]
        %v688 = vld [vmem:[%s536 + $0x1f0] sm:$0xff]
        %v689 = vld [vmem:[%s536 + $0x1f8] sm:$0xff]
        %v690 = vld [vmem:[#allocation9] sm:$0xff]
        %v691 = vld [vmem:[#allocation9 + $0x8] sm:$0xff]
        %v692 = vld [vmem:[#allocation9 + $0x10] sm:$0xff]
        %v693 = vld [vmem:[#allocation9 + $0x18] sm:$0xff]
        %v694 = vld [vmem:[#allocation9 + $0x20] sm:$0xff]
        %v695 = vld [vmem:[#allocation9 + $0x28] sm:$0xff]
        %v696 = vld [vmem:[#allocation9 + $0x30] sm:$0xff]
        %v697 = vld [vmem:[#allocation9 + $0x38] sm:$0xff]
        %v698 = vld [vmem:[#allocation9 + $0x40] sm:$0xff]
        %v699 = vld [vmem:[#allocation9 + $0x48] sm:$0xff]
        %v700 = vld [vmem:[#allocation9 + $0x50] sm:$0xff]
        %v701 = vld [vmem:[#allocation9 + $0x58] sm:$0xff]
        %v702 = vld [vmem:[#allocation9 + $0x60] sm:$0xff]
        %v703 = vld [vmem:[#allocation9 + $0x68] sm:$0xff]
        %v704 = vld [vmem:[#allocation9 + $0x70] sm:$0xff]
        %v705 = vld [vmem:[#allocation9 + $0x78] sm:$0xff]
        %v706 = vld [vmem:[#allocation9 + $0x80] sm:$0xff]
        %v707 = vld [vmem:[#allocation9 + $0x88] sm:$0xff]
        %v708 = vld [vmem:[#allocation9 + $0x90] sm:$0xff]
        %v709 = vld [vmem:[#allocation9 + $0x98] sm:$0xff]
        %v710 = vld [vmem:[#allocation9 + $0xa0] sm:$0xff]
        %v711 = vld [vmem:[#allocation9 + $0xa8] sm:$0xff]
        %v712 = vld [vmem:[#allocation9 + $0xb0] sm:$0xff]
        %v713 = vld [vmem:[#allocation9 + $0xb8] sm:$0xff]
        %v714 = vld [vmem:[#allocation9 + $0xc0] sm:$0xff]
        %v715 = vld [vmem:[#allocation9 + $0xc8] sm:$0xff]
        %v716 = vld [vmem:[#allocation9 + $0xd0] sm:$0xff]
        %v717 = vld [vmem:[#allocation9 + $0xd8] sm:$0xff]
        %v718 = vld [vmem:[#allocation9 + $0xe0] sm:$0xff]
        %v719 = vld [vmem:[#allocation9 + $0xe8] sm:$0xff]
        %v720 = vld [vmem:[#allocation9 + $0xf0] sm:$0xff]
        %v721 = vld [vmem:[#allocation9 + $0xf8] sm:$0xff]
        %v722 = vld [vmem:[#allocation9 + $0x100] sm:$0xff]
        %v723 = vld [vmem:[#allocation9 + $0x108] sm:$0xff]
        %v724 = vld [vmem:[#allocation9 + $0x110] sm:$0xff]
        %v725 = vld [vmem:[#allocation9 + $0x118] sm:$0xff]
        %v726 = vld [vmem:[#allocation9 + $0x120] sm:$0xff]
        %v727 = vld [vmem:[#allocation9 + $0x128] sm:$0xff]
        %v728 = vld [vmem:[#allocation9 + $0x130] sm:$0xff]
        %v729 = vld [vmem:[#allocation9 + $0x138] sm:$0xff]
        %v730 = vld [vmem:[#allocation9 + $0x140] sm:$0xff]
        %v731 = vld [vmem:[#allocation9 + $0x148] sm:$0xff]
        %v732 = vld [vmem:[#allocation9 + $0x150] sm:$0xff]
        %v733 = vld [vmem:[#allocation9 + $0x158] sm:$0xff]
        %v734 = vld [vmem:[#allocation9 + $0x160] sm:$0xff]
        %v735 = vld [vmem:[#allocation9 + $0x168] sm:$0xff]
        %v736 = vld [vmem:[#allocation9 + $0x170] sm:$0xff]
        %v737 = vld [vmem:[#allocation9 + $0x178] sm:$0xff]
        %v738 = vld [vmem:[#allocation9 + $0x180] sm:$0xff]
        %v739 = vld [vmem:[#allocation9 + $0x188] sm:$0xff]
        %v740 = vld [vmem:[#allocation9 + $0x190] sm:$0xff]
        %v741 = vld [vmem:[#allocation9 + $0x198] sm:$0xff]
        %v742 = vld [vmem:[#allocation9 + $0x1a0] sm:$0xff]
        %v743 = vld [vmem:[#allocation9 + $0x1a8] sm:$0xff]
        %v744 = vld [vmem:[#allocation9 + $0x1b0] sm:$0xff]
        %v745 = vld [vmem:[#allocation9 + $0x1b8] sm:$0xff]
        %v746 = vld [vmem:[#allocation9 + $0x1c0] sm:$0xff]
        %v747 = vld [vmem:[#allocation9 + $0x1c8] sm:$0xff]
        %v748 = vld [vmem:[#allocation9 + $0x1d0] sm:$0xff]
        %v749 = vld [vmem:[#allocation9 + $0x1d8] sm:$0xff]
        %v750 = vld [vmem:[#allocation9 + $0x1e0] sm:$0xff]
        %v751 = vld [vmem:[#allocation9 + $0x1e8] sm:$0xff]
        %v752 = vld [vmem:[#allocation9 + $0x1f0] sm:$0xff]
        %v753 = vld [vmem:[#allocation9 + $0x1f8] sm:$0xff]
        %v754 = vld [vmem:[#allocation9 + $0x200] sm:$0xff]
        %v755 = vld [vmem:[#allocation9 + $0x208] sm:$0xff]
        %v756 = vld [vmem:[#allocation9 + $0x210] sm:$0xff]
        %v757 = vld [vmem:[#allocation9 + $0x218] sm:$0xff]
        %v758 = vld [vmem:[#allocation9 + $0x220] sm:$0xff]
        %v759 = vld [vmem:[#allocation9 + $0x228] sm:$0xff]
        %v760 = vld [vmem:[#allocation9 + $0x230] sm:$0xff]
        %v761 = vld [vmem:[#allocation9 + $0x238] sm:$0xff]
        %v762 = vld [vmem:[#allocation9 + $0x240] sm:$0xff]
        %v763 = vld [vmem:[#allocation9 + $0x248] sm:$0xff]
        %v764 = vld [vmem:[#allocation9 + $0x250] sm:$0xff]
        %v765 = vld [vmem:[#allocation9 + $0x258] sm:$0xff]
        %v766 = vld [vmem:[#allocation9 + $0x260] sm:$0xff]
        %v767 = vld [vmem:[#allocation9 + $0x268] sm:$0xff]
        %v768 = vld [vmem:[#allocation9 + $0x270] sm:$0xff]
        %v769 = vld [vmem:[#allocation9 + $0x278] sm:$0xff]
        %v770 = vld [vmem:[#allocation9 + $0x280] sm:$0xff]
        %v771 = vld [vmem:[#allocation9 + $0x288] sm:$0xff]
        %v772 = vld [vmem:[#allocation9 + $0x290] sm:$0xff]
        %v773 = vld [vmem:[#allocation9 + $0x298] sm:$0xff]
        %v774 = vld [vmem:[#allocation9 + $0x2a0] sm:$0xff]
        %v775 = vld [vmem:[#allocation9 + $0x2a8] sm:$0xff]
        %v776 = vld [vmem:[#allocation9 + $0x2b0] sm:$0xff]
        %v777 = vld [vmem:[#allocation9 + $0x2b8] sm:$0xff]
        %v778 = vld [vmem:[#allocation9 + $0x2c0] sm:$0xff]
        %v779 = vld [vmem:[#allocation9 + $0x2c8] sm:$0xff]
        %v780 = vld [vmem:[#allocation9 + $0x2d0] sm:$0xff]
        %v781 = vld [vmem:[#allocation9 + $0x2d8] sm:$0xff]
        %v782 = vld [vmem:[#allocation9 + $0x2e0] sm:$0xff]
        %v783 = vld [vmem:[#allocation9 + $0x2e8] sm:$0xff]
        %v784 = vld [vmem:[#allocation9 + $0x2f0] sm:$0xff]
        %v785 = vld [vmem:[#allocation9 + $0x2f8] sm:$0xff]
        %v786 = vld [vmem:[#allocation9 + $0x300] sm:$0xff]
        %v787 = vld [vmem:[#allocation9 + $0x308] sm:$0xff]
        %v788 = vld [vmem:[#allocation9 + $0x310] sm:$0xff]
        %v789 = vld [vmem:[#allocation9 + $0x318] sm:$0xff]
        %v790 = vld [vmem:[#allocation9 + $0x320] sm:$0xff]
        %v791 = vld [vmem:[#allocation9 + $0x328] sm:$0xff]
        %v792 = vld [vmem:[#allocation9 + $0x330] sm:$0xff]
        %v793 = vld [vmem:[#allocation9 + $0x338] sm:$0xff]
        %v794 = vld [vmem:[#allocation9 + $0x340] sm:$0xff]
        %v795 = vld [vmem:[#allocation9 + $0x348] sm:$0xff]
        %v796 = vld [vmem:[#allocation9 + $0x350] sm:$0xff]
        %v797 = vld [vmem:[#allocation9 + $0x358] sm:$0xff]
        %v798 = vld [vmem:[#allocation9 + $0x360] sm:$0xff]
        %v799 = vld [vmem:[#allocation9 + $0x368] sm:$0xff]
        %v800 = vld [vmem:[#allocation9 + $0x370] sm:$0xff]
        %v801 = vld [vmem:[#allocation9 + $0x378] sm:$0xff]
        %v802 = vld [vmem:[#allocation9 + $0x380] sm:$0xff]
        %v803 = vld [vmem:[#allocation9 + $0x388] sm:$0xff]
        %v804 = vld [vmem:[#allocation9 + $0x390] sm:$0xff]
        %v805 = vld [vmem:[#allocation9 + $0x398] sm:$0xff]
        %v806 = vld [vmem:[#allocation9 + $0x3a0] sm:$0xff]
        %v807 = vld [vmem:[#allocation9 + $0x3a8] sm:$0xff]
        %v808 = vld [vmem:[#allocation9 + $0x3b0] sm:$0xff]
        %v809 = vld [vmem:[#allocation9 + $0x3b8] sm:$0xff]
        %v810 = vld [vmem:[#allocation9 + $0x3c0] sm:$0xff]
        %v811 = vld [vmem:[#allocation9 + $0x3c8] sm:$0xff]
        %v812 = vld [vmem:[#allocation9 + $0x3d0] sm:$0xff]
        %v813 = vld [vmem:[#allocation9 + $0x3d8] sm:$0xff]
        %v814 = vld [vmem:[#allocation9 + $0x3e0] sm:$0xff]
        %v815 = vld [vmem:[#allocation9 + $0x3e8] sm:$0xff]
        %v816 = vld [vmem:[#allocation9 + $0x3f0] sm:$0xff]
        %v817 = vld [vmem:[#allocation9 + $0x3f8] sm:$0xff]
        %v818 = vld [vmem:[#allocation9 + $0x400] sm:$0xff]
        %v819 = vld [vmem:[#allocation9 + $0x408] sm:$0xff]
        %v820 = vld [vmem:[#allocation9 + $0x410] sm:$0xff]
        %v821 = vld [vmem:[#allocation9 + $0x418] sm:$0xff]
        %v822 = vld [vmem:[#allocation9 + $0x420] sm:$0xff]
        %v823 = vld [vmem:[#allocation9 + $0x428] sm:$0xff]
        %v824 = vld [vmem:[#allocation9 + $0x430] sm:$0xff]
        %v825 = vld [vmem:[#allocation9 + $0x438] sm:$0xff]
        %v826 = vld [vmem:[#allocation9 + $0x440] sm:$0xff]
        %v827 = vld [vmem:[#allocation9 + $0x448] sm:$0xff]
        %v828 = vld [vmem:[#allocation9 + $0x450] sm:$0xff]
        %v829 = vld [vmem:[#allocation9 + $0x458] sm:$0xff]
        %v830 = vld [vmem:[#allocation9 + $0x460] sm:$0xff]
        %v831 = vld [vmem:[#allocation9 + $0x468] sm:$0xff]
        %v832 = vld [vmem:[#allocation9 + $0x470] sm:$0xff]
        %v833 = vld [vmem:[#allocation9 + $0x478] sm:$0xff]
        %v834 = vld [vmem:[#allocation9 + $0x480] sm:$0xff]
        %v835 = vld [vmem:[#allocation9 + $0x488] sm:$0xff]
        %v836 = vld [vmem:[#allocation9 + $0x490] sm:$0xff]
        %v837 = vld [vmem:[#allocation9 + $0x498] sm:$0xff]
        %v838 = vld [vmem:[#allocation9 + $0x4a0] sm:$0xff]
        %v839 = vld [vmem:[#allocation9 + $0x4a8] sm:$0xff]
        %v840 = vld [vmem:[#allocation9 + $0x4b0] sm:$0xff]
        %v841 = vld [vmem:[#allocation9 + $0x4b8] sm:$0xff]
        %v842 = vld [vmem:[#allocation9 + $0x4c0] sm:$0xff]
        %v843 = vld [vmem:[#allocation9 + $0x4c8] sm:$0xff]
        %v844 = vld [vmem:[#allocation9 + $0x4d0] sm:$0xff]
        %v845 = vld [vmem:[#allocation9 + $0x4d8] sm:$0xff]
        %v846 = vld [vmem:[#allocation9 + $0x4e0] sm:$0xff]
        %v847 = vld [vmem:[#allocation9 + $0x4e8] sm:$0xff]
        %v848 = vld [vmem:[#allocation9 + $0x4f0] sm:$0xff]
        %v849 = vld [vmem:[#allocation9 + $0x4f8] sm:$0xff]
        %v850 = vld [vmem:[#allocation9 + $0x500] sm:$0xff]
        %v851 = vld [vmem:[#allocation9 + $0x508] sm:$0xff]
        %v852 = vld [vmem:[#allocation9 + $0x510] sm:$0xff]
        %v853 = vld [vmem:[#allocation9 + $0x518] sm:$0xff]
        %v854 = vld [vmem:[#allocation9 + $0x520] sm:$0xff]
        %v855 = vld [vmem:[#allocation9 + $0x528] sm:$0xff]
        %v856 = vld [vmem:[#allocation9 + $0x530] sm:$0xff]
        %v857 = vld [vmem:[#allocation9 + $0x538] sm:$0xff]
        %v858 = vld [vmem:[#allocation9 + $0x540] sm:$0xff]
        %v859 = vld [vmem:[#allocation9 + $0x548] sm:$0xff]
        %v860 = vld [vmem:[#allocation9 + $0x550] sm:$0xff]
        %v861 = vld [vmem:[#allocation9 + $0x558] sm:$0xff]
        %v862 = vld [vmem:[#allocation9 + $0x560] sm:$0xff]
        %v863 = vld [vmem:[#allocation9 + $0x568] sm:$0xff]
        %v864 = vld [vmem:[#allocation9 + $0x570] sm:$0xff]
        %v865 = vld [vmem:[#allocation9 + $0x578] sm:$0xff]
        %v866 = vld [vmem:[#allocation9 + $0x580] sm:$0xff]
        %v867 = vld [vmem:[#allocation9 + $0x588] sm:$0xff]
        %v868 = vld [vmem:[#allocation9 + $0x590] sm:$0xff]
        %v869 = vld [vmem:[#allocation9 + $0x598] sm:$0xff]
        %v870 = vld [vmem:[#allocation9 + $0x5a0] sm:$0xff]
        %v871 = vld [vmem:[#allocation9 + $0x5a8] sm:$0xff]
        %v872 = vld [vmem:[#allocation9 + $0x5b0] sm:$0xff]
        %v873 = vld [vmem:[#allocation9 + $0x5b8] sm:$0xff]
        %v874 = vld [vmem:[#allocation9 + $0x5c0] sm:$0xff]
        %v875 = vld [vmem:[#allocation9 + $0x5c8] sm:$0xff]
        %v876 = vld [vmem:[#allocation9 + $0x5d0] sm:$0xff]
        %v877 = vld [vmem:[#allocation9 + $0x5d8] sm:$0xff]
        %v878 = vld [vmem:[#allocation9 + $0x5e0] sm:$0xff]
        %v879 = vld [vmem:[#allocation9 + $0x5e8] sm:$0xff]
        %v880 = vld [vmem:[#allocation9 + $0x5f0] sm:$0xff]
        %v881 = vld [vmem:[#allocation9 + $0x5f8] sm:$0xff]
        %v882 = vld [vmem:[#allocation9 + $0x600] sm:$0xff]
        %v883 = vld [vmem:[#allocation9 + $0x608] sm:$0xff]
        %v884 = vld [vmem:[#allocation9 + $0x610] sm:$0xff]
        %v885 = vld [vmem:[#allocation9 + $0x618] sm:$0xff]
        %v886 = vld [vmem:[#allocation9 + $0x620] sm:$0xff]
        %v887 = vld [vmem:[#allocation9 + $0x628] sm:$0xff]
        %v888 = vld [vmem:[#allocation9 + $0x630] sm:$0xff]
        %v889 = vld [vmem:[#allocation9 + $0x638] sm:$0xff]
        %v890 = vld [vmem:[#allocation9 + $0x640] sm:$0xff]
        %v891 = vld [vmem:[#allocation9 + $0x648] sm:$0xff]
        %v892 = vld [vmem:[#allocation9 + $0x650] sm:$0xff]
        %v893 = vld [vmem:[#allocation9 + $0x658] sm:$0xff]
        %v894 = vld [vmem:[#allocation9 + $0x660] sm:$0xff]
        %v895 = vld [vmem:[#allocation9 + $0x668] sm:$0xff]
        %v896 = vld [vmem:[#allocation9 + $0x670] sm:$0xff]
        %v897 = vld [vmem:[#allocation9 + $0x678] sm:$0xff]
        %v898 = vld [vmem:[#allocation9 + $0x680] sm:$0xff]
        %v899 = vld [vmem:[#allocation9 + $0x688] sm:$0xff]
        %v900 = vld [vmem:[#allocation9 + $0x690] sm:$0xff]
        %v901 = vld [vmem:[#allocation9 + $0x698] sm:$0xff]
        %v902 = vld [vmem:[#allocation9 + $0x6a0] sm:$0xff]
        %v903 = vld [vmem:[#allocation9 + $0x6a8] sm:$0xff]
        %v904 = vld [vmem:[#allocation9 + $0x6b0] sm:$0xff]
        %v905 = vld [vmem:[#allocation9 + $0x6b8] sm:$0xff]
        %v906 = vld [vmem:[#allocation9 + $0x6c0] sm:$0xff]
        %v907 = vld [vmem:[#allocation9 + $0x6c8] sm:$0xff]
        %v908 = vld [vmem:[#allocation9 + $0x6d0] sm:$0xff]
        %v909 = vld [vmem:[#allocation9 + $0x6d8] sm:$0xff]
        %v910 = vld [vmem:[#allocation9 + $0x6e0] sm:$0xff]
        %v911 = vld [vmem:[#allocation9 + $0x6e8] sm:$0xff]
        %v912 = vld [vmem:[#allocation9 + $0x6f0] sm:$0xff]
        %v913 = vld [vmem:[#allocation9 + $0x6f8] sm:$0xff]
        %v914 = vld [vmem:[#allocation9 + $0x700] sm:$0xff]
        %v915 = vld [vmem:[#allocation9 + $0x708] sm:$0xff]
        %v916 = vld [vmem:[#allocation9 + $0x710] sm:$0xff]
        %v917 = vld [vmem:[#allocation9 + $0x718] sm:$0xff]
        %v918 = vld [vmem:[#allocation9 + $0x720] sm:$0xff]
        %v919 = vld [vmem:[#allocation9 + $0x728] sm:$0xff]
        %v920 = vld [vmem:[#allocation9 + $0x730] sm:$0xff]
        %v921 = vld [vmem:[#allocation9 + $0x738] sm:$0xff]
        %v922 = vld [vmem:[#allocation9 + $0x740] sm:$0xff]
        %v923 = vld [vmem:[#allocation9 + $0x748] sm:$0xff]
        %v924 = vld [vmem:[#allocation9 + $0x750] sm:$0xff]
        %v925 = vld [vmem:[#allocation9 + $0x758] sm:$0xff]
        %v926 = vld [vmem:[#allocation9 + $0x760] sm:$0xff]
        %v927 = vld [vmem:[#allocation9 + $0x768] sm:$0xff]
        %v928 = vld [vmem:[#allocation9 + $0x770] sm:$0xff]
        %v929 = vld [vmem:[#allocation9 + $0x778] sm:$0xff]
        %v930 = vld [vmem:[#allocation9 + $0x780] sm:$0xff]
        %v931 = vld [vmem:[#allocation9 + $0x788] sm:$0xff]
        %v932 = vld [vmem:[#allocation9 + $0x790] sm:$0xff]
        %v933 = vld [vmem:[#allocation9 + $0x798] sm:$0xff]
        %v934 = vld [vmem:[#allocation9 + $0x7a0] sm:$0xff]
        %v935 = vld [vmem:[#allocation9 + $0x7a8] sm:$0xff]
        %v936 = vld [vmem:[#allocation9 + $0x7b0] sm:$0xff]
        %v937 = vld [vmem:[#allocation9 + $0x7b8] sm:$0xff]
        %v938 = vld [vmem:[#allocation9 + $0x7c0] sm:$0xff]
        %v939 = vld [vmem:[#allocation9 + $0x7c8] sm:$0xff]
        %v940 = vld [vmem:[#allocation9 + $0x7d0] sm:$0xff]
        %v941 = vld [vmem:[#allocation9 + $0x7d8] sm:$0xff]
        %v942 = vld [vmem:[#allocation9 + $0x7e0] sm:$0xff]
        %v943 = vld [vmem:[#allocation9 + $0x7e8] sm:$0xff]
        %v944 = vld [vmem:[#allocation9 + $0x7f0] sm:$0xff]
        %v945 = vld [vmem:[#allocation9 + $0x7f8] sm:$0xff]
        %v946 = vld [vmem:[#allocation10] sm:$0xf]
        %v948 = vlaneseq
        %v949 = vshrl.u32 %v948, 7
        %v950 = vsub.s32 0, %v949
        %v951 = vrot.slane %v946, %v950
        %v952 = vlaneseq
        %v953 = vshrl.u32 %v952, 7
        %v954 = vsub.s32 1, %v953
        %v955 = vrot.slane %v946, %v954
        %v956 = vlaneseq
        %v957 = vshrl.u32 %v956, 7
        %v958 = vsub.s32 2, %v957
        %v959 = vrot.slane %v946, %v958
        %v960 = vlaneseq
        %v961 = vshrl.u32 %v960, 7
        %v962 = vsub.s32 3, %v961
        %v963 = vrot.slane %v946, %v962
        %968 = vmatprep.subr.mxu0 %v691
        %969 = vmatpush1.msra.mxu0 %v690
        %970 = vmatprep.subr.mxu0 %v695
        %971 = vmatpush1.msra.mxu0 %v694
        %972 = vmatprep.subr.mxu0 %v699
        %973 = vmatpush1.msra.mxu0 %v698
        %974 = vmatprep.subr.mxu0 %v703
        %975 = vmatpush1.msra.mxu0 %v702
        %976 = vmatprep.subr.mxu0 %v707
        %977 = vmatpush1.msra.mxu0 %v706
        %978 = vmatprep.subr.mxu0 %v711
        %979 = vmatpush1.msra.mxu0 %v710
        %980 = vmatprep.subr.mxu0 %v715
        %981 = vmatpush1.msra.mxu0 %v714
        %982 = vmatprep.subr.mxu0 %v719
        %983 = vmatpush1.msra.mxu0 %v718
        %984 = vmatprep.subr.mxu0 %v723
        %985 = vmatpush1.msra.mxu0 %v722
        %986 = vmatprep.subr.mxu0 %v727
        %987 = vmatpush1.msra.mxu0 %v726
        %988 = vmatprep.subr.mxu0 %v731
        %989 = vmatpush1.msra.mxu0 %v730
        %990 = vmatprep.subr.mxu0 %v735
        %991 = vmatpush1.msra.mxu0 %v734
        %992 = vmatprep.subr.mxu0 %v739
        %993 = vmatpush1.msra.mxu0 %v738
        %994 = vmatprep.subr.mxu0 %v743
        %995 = vmatpush1.msra.mxu0 %v742
        %996 = vmatprep.subr.mxu0 %v747
        %997 = vmatpush1.msra.mxu0 %v746
        %998 = vmatprep.subr.mxu0 %v751
        %999 = vmatpush1.msra.mxu0 %v750
        %1000 = vmatprep.subr.mxu0 %v755
        %1001 = vmatpush1.msra.mxu0 %v754
        %1002 = vmatprep.subr.mxu0 %v759
        %1003 = vmatpush1.msra.mxu0 %v758
        %1004 = vmatprep.subr.mxu0 %v763
        %1005 = vmatpush1.msra.mxu0 %v762
        %1006 = vmatprep.subr.mxu0 %v767
        %1007 = vmatpush1.msra.mxu0 %v766
        %1008 = vmatprep.subr.mxu0 %v771
        %1009 = vmatpush1.msra.mxu0 %v770
        %1010 = vmatprep.subr.mxu0 %v775
        %1011 = vmatpush1.msra.mxu0 %v774
        %1012 = vmatprep.subr.mxu0 %v779
        %1013 = vmatpush1.msra.mxu0 %v778
        %1014 = vmatprep.subr.mxu0 %v783
        %1015 = vmatpush1.msra.mxu0 %v782
        %1016 = vmatprep.subr.mxu0 %v787
        %1017 = vmatpush1.msra.mxu0 %v786
        %1018 = vmatprep.subr.mxu0 %v791
        %1019 = vmatpush1.msra.mxu0 %v790
        %1020 = vmatprep.subr.mxu0 %v795
        %1021 = vmatpush1.msra.mxu0 %v794
        %1022 = vmatprep.subr.mxu0 %v799
        %1023 = vmatpush1.msra.mxu0 %v798
        %1024 = vmatprep.subr.mxu0 %v803
        %1025 = vmatpush1.msra.mxu0 %v802
        %1026 = vmatprep.subr.mxu0 %v807
        %1027 = vmatpush1.msra.mxu0 %v806
        %1028 = vmatprep.subr.mxu0 %v811
        %1029 = vmatpush1.msra.mxu0 %v810
        %1030 = vmatprep.subr.mxu0 %v815
        %1031 = vmatpush1.msra.mxu0 %v814
        %1032 = vmatprep.mubr.f32.mxu0 %v627
        %1033 = vmatmul.mubr.f32.gmra.mrb[0].mxu0 %v626
        %v1034 = vpop.f32.mrb[0].mxu0
        %v1035 = vadd.f32 %v951, %v1034
        %v1036 = vpop.f32.mrb[0].mxu0
        %v1037 = vadd.f32 %v955, %v1036
        %1038 = vmatprep.mubr.f32.mxu0 %v631
        %1039 = vmatmul.mubr.f32.gmra.mrb[0].mxu0 %v630
        %v1040 = vpop.f32.mrb[0].mxu0
        %v1041 = vadd.f32 %v951, %v1040
        %v1042 = vpop.f32.mrb[0].mxu0
        %v1043 = vadd.f32 %v955, %v1042
        %1044 = vmatprep.mubr.f32.mxu0 %v635
        %1045 = vmatmul.mubr.f32.gmra.mrb[0].mxu0 %v634
        %v1046 = vpop.f32.mrb[0].mxu0
        %v1047 = vadd.f32 %v951, %v1046
        %v1048 = vpop.f32.mrb[0].mxu0
        %v1049 = vadd.f32 %v955, %v1048
        %1050 = vmatprep.mubr.f32.mxu0 %v639
        %1051 = vmatmul.mubr.f32.gmra.mrb[0].mxu0 %v638
        %v1052 = vpop.f32.mrb[0].mxu0
        %v1053 = vadd.f32 %v951, %v1052
        %v1054 = vpop.f32.mrb[0].mxu0
        %v1055 = vadd.f32 %v955, %v1054
        %1056 = vmatprep.mubr.f32.mxu0 %v643
        %1057 = vmatmul.mubr.f32.gmra.mrb[0].mxu0 %v642
        %v1058 = vpop.f32.mrb[0].mxu0
        %v1059 = vadd.f32 %v951, %v1058
        %v1060 = vpop.f32.mrb[0].mxu0
        %v1061 = vadd.f32 %v955, %v1060
        %1062 = vmatprep.mubr.f32.mxu0 %v647
        %1063 = vmatmul.mubr.f32.gmra.mrb[0].mxu0 %v646
        %v1064 = vpop.f32.mrb[0].mxu0
        %v1065 = vadd.f32 %v951, %v1064
        %v1066 = vpop.f32.mrb[0].mxu0
        %v1067 = vadd.f32 %v955, %v1066
        %1068 = vmatprep.mubr.f32.mxu0 %v651
        %1069 = vmatmul.mubr.f32.gmra.mrb[0].mxu0 %v650
        %v1070 = vpop.f32.mrb[0].mxu0
        %v1071 = vadd.f32 %v951, %v1070
        %v1072 = vpop.f32.mrb[0].mxu0
        %v1073 = vadd.f32 %v955, %v1072
        %1074 = vmatprep.mubr.f32.mxu0 %v655
        %1075 = vmatmul.mubr.f32.gmra.mrb[0].mxu0 %v654
        %v1076 = vpop.f32.mrb[0].mxu0
        %v1077 = vadd.f32 %v951, %v1076
        %v1078 = vpop.f32.mrb[0].mxu0
        %v1079 = vadd.f32 %v955, %v1078
        %1080 = vmatprep.mubr.f32.mxu0 %v659
        %1081 = vmatmul.mubr.f32.gmra.mrb[0].mxu0 %v658
        %v1082 = vpop.f32.mrb[0].mxu0
        %v1083 = vadd.f32 %v951, %v1082
        %v1084 = vpop.f32.mrb[0].mxu0
        %v1085 = vadd.f32 %v955, %v1084
        %1086 = vmatprep.mubr.f32.mxu0 %v663
        %1087 = vmatmul.mubr.f32.gmra.mrb[0].mxu0 %v662
        %v1088 = vpop.f32.mrb[0].mxu0
        %v1089 = vadd.f32 %v951, %v1088
        %v1090 = vpop.f32.mrb[0].mxu0
        %v1091 = vadd.f32 %v955, %v1090
        %1092 = vmatprep.mubr.f32.mxu0 %v667
        %1093 = vmatmul.mubr.f32.gmra.mrb[0].mxu0 %v666
        %v1094 = vpop.f32.mrb[0].mxu0
        %v1095 = vadd.f32 %v951, %v1094
        %v1096 = vpop.f32.mrb[0].mxu0
        %v1097 = vadd.f32 %v955, %v1096
        %1098 = vmatprep.mubr.f32.mxu0 %v671
        %1099 = vmatmul.mubr.f32.gmra.mrb[0].mxu0 %v670
        %v1100 = vpop.f32.mrb[0].mxu0
        %v1101 = vadd.f32 %v951, %v1100
        %v1102 = vpop.f32.mrb[0].mxu0
        %v1103 = vadd.f32 %v955, %v1102
        %1104 = vmatprep.mubr.f32.mxu0 %v675
        %1105 = vmatmul.mubr.f32.gmra.mrb[0].mxu0 %v674
        %v1106 = vpop.f32.mrb[0].mxu0
        %v1107 = vadd.f32 %v951, %v1106
        %v1108 = vpop.f32.mrb[0].mxu0
        %v1109 = vadd.f32 %v955, %v1108
        %1110 = vmatprep.mubr.f32.mxu0 %v679
        %1111 = vmatmul.mubr.f32.gmra.mrb[0].mxu0 %v678
        %v1112 = vpop.f32.mrb[0].mxu0
        %v1113 = vadd.f32 %v951, %v1112
        %v1114 = vpop.f32.mrb[0].mxu0
        %v1115 = vadd.f32 %v955, %v1114
        %1116 = vmatprep.mubr.f32.mxu0 %v683
        %1117 = vmatmul.mubr.f32.gmra.mrb[0].mxu0 %v682
        %v1118 = vpop.f32.mrb[0].mxu0
        %v1119 = vadd.f32 %v951, %v1118
        %v1120 = vpop.f32.mrb[0].mxu0
        %v1121 = vadd.f32 %v955, %v1120
        %1122 = vmatprep.mubr.f32.mxu0 %v687
        %1123 = vmatmul.mubr.f32.gmra.mrb[0].mxu0 %v686
        %v1124 = vpop.f32.mrb[0].mxu0
        %v1125 = vadd.f32 %v951, %v1124
        %v1126 = vpop.f32.mrb[0].mxu0
        %v1127 = vadd.f32 %v955, %v1126
        %1128 = vdwg.mxu0
        %1129 = vmatprep.subr.mxu0 %v819
        %1130 = vmatpush1.msra.mxu0 %v818
        %1131 = vmatprep.subr.mxu0 %v823
        %1132 = vmatpush1.msra.mxu0 %v822
        %1133 = vmatprep.subr.mxu0 %v827
        %1134 = vmatpush1.msra.mxu0 %v826
        %1135 = vmatprep.subr.mxu0 %v831
        %1136 = vmatpush1.msra.mxu0 %v830
        %1137 = vmatprep.subr.mxu0 %v835
        %1138 = vmatpush1.msra.mxu0 %v834
        %1139 = vmatprep.subr.mxu0 %v839
        %1140 = vmatpush1.msra.mxu0 %v838
        %1141 = vmatprep.subr.mxu0 %v843
        %1142 = vmatpush1.msra.mxu0 %v842
        %1143 = vmatprep.subr.mxu0 %v847
        %1144 = vmatpush1.msra.mxu0 %v846
        %1145 = vmatprep.subr.mxu0 %v851
        %1146 = vmatpush1.msra.mxu0 %v850
        %1147 = vmatprep.subr.mxu0 %v855
        %1148 = vmatpush1.msra.mxu0 %v854
        %1149 = vmatprep.subr.mxu0 %v859
        %1150 = vmatpush1.msra.mxu0 %v858
        %1151 = vmatprep.subr.mxu0 %v863
        %1152 = vmatpush1.msra.mxu0 %v862
        %1153 = vmatprep.subr.mxu0 %v867
        %1154 = vmatpush1.msra.mxu0 %v866
        %1155 = vmatprep.subr.mxu0 %v871
        %1156 = vmatpush1.msra.mxu0 %v870
        %1157 = vmatprep.subr.mxu0 %v875
        %1158 = vmatpush1.msra.mxu0 %v874
        %1159 = vmatprep.subr.mxu0 %v879
        %1160 = vmatpush1.msra.mxu0 %v878
        %1161 = vmatprep.subr.mxu0 %v883
        %1162 = vmatpush1.msra.mxu0 %v882
        %1163 = vmatprep.subr.mxu0 %v887
        %1164 = vmatpush1.msra.mxu0 %v886
        %1165 = vmatprep.subr.mxu0 %v891
        %1166 = vmatpush1.msra.mxu0 %v890
        %1167 = vmatprep.subr.mxu0 %v895
        %1168 = vmatpush1.msra.mxu0 %v894
        %1169 = vmatprep.subr.mxu0 %v899
        %1170 = vmatpush1.msra.mxu0 %v898
        %1171 = vmatprep.subr.mxu0 %v903
        %1172 = vmatpush1.msra.mxu0 %v902
        %1173 = vmatprep.subr.mxu0 %v907
        %1174 = vmatpush1.msra.mxu0 %v906
        %1175 = vmatprep.subr.mxu0 %v911
        %1176 = vmatpush1.msra.mxu0 %v910
        %1177 = vmatprep.subr.mxu0 %v915
        %1178 = vmatpush1.msra.mxu0 %v914
        %1179 = vmatprep.subr.mxu0 %v919
        %1180 = vmatpush1.msra.mxu0 %v918
        %1181 = vmatprep.subr.mxu0 %v923
        %1182 = vmatpush1.msra.mxu0 %v922
        %1183 = vmatprep.subr.mxu0 %v927
        %1184 = vmatpush1.msra.mxu0 %v926
        %1185 = vmatprep.subr.mxu0 %v931
        %1186 = vmatpush1.msra.mxu0 %v930
        %1187 = vmatprep.subr.mxu0 %v935
        %1188 = vmatpush1.msra.mxu0 %v934
        %1189 = vmatprep.subr.mxu0 %v939
        %1190 = vmatpush1.msra.mxu0 %v938
        %1191 = vmatprep.subr.mxu0 %v943
        %1192 = vmatpush1.msra.mxu0 %v942
        %1193 = vmatprep.mubr.f32.mxu0 %v629
        %1194 = vmatmul.mubr.f32.gmra.mrb[0].mxu0 %v628
        %v1195 = vpop.f32.mrb[0].mxu0
        %v1196 = vadd.f32 %v1035, %v1195
        %v1197 = vpop.f32.mrb[0].mxu0
        %v1198 = vadd.f32 %v1037, %v1197
        %1199 = vmatprep.mubr.f32.mxu0 %v633
        %1200 = vmatmul.mubr.f32.gmra.mrb[0].mxu0 %v632
        %v1201 = vpop.f32.mrb[0].mxu0
        %v1202 = vadd.f32 %v1041, %v1201
        %v1203 = vpop.f32.mrb[0].mxu0
        %v1204 = vadd.f32 %v1043, %v1203
        %1205 = vmatprep.mubr.f32.mxu0 %v637
        %1206 = vmatmul.mubr.f32.gmra.mrb[0].mxu0 %v636
        %v1207 = vpop.f32.mrb[0].mxu0
        %v1208 = vadd.f32 %v1047, %v1207
        %v1209 = vpop.f32.mrb[0].mxu0
        %v1210 = vadd.f32 %v1049, %v1209
        %1211 = vmatprep.mubr.f32.mxu0 %v641
        %1212 = vmatmul.mubr.f32.gmra.mrb[0].mxu0 %v640
        %v1213 = vpop.f32.mrb[0].mxu0
        %v1214 = vadd.f32 %v1053, %v1213
        %v1215 = vpop.f32.mrb[0].mxu0
        %v1216 = vadd.f32 %v1055, %v1215
        %1217 = vmatprep.mubr.f32.mxu0 %v645
        %1218 = vmatmul.mubr.f32.gmra.mrb[0].mxu0 %v644
        %v1219 = vpop.f32.mrb[0].mxu0
        %v1220 = vadd.f32 %v1059, %v1219
        %v1221 = vpop.f32.mrb[0].mxu0
        %v1222 = vadd.f32 %v1061, %v1221
        %1223 = vmatprep.mubr.f32.mxu0 %v649
        %1224 = vmatmul.mubr.f32.gmra.mrb[0].mxu0 %v648
        %v1225 = vpop.f32.mrb[0].mxu0
        %v1226 = vadd.f32 %v1065, %v1225
        %v1227 = vpop.f32.mrb[0].mxu0
        %v1228 = vadd.f32 %v1067, %v1227
        %1229 = vmatprep.mubr.f32.mxu0 %v653
        %1230 = vmatmul.mubr.f32.gmra.mrb[0].mxu0 %v652
        %v1231 = vpop.f32.mrb[0].mxu0
        %v1232 = vadd.f32 %v1071, %v1231
        %v1233 = vpop.f32.mrb[0].mxu0
        %v1234 = vadd.f32 %v1073, %v1233
        %1235 = vmatprep.mubr.f32.mxu0 %v657
        %1236 = vmatmul.mubr.f32.gmra.mrb[0].mxu0 %v656
        %v1237 = vpop.f32.mrb[0].mxu0
        %v1238 = vadd.f32 %v1077, %v1237
        %v1239 = vpop.f32.mrb[0].mxu0
        %v1240 = vadd.f32 %v1079, %v1239
        %1241 = vmatprep.mubr.f32.mxu0 %v661
        %1242 = vmatmul.mubr.f32.gmra.mrb[0].mxu0 %v660
        %v1243 = vpop.f32.mrb[0].mxu0
        %v1244 = vadd.f32 %v1083, %v1243
        %v1245 = vpop.f32.mrb[0].mxu0
        %v1246 = vadd.f32 %v1085, %v1245
        %1247 = vmatprep.mubr.f32.mxu0 %v665
        %1248 = vmatmul.mubr.f32.gmra.mrb[0].mxu0 %v664
        %v1249 = vpop.f32.mrb[0].mxu0
        %v1250 = vadd.f32 %v1089, %v1249
        %v1251 = vpop.f32.mrb[0].mxu0
        %v1252 = vadd.f32 %v1091, %v1251
        %1253 = vmatprep.mubr.f32.mxu0 %v669
        %1254 = vmatmul.mubr.f32.gmra.mrb[0].mxu0 %v668
        %v1255 = vpop.f32.mrb[0].mxu0
        %v1256 = vadd.f32 %v1095, %v1255
        %v1257 = vpop.f32.mrb[0].mxu0
        %v1258 = vadd.f32 %v1097, %v1257
        %1259 = vmatprep.mubr.f32.mxu0 %v673
        %1260 = vmatmul.mubr.f32.gmra.mrb[0].mxu0 %v672
        %v1261 = vpop.f32.mrb[0].mxu0
        %v1262 = vadd.f32 %v1101, %v1261
        %v1263 = vpop.f32.mrb[0].mxu0
        %v1264 = vadd.f32 %v1103, %v1263
        %1265 = vmatprep.mubr.f32.mxu0 %v677
        %1266 = vmatmul.mubr.f32.gmra.mrb[0].mxu0 %v676
        %v1267 = vpop.f32.mrb[0].mxu0
        %v1268 = vadd.f32 %v1107, %v1267
        %v1269 = vpop.f32.mrb[0].mxu0
        %v1270 = vadd.f32 %v1109, %v1269
        %1271 = vmatprep.mubr.f32.mxu0 %v681
        %1272 = vmatmul.mubr.f32.gmra.mrb[0].mxu0 %v680
        %v1273 = vpop.f32.mrb[0].mxu0
        %v1274 = vadd.f32 %v1113, %v1273
        %v1275 = vpop.f32.mrb[0].mxu0
        %v1276 = vadd.f32 %v1115, %v1275
        %1277 = vmatprep.mubr.f32.mxu0 %v685
        %1278 = vmatmul.mubr.f32.gmra.mrb[0].mxu0 %v684
        %v1279 = vpop.f32.mrb[0].mxu0
        %v1280 = vadd.f32 %v1119, %v1279
        %v1281 = vpop.f32.mrb[0].mxu0
        %v1282 = vadd.f32 %v1121, %v1281
        %1283 = vmatprep.mubr.f32.mxu0 %v689
        %1284 = vmatmul.mubr.f32.gmra.mrb[0].mxu0 %v688
        %v1285 = vpop.f32.mrb[0].mxu0
        %v1286 = vadd.f32 %v1125, %v1285
        %v1287 = vpop.f32.mrb[0].mxu0
        %v1288 = vadd.f32 %v1127, %v1287
        %1289 = vdwg.mxu0
        %1290 = vmatprep.subr.mxu0 %v693
        %1291 = vmatpush1.msra.mxu0 %v692
        %1292 = vmatprep.subr.mxu0 %v697
        %1293 = vmatpush1.msra.mxu0 %v696
        %1294 = vmatprep.subr.mxu0 %v701
        %1295 = vmatpush1.msra.mxu0 %v700
        %1296 = vmatprep.subr.mxu0 %v705
        %1297 = vmatpush1.msra.mxu0 %v704
        %1298 = vmatprep.subr.mxu0 %v709
        %1299 = vmatpush1.msra.mxu0 %v708
        %1300 = vmatprep.subr.mxu0 %v713
        %1301 = vmatpush1.msra.mxu0 %v712
        %1302 = vmatprep.subr.mxu0 %v717
        %1303 = vmatpush1.msra.mxu0 %v716
        %1304 = vmatprep.subr.mxu0 %v721
        %1305 = vmatpush1.msra.mxu0 %v720
        %1306 = vmatprep.subr.mxu0 %v725
        %1307 = vmatpush1.msra.mxu0 %v724
        %1308 = vmatprep.subr.mxu0 %v729
        %1309 = vmatpush1.msra.mxu0 %v728
        %1310 = vmatprep.subr.mxu0 %v733
        %1311 = vmatpush1.msra.mxu0 %v732
        %1312 = vmatprep.subr.mxu0 %v737
        %1313 = vmatpush1.msra.mxu0 %v736
        %1314 = vmatprep.subr.mxu0 %v741
        %1315 = vmatpush1.msra.mxu0 %v740
        %1316 = vmatprep.subr.mxu0 %v745
        %1317 = vmatpush1.msra.mxu0 %v744
        %1318 = vmatprep.subr.mxu0 %v749
        %1319 = vmatpush1.msra.mxu0 %v748
        %1320 = vmatprep.subr.mxu0 %v753
        %1321 = vmatpush1.msra.mxu0 %v752
        %1322 = vmatprep.subr.mxu0 %v757
        %1323 = vmatpush1.msra.mxu0 %v756
        %1324 = vmatprep.subr.mxu0 %v761
        %1325 = vmatpush1.msra.mxu0 %v760
        %1326 = vmatprep.subr.mxu0 %v765
        %1327 = vmatpush1.msra.mxu0 %v764
        %1328 = vmatprep.subr.mxu0 %v769
        %1329 = vmatpush1.msra.mxu0 %v768
        %1330 = vmatprep.subr.mxu0 %v773
        %1331 = vmatpush1.msra.mxu0 %v772
        %1332 = vmatprep.subr.mxu0 %v777
        %1333 = vmatpush1.msra.mxu0 %v776
        %1334 = vmatprep.subr.mxu0 %v781
        %1335 = vmatpush1.msra.mxu0 %v780
        %1336 = vmatprep.subr.mxu0 %v785
        %1337 = vmatpush1.msra.mxu0 %v784
        %1338 = vmatprep.subr.mxu0 %v789
        %1339 = vmatpush1.msra.mxu0 %v788
        %1340 = vmatprep.subr.mxu0 %v793
        %1341 = vmatpush1.msra.mxu0 %v792
        %1342 = vmatprep.subr.mxu0 %v797
        %1343 = vmatpush1.msra.mxu0 %v796
        %1344 = vmatprep.subr.mxu0 %v801
        %1345 = vmatpush1.msra.mxu0 %v800
        %1346 = vmatprep.subr.mxu0 %v805
        %1347 = vmatpush1.msra.mxu0 %v804
        %1348 = vmatprep.subr.mxu0 %v809
        %1349 = vmatpush1.msra.mxu0 %v808
        %1350 = vmatprep.subr.mxu0 %v813
        %1351 = vmatpush1.msra.mxu0 %v812
        %1352 = vmatprep.subr.mxu0 %v817
        %1353 = vmatpush1.msra.mxu0 %v816
        %1354 = vmatprep.mubr.f32.mxu0 %v627
        %1355 = vmatmul.mubr.f32.gmra.mrb[0].mxu0 %v626
        %v1356 = vpop.f32.mrb[0].mxu0
        %v1357 = vadd.f32 %v959, %v1356
        %v1358 = vpop.f32.mrb[0].mxu0
        %v1359 = vadd.f32 %v963, %v1358
        %1360 = vmatprep.mubr.f32.mxu0 %v631
        %1361 = vmatmul.mubr.f32.gmra.mrb[0].mxu0 %v630
        %v1362 = vpop.f32.mrb[0].mxu0
        %v1363 = vadd.f32 %v959, %v1362
        %v1364 = vpop.f32.mrb[0].mxu0
        %v1365 = vadd.f32 %v963, %v1364
        %1366 = vmatprep.mubr.f32.mxu0 %v635
        %1367 = vmatmul.mubr.f32.gmra.mrb[0].mxu0 %v634
        %v1368 = vpop.f32.mrb[0].mxu0
        %v1369 = vadd.f32 %v959, %v1368
        %v1370 = vpop.f32.mrb[0].mxu0
        %v1371 = vadd.f32 %v963, %v1370
        %1372 = vmatprep.mubr.f32.mxu0 %v639
        %1373 = vmatmul.mubr.f32.gmra.mrb[0].mxu0 %v638
        %v1374 = vpop.f32.mrb[0].mxu0
        %v1375 = vadd.f32 %v959, %v1374
        %v1376 = vpop.f32.mrb[0].mxu0
        %v1377 = vadd.f32 %v963, %v1376
        %1378 = vmatprep.mubr.f32.mxu0 %v643
        %1379 = vmatmul.mubr.f32.gmra.mrb[0].mxu0 %v642
        %v1380 = vpop.f32.mrb[0].mxu0
        %v1381 = vadd.f32 %v959, %v1380
        %v1382 = vpop.f32.mrb[0].mxu0
        %v1383 = vadd.f32 %v963, %v1382
        %1384 = vmatprep.mubr.f32.mxu0 %v647
        %1385 = vmatmul.mubr.f32.gmra.mrb[0].mxu0 %v646
        %v1386 = vpop.f32.mrb[0].mxu0
        %v1387 = vadd.f32 %v959, %v1386
        %v1388 = vpop.f32.mrb[0].mxu0
        %v1389 = vadd.f32 %v963, %v1388
        %1390 = vmatprep.mubr.f32.mxu0 %v651
        %1391 = vmatmul.mubr.f32.gmra.mrb[0].mxu0 %v650
        %v1392 = vpop.f32.mrb[0].mxu0
        %v1393 = vadd.f32 %v959, %v1392
        %v1394 = vpop.f32.mrb[0].mxu0
        %v1395 = vadd.f32 %v963, %v1394
        %1396 = vmatprep.mubr.f32.mxu0 %v655
        %1397 = vmatmul.mubr.f32.gmra.mrb[0].mxu0 %v654
        %v1398 = vpop.f32.mrb[0].mxu0
        %v1399 = vadd.f32 %v959, %v1398
        %v1400 = vpop.f32.mrb[0].mxu0
        %v1401 = vadd.f32 %v963, %v1400
        %1402 = vmatprep.mubr.f32.mxu0 %v659
        %1403 = vmatmul.mubr.f32.gmra.mrb[0].mxu0 %v658
        %v1404 = vpop.f32.mrb[0].mxu0
        %v1405 = vadd.f32 %v959, %v1404
        %v1406 = vpop.f32.mrb[0].mxu0
        %v1407 = vadd.f32 %v963, %v1406
        %1408 = vmatprep.mubr.f32.mxu0 %v663
        %1409 = vmatmul.mubr.f32.gmra.mrb[0].mxu0 %v662
        %v1410 = vpop.f32.mrb[0].mxu0
        %v1411 = vadd.f32 %v959, %v1410
        %v1412 = vpop.f32.mrb[0].mxu0
        %v1413 = vadd.f32 %v963, %v1412
        %1414 = vmatprep.mubr.f32.mxu0 %v667
        %1415 = vmatmul.mubr.f32.gmra.mrb[0].mxu0 %v666
        %v1416 = vpop.f32.mrb[0].mxu0
        %v1417 = vadd.f32 %v959, %v1416
        %v1418 = vpop.f32.mrb[0].mxu0
        %v1419 = vadd.f32 %v963, %v1418
        %1420 = vmatprep.mubr.f32.mxu0 %v671
        %1421 = vmatmul.mubr.f32.gmra.mrb[0].mxu0 %v670
        %v1422 = vpop.f32.mrb[0].mxu0
        %v1423 = vadd.f32 %v959, %v1422
        %v1424 = vpop.f32.mrb[0].mxu0
        %v1425 = vadd.f32 %v963, %v1424
        %1426 = vmatprep.mubr.f32.mxu0 %v675
        %1427 = vmatmul.mubr.f32.gmra.mrb[0].mxu0 %v674
        %v1428 = vpop.f32.mrb[0].mxu0
        %v1429 = vadd.f32 %v959, %v1428
        %v1430 = vpop.f32.mrb[0].mxu0
        %v1431 = vadd.f32 %v963, %v1430
        %1432 = vmatprep.mubr.f32.mxu0 %v679
        %1433 = vmatmul.mubr.f32.gmra.mrb[0].mxu0 %v678
        %v1434 = vpop.f32.mrb[0].mxu0
        %v1435 = vadd.f32 %v959, %v1434
        %v1436 = vpop.f32.mrb[0].mxu0
        %v1437 = vadd.f32 %v963, %v1436
        %1438 = vmatprep.mubr.f32.mxu0 %v683
        %1439 = vmatmul.mubr.f32.gmra.mrb[0].mxu0 %v682
        %v1440 = vpop.f32.mrb[0].mxu0
        %v1441 = vadd.f32 %v959, %v1440
        %v1442 = vpop.f32.mrb[0].mxu0
        %v1443 = vadd.f32 %v963, %v1442
        %1444 = vmatprep.mubr.f32.mxu0 %v687
        %1445 = vmatmul.mubr.f32.gmra.mrb[0].mxu0 %v686
        %v1446 = vpop.f32.mrb[0].mxu0
        %v1447 = vadd.f32 %v959, %v1446
        %v1448 = vpop.f32.mrb[0].mxu0
        %v1449 = vadd.f32 %v963, %v1448
        %1450 = vdwg.mxu0
        %1451 = vmatprep.subr.mxu0 %v821
        %1452 = vmatpush1.msra.mxu0 %v820
        %1453 = vmatprep.subr.mxu0 %v825
        %1454 = vmatpush1.msra.mxu0 %v824
        %1455 = vmatprep.subr.mxu0 %v829
        %1456 = vmatpush1.msra.mxu0 %v828
        %1457 = vmatprep.subr.mxu0 %v833
        %1458 = vmatpush1.msra.mxu0 %v832
        %1459 = vmatprep.subr.mxu0 %v837
        %1460 = vmatpush1.msra.mxu0 %v836
        %1461 = vmatprep.subr.mxu0 %v841
        %1462 = vmatpush1.msra.mxu0 %v840
        %1463 = vmatprep.subr.mxu0 %v845
        %1464 = vmatpush1.msra.mxu0 %v844
        %1465 = vmatprep.subr.mxu0 %v849
        %1466 = vmatpush1.msra.mxu0 %v848
        %1467 = vmatprep.subr.mxu0 %v853
        %1468 = vmatpush1.msra.mxu0 %v852
        %1469 = vmatprep.subr.mxu0 %v857
        %1470 = vmatpush1.msra.mxu0 %v856
        %1471 = vmatprep.subr.mxu0 %v861
        %1472 = vmatpush1.msra.mxu0 %v860
        %1473 = vmatprep.subr.mxu0 %v865
        %1474 = vmatpush1.msra.mxu0 %v864
        %1475 = vmatprep.subr.mxu0 %v869
        %1476 = vmatpush1.msra.mxu0 %v868
        %1477 = vmatprep.subr.mxu0 %v873
        %1478 = vmatpush1.msra.mxu0 %v872
        %1479 = vmatprep.subr.mxu0 %v877
        %1480 = vmatpush1.msra.mxu0 %v876
        %1481 = vmatprep.subr.mxu0 %v881
        %1482 = vmatpush1.msra.mxu0 %v880
        %1483 = vmatprep.subr.mxu0 %v885
        %1484 = vmatpush1.msra.mxu0 %v884
        %1485 = vmatprep.subr.mxu0 %v889
        %1486 = vmatpush1.msra.mxu0 %v888
        %1487 = vmatprep.subr.mxu0 %v893
        %1488 = vmatpush1.msra.mxu0 %v892
        %1489 = vmatprep.subr.mxu0 %v897
        %1490 = vmatpush1.msra.mxu0 %v896
        %1491 = vmatprep.subr.mxu0 %v901
        %1492 = vmatpush1.msra.mxu0 %v900
        %1493 = vmatprep.subr.mxu0 %v905
        %1494 = vmatpush1.msra.mxu0 %v904
        %1495 = vmatprep.subr.mxu0 %v909
        %1496 = vmatpush1.msra.mxu0 %v908
        %1497 = vmatprep.subr.mxu0 %v913
        %1498 = vmatpush1.msra.mxu0 %v912
        %1499 = vmatprep.subr.mxu0 %v917
        %1500 = vmatpush1.msra.mxu0 %v916
        %1501 = vmatprep.subr.mxu0 %v921
        %1502 = vmatpush1.msra.mxu0 %v920
        %1503 = vmatprep.subr.mxu0 %v925
        %1504 = vmatpush1.msra.mxu0 %v924
        %1505 = vmatprep.subr.mxu0 %v929
        %1506 = vmatpush1.msra.mxu0 %v928
        %1507 = vmatprep.subr.mxu0 %v933
        %1508 = vmatpush1.msra.mxu0 %v932
        %1509 = vmatprep.subr.mxu0 %v937
        %1510 = vmatpush1.msra.mxu0 %v936
        %1511 = vmatprep.subr.mxu0 %v941
        %1512 = vmatpush1.msra.mxu0 %v940
        %1513 = vmatprep.subr.mxu0 %v945
        %1514 = vmatpush1.msra.mxu0 %v944
        %1515 = vmatprep.mubr.f32.mxu0 %v629
        %1516 = vmatmul.mubr.f32.gmra.mrb[0].mxu0 %v628
        %v1517 = vpop.f32.mrb[0].mxu0
        %v1518 = vadd.f32 %v1357, %v1517
        %v1519 = vpop.f32.mrb[0].mxu0
        %v1520 = vadd.f32 %v1359, %v1519
        %1521 = vmatprep.mubr.f32.mxu0 %v633
        %1522 = vmatmul.mubr.f32.gmra.mrb[0].mxu0 %v632
        %v1523 = vpop.f32.mrb[0].mxu0
        %v1524 = vadd.f32 %v1363, %v1523
        %v1525 = vpop.f32.mrb[0].mxu0
        %v1526 = vadd.f32 %v1365, %v1525
        %1527 = vmatprep.mubr.f32.mxu0 %v637
        %1528 = vmatmul.mubr.f32.gmra.mrb[0].mxu0 %v636
        %v1529 = vpop.f32.mrb[0].mxu0
        %v1530 = vadd.f32 %v1369, %v1529
        %v1531 = vpop.f32.mrb[0].mxu0
        %v1532 = vadd.f32 %v1371, %v1531
        %1533 = vmatprep.mubr.f32.mxu0 %v641
        %1534 = vmatmul.mubr.f32.gmra.mrb[0].mxu0 %v640
        %v1535 = vpop.f32.mrb[0].mxu0
        %v1536 = vadd.f32 %v1375, %v1535
        %v1537 = vpop.f32.mrb[0].mxu0
        %v1538 = vadd.f32 %v1377, %v1537
        %1539 = vmatprep.mubr.f32.mxu0 %v645
        %1540 = vmatmul.mubr.f32.gmra.mrb[0].mxu0 %v644
        %v1541 = vpop.f32.mrb[0].mxu0
        %v1542 = vadd.f32 %v1381, %v1541
        %v1543 = vpop.f32.mrb[0].mxu0
        %v1544 = vadd.f32 %v1383, %v1543
        %1545 = vmatprep.mubr.f32.mxu0 %v649
        %1546 = vmatmul.mubr.f32.gmra.mrb[0].mxu0 %v648
        %v1547 = vpop.f32.mrb[0].mxu0
        %v1548 = vadd.f32 %v1387, %v1547
        %v1549 = vpop.f32.mrb[0].mxu0
        %v1550 = vadd.f32 %v1389, %v1549
        %1551 = vmatprep.mubr.f32.mxu0 %v653
        %1552 = vmatmul.mubr.f32.gmra.mrb[0].mxu0 %v652
        %v1553 = vpop.f32.mrb[0].mxu0
        %v1554 = vadd.f32 %v1393, %v1553
        %v1555 = vpop.f32.mrb[0].mxu0
        %v1556 = vadd.f32 %v1395, %v1555
        %1557 = vmatprep.mubr.f32.mxu0 %v657
        %1558 = vmatmul.mubr.f32.gmra.mrb[0].mxu0 %v656
        %v1559 = vpop.f32.mrb[0].mxu0
        %v1560 = vadd.f32 %v1399, %v1559
        %v1561 = vpop.f32.mrb[0].mxu0
        %v1562 = vadd.f32 %v1401, %v1561
        %1563 = vmatprep.mubr.f32.mxu0 %v661
        %1564 = vmatmul.mubr.f32.gmra.mrb[0].mxu0 %v660
        %v1565 = vpop.f32.mrb[0].mxu0
        %v1566 = vadd.f32 %v1405, %v1565
        %v1567 = vpop.f32.mrb[0].mxu0
        %v1568 = vadd.f32 %v1407, %v1567
        %1569 = vmatprep.mubr.f32.mxu0 %v665
        %1570 = vmatmul.mubr.f32.gmra.mrb[0].mxu0 %v664
        %v1571 = vpop.f32.mrb[0].mxu0
        %v1572 = vadd.f32 %v1411, %v1571
        %v1573 = vpop.f32.mrb[0].mxu0
        %v1574 = vadd.f32 %v1413, %v1573
        %1575 = vmatprep.mubr.f32.mxu0 %v669
        %1576 = vmatmul.mubr.f32.gmra.mrb[0].mxu0 %v668
        %v1577 = vpop.f32.mrb[0].mxu0
        %v1578 = vadd.f32 %v1417, %v1577
        %v1579 = vpop.f32.mrb[0].mxu0
        %v1580 = vadd.f32 %v1419, %v1579
        %1581 = vmatprep.mubr.f32.mxu0 %v673
        %1582 = vmatmul.mubr.f32.gmra.mrb[0].mxu0 %v672
        %v1583 = vpop.f32.mrb[0].mxu0
        %v1584 = vadd.f32 %v1423, %v1583
        %v1585 = vpop.f32.mrb[0].mxu0
        %v1586 = vadd.f32 %v1425, %v1585
        %1587 = vmatprep.mubr.f32.mxu0 %v677
        %1588 = vmatmul.mubr.f32.gmra.mrb[0].mxu0 %v676
        %v1589 = vpop.f32.mrb[0].mxu0
        %v1590 = vadd.f32 %v1429, %v1589
        %v1591 = vpop.f32.mrb[0].mxu0
        %v1592 = vadd.f32 %v1431, %v1591
        %1593 = vmatprep.mubr.f32.mxu0 %v681
        %1594 = vmatmul.mubr.f32.gmra.mrb[0].mxu0 %v680
        %v1595 = vpop.f32.mrb[0].mxu0
        %v1596 = vadd.f32 %v1435, %v1595
        %v1597 = vpop.f32.mrb[0].mxu0
        %v1598 = vadd.f32 %v1437, %v1597
        %1599 = vmatprep.mubr.f32.mxu0 %v685
        %1600 = vmatmul.mubr.f32.gmra.mrb[0].mxu0 %v684
        %v1601 = vpop.f32.mrb[0].mxu0
        %v1602 = vadd.f32 %v1441, %v1601
        %v1603 = vpop.f32.mrb[0].mxu0
        %v1604 = vadd.f32 %v1443, %v1603
        %1605 = vmatprep.mubr.f32.mxu0 %v689
        %1606 = vmatmul.mubr.f32.gmra.mrb[0].mxu0 %v688
        %v1607 = vpop.f32.mrb[0].mxu0
        %v1608 = vadd.f32 %v1447, %v1607
        %v1609 = vpop.f32.mrb[0].mxu0
        %v1610 = vadd.f32 %v1449, %v1609
        %1611 = vdwg.mxu0
        %v1612 = vtanh.pop %v1196
        %v1613 = vtanh.pop %v1198
        %v1614 = vtanh.pop %v1518
        %v1615 = vtanh.pop %v1520
        %v1616 = vtanh.pop %v1202
        %v1617 = vtanh.pop %v1204
        %v1618 = vtanh.pop %v1524
        %v1619 = vtanh.pop %v1526
        %v1620 = vtanh.pop %v1208
        %v1621 = vtanh.pop %v1210
        %v1622 = vtanh.pop %v1530
        %v1623 = vtanh.pop %v1532
        %v1624 = vtanh.pop %v1214
        %v1625 = vtanh.pop %v1216
        %v1626 = vtanh.pop %v1536
        %v1627 = vtanh.pop %v1538
        %v1628 = vtanh.pop %v1220
        %v1629 = vtanh.pop %v1222
        %v1630 = vtanh.pop %v1542
        %v1631 = vtanh.pop %v1544
        %v1632 = vtanh.pop %v1226
        %v1633 = vtanh.pop %v1228
        %v1634 = vtanh.pop %v1548
        %v1635 = vtanh.pop %v1550
        %v1636 = vtanh.pop %v1232
        %v1637 = vtanh.pop %v1234
        %v1638 = vtanh.pop %v1554
        %v1639 = vtanh.pop %v1556
        %v1640 = vtanh.pop %v1238
        %v1641 = vtanh.pop %v1240
        %v1642 = vtanh.pop %v1560
        %v1643 = vtanh.pop %v1562
        %v1644 = vtanh.pop %v1244
        %v1645 = vtanh.pop %v1246
        %v1646 = vtanh.pop %v1566
        %v1647 = vtanh.pop %v1568
        %v1648 = vtanh.pop %v1250
        %v1649 = vtanh.pop %v1252
        %v1650 = vtanh.pop %v1572
        %v1651 = vtanh.pop %v1574
        %v1652 = vtanh.pop %v1256
        %v1653 = vtanh.pop %v1258
        %v1654 = vtanh.pop %v1578
        %v1655 = vtanh.pop %v1580
        %v1656 = vtanh.pop %v1262
        %v1657 = vtanh.pop %v1264
        %v1658 = vtanh.pop %v1584
        %v1659 = vtanh.pop %v1586
        %v1660 = vtanh.pop %v1268
        %v1661 = vtanh.pop %v1270
        %v1662 = vtanh.pop %v1590
        %v1663 = vtanh.pop %v1592
        %v1664 = vtanh.pop %v1274
        %v1665 = vtanh.pop %v1276
        %v1666 = vtanh.pop %v1596
        %v1667 = vtanh.pop %v1598
        %v1668 = vtanh.pop %v1280
        %v1669 = vtanh.pop %v1282
        %v1670 = vtanh.pop %v1602
        %v1671 = vtanh.pop %v1604
        %v1672 = vtanh.pop %v1286
        %v1673 = vtanh.pop %v1288
        %v1674 = vtanh.pop %v1608
        %v1675 = vtanh.pop %v1610
        %v1676 = vld [vmem:[#allocation12] sm:$0xff]
        %v1677 = vld [vmem:[#allocation12 + $0x8] sm:$0xff]
        %v1678 = vld [vmem:[#allocation12 + $0x10] sm:$0xff]
        %v1679 = vld [vmem:[#allocation12 + $0x18] sm:$0xff]
        %v1680 = vld [vmem:[#allocation12 + $0x20] sm:$0xff]
        %v1681 = vld [vmem:[#allocation12 + $0x28] sm:$0xff]
        %v1682 = vld [vmem:[#allocation12 + $0x30] sm:$0xff]
        %v1683 = vld [vmem:[#allocation12 + $0x38] sm:$0xff]
        %v1684 = vld [vmem:[#allocation12 + $0x40] sm:$0xff]
        %v1685 = vld [vmem:[#allocation12 + $0x48] sm:$0xff]
        %v1686 = vld [vmem:[#allocation12 + $0x50] sm:$0xff]
        %v1687 = vld [vmem:[#allocation12 + $0x58] sm:$0xff]
        %v1688 = vld [vmem:[#allocation12 + $0x60] sm:$0xff]
        %v1689 = vld [vmem:[#allocation12 + $0x68] sm:$0xff]
        %v1690 = vld [vmem:[#allocation12 + $0x70] sm:$0xff]
        %v1691 = vld [vmem:[#allocation12 + $0x78] sm:$0xff]
        %v1692 = vld [vmem:[#allocation12 + $0x80] sm:$0xff]
        %v1693 = vld [vmem:[#allocation12 + $0x88] sm:$0xff]
        %v1694 = vld [vmem:[#allocation12 + $0x90] sm:$0xff]
        %v1695 = vld [vmem:[#allocation12 + $0x98] sm:$0xff]
        %v1696 = vld [vmem:[#allocation12 + $0xa0] sm:$0xff]
        %v1697 = vld [vmem:[#allocation12 + $0xa8] sm:$0xff]
        %v1698 = vld [vmem:[#allocation12 + $0xb0] sm:$0xff]
        %v1699 = vld [vmem:[#allocation12 + $0xb8] sm:$0xff]
        %v1700 = vld [vmem:[#allocation12 + $0xc0] sm:$0xff]
        %v1701 = vld [vmem:[#allocation12 + $0xc8] sm:$0xff]
        %v1702 = vld [vmem:[#allocation12 + $0xd0] sm:$0xff]
        %v1703 = vld [vmem:[#allocation12 + $0xd8] sm:$0xff]
        %v1704 = vld [vmem:[#allocation12 + $0xe0] sm:$0xff]
        %v1705 = vld [vmem:[#allocation12 + $0xe8] sm:$0xff]
        %v1706 = vld [vmem:[#allocation12 + $0xf0] sm:$0xff]
        %v1707 = vld [vmem:[#allocation12 + $0xf8] sm:$0xff]
        %v1708 = vld [vmem:[#allocation12 + $0x100] sm:$0xff]
        %v1709 = vld [vmem:[#allocation12 + $0x108] sm:$0xff]
        %v1710 = vld [vmem:[#allocation12 + $0x110] sm:$0xff]
        %v1711 = vld [vmem:[#allocation12 + $0x118] sm:$0xff]
        %v1712 = vld [vmem:[#allocation12 + $0x120] sm:$0xff]
        %v1713 = vld [vmem:[#allocation12 + $0x128] sm:$0xff]
        %v1714 = vld [vmem:[#allocation12 + $0x130] sm:$0xff]
        %v1715 = vld [vmem:[#allocation12 + $0x138] sm:$0xff]
        %v1716 = vld [vmem:[#allocation12 + $0x140] sm:$0xff]
        %v1717 = vld [vmem:[#allocation12 + $0x148] sm:$0xff]
        %v1718 = vld [vmem:[#allocation12 + $0x150] sm:$0xff]
        %v1719 = vld [vmem:[#allocation12 + $0x158] sm:$0xff]
        %v1720 = vld [vmem:[#allocation12 + $0x160] sm:$0xff]
        %v1721 = vld [vmem:[#allocation12 + $0x168] sm:$0xff]
        %v1722 = vld [vmem:[#allocation12 + $0x170] sm:$0xff]
        %v1723 = vld [vmem:[#allocation12 + $0x178] sm:$0xff]
        %v1724 = vld [vmem:[#allocation12 + $0x180] sm:$0xff]
        %v1725 = vld [vmem:[#allocation12 + $0x188] sm:$0xff]
        %v1726 = vld [vmem:[#allocation12 + $0x190] sm:$0xff]
        %v1727 = vld [vmem:[#allocation12 + $0x198] sm:$0xff]
        %v1728 = vld [vmem:[#allocation12 + $0x1a0] sm:$0xff]
        %v1729 = vld [vmem:[#allocation12 + $0x1a8] sm:$0xff]
        %v1730 = vld [vmem:[#allocation12 + $0x1b0] sm:$0xff]
        %v1731 = vld [vmem:[#allocation12 + $0x1b8] sm:$0xff]
        %v1732 = vld [vmem:[#allocation12 + $0x1c0] sm:$0xff]
        %v1733 = vld [vmem:[#allocation12 + $0x1c8] sm:$0xff]
        %v1734 = vld [vmem:[#allocation12 + $0x1d0] sm:$0xff]
        %v1735 = vld [vmem:[#allocation12 + $0x1d8] sm:$0xff]
        %v1736 = vld [vmem:[#allocation12 + $0x1e0] sm:$0xff]
        %v1737 = vld [vmem:[#allocation12 + $0x1e8] sm:$0xff]
        %v1738 = vld [vmem:[#allocation12 + $0x1f0] sm:$0xff]
        %v1739 = vld [vmem:[#allocation12 + $0x1f8] sm:$0xff]
        %v1740 = vld [vmem:[#allocation12 + $0x200] sm:$0xff]
        %v1741 = vld [vmem:[#allocation12 + $0x208] sm:$0xff]
        %v1742 = vld [vmem:[#allocation12 + $0x210] sm:$0xff]
        %v1743 = vld [vmem:[#allocation12 + $0x218] sm:$0xff]
        %v1744 = vld [vmem:[#allocation12 + $0x220] sm:$0xff]
        %v1745 = vld [vmem:[#allocation12 + $0x228] sm:$0xff]
        %v1746 = vld [vmem:[#allocation12 + $0x230] sm:$0xff]
        %v1747 = vld [vmem:[#allocation12 + $0x238] sm:$0xff]
        %v1748 = vld [vmem:[#allocation12 + $0x240] sm:$0xff]
        %v1749 = vld [vmem:[#allocation12 + $0x248] sm:$0xff]
        %v1750 = vld [vmem:[#allocation12 + $0x250] sm:$0xff]
        %v1751 = vld [vmem:[#allocation12 + $0x258] sm:$0xff]
        %v1752 = vld [vmem:[#allocation12 + $0x260] sm:$0xff]
        %v1753 = vld [vmem:[#allocation12 + $0x268] sm:$0xff]
        %v1754 = vld [vmem:[#allocation12 + $0x270] sm:$0xff]
        %v1755 = vld [vmem:[#allocation12 + $0x278] sm:$0xff]
        %v1756 = vld [vmem:[#allocation12 + $0x280] sm:$0xff]
        %v1757 = vld [vmem:[#allocation12 + $0x288] sm:$0xff]
        %v1758 = vld [vmem:[#allocation12 + $0x290] sm:$0xff]
        %v1759 = vld [vmem:[#allocation12 + $0x298] sm:$0xff]
        %v1760 = vld [vmem:[#allocation12 + $0x2a0] sm:$0xff]
        %v1761 = vld [vmem:[#allocation12 + $0x2a8] sm:$0xff]
        %v1762 = vld [vmem:[#allocation12 + $0x2b0] sm:$0xff]
        %v1763 = vld [vmem:[#allocation12 + $0x2b8] sm:$0xff]
        %v1764 = vld [vmem:[#allocation12 + $0x2c0] sm:$0xff]
        %v1765 = vld [vmem:[#allocation12 + $0x2c8] sm:$0xff]
        %v1766 = vld [vmem:[#allocation12 + $0x2d0] sm:$0xff]
        %v1767 = vld [vmem:[#allocation12 + $0x2d8] sm:$0xff]
        %v1768 = vld [vmem:[#allocation12 + $0x2e0] sm:$0xff]
        %v1769 = vld [vmem:[#allocation12 + $0x2e8] sm:$0xff]
        %v1770 = vld [vmem:[#allocation12 + $0x2f0] sm:$0xff]
        %v1771 = vld [vmem:[#allocation12 + $0x2f8] sm:$0xff]
        %v1772 = vld [vmem:[#allocation12 + $0x300] sm:$0xff]
        %v1773 = vld [vmem:[#allocation12 + $0x308] sm:$0xff]
        %v1774 = vld [vmem:[#allocation12 + $0x310] sm:$0xff]
        %v1775 = vld [vmem:[#allocation12 + $0x318] sm:$0xff]
        %v1776 = vld [vmem:[#allocation12 + $0x320] sm:$0xff]
        %v1777 = vld [vmem:[#allocation12 + $0x328] sm:$0xff]
        %v1778 = vld [vmem:[#allocation12 + $0x330] sm:$0xff]
        %v1779 = vld [vmem:[#allocation12 + $0x338] sm:$0xff]
        %v1780 = vld [vmem:[#allocation12 + $0x340] sm:$0xff]
        %v1781 = vld [vmem:[#allocation12 + $0x348] sm:$0xff]
        %v1782 = vld [vmem:[#allocation12 + $0x350] sm:$0xff]
        %v1783 = vld [vmem:[#allocation12 + $0x358] sm:$0xff]
        %v1784 = vld [vmem:[#allocation12 + $0x360] sm:$0xff]
        %v1785 = vld [vmem:[#allocation12 + $0x368] sm:$0xff]
        %v1786 = vld [vmem:[#allocation12 + $0x370] sm:$0xff]
        %v1787 = vld [vmem:[#allocation12 + $0x378] sm:$0xff]
        %v1788 = vld [vmem:[#allocation12 + $0x380] sm:$0xff]
        %v1789 = vld [vmem:[#allocation12 + $0x388] sm:$0xff]
        %v1790 = vld [vmem:[#allocation12 + $0x390] sm:$0xff]
        %v1791 = vld [vmem:[#allocation12 + $0x398] sm:$0xff]
        %v1792 = vld [vmem:[#allocation12 + $0x3a0] sm:$0xff]
        %v1793 = vld [vmem:[#allocation12 + $0x3a8] sm:$0xff]
        %v1794 = vld [vmem:[#allocation12 + $0x3b0] sm:$0xff]
        %v1795 = vld [vmem:[#allocation12 + $0x3b8] sm:$0xff]
        %v1796 = vld [vmem:[#allocation12 + $0x3c0] sm:$0xff]
        %v1797 = vld [vmem:[#allocation12 + $0x3c8] sm:$0xff]
        %v1798 = vld [vmem:[#allocation12 + $0x3d0] sm:$0xff]
        %v1799 = vld [vmem:[#allocation12 + $0x3d8] sm:$0xff]
        %v1800 = vld [vmem:[#allocation12 + $0x3e0] sm:$0xff]
        %v1801 = vld [vmem:[#allocation12 + $0x3e8] sm:$0xff]
        %v1802 = vld [vmem:[#allocation12 + $0x3f0] sm:$0xff]
        %v1803 = vld [vmem:[#allocation12 + $0x3f8] sm:$0xff]
        %v1804 = vld [vmem:[%s5] sm:$0x3]
        %v1806 = vlaneseq
        %v1807 = vshrl.u32 %v1806, 7
        %v1808 = vsub.s32 0, %v1807
        %v1809 = vrot.slane %v1804, %v1808
        %v1810 = vlaneseq
        %v1811 = vshrl.u32 %v1810, 7
        %v1812 = vsub.s32 1, %v1811
        %v1813 = vrot.slane %v1804, %v1812
        %1816 = vmatprep.subr.mxu0 %v1677
        %1817 = vmatpush1.msra.mxu0 %v1676
        %1818 = vmatprep.subr.mxu0 %v1679
        %1819 = vmatpush1.msra.mxu0 %v1678
        %1820 = vmatprep.subr.mxu0 %v1681
        %1821 = vmatpush1.msra.mxu0 %v1680
        %1822 = vmatprep.subr.mxu0 %v1683
        %1823 = vmatpush1.msra.mxu0 %v1682
        %1824 = vmatprep.subr.mxu0 %v1685
        %1825 = vmatpush1.msra.mxu0 %v1684
        %1826 = vmatprep.subr.mxu0 %v1687
        %1827 = vmatpush1.msra.mxu0 %v1686
        %1828 = vmatprep.subr.mxu0 %v1689
        %1829 = vmatpush1.msra.mxu0 %v1688
        %1830 = vmatprep.subr.mxu0 %v1691
        %1831 = vmatpush1.msra.mxu0 %v1690
        %1832 = vmatprep.subr.mxu0 %v1693
        %1833 = vmatpush1.msra.mxu0 %v1692
        %1834 = vmatprep.subr.mxu0 %v1695
        %1835 = vmatpush1.msra.mxu0 %v1694
        %1836 = vmatprep.subr.mxu0 %v1697
        %1837 = vmatpush1.msra.mxu0 %v1696
        %1838 = vmatprep.subr.mxu0 %v1699
        %1839 = vmatpush1.msra.mxu0 %v1698
        %1840 = vmatprep.subr.mxu0 %v1701
        %1841 = vmatpush1.msra.mxu0 %v1700
        %1842 = vmatprep.subr.mxu0 %v1703
        %1843 = vmatpush1.msra.mxu0 %v1702
        %1844 = vmatprep.subr.mxu0 %v1705
        %1845 = vmatpush1.msra.mxu0 %v1704
        %1846 = vmatprep.subr.mxu0 %v1707
        %1847 = vmatpush1.msra.mxu0 %v1706
        %1848 = vmatprep.subr.mxu0 %v1709
        %1849 = vmatpush1.msra.mxu0 %v1708
        %1850 = vmatprep.subr.mxu0 %v1711
        %1851 = vmatpush1.msra.mxu0 %v1710
        %1852 = vmatprep.subr.mxu0 %v1713
        %1853 = vmatpush1.msra.mxu0 %v1712
        %1854 = vmatprep.subr.mxu0 %v1715
        %1855 = vmatpush1.msra.mxu0 %v1714
        %1856 = vmatprep.subr.mxu0 %v1717
        %1857 = vmatpush1.msra.mxu0 %v1716
        %1858 = vmatprep.subr.mxu0 %v1719
        %1859 = vmatpush1.msra.mxu0 %v1718
        %1860 = vmatprep.subr.mxu0 %v1721
        %1861 = vmatpush1.msra.mxu0 %v1720
        %1862 = vmatprep.subr.mxu0 %v1723
        %1863 = vmatpush1.msra.mxu0 %v1722
        %1864 = vmatprep.subr.mxu0 %v1725
        %1865 = vmatpush1.msra.mxu0 %v1724
        %1866 = vmatprep.subr.mxu0 %v1727
        %1867 = vmatpush1.msra.mxu0 %v1726
        %1868 = vmatprep.subr.mxu0 %v1729
        %1869 = vmatpush1.msra.mxu0 %v1728
        %1870 = vmatprep.subr.mxu0 %v1731
        %1871 = vmatpush1.msra.mxu0 %v1730
        %1872 = vmatprep.subr.mxu0 %v1733
        %1873 = vmatpush1.msra.mxu0 %v1732
        %1874 = vmatprep.subr.mxu0 %v1735
        %1875 = vmatpush1.msra.mxu0 %v1734
        %1876 = vmatprep.subr.mxu0 %v1737
        %1877 = vmatpush1.msra.mxu0 %v1736
        %1878 = vmatprep.subr.mxu0 %v1739
        %1879 = vmatpush1.msra.mxu0 %v1738
        %1880 = vmatprep.mubr.f32.mxu0 %v1613
        %1881 = vmatmul.mubr.f32.gmra.mrb[0].mxu0 %v1612
        %v1882 = vpop.f32.mrb[0].mxu0
        %v1883 = vadd.f32 %v1809, %v1882
        %v1884 = vpop.f32.mrb[0].mxu0
        %v1885 = vadd.f32 %v1813, %v1884
        %1886 = vmatprep.mubr.f32.mxu0 %v1617
        %1887 = vmatmul.mubr.f32.gmra.mrb[0].mxu0 %v1616
        %v1888 = vpop.f32.mrb[0].mxu0
        %v1889 = vadd.f32 %v1809, %v1888
        %v1890 = vpop.f32.mrb[0].mxu0
        %v1891 = vadd.f32 %v1813, %v1890
        %1892 = vmatprep.mubr.f32.mxu0 %v1621
        %1893 = vmatmul.mubr.f32.gmra.mrb[0].mxu0 %v1620
        %v1894 = vpop.f32.mrb[0].mxu0
        %v1895 = vadd.f32 %v1809, %v1894
        %v1896 = vpop.f32.mrb[0].mxu0
        %v1897 = vadd.f32 %v1813, %v1896
        %1898 = vmatprep.mubr.f32.mxu0 %v1625
        %1899 = vmatmul.mubr.f32.gmra.mrb[0].mxu0 %v1624
        %v1900 = vpop.f32.mrb[0].mxu0
        %v1901 = vadd.f32 %v1809, %v1900
        %v1902 = vpop.f32.mrb[0].mxu0
        %v1903 = vadd.f32 %v1813, %v1902
        %1904 = vmatprep.mubr.f32.mxu0 %v1629
        %1905 = vmatmul.mubr.f32.gmra.mrb[0].mxu0 %v1628
        %v1906 = vpop.f32.mrb[0].mxu0
        %v1907 = vadd.f32 %v1809, %v1906
        %v1908 = vpop.f32.mrb[0].mxu0
        %v1909 = vadd.f32 %v1813, %v1908
        %1910 = vmatprep.mubr.f32.mxu0 %v1633
        %1911 = vmatmul.mubr.f32.gmra.mrb[0].mxu0 %v1632
        %v1912 = vpop.f32.mrb[0].mxu0
        %v1913 = vadd.f32 %v1809, %v1912
        %v1914 = vpop.f32.mrb[0].mxu0
        %v1915 = vadd.f32 %v1813, %v1914
        %1916 = vmatprep.mubr.f32.mxu0 %v1637
        %1917 = vmatmul.mubr.f32.gmra.mrb[0].mxu0 %v1636
        %v1918 = vpop.f32.mrb[0].mxu0
        %v1919 = vadd.f32 %v1809, %v1918
        %v1920 = vpop.f32.mrb[0].mxu0
        %v1921 = vadd.f32 %v1813, %v1920
        %1922 = vmatprep.mubr.f32.mxu0 %v1641
        %1923 = vmatmul.mubr.f32.gmra.mrb[0].mxu0 %v1640
        %v1924 = vpop.f32.mrb[0].mxu0
        %v1925 = vadd.f32 %v1809, %v1924
        %v1926 = vpop.f32.mrb[0].mxu0
        %v1927 = vadd.f32 %v1813, %v1926
        %1928 = vmatprep.mubr.f32.mxu0 %v1645
        %1929 = vmatmul.mubr.f32.gmra.mrb[0].mxu0 %v1644
        %v1930 = vpop.f32.mrb[0].mxu0
        %v1931 = vadd.f32 %v1809, %v1930
        %v1932 = vpop.f32.mrb[0].mxu0
        %v1933 = vadd.f32 %v1813, %v1932
        %1934 = vmatprep.mubr.f32.mxu0 %v1649
        %1935 = vmatmul.mubr.f32.gmra.mrb[0].mxu0 %v1648
        %v1936 = vpop.f32.mrb[0].mxu0
        %v1937 = vadd.f32 %v1809, %v1936
        %v1938 = vpop.f32.mrb[0].mxu0
        %v1939 = vadd.f32 %v1813, %v1938
        %1940 = vmatprep.mubr.f32.mxu0 %v1653
        %1941 = vmatmul.mubr.f32.gmra.mrb[0].mxu0 %v1652
        %v1942 = vpop.f32.mrb[0].mxu0
        %v1943 = vadd.f32 %v1809, %v1942
        %v1944 = vpop.f32.mrb[0].mxu0
        %v1945 = vadd.f32 %v1813, %v1944
        %1946 = vmatprep.mubr.f32.mxu0 %v1657
        %1947 = vmatmul.mubr.f32.gmra.mrb[0].mxu0 %v1656
        %v1948 = vpop.f32.mrb[0].mxu0
        %v1949 = vadd.f32 %v1809, %v1948
        %v1950 = vpop.f32.mrb[0].mxu0
        %v1951 = vadd.f32 %v1813, %v1950
        %1952 = vmatprep.mubr.f32.mxu0 %v1661
        %1953 = vmatmul.mubr.f32.gmra.mrb[0].mxu0 %v1660
        %v1954 = vpop.f32.mrb[0].mxu0
        %v1955 = vadd.f32 %v1809, %v1954
        %v1956 = vpop.f32.mrb[0].mxu0
        %v1957 = vadd.f32 %v1813, %v1956
        %1958 = vmatprep.mubr.f32.mxu0 %v1665
        %1959 = vmatmul.mubr.f32.gmra.mrb[0].mxu0 %v1664
        %v1960 = vpop.f32.mrb[0].mxu0
        %v1961 = vadd.f32 %v1809, %v1960
        %v1962 = vpop.f32.mrb[0].mxu0
        %v1963 = vadd.f32 %v1813, %v1962
        %1964 = vmatprep.mubr.f32.mxu0 %v1669
        %1965 = vmatmul.mubr.f32.gmra.mrb[0].mxu0 %v1668
        %v1966 = vpop.f32.mrb[0].mxu0
        %v1967 = vadd.f32 %v1809, %v1966
        %v1968 = vpop.f32.mrb[0].mxu0
        %v1969 = vadd.f32 %v1813, %v1968
        %1970 = vmatprep.mubr.f32.mxu0 %v1673
        %1971 = vmatmul.mubr.f32.gmra.mrb[0].mxu0 %v1672
        %v1972 = vpop.f32.mrb[0].mxu0
        %v1973 = vadd.f32 %v1809, %v1972
        %v1974 = vpop.f32.mrb[0].mxu0
        %v1975 = vadd.f32 %v1813, %v1974
        %1976 = vdwg.mxu0
        %1977 = vmatprep.subr.mxu0 %v1741
        %1978 = vmatpush1.msra.mxu0 %v1740
        %1979 = vmatprep.subr.mxu0 %v1743
        %1980 = vmatpush1.msra.mxu0 %v1742
        %1981 = vmatprep.subr.mxu0 %v1745
        %1982 = vmatpush1.msra.mxu0 %v1744
        %1983 = vmatprep.subr.mxu0 %v1747
        %1984 = vmatpush1.msra.mxu0 %v1746
        %1985 = vmatprep.subr.mxu0 %v1749
        %1986 = vmatpush1.msra.mxu0 %v1748
        %1987 = vmatprep.subr.mxu0 %v1751
        %1988 = vmatpush1.msra.mxu0 %v1750
        %1989 = vmatprep.subr.mxu0 %v1753
        %1990 = vmatpush1.msra.mxu0 %v1752
        %1991 = vmatprep.subr.mxu0 %v1755
        %1992 = vmatpush1.msra.mxu0 %v1754
        %1993 = vmatprep.subr.mxu0 %v1757
        %1994 = vmatpush1.msra.mxu0 %v1756
        %1995 = vmatprep.subr.mxu0 %v1759
        %1996 = vmatpush1.msra.mxu0 %v1758
        %1997 = vmatprep.subr.mxu0 %v1761
        %1998 = vmatpush1.msra.mxu0 %v1760
        %1999 = vmatprep.subr.mxu0 %v1763
        %2000 = vmatpush1.msra.mxu0 %v1762
        %2001 = vmatprep.subr.mxu0 %v1765
        %2002 = vmatpush1.msra.mxu0 %v1764
        %2003 = vmatprep.subr.mxu0 %v1767
        %2004 = vmatpush1.msra.mxu0 %v1766
        %2005 = vmatprep.subr.mxu0 %v1769
        %2006 = vmatpush1.msra.mxu0 %v1768
        %2007 = vmatprep.subr.mxu0 %v1771
        %2008 = vmatpush1.msra.mxu0 %v1770
        %2009 = vmatprep.subr.mxu0 %v1773
        %2010 = vmatpush1.msra.mxu0 %v1772
        %2011 = vmatprep.subr.mxu0 %v1775
        %2012 = vmatpush1.msra.mxu0 %v1774
        %2013 = vmatprep.subr.mxu0 %v1777
        %2014 = vmatpush1.msra.mxu0 %v1776
        %2015 = vmatprep.subr.mxu0 %v1779
        %2016 = vmatpush1.msra.mxu0 %v1778
        %2017 = vmatprep.subr.mxu0 %v1781
        %2018 = vmatpush1.msra.mxu0 %v1780
        %2019 = vmatprep.subr.mxu0 %v1783
        %2020 = vmatpush1.msra.mxu0 %v1782
        %2021 = vmatprep.subr.mxu0 %v1785
        %2022 = vmatpush1.msra.mxu0 %v1784
        %2023 = vmatprep.subr.mxu0 %v1787
        %2024 = vmatpush1.msra.mxu0 %v1786
        %2025 = vmatprep.subr.mxu0 %v1789
        %2026 = vmatpush1.msra.mxu0 %v1788
        %2027 = vmatprep.subr.mxu0 %v1791
        %2028 = vmatpush1.msra.mxu0 %v1790
        %2029 = vmatprep.subr.mxu0 %v1793
        %2030 = vmatpush1.msra.mxu0 %v1792
        %2031 = vmatprep.subr.mxu0 %v1795
        %2032 = vmatpush1.msra.mxu0 %v1794
        %2033 = vmatprep.subr.mxu0 %v1797
        %2034 = vmatpush1.msra.mxu0 %v1796
        %2035 = vmatprep.subr.mxu0 %v1799
        %2036 = vmatpush1.msra.mxu0 %v1798
        %2037 = vmatprep.subr.mxu0 %v1801
        %2038 = vmatpush1.msra.mxu0 %v1800
        %2039 = vmatprep.subr.mxu0 %v1803
        %2040 = vmatpush1.msra.mxu0 %v1802
        %2041 = vmatprep.mubr.f32.mxu0 %v1615
        %2042 = vmatmul.mubr.f32.gmra.mrb[0].mxu0 %v1614
        %v2043 = vpop.f32.mrb[0].mxu0
        %v2044 = vadd.f32 %v1883, %v2043
        %v2045 = vpop.f32.mrb[0].mxu0
        %v2046 = vadd.f32 %v1885, %v2045
        %2047 = vmatprep.mubr.f32.mxu0 %v1619
        %2048 = vmatmul.mubr.f32.gmra.mrb[0].mxu0 %v1618
        %v2049 = vpop.f32.mrb[0].mxu0
        %v2050 = vadd.f32 %v1889, %v2049
        %v2051 = vpop.f32.mrb[0].mxu0
        %v2052 = vadd.f32 %v1891, %v2051
        %2053 = vmatprep.mubr.f32.mxu0 %v1623
        %2054 = vmatmul.mubr.f32.gmra.mrb[0].mxu0 %v1622
        %v2055 = vpop.f32.mrb[0].mxu0
        %v2056 = vadd.f32 %v1895, %v2055
        %v2057 = vpop.f32.mrb[0].mxu0
        %v2058 = vadd.f32 %v1897, %v2057
        %2059 = vmatprep.mubr.f32.mxu0 %v1627
        %2060 = vmatmul.mubr.f32.gmra.mrb[0].mxu0 %v1626
        %v2061 = vpop.f32.mrb[0].mxu0
        %v2062 = vadd.f32 %v1901, %v2061
        %v2063 = vpop.f32.mrb[0].mxu0
        %v2064 = vadd.f32 %v1903, %v2063
        %2065 = vmatprep.mubr.f32.mxu0 %v1631
        %2066 = vmatmul.mubr.f32.gmra.mrb[0].mxu0 %v1630
        %v2067 = vpop.f32.mrb[0].mxu0
        %v2068 = vadd.f32 %v1907, %v2067
        %v2069 = vpop.f32.mrb[0].mxu0
        %v2070 = vadd.f32 %v1909, %v2069
        %2071 = vmatprep.mubr.f32.mxu0 %v1635
        %2072 = vmatmul.mubr.f32.gmra.mrb[0].mxu0 %v1634
        %v2073 = vpop.f32.mrb[0].mxu0
        %v2074 = vadd.f32 %v1913, %v2073
        %v2075 = vpop.f32.mrb[0].mxu0
        %v2076 = vadd.f32 %v1915, %v2075
        %2077 = vmatprep.mubr.f32.mxu0 %v1639
        %2078 = vmatmul.mubr.f32.gmra.mrb[0].mxu0 %v1638
        %v2079 = vpop.f32.mrb[0].mxu0
        %v2080 = vadd.f32 %v1919, %v2079
        %v2081 = vpop.f32.mrb[0].mxu0
        %v2082 = vadd.f32 %v1921, %v2081
        %2083 = vmatprep.mubr.f32.mxu0 %v1643
        %2084 = vmatmul.mubr.f32.gmra.mrb[0].mxu0 %v1642
        %v2085 = vpop.f32.mrb[0].mxu0
        %v2086 = vadd.f32 %v1925, %v2085
        %v2087 = vpop.f32.mrb[0].mxu0
        %v2088 = vadd.f32 %v1927, %v2087
        %2089 = vmatprep.mubr.f32.mxu0 %v1647
        %2090 = vmatmul.mubr.f32.gmra.mrb[0].mxu0 %v1646
        %v2091 = vpop.f32.mrb[0].mxu0
        %v2092 = vadd.f32 %v1931, %v2091
        %v2093 = vpop.f32.mrb[0].mxu0
        %v2094 = vadd.f32 %v1933, %v2093
        %2095 = vmatprep.mubr.f32.mxu0 %v1651
        %2096 = vmatmul.mubr.f32.gmra.mrb[0].mxu0 %v1650
        %v2097 = vpop.f32.mrb[0].mxu0
        %v2098 = vadd.f32 %v1937, %v2097
        %v2099 = vpop.f32.mrb[0].mxu0
        %v2100 = vadd.f32 %v1939, %v2099
        %2101 = vmatprep.mubr.f32.mxu0 %v1655
        %2102 = vmatmul.mubr.f32.gmra.mrb[0].mxu0 %v1654
        %v2103 = vpop.f32.mrb[0].mxu0
        %v2104 = vadd.f32 %v1943, %v2103
        %v2105 = vpop.f32.mrb[0].mxu0
        %v2106 = vadd.f32 %v1945, %v2105
        %2107 = vmatprep.mubr.f32.mxu0 %v1659
        %2108 = vmatmul.mubr.f32.gmra.mrb[0].mxu0 %v1658
        %v2109 = vpop.f32.mrb[0].mxu0
        %v2110 = vadd.f32 %v1949, %v2109
        %v2111 = vpop.f32.mrb[0].mxu0
        %v2112 = vadd.f32 %v1951, %v2111
        %2113 = vmatprep.mubr.f32.mxu0 %v1663
        %2114 = vmatmul.mubr.f32.gmra.mrb[0].mxu0 %v1662
        %v2115 = vpop.f32.mrb[0].mxu0
        %v2116 = vadd.f32 %v1955, %v2115
        %v2117 = vpop.f32.mrb[0].mxu0
        %v2118 = vadd.f32 %v1957, %v2117
        %2119 = vmatprep.mubr.f32.mxu0 %v1667
        %2120 = vmatmul.mubr.f32.gmra.mrb[0].mxu0 %v1666
        %v2121 = vpop.f32.mrb[0].mxu0
        %v2122 = vadd.f32 %v1961, %v2121
        %v2123 = vpop.f32.mrb[0].mxu0
        %v2124 = vadd.f32 %v1963, %v2123
        %2125 = vmatprep.mubr.f32.mxu0 %v1671
        %2126 = vmatmul.mubr.f32.gmra.mrb[0].mxu0 %v1670
        %v2127 = vpop.f32.mrb[0].mxu0
        %v2128 = vadd.f32 %v1967, %v2127
        %v2129 = vpop.f32.mrb[0].mxu0
        %v2130 = vadd.f32 %v1969, %v2129
        %2131 = vmatprep.mubr.f32.mxu0 %v1675
        %2132 = vmatmul.mubr.f32.gmra.mrb[0].mxu0 %v1674
        %v2133 = vpop.f32.mrb[0].mxu0
        %v2134 = vadd.f32 %v1973, %v2133
        %v2135 = vpop.f32.mrb[0].mxu0
        %v2136 = vadd.f32 %v1975, %v2135
        %2137 = vdwg.mxu0
        %v2138 = vtanh.pop %v2044
        %v2139 = vtanh.pop %v2046
        %v2140 = vtanh.pop %v2050
        %v2141 = vtanh.pop %v2052
        %v2142 = vtanh.pop %v2056
        %v2143 = vtanh.pop %v2058
        %v2144 = vtanh.pop %v2062
        %v2145 = vtanh.pop %v2064
        %v2146 = vtanh.pop %v2068
        %v2147 = vtanh.pop %v2070
        %v2148 = vtanh.pop %v2074
        %v2149 = vtanh.pop %v2076
        %v2150 = vtanh.pop %v2080
        %v2151 = vtanh.pop %v2082
        %v2152 = vtanh.pop %v2086
        %v2153 = vtanh.pop %v2088
        %v2154 = vtanh.pop %v2092
        %v2155 = vtanh.pop %v2094
        %v2156 = vtanh.pop %v2098
        %v2157 = vtanh.pop %v2100
        %v2158 = vtanh.pop %v2104
        %v2159 = vtanh.pop %v2106
        %v2160 = vtanh.pop %v2110
        %v2161 = vtanh.pop %v2112
        %v2162 = vtanh.pop %v2116
        %v2163 = vtanh.pop %v2118
        %v2164 = vtanh.pop %v2122
        %v2165 = vtanh.pop %v2124
        %v2166 = vtanh.pop %v2128
        %v2167 = vtanh.pop %v2130
        %v2168 = vtanh.pop %v2134
        %v2169 = vtanh.pop %v2136
        %v2170 = vld [vmem:[#allocation13] sm:$0xff]
        %v2171 = vld [vmem:[#allocation13 + $0x8] sm:$0xff]
        %v2172 = vld [vmem:[#allocation13 + $0x10] sm:$0xff]
        %v2173 = vld [vmem:[#allocation13 + $0x18] sm:$0xff]
        %v2174 = vld [vmem:[#allocation13 + $0x20] sm:$0xff]
        %v2175 = vld [vmem:[#allocation13 + $0x28] sm:$0xff]
        %v2176 = vld [vmem:[#allocation13 + $0x30] sm:$0xff]
        %v2177 = vld [vmem:[#allocation13 + $0x38] sm:$0xff]
        %v2178 = vld [vmem:[#allocation13 + $0x40] sm:$0xff]
        %v2179 = vld [vmem:[#allocation13 + $0x48] sm:$0xff]
        %v2180 = vld [vmem:[#allocation13 + $0x50] sm:$0xff]
        %v2181 = vld [vmem:[#allocation13 + $0x58] sm:$0xff]
        %v2182 = vld [vmem:[#allocation13 + $0x60] sm:$0xff]
        %v2183 = vld [vmem:[#allocation13 + $0x68] sm:$0xff]
        %v2184 = vld [vmem:[#allocation13 + $0x70] sm:$0xff]
        %v2185 = vld [vmem:[#allocation13 + $0x78] sm:$0xff]
        %v2186 = vld [vmem:[#allocation13 + $0x80] sm:$0xff]
        %v2187 = vld [vmem:[#allocation13 + $0x88] sm:$0xff]
        %v2188 = vld [vmem:[#allocation13 + $0x90] sm:$0xff]
        %v2189 = vld [vmem:[#allocation13 + $0x98] sm:$0xff]
        %v2190 = vld [vmem:[#allocation13 + $0xa0] sm:$0xff]
        %v2191 = vld [vmem:[#allocation13 + $0xa8] sm:$0xff]
        %v2192 = vld [vmem:[#allocation13 + $0xb0] sm:$0xff]
        %v2193 = vld [vmem:[#allocation13 + $0xb8] sm:$0xff]
        %v2194 = vld [vmem:[#allocation13 + $0xc0] sm:$0xff]
        %v2195 = vld [vmem:[#allocation13 + $0xc8] sm:$0xff]
        %v2196 = vld [vmem:[#allocation13 + $0xd0] sm:$0xff]
        %v2197 = vld [vmem:[#allocation13 + $0xd8] sm:$0xff]
        %v2198 = vld [vmem:[#allocation13 + $0xe0] sm:$0xff]
        %v2199 = vld [vmem:[#allocation13 + $0xe8] sm:$0xff]
        %v2200 = vld [vmem:[#allocation13 + $0xf0] sm:$0xff]
        %v2201 = vld [vmem:[#allocation13 + $0xf8] sm:$0xff]
        %v2202 = vld [vmem:[#allocation13 + $0x100] sm:$0xff]
        %v2203 = vld [vmem:[#allocation13 + $0x108] sm:$0xff]
        %v2204 = vld [vmem:[#allocation13 + $0x110] sm:$0xff]
        %v2205 = vld [vmem:[#allocation13 + $0x118] sm:$0xff]
        %v2206 = vld [vmem:[#allocation13 + $0x120] sm:$0xff]
        %v2207 = vld [vmem:[#allocation13 + $0x128] sm:$0xff]
        %v2208 = vld [vmem:[#allocation13 + $0x130] sm:$0xff]
        %v2209 = vld [vmem:[#allocation13 + $0x138] sm:$0xff]
        %v2210 = vld [vmem:[#allocation13 + $0x140] sm:$0xff]
        %v2211 = vld [vmem:[#allocation13 + $0x148] sm:$0xff]
        %v2212 = vld [vmem:[#allocation13 + $0x150] sm:$0xff]
        %v2213 = vld [vmem:[#allocation13 + $0x158] sm:$0xff]
        %v2214 = vld [vmem:[#allocation13 + $0x160] sm:$0xff]
        %v2215 = vld [vmem:[#allocation13 + $0x168] sm:$0xff]
        %v2216 = vld [vmem:[#allocation13 + $0x170] sm:$0xff]
        %v2217 = vld [vmem:[#allocation13 + $0x178] sm:$0xff]
        %v2218 = vld [vmem:[#allocation13 + $0x180] sm:$0xff]
        %v2219 = vld [vmem:[#allocation13 + $0x188] sm:$0xff]
        %v2220 = vld [vmem:[#allocation13 + $0x190] sm:$0xff]
        %v2221 = vld [vmem:[#allocation13 + $0x198] sm:$0xff]
        %v2222 = vld [vmem:[#allocation13 + $0x1a0] sm:$0xff]
        %v2223 = vld [vmem:[#allocation13 + $0x1a8] sm:$0xff]
        %v2224 = vld [vmem:[#allocation13 + $0x1b0] sm:$0xff]
        %v2225 = vld [vmem:[#allocation13 + $0x1b8] sm:$0xff]
        %v2226 = vld [vmem:[#allocation13 + $0x1c0] sm:$0xff]
        %v2227 = vld [vmem:[#allocation13 + $0x1c8] sm:$0xff]
        %v2228 = vld [vmem:[#allocation13 + $0x1d0] sm:$0xff]
        %v2229 = vld [vmem:[#allocation13 + $0x1d8] sm:$0xff]
        %v2230 = vld [vmem:[#allocation13 + $0x1e0] sm:$0xff]
        %v2231 = vld [vmem:[#allocation13 + $0x1e8] sm:$0xff]
        %v2232 = vld [vmem:[#allocation13 + $0x1f0] sm:$0xff]
        %v2233 = vld [vmem:[#allocation13 + $0x1f8] sm:$0xff]
        %v2234 = vld [vmem:[#allocation13 + $0x200] sm:$0xff]
        %v2235 = vld [vmem:[#allocation13 + $0x208] sm:$0xff]
        %v2236 = vld [vmem:[#allocation13 + $0x210] sm:$0xff]
        %v2237 = vld [vmem:[#allocation13 + $0x218] sm:$0xff]
        %v2238 = vld [vmem:[#allocation13 + $0x220] sm:$0xff]
        %v2239 = vld [vmem:[#allocation13 + $0x228] sm:$0xff]
        %v2240 = vld [vmem:[#allocation13 + $0x230] sm:$0xff]
        %v2241 = vld [vmem:[#allocation13 + $0x238] sm:$0xff]
        %v2242 = vld [vmem:[#allocation13 + $0x240] sm:$0xff]
        %v2243 = vld [vmem:[#allocation13 + $0x248] sm:$0xff]
        %v2244 = vld [vmem:[#allocation13 + $0x250] sm:$0xff]
        %v2245 = vld [vmem:[#allocation13 + $0x258] sm:$0xff]
        %v2246 = vld [vmem:[#allocation13 + $0x260] sm:$0xff]
        %v2247 = vld [vmem:[#allocation13 + $0x268] sm:$0xff]
        %v2248 = vld [vmem:[#allocation13 + $0x270] sm:$0xff]
        %v2249 = vld [vmem:[#allocation13 + $0x278] sm:$0xff]
        %v2250 = vld [vmem:[#allocation13 + $0x280] sm:$0xff]
        %v2251 = vld [vmem:[#allocation13 + $0x288] sm:$0xff]
        %v2252 = vld [vmem:[#allocation13 + $0x290] sm:$0xff]
        %v2253 = vld [vmem:[#allocation13 + $0x298] sm:$0xff]
        %v2254 = vld [vmem:[#allocation13 + $0x2a0] sm:$0xff]
        %v2255 = vld [vmem:[#allocation13 + $0x2a8] sm:$0xff]
        %v2256 = vld [vmem:[#allocation13 + $0x2b0] sm:$0xff]
        %v2257 = vld [vmem:[#allocation13 + $0x2b8] sm:$0xff]
        %v2258 = vld [vmem:[#allocation13 + $0x2c0] sm:$0xff]
        %v2259 = vld [vmem:[#allocation13 + $0x2c8] sm:$0xff]
        %v2260 = vld [vmem:[#allocation13 + $0x2d0] sm:$0xff]
        %v2261 = vld [vmem:[#allocation13 + $0x2d8] sm:$0xff]
        %v2262 = vld [vmem:[#allocation13 + $0x2e0] sm:$0xff]
        %v2263 = vld [vmem:[#allocation13 + $0x2e8] sm:$0xff]
        %v2264 = vld [vmem:[#allocation13 + $0x2f0] sm:$0xff]
        %v2265 = vld [vmem:[#allocation13 + $0x2f8] sm:$0xff]
        %v2266 = vld [vmem:[#allocation13 + $0x300] sm:$0xff]
        %v2267 = vld [vmem:[#allocation13 + $0x308] sm:$0xff]
        %v2268 = vld [vmem:[#allocation13 + $0x310] sm:$0xff]
        %v2269 = vld [vmem:[#allocation13 + $0x318] sm:$0xff]
        %v2270 = vld [vmem:[#allocation13 + $0x320] sm:$0xff]
        %v2271 = vld [vmem:[#allocation13 + $0x328] sm:$0xff]
        %v2272 = vld [vmem:[#allocation13 + $0x330] sm:$0xff]
        %v2273 = vld [vmem:[#allocation13 + $0x338] sm:$0xff]
        %v2274 = vld [vmem:[#allocation13 + $0x340] sm:$0xff]
        %v2275 = vld [vmem:[#allocation13 + $0x348] sm:$0xff]
        %v2276 = vld [vmem:[#allocation13 + $0x350] sm:$0xff]
        %v2277 = vld [vmem:[#allocation13 + $0x358] sm:$0xff]
        %v2278 = vld [vmem:[#allocation13 + $0x360] sm:$0xff]
        %v2279 = vld [vmem:[#allocation13 + $0x368] sm:$0xff]
        %v2280 = vld [vmem:[#allocation13 + $0x370] sm:$0xff]
        %v2281 = vld [vmem:[#allocation13 + $0x378] sm:$0xff]
        %v2282 = vld [vmem:[#allocation13 + $0x380] sm:$0xff]
        %v2283 = vld [vmem:[#allocation13 + $0x388] sm:$0xff]
        %v2284 = vld [vmem:[#allocation13 + $0x390] sm:$0xff]
        %v2285 = vld [vmem:[#allocation13 + $0x398] sm:$0xff]
        %v2286 = vld [vmem:[#allocation13 + $0x3a0] sm:$0xff]
        %v2287 = vld [vmem:[#allocation13 + $0x3a8] sm:$0xff]
        %v2288 = vld [vmem:[#allocation13 + $0x3b0] sm:$0xff]
        %v2289 = vld [vmem:[#allocation13 + $0x3b8] sm:$0xff]
        %v2290 = vld [vmem:[#allocation13 + $0x3c0] sm:$0xff]
        %v2291 = vld [vmem:[#allocation13 + $0x3c8] sm:$0xff]
        %v2292 = vld [vmem:[#allocation13 + $0x3d0] sm:$0xff]
        %v2293 = vld [vmem:[#allocation13 + $0x3d8] sm:$0xff]
        %v2294 = vld [vmem:[#allocation13 + $0x3e0] sm:$0xff]
        %v2295 = vld [vmem:[#allocation13 + $0x3e8] sm:$0xff]
        %v2296 = vld [vmem:[#allocation13 + $0x3f0] sm:$0xff]
        %v2297 = vld [vmem:[#allocation13 + $0x3f8] sm:$0xff]
        %v2298 = vld [vmem:[#allocation13 + $0x400] sm:$0xff]
        %v2299 = vld [vmem:[#allocation13 + $0x408] sm:$0xff]
        %v2300 = vld [vmem:[#allocation13 + $0x410] sm:$0xff]
        %v2301 = vld [vmem:[#allocation13 + $0x418] sm:$0xff]
        %v2302 = vld [vmem:[#allocation13 + $0x420] sm:$0xff]
        %v2303 = vld [vmem:[#allocation13 + $0x428] sm:$0xff]
        %v2304 = vld [vmem:[#allocation13 + $0x430] sm:$0xff]
        %v2305 = vld [vmem:[#allocation13 + $0x438] sm:$0xff]
        %v2306 = vld [vmem:[#allocation13 + $0x440] sm:$0xff]
        %v2307 = vld [vmem:[#allocation13 + $0x448] sm:$0xff]
        %v2308 = vld [vmem:[#allocation13 + $0x450] sm:$0xff]
        %v2309 = vld [vmem:[#allocation13 + $0x458] sm:$0xff]
        %v2310 = vld [vmem:[#allocation13 + $0x460] sm:$0xff]
        %v2311 = vld [vmem:[#allocation13 + $0x468] sm:$0xff]
        %v2312 = vld [vmem:[#allocation13 + $0x470] sm:$0xff]
        %v2313 = vld [vmem:[#allocation13 + $0x478] sm:$0xff]
        %v2314 = vld [vmem:[#allocation13 + $0x480] sm:$0xff]
        %v2315 = vld [vmem:[#allocation13 + $0x488] sm:$0xff]
        %v2316 = vld [vmem:[#allocation13 + $0x490] sm:$0xff]
        %v2317 = vld [vmem:[#allocation13 + $0x498] sm:$0xff]
        %v2318 = vld [vmem:[#allocation13 + $0x4a0] sm:$0xff]
        %v2319 = vld [vmem:[#allocation13 + $0x4a8] sm:$0xff]
        %v2320 = vld [vmem:[#allocation13 + $0x4b0] sm:$0xff]
        %v2321 = vld [vmem:[#allocation13 + $0x4b8] sm:$0xff]
        %v2322 = vld [vmem:[#allocation13 + $0x4c0] sm:$0xff]
        %v2323 = vld [vmem:[#allocation13 + $0x4c8] sm:$0xff]
        %v2324 = vld [vmem:[#allocation13 + $0x4d0] sm:$0xff]
        %v2325 = vld [vmem:[#allocation13 + $0x4d8] sm:$0xff]
        %v2326 = vld [vmem:[#allocation13 + $0x4e0] sm:$0xff]
        %v2327 = vld [vmem:[#allocation13 + $0x4e8] sm:$0xff]
        %v2328 = vld [vmem:[#allocation13 + $0x4f0] sm:$0xff]
        %v2329 = vld [vmem:[#allocation13 + $0x4f8] sm:$0xff]
        %v2330 = vld [vmem:[#allocation13 + $0x500] sm:$0xff]
        %v2331 = vld [vmem:[#allocation13 + $0x508] sm:$0xff]
        %v2332 = vld [vmem:[#allocation13 + $0x510] sm:$0xff]
        %v2333 = vld [vmem:[#allocation13 + $0x518] sm:$0xff]
        %v2334 = vld [vmem:[#allocation13 + $0x520] sm:$0xff]
        %v2335 = vld [vmem:[#allocation13 + $0x528] sm:$0xff]
        %v2336 = vld [vmem:[#allocation13 + $0x530] sm:$0xff]
        %v2337 = vld [vmem:[#allocation13 + $0x538] sm:$0xff]
        %v2338 = vld [vmem:[#allocation13 + $0x540] sm:$0xff]
        %v2339 = vld [vmem:[#allocation13 + $0x548] sm:$0xff]
        %v2340 = vld [vmem:[#allocation13 + $0x550] sm:$0xff]
        %v2341 = vld [vmem:[#allocation13 + $0x558] sm:$0xff]
        %v2342 = vld [vmem:[#allocation13 + $0x560] sm:$0xff]
        %v2343 = vld [vmem:[#allocation13 + $0x568] sm:$0xff]
        %v2344 = vld [vmem:[#allocation13 + $0x570] sm:$0xff]
        %v2345 = vld [vmem:[#allocation13 + $0x578] sm:$0xff]
        %v2346 = vld [vmem:[#allocation13 + $0x580] sm:$0xff]
        %v2347 = vld [vmem:[#allocation13 + $0x588] sm:$0xff]
        %v2348 = vld [vmem:[#allocation13 + $0x590] sm:$0xff]
        %v2349 = vld [vmem:[#allocation13 + $0x598] sm:$0xff]
        %v2350 = vld [vmem:[#allocation13 + $0x5a0] sm:$0xff]
        %v2351 = vld [vmem:[#allocation13 + $0x5a8] sm:$0xff]
        %v2352 = vld [vmem:[#allocation13 + $0x5b0] sm:$0xff]
        %v2353 = vld [vmem:[#allocation13 + $0x5b8] sm:$0xff]
        %v2354 = vld [vmem:[#allocation13 + $0x5c0] sm:$0xff]
        %v2355 = vld [vmem:[#allocation13 + $0x5c8] sm:$0xff]
        %v2356 = vld [vmem:[#allocation13 + $0x5d0] sm:$0xff]
        %v2357 = vld [vmem:[#allocation13 + $0x5d8] sm:$0xff]
        %v2358 = vld [vmem:[#allocation13 + $0x5e0] sm:$0xff]
        %v2359 = vld [vmem:[#allocation13 + $0x5e8] sm:$0xff]
        %v2360 = vld [vmem:[#allocation13 + $0x5f0] sm:$0xff]
        %v2361 = vld [vmem:[#allocation13 + $0x5f8] sm:$0xff]
        %v2362 = vld [vmem:[%s8] sm:$0x3f]
        %v2364 = vlaneseq
        %v2365 = vshrl.u32 %v2364, 7
        %v2366 = vsub.s32 0, %v2365
        %v2367 = vrot.slane %v2362, %v2366
        %v2368 = vlaneseq
        %v2369 = vshrl.u32 %v2368, 7
        %v2370 = vsub.s32 1, %v2369
        %v2371 = vrot.slane %v2362, %v2370
        %v2372 = vlaneseq
        %v2373 = vshrl.u32 %v2372, 7
        %v2374 = vsub.s32 2, %v2373
        %v2375 = vrot.slane %v2362, %v2374
        %v2376 = vlaneseq
        %v2377 = vshrl.u32 %v2376, 7
        %v2378 = vsub.s32 3, %v2377
        %v2379 = vrot.slane %v2362, %v2378
        %v2380 = vlaneseq
        %v2381 = vshrl.u32 %v2380, 7
        %v2382 = vsub.s32 4, %v2381
        %v2383 = vrot.slane %v2362, %v2382
        %v2384 = vlaneseq
        %v2385 = vshrl.u32 %v2384, 7
        %v2386 = vsub.s32 5, %v2385
        %v2387 = vrot.slane %v2362, %v2386
        %2394 = vmatprep.subr.mxu0 %v2171
        %2395 = vmatpush1.msra.mxu0 %v2170
        %2396 = vmatprep.subr.mxu0 %v2177
        %2397 = vmatpush1.msra.mxu0 %v2176
        %2398 = vmatprep.subr.mxu0 %v2183
        %2399 = vmatpush1.msra.mxu0 %v2182
        %2400 = vmatprep.subr.mxu0 %v2189
        %2401 = vmatpush1.msra.mxu0 %v2188
        %2402 = vmatprep.subr.mxu0 %v2195
        %2403 = vmatpush1.msra.mxu0 %v2194
        %2404 = vmatprep.subr.mxu0 %v2201
        %2405 = vmatpush1.msra.mxu0 %v2200
        %2406 = vmatprep.subr.mxu0 %v2207
        %2407 = vmatpush1.msra.mxu0 %v2206
        %2408 = vmatprep.subr.mxu0 %v2213
        %2409 = vmatpush1.msra.mxu0 %v2212
        %2410 = vmatprep.subr.mxu0 %v2219
        %2411 = vmatpush1.msra.mxu0 %v2218
        %2412 = vmatprep.subr.mxu0 %v2225
        %2413 = vmatpush1.msra.mxu0 %v2224
        %2414 = vmatprep.subr.mxu0 %v2231
        %2415 = vmatpush1.msra.mxu0 %v2230
        %2416 = vmatprep.subr.mxu0 %v2237
        %2417 = vmatpush1.msra.mxu0 %v2236
        %2418 = vmatprep.subr.mxu0 %v2243
        %2419 = vmatpush1.msra.mxu0 %v2242
        %2420 = vmatprep.subr.mxu0 %v2249
        %2421 = vmatpush1.msra.mxu0 %v2248
        %2422 = vmatprep.subr.mxu0 %v2255
        %2423 = vmatpush1.msra.mxu0 %v2254
        %2424 = vmatprep.subr.mxu0 %v2261
        %2425 = vmatpush1.msra.mxu0 %v2260
        %2426 = vmatprep.subr.mxu0 %v2267
        %2427 = vmatpush1.msra.mxu0 %v2266
        %2428 = vmatprep.subr.mxu0 %v2273
        %2429 = vmatpush1.msra.mxu0 %v2272
        %2430 = vmatprep.subr.mxu0 %v2279
        %2431 = vmatpush1.msra.mxu0 %v2278
        %2432 = vmatprep.subr.mxu0 %v2285
        %2433 = vmatpush1.msra.mxu0 %v2284
        %2434 = vmatprep.subr.mxu0 %v2291
        %2435 = vmatpush1.msra.mxu0 %v2290
        %2436 = vmatprep.subr.mxu0 %v2297
        %2437 = vmatpush1.msra.mxu0 %v2296
        %2438 = vmatprep.subr.mxu0 %v2303
        %2439 = vmatpush1.msra.mxu0 %v2302
        %2440 = vmatprep.subr.mxu0 %v2309
        %2441 = vmatpush1.msra.mxu0 %v2308
        %2442 = vmatprep.subr.mxu0 %v2315
        %2443 = vmatpush1.msra.mxu0 %v2314
        %2444 = vmatprep.subr.mxu0 %v2321
        %2445 = vmatpush1.msra.mxu0 %v2320
        %2446 = vmatprep.subr.mxu0 %v2327
        %2447 = vmatpush1.msra.mxu0 %v2326
        %2448 = vmatprep.subr.mxu0 %v2333
        %2449 = vmatpush1.msra.mxu0 %v2332
        %2450 = vmatprep.subr.mxu0 %v2339
        %2451 = vmatpush1.msra.mxu0 %v2338
        %2452 = vmatprep.subr.mxu0 %v2345
        %2453 = vmatpush1.msra.mxu0 %v2344
        %2454 = vmatprep.subr.mxu0 %v2351
        %2455 = vmatpush1.msra.mxu0 %v2350
        %2456 = vmatprep.subr.mxu0 %v2357
        %2457 = vmatpush1.msra.mxu0 %v2356
        %2458 = vmatprep.mubr.f32.mxu0 %v2139
        %2459 = vmatmul.mubr.f32.gmra.mrb[0].mxu0 %v2138
        %v2460 = vpop.f32.mrb[0].mxu0
        %v2461 = vadd.f32 %v2367, %v2460
        %v2462 = vpop.f32.mrb[0].mxu0
        %v2463 = vadd.f32 %v2371, %v2462
        %2464 = vmatprep.mubr.f32.mxu0 %v2141
        %2465 = vmatmul.mubr.f32.gmra.mrb[0].mxu0 %v2140
        %v2466 = vpop.f32.mrb[0].mxu0
        %v2467 = vadd.f32 %v2367, %v2466
        %v2468 = vpop.f32.mrb[0].mxu0
        %v2469 = vadd.f32 %v2371, %v2468
        %2470 = vmatprep.mubr.f32.mxu0 %v2143
        %2471 = vmatmul.mubr.f32.gmra.mrb[0].mxu0 %v2142
        %v2472 = vpop.f32.mrb[0].mxu0
        %v2473 = vadd.f32 %v2367, %v2472
        %v2474 = vpop.f32.mrb[0].mxu0
        %v2475 = vadd.f32 %v2371, %v2474
        %2476 = vmatprep.mubr.f32.mxu0 %v2145
        %2477 = vmatmul.mubr.f32.gmra.mrb[0].mxu0 %v2144
        %v2478 = vpop.f32.mrb[0].mxu0
        %v2479 = vadd.f32 %v2367, %v2478
        %v2480 = vpop.f32.mrb[0].mxu0
        %v2481 = vadd.f32 %v2371, %v2480
        %2482 = vmatprep.mubr.f32.mxu0 %v2147
        %2483 = vmatmul.mubr.f32.gmra.mrb[0].mxu0 %v2146
        %v2484 = vpop.f32.mrb[0].mxu0
        %v2485 = vadd.f32 %v2367, %v2484
        %v2486 = vpop.f32.mrb[0].mxu0
        %v2487 = vadd.f32 %v2371, %v2486
        %2488 = vmatprep.mubr.f32.mxu0 %v2149
        %2489 = vmatmul.mubr.f32.gmra.mrb[0].mxu0 %v2148
        %v2490 = vpop.f32.mrb[0].mxu0
        %v2491 = vadd.f32 %v2367, %v2490
        %v2492 = vpop.f32.mrb[0].mxu0
        %v2493 = vadd.f32 %v2371, %v2492
        %2494 = vmatprep.mubr.f32.mxu0 %v2151
        %2495 = vmatmul.mubr.f32.gmra.mrb[0].mxu0 %v2150
        %v2496 = vpop.f32.mrb[0].mxu0
        %v2497 = vadd.f32 %v2367, %v2496
        %v2498 = vpop.f32.mrb[0].mxu0
        %v2499 = vadd.f32 %v2371, %v2498
        %2500 = vmatprep.mubr.f32.mxu0 %v2153
        %2501 = vmatmul.mubr.f32.gmra.mrb[0].mxu0 %v2152
        %v2502 = vpop.f32.mrb[0].mxu0
        %v2503 = vadd.f32 %v2367, %v2502
        %v2504 = vpop.f32.mrb[0].mxu0
        %v2505 = vadd.f32 %v2371, %v2504
        %2506 = vmatprep.mubr.f32.mxu0 %v2155
        %2507 = vmatmul.mubr.f32.gmra.mrb[0].mxu0 %v2154
        %v2508 = vpop.f32.mrb[0].mxu0
        %v2509 = vadd.f32 %v2367, %v2508
        %v2510 = vpop.f32.mrb[0].mxu0
        %v2511 = vadd.f32 %v2371, %v2510
        %2512 = vmatprep.mubr.f32.mxu0 %v2157
        %2513 = vmatmul.mubr.f32.gmra.mrb[0].mxu0 %v2156
        %v2514 = vpop.f32.mrb[0].mxu0
        %v2515 = vadd.f32 %v2367, %v2514
        %v2516 = vpop.f32.mrb[0].mxu0
        %v2517 = vadd.f32 %v2371, %v2516
        %2518 = vmatprep.mubr.f32.mxu0 %v2159
        %2519 = vmatmul.mubr.f32.gmra.mrb[0].mxu0 %v2158
        %v2520 = vpop.f32.mrb[0].mxu0
        %v2521 = vadd.f32 %v2367, %v2520
        %v2522 = vpop.f32.mrb[0].mxu0
        %v2523 = vadd.f32 %v2371, %v2522
        %2524 = vmatprep.mubr.f32.mxu0 %v2161
        %2525 = vmatmul.mubr.f32.gmra.mrb[0].mxu0 %v2160
        %v2526 = vpop.f32.mrb[0].mxu0
        %v2527 = vadd.f32 %v2367, %v2526
        %v2528 = vpop.f32.mrb[0].mxu0
        %v2529 = vadd.f32 %v2371, %v2528
        %2530 = vmatprep.mubr.f32.mxu0 %v2163
        %2531 = vmatmul.mubr.f32.gmra.mrb[0].mxu0 %v2162
        %v2532 = vpop.f32.mrb[0].mxu0
        %v2533 = vadd.f32 %v2367, %v2532
        %v2534 = vpop.f32.mrb[0].mxu0
        %v2535 = vadd.f32 %v2371, %v2534
        %2536 = vmatprep.mubr.f32.mxu0 %v2165
        %2537 = vmatmul.mubr.f32.gmra.mrb[0].mxu0 %v2164
        %v2538 = vpop.f32.mrb[0].mxu0
        %v2539 = vadd.f32 %v2367, %v2538
        %v2540 = vpop.f32.mrb[0].mxu0
        %v2541 = vadd.f32 %v2371, %v2540
        %2542 = vmatprep.mubr.f32.mxu0 %v2167
        %2543 = vmatmul.mubr.f32.gmra.mrb[0].mxu0 %v2166
        %v2544 = vpop.f32.mrb[0].mxu0
        %v2545 = vadd.f32 %v2367, %v2544
        %v2546 = vpop.f32.mrb[0].mxu0
        %v2547 = vadd.f32 %v2371, %v2546
        %2548 = vmatprep.mubr.f32.mxu0 %v2169
        %2549 = vmatmul.mubr.f32.gmra.mrb[0].mxu0 %v2168
        %v2550 = vpop.f32.mrb[0].mxu0
        %v2551 = vadd.f32 %v2367, %v2550
        %v2552 = vpop.f32.mrb[0].mxu0
        %v2553 = vadd.f32 %v2371, %v2552
        %2554 = vdwg.mxu0
        %2555 = vmatprep.subr.mxu0 %v2173
        %2556 = vmatpush1.msra.mxu0 %v2172
        %2557 = vmatprep.subr.mxu0 %v2179
        %2558 = vmatpush1.msra.mxu0 %v2178
        %2559 = vmatprep.subr.mxu0 %v2185
        %2560 = vmatpush1.msra.mxu0 %v2184
        %2561 = vmatprep.subr.mxu0 %v2191
        %2562 = vmatpush1.msra.mxu0 %v2190
        %2563 = vmatprep.subr.mxu0 %v2197
        %2564 = vmatpush1.msra.mxu0 %v2196
        %2565 = vmatprep.subr.mxu0 %v2203
        %2566 = vmatpush1.msra.mxu0 %v2202
        %2567 = vmatprep.subr.mxu0 %v2209
        %2568 = vmatpush1.msra.mxu0 %v2208
        %2569 = vmatprep.subr.mxu0 %v2215
        %2570 = vmatpush1.msra.mxu0 %v2214
        %2571 = vmatprep.subr.mxu0 %v2221
        %2572 = vmatpush1.msra.mxu0 %v2220
        %2573 = vmatprep.subr.mxu0 %v2227
        %2574 = vmatpush1.msra.mxu0 %v2226
        %2575 = vmatprep.subr.mxu0 %v2233
        %2576 = vmatpush1.msra.mxu0 %v2232
        %2577 = vmatprep.subr.mxu0 %v2239
        %2578 = vmatpush1.msra.mxu0 %v2238
        %2579 = vmatprep.subr.mxu0 %v2245
        %2580 = vmatpush1.msra.mxu0 %v2244
        %2581 = vmatprep.subr.mxu0 %v2251
        %2582 = vmatpush1.msra.mxu0 %v2250
        %2583 = vmatprep.subr.mxu0 %v2257
        %2584 = vmatpush1.msra.mxu0 %v2256
        %2585 = vmatprep.subr.mxu0 %v2263
        %2586 = vmatpush1.msra.mxu0 %v2262
        %2587 = vmatprep.subr.mxu0 %v2269
        %2588 = vmatpush1.msra.mxu0 %v2268
        %2589 = vmatprep.subr.mxu0 %v2275
        %2590 = vmatpush1.msra.mxu0 %v2274
        %2591 = vmatprep.subr.mxu0 %v2281
        %2592 = vmatpush1.msra.mxu0 %v2280
        %2593 = vmatprep.subr.mxu0 %v2287
        %2594 = vmatpush1.msra.mxu0 %v2286
        %2595 = vmatprep.subr.mxu0 %v2293
        %2596 = vmatpush1.msra.mxu0 %v2292
        %2597 = vmatprep.subr.mxu0 %v2299
        %2598 = vmatpush1.msra.mxu0 %v2298
        %2599 = vmatprep.subr.mxu0 %v2305
        %2600 = vmatpush1.msra.mxu0 %v2304
        %2601 = vmatprep.subr.mxu0 %v2311
        %2602 = vmatpush1.msra.mxu0 %v2310
        %2603 = vmatprep.subr.mxu0 %v2317
        %2604 = vmatpush1.msra.mxu0 %v2316
        %2605 = vmatprep.subr.mxu0 %v2323
        %2606 = vmatpush1.msra.mxu0 %v2322
        %2607 = vmatprep.subr.mxu0 %v2329
        %2608 = vmatpush1.msra.mxu0 %v2328
        %2609 = vmatprep.subr.mxu0 %v2335
        %2610 = vmatpush1.msra.mxu0 %v2334
        %2611 = vmatprep.subr.mxu0 %v2341
        %2612 = vmatpush1.msra.mxu0 %v2340
        %2613 = vmatprep.subr.mxu0 %v2347
        %2614 = vmatpush1.msra.mxu0 %v2346
        %2615 = vmatprep.subr.mxu0 %v2353
        %2616 = vmatpush1.msra.mxu0 %v2352
        %2617 = vmatprep.subr.mxu0 %v2359
        %2618 = vmatpush1.msra.mxu0 %v2358
        %2619 = vmatprep.mubr.f32.mxu0 %v2139
        %2620 = vmatmul.mubr.f32.gmra.mrb[0].mxu0 %v2138
        %v2621 = vpop.f32.mrb[0].mxu0
        %v2622 = vadd.f32 %v2375, %v2621
        %v2623 = vpop.f32.mrb[0].mxu0
        %v2624 = vadd.f32 %v2379, %v2623
        %2625 = vmatprep.mubr.f32.mxu0 %v2141
        %2626 = vmatmul.mubr.f32.gmra.mrb[0].mxu0 %v2140
        %v2627 = vpop.f32.mrb[0].mxu0
        %v2628 = vadd.f32 %v2375, %v2627
        %v2629 = vpop.f32.mrb[0].mxu0
        %v2630 = vadd.f32 %v2379, %v2629
        %2631 = vmatprep.mubr.f32.mxu0 %v2143
        %2632 = vmatmul.mubr.f32.gmra.mrb[0].mxu0 %v2142
        %v2633 = vpop.f32.mrb[0].mxu0
        %v2634 = vadd.f32 %v2375, %v2633
        %v2635 = vpop.f32.mrb[0].mxu0
        %v2636 = vadd.f32 %v2379, %v2635
        %2637 = vmatprep.mubr.f32.mxu0 %v2145
        %2638 = vmatmul.mubr.f32.gmra.mrb[0].mxu0 %v2144
        %v2639 = vpop.f32.mrb[0].mxu0
        %v2640 = vadd.f32 %v2375, %v2639
        %v2641 = vpop.f32.mrb[0].mxu0
        %v2642 = vadd.f32 %v2379, %v2641
        %2643 = vmatprep.mubr.f32.mxu0 %v2147
        %2644 = vmatmul.mubr.f32.gmra.mrb[0].mxu0 %v2146
        %v2645 = vpop.f32.mrb[0].mxu0
        %v2646 = vadd.f32 %v2375, %v2645
        %v2647 = vpop.f32.mrb[0].mxu0
        %v2648 = vadd.f32 %v2379, %v2647
        %2649 = vmatprep.mubr.f32.mxu0 %v2149
        %2650 = vmatmul.mubr.f32.gmra.mrb[0].mxu0 %v2148
        %v2651 = vpop.f32.mrb[0].mxu0
        %v2652 = vadd.f32 %v2375, %v2651
        %v2653 = vpop.f32.mrb[0].mxu0
        %v2654 = vadd.f32 %v2379, %v2653
        %2655 = vmatprep.mubr.f32.mxu0 %v2151
        %2656 = vmatmul.mubr.f32.gmra.mrb[0].mxu0 %v2150
        %v2657 = vpop.f32.mrb[0].mxu0
        %v2658 = vadd.f32 %v2375, %v2657
        %v2659 = vpop.f32.mrb[0].mxu0
        %v2660 = vadd.f32 %v2379, %v2659
        %2661 = vmatprep.mubr.f32.mxu0 %v2153
        %2662 = vmatmul.mubr.f32.gmra.mrb[0].mxu0 %v2152
        %v2663 = vpop.f32.mrb[0].mxu0
        %v2664 = vadd.f32 %v2375, %v2663
        %v2665 = vpop.f32.mrb[0].mxu0
        %v2666 = vadd.f32 %v2379, %v2665
        %2667 = vmatprep.mubr.f32.mxu0 %v2155
        %2668 = vmatmul.mubr.f32.gmra.mrb[0].mxu0 %v2154
        %v2669 = vpop.f32.mrb[0].mxu0
        %v2670 = vadd.f32 %v2375, %v2669
        %v2671 = vpop.f32.mrb[0].mxu0
        %v2672 = vadd.f32 %v2379, %v2671
        %2673 = vmatprep.mubr.f32.mxu0 %v2157
        %2674 = vmatmul.mubr.f32.gmra.mrb[0].mxu0 %v2156
        %v2675 = vpop.f32.mrb[0].mxu0
        %v2676 = vadd.f32 %v2375, %v2675
        %v2677 = vpop.f32.mrb[0].mxu0
        %v2678 = vadd.f32 %v2379, %v2677
        %2679 = vmatprep.mubr.f32.mxu0 %v2159
        %2680 = vmatmul.mubr.f32.gmra.mrb[0].mxu0 %v2158
        %v2681 = vpop.f32.mrb[0].mxu0
        %v2682 = vadd.f32 %v2375, %v2681
        %v2683 = vpop.f32.mrb[0].mxu0
        %v2684 = vadd.f32 %v2379, %v2683
        %2685 = vmatprep.mubr.f32.mxu0 %v2161
        %2686 = vmatmul.mubr.f32.gmra.mrb[0].mxu0 %v2160
        %v2687 = vpop.f32.mrb[0].mxu0
        %v2688 = vadd.f32 %v2375, %v2687
        %v2689 = vpop.f32.mrb[0].mxu0
        %v2690 = vadd.f32 %v2379, %v2689
        %2691 = vmatprep.mubr.f32.mxu0 %v2163
        %2692 = vmatmul.mubr.f32.gmra.mrb[0].mxu0 %v2162
        %v2693 = vpop.f32.mrb[0].mxu0
        %v2694 = vadd.f32 %v2375, %v2693
        %v2695 = vpop.f32.mrb[0].mxu0
        %v2696 = vadd.f32 %v2379, %v2695
        %2697 = vmatprep.mubr.f32.mxu0 %v2165
        %2698 = vmatmul.mubr.f32.gmra.mrb[0].mxu0 %v2164
        %v2699 = vpop.f32.mrb[0].mxu0
        %v2700 = vadd.f32 %v2375, %v2699
        %v2701 = vpop.f32.mrb[0].mxu0
        %v2702 = vadd.f32 %v2379, %v2701
        %2703 = vmatprep.mubr.f32.mxu0 %v2167
        %2704 = vmatmul.mubr.f32.gmra.mrb[0].mxu0 %v2166
        %v2705 = vpop.f32.mrb[0].mxu0
        %v2706 = vadd.f32 %v2375, %v2705
        %v2707 = vpop.f32.mrb[0].mxu0
        %v2708 = vadd.f32 %v2379, %v2707
        %2709 = vmatprep.mubr.f32.mxu0 %v2169
        %2710 = vmatmul.mubr.f32.gmra.mrb[0].mxu0 %v2168
        %v2711 = vpop.f32.mrb[0].mxu0
        %v2712 = vadd.f32 %v2375, %v2711
        %v2713 = vpop.f32.mrb[0].mxu0
        %v2714 = vadd.f32 %v2379, %v2713
        %2715 = vdwg.mxu0
        %2716 = vmatprep.subr.mxu0 %v2175
        %2717 = vmatpush1.msra.mxu0 %v2174
        %2718 = vmatprep.subr.mxu0 %v2181
        %2719 = vmatpush1.msra.mxu0 %v2180
        %2720 = vmatprep.subr.mxu0 %v2187
        %2721 = vmatpush1.msra.mxu0 %v2186
        %2722 = vmatprep.subr.mxu0 %v2193
        %2723 = vmatpush1.msra.mxu0 %v2192
        %2724 = vmatprep.subr.mxu0 %v2199
        %2725 = vmatpush1.msra.mxu0 %v2198
        %2726 = vmatprep.subr.mxu0 %v2205
        %2727 = vmatpush1.msra.mxu0 %v2204
        %2728 = vmatprep.subr.mxu0 %v2211
        %2729 = vmatpush1.msra.mxu0 %v2210
        %2730 = vmatprep.subr.mxu0 %v2217
        %2731 = vmatpush1.msra.mxu0 %v2216
        %2732 = vmatprep.subr.mxu0 %v2223
        %2733 = vmatpush1.msra.mxu0 %v2222
        %2734 = vmatprep.subr.mxu0 %v2229
        %2735 = vmatpush1.msra.mxu0 %v2228
        %2736 = vmatprep.subr.mxu0 %v2235
        %2737 = vmatpush1.msra.mxu0 %v2234
        %2738 = vmatprep.subr.mxu0 %v2241
        %2739 = vmatpush1.msra.mxu0 %v2240
        %2740 = vmatprep.subr.mxu0 %v2247
        %2741 = vmatpush1.msra.mxu0 %v2246
        %2742 = vmatprep.subr.mxu0 %v2253
        %2743 = vmatpush1.msra.mxu0 %v2252
        %2744 = vmatprep.subr.mxu0 %v2259
        %2745 = vmatpush1.msra.mxu0 %v2258
        %2746 = vmatprep.subr.mxu0 %v2265
        %2747 = vmatpush1.msra.mxu0 %v2264
        %2748 = vmatprep.subr.mxu0 %v2271
        %2749 = vmatpush1.msra.mxu0 %v2270
        %2750 = vmatprep.subr.mxu0 %v2277
        %2751 = vmatpush1.msra.mxu0 %v2276
        %2752 = vmatprep.subr.mxu0 %v2283
        %2753 = vmatpush1.msra.mxu0 %v2282
        %2754 = vmatprep.subr.mxu0 %v2289
        %2755 = vmatpush1.msra.mxu0 %v2288
        %2756 = vmatprep.subr.mxu0 %v2295
        %2757 = vmatpush1.msra.mxu0 %v2294
        %2758 = vmatprep.subr.mxu0 %v2301
        %2759 = vmatpush1.msra.mxu0 %v2300
        %2760 = vmatprep.subr.mxu0 %v2307
        %2761 = vmatpush1.msra.mxu0 %v2306
        %2762 = vmatprep.subr.mxu0 %v2313
        %2763 = vmatpush1.msra.mxu0 %v2312
        %2764 = vmatprep.subr.mxu0 %v2319
        %2765 = vmatpush1.msra.mxu0 %v2318
        %2766 = vmatprep.subr.mxu0 %v2325
        %2767 = vmatpush1.msra.mxu0 %v2324
        %2768 = vmatprep.subr.mxu0 %v2331
        %2769 = vmatpush1.msra.mxu0 %v2330
        %2770 = vmatprep.subr.mxu0 %v2337
        %2771 = vmatpush1.msra.mxu0 %v2336
        %2772 = vmatprep.subr.mxu0 %v2343
        %2773 = vmatpush1.msra.mxu0 %v2342
        %2774 = vmatprep.subr.mxu0 %v2349
        %2775 = vmatpush1.msra.mxu0 %v2348
        %2776 = vmatprep.subr.mxu0 %v2355
        %2777 = vmatpush1.msra.mxu0 %v2354
        %2778 = vmatprep.subr.mxu0 %v2361
        %2779 = vmatpush1.msra.mxu0 %v2360
        %2780 = vmatprep.mubr.f32.mxu0 %v2139
        %2781 = vmatmul.mubr.f32.gmra.mrb[0].mxu0 %v2138
        %v2782 = vpop.f32.mrb[0].mxu0
        %v2783 = vadd.f32 %v2383, %v2782
        %v2784 = vpop.f32.mrb[0].mxu0
        %v2785 = vadd.f32 %v2387, %v2784
        %2786 = vmatprep.mubr.f32.mxu0 %v2141
        %2787 = vmatmul.mubr.f32.gmra.mrb[0].mxu0 %v2140
        %v2788 = vpop.f32.mrb[0].mxu0
        %v2789 = vadd.f32 %v2383, %v2788
        %v2790 = vpop.f32.mrb[0].mxu0
        %v2791 = vadd.f32 %v2387, %v2790
        %2792 = vmatprep.mubr.f32.mxu0 %v2143
        %2793 = vmatmul.mubr.f32.gmra.mrb[0].mxu0 %v2142
        %v2794 = vpop.f32.mrb[0].mxu0
        %v2795 = vadd.f32 %v2383, %v2794
        %v2796 = vpop.f32.mrb[0].mxu0
        %v2797 = vadd.f32 %v2387, %v2796
        %2798 = vmatprep.mubr.f32.mxu0 %v2145
        %2799 = vmatmul.mubr.f32.gmra.mrb[0].mxu0 %v2144
        %v2800 = vpop.f32.mrb[0].mxu0
        %v2801 = vadd.f32 %v2383, %v2800
        %v2802 = vpop.f32.mrb[0].mxu0
        %v2803 = vadd.f32 %v2387, %v2802
        %2804 = vmatprep.mubr.f32.mxu0 %v2147
        %2805 = vmatmul.mubr.f32.gmra.mrb[0].mxu0 %v2146
        %v2806 = vpop.f32.mrb[0].mxu0
        %v2807 = vadd.f32 %v2383, %v2806
        %v2808 = vpop.f32.mrb[0].mxu0
        %v2809 = vadd.f32 %v2387, %v2808
        %2810 = vmatprep.mubr.f32.mxu0 %v2149
        %2811 = vmatmul.mubr.f32.gmra.mrb[0].mxu0 %v2148
        %v2812 = vpop.f32.mrb[0].mxu0
        %v2813 = vadd.f32 %v2383, %v2812
        %v2814 = vpop.f32.mrb[0].mxu0
        %v2815 = vadd.f32 %v2387, %v2814
        %2816 = vmatprep.mubr.f32.mxu0 %v2151
        %2817 = vmatmul.mubr.f32.gmra.mrb[0].mxu0 %v2150
        %v2818 = vpop.f32.mrb[0].mxu0
        %v2819 = vadd.f32 %v2383, %v2818
        %v2820 = vpop.f32.mrb[0].mxu0
        %v2821 = vadd.f32 %v2387, %v2820
        %2822 = vmatprep.mubr.f32.mxu0 %v2153
        %2823 = vmatmul.mubr.f32.gmra.mrb[0].mxu0 %v2152
        %v2824 = vpop.f32.mrb[0].mxu0
        %v2825 = vadd.f32 %v2383, %v2824
        %v2826 = vpop.f32.mrb[0].mxu0
        %v2827 = vadd.f32 %v2387, %v2826
        %2828 = vmatprep.mubr.f32.mxu0 %v2155
        %2829 = vmatmul.mubr.f32.gmra.mrb[0].mxu0 %v2154
        %v2830 = vpop.f32.mrb[0].mxu0
        %v2831 = vadd.f32 %v2383, %v2830
        %v2832 = vpop.f32.mrb[0].mxu0
        %v2833 = vadd.f32 %v2387, %v2832
        %2834 = vmatprep.mubr.f32.mxu0 %v2157
        %2835 = vmatmul.mubr.f32.gmra.mrb[0].mxu0 %v2156
        %v2836 = vpop.f32.mrb[0].mxu0
        %v2837 = vadd.f32 %v2383, %v2836
        %v2838 = vpop.f32.mrb[0].mxu0
        %v2839 = vadd.f32 %v2387, %v2838
        %2840 = vmatprep.mubr.f32.mxu0 %v2159
        %2841 = vmatmul.mubr.f32.gmra.mrb[0].mxu0 %v2158
        %v2842 = vpop.f32.mrb[0].mxu0
        %v2843 = vadd.f32 %v2383, %v2842
        %v2844 = vpop.f32.mrb[0].mxu0
        %v2845 = vadd.f32 %v2387, %v2844
        %2846 = vmatprep.mubr.f32.mxu0 %v2161
        %2847 = vmatmul.mubr.f32.gmra.mrb[0].mxu0 %v2160
        %v2848 = vpop.f32.mrb[0].mxu0
        %v2849 = vadd.f32 %v2383, %v2848
        %v2850 = vpop.f32.mrb[0].mxu0
        %v2851 = vadd.f32 %v2387, %v2850
        %2852 = vmatprep.mubr.f32.mxu0 %v2163
        %2853 = vmatmul.mubr.f32.gmra.mrb[0].mxu0 %v2162
        %v2854 = vpop.f32.mrb[0].mxu0
        %v2855 = vadd.f32 %v2383, %v2854
        %v2856 = vpop.f32.mrb[0].mxu0
        %v2857 = vadd.f32 %v2387, %v2856
        %2858 = vmatprep.mubr.f32.mxu0 %v2165
        %2859 = vmatmul.mubr.f32.gmra.mrb[0].mxu0 %v2164
        %v2860 = vpop.f32.mrb[0].mxu0
        %v2861 = vadd.f32 %v2383, %v2860
        %v2862 = vpop.f32.mrb[0].mxu0
        %v2863 = vadd.f32 %v2387, %v2862
        %2864 = vmatprep.mubr.f32.mxu0 %v2167
        %2865 = vmatmul.mubr.f32.gmra.mrb[0].mxu0 %v2166
        %v2866 = vpop.f32.mrb[0].mxu0
        %v2867 = vadd.f32 %v2383, %v2866
        %v2868 = vpop.f32.mrb[0].mxu0
        %v2869 = vadd.f32 %v2387, %v2868
        %2870 = vmatprep.mubr.f32.mxu0 %v2169
        %2871 = vmatmul.mubr.f32.gmra.mrb[0].mxu0 %v2168
        %v2872 = vpop.f32.mrb[0].mxu0
        %v2873 = vadd.f32 %v2383, %v2872
        %v2874 = vpop.f32.mrb[0].mxu0
        %v2875 = vadd.f32 %v2387, %v2874
        %2876 = vdwg.mxu0
        %2877 = vst [vmem:[#allocation2] sm:$0xff] %v2461
        %2878 = vst [vmem:[#allocation2 + $0x8] sm:$0xff] %v2463
        %2879 = vst [vmem:[#allocation2 + $0x10] sm:$0xff] %v2622
        %2880 = vst [vmem:[#allocation2 + $0x18] sm:$0xff] %v2624
        %2881 = vst [vmem:[#allocation2 + $0x20] sm:$0xff] %v2783
        %2882 = vst [vmem:[#allocation2 + $0x28] sm:$0xff] %v2785
        %2883 = vst [vmem:[#allocation2 + $0x30] sm:$0xff] %v2467
        %2884 = vst [vmem:[#allocation2 + $0x38] sm:$0xff] %v2469
        %2885 = vst [vmem:[#allocation2 + $0x40] sm:$0xff] %v2628
        %2886 = vst [vmem:[#allocation2 + $0x48] sm:$0xff] %v2630
        %2887 = vst [vmem:[#allocation2 + $0x50] sm:$0xff] %v2789
        %2888 = vst [vmem:[#allocation2 + $0x58] sm:$0xff] %v2791
        %2889 = vst [vmem:[#allocation2 + $0x60] sm:$0xff] %v2473
        %2890 = vst [vmem:[#allocation2 + $0x68] sm:$0xff] %v2475
        %2891 = vst [vmem:[#allocation2 + $0x70] sm:$0xff] %v2634
        %2892 = vst [vmem:[#allocation2 + $0x78] sm:$0xff] %v2636
        %2893 = vst [vmem:[#allocation2 + $0x80] sm:$0xff] %v2795
        %2894 = vst [vmem:[#allocation2 + $0x88] sm:$0xff] %v2797
        %2895 = vst [vmem:[#allocation2 + $0x90] sm:$0xff] %v2479
        %2896 = vst [vmem:[#allocation2 + $0x98] sm:$0xff] %v2481
        %2897 = vst [vmem:[#allocation2 + $0xa0] sm:$0xff] %v2640
        %2898 = vst [vmem:[#allocation2 + $0xa8] sm:$0xff] %v2642
        %2899 = vst [vmem:[#allocation2 + $0xb0] sm:$0xff] %v2801
        %2900 = vst [vmem:[#allocation2 + $0xb8] sm:$0xff] %v2803
        %2901 = vst [vmem:[#allocation2 + $0xc0] sm:$0xff] %v2485
        %2902 = vst [vmem:[#allocation2 + $0xc8] sm:$0xff] %v2487
        %2903 = vst [vmem:[#allocation2 + $0xd0] sm:$0xff] %v2646
        %2904 = vst [vmem:[#allocation2 + $0xd8] sm:$0xff] %v2648
        %2905 = vst [vmem:[#allocation2 + $0xe0] sm:$0xff] %v2807
        %2906 = vst [vmem:[#allocation2 + $0xe8] sm:$0xff] %v2809
        %2907 = vst [vmem:[#allocation2 + $0xf0] sm:$0xff] %v2491
        %2908 = vst [vmem:[#allocation2 + $0xf8] sm:$0xff] %v2493
        %2909 = vst [vmem:[#allocation2 + $0x100] sm:$0xff] %v2652
        %2910 = vst [vmem:[#allocation2 + $0x108] sm:$0xff] %v2654
        %2911 = vst [vmem:[#allocation2 + $0x110] sm:$0xff] %v2813
        %2912 = vst [vmem:[#allocation2 + $0x118] sm:$0xff] %v2815
        %2913 = vst [vmem:[#allocation2 + $0x120] sm:$0xff] %v2497
        %2914 = vst [vmem:[#allocation2 + $0x128] sm:$0xff] %v2499
        %2915 = vst [vmem:[#allocation2 + $0x130] sm:$0xff] %v2658
        %2916 = vst [vmem:[#allocation2 + $0x138] sm:$0xff] %v2660
        %2917 = vst [vmem:[#allocation2 + $0x140] sm:$0xff] %v2819
        %2918 = vst [vmem:[#allocation2 + $0x148] sm:$0xff] %v2821
        %2919 = vst [vmem:[#allocation2 + $0x150] sm:$0xff] %v2503
        %2920 = vst [vmem:[#allocation2 + $0x158] sm:$0xff] %v2505
        %2921 = vst [vmem:[#allocation2 + $0x160] sm:$0xff] %v2664
        %2922 = vst [vmem:[#allocation2 + $0x168] sm:$0xff] %v2666
        %2923 = vst [vmem:[#allocation2 + $0x170] sm:$0xff] %v2825
        %2924 = vst [vmem:[#allocation2 + $0x178] sm:$0xff] %v2827
        %2925 = vst [vmem:[#allocation2 + $0x180] sm:$0xff] %v2509
        %2926 = vst [vmem:[#allocation2 + $0x188] sm:$0xff] %v2511
        %2927 = vst [vmem:[#allocation2 + $0x190] sm:$0xff] %v2670
        %2928 = vst [vmem:[#allocation2 + $0x198] sm:$0xff] %v2672
        %2929 = vst [vmem:[#allocation2 + $0x1a0] sm:$0xff] %v2831
        %2930 = vst [vmem:[#allocation2 + $0x1a8] sm:$0xff] %v2833
        %2931 = vst [vmem:[#allocation2 + $0x1b0] sm:$0xff] %v2515
        %2932 = vst [vmem:[#allocation2 + $0x1b8] sm:$0xff] %v2517
        %2933 = vst [vmem:[#allocation2 + $0x1c0] sm:$0xff] %v2676
        %2934 = vst [vmem:[#allocation2 + $0x1c8] sm:$0xff] %v2678
        %2935 = vst [vmem:[#allocation2 + $0x1d0] sm:$0xff] %v2837
        %2936 = vst [vmem:[#allocation2 + $0x1d8] sm:$0xff] %v2839
        %2937 = vst [vmem:[#allocation2 + $0x1e0] sm:$0xff] %v2521
        %2938 = vst [vmem:[#allocation2 + $0x1e8] sm:$0xff] %v2523
        %2939 = vst [vmem:[#allocation2 + $0x1f0] sm:$0xff] %v2682
        %2940 = vst [vmem:[#allocation2 + $0x1f8] sm:$0xff] %v2684
        %2941 = vst [vmem:[#allocation2 + $0x200] sm:$0xff] %v2843
        %2942 = vst [vmem:[#allocation2 + $0x208] sm:$0xff] %v2845
        %2943 = vst [vmem:[#allocation2 + $0x210] sm:$0xff] %v2527
        %2944 = vst [vmem:[#allocation2 + $0x218] sm:$0xff] %v2529
        %2945 = vst [vmem:[#allocation2 + $0x220] sm:$0xff] %v2688
        %2946 = vst [vmem:[#allocation2 + $0x228] sm:$0xff] %v2690
        %2947 = vst [vmem:[#allocation2 + $0x230] sm:$0xff] %v2849
        %2948 = vst [vmem:[#allocation2 + $0x238] sm:$0xff] %v2851
        %2949 = vst [vmem:[#allocation2 + $0x240] sm:$0xff] %v2533
        %2950 = vst [vmem:[#allocation2 + $0x248] sm:$0xff] %v2535
        %2951 = vst [vmem:[#allocation2 + $0x250] sm:$0xff] %v2694
        %2952 = vst [vmem:[#allocation2 + $0x258] sm:$0xff] %v2696
        %2953 = vst [vmem:[#allocation2 + $0x260] sm:$0xff] %v2855
        %2954 = vst [vmem:[#allocation2 + $0x268] sm:$0xff] %v2857
        %2955 = vst [vmem:[#allocation2 + $0x270] sm:$0xff] %v2539
        %2956 = vst [vmem:[#allocation2 + $0x278] sm:$0xff] %v2541
        %2957 = vst [vmem:[#allocation2 + $0x280] sm:$0xff] %v2700
        %2958 = vst [vmem:[#allocation2 + $0x288] sm:$0xff] %v2702
        %2959 = vst [vmem:[#allocation2 + $0x290] sm:$0xff] %v2861
        %2960 = vst [vmem:[#allocation2 + $0x298] sm:$0xff] %v2863
        %2961 = vst [vmem:[#allocation2 + $0x2a0] sm:$0xff] %v2545
        %2962 = vst [vmem:[#allocation2 + $0x2a8] sm:$0xff] %v2547
        %2963 = vst [vmem:[#allocation2 + $0x2b0] sm:$0xff] %v2706
        %2964 = vst [vmem:[#allocation2 + $0x2b8] sm:$0xff] %v2708
        %2965 = vst [vmem:[#allocation2 + $0x2c0] sm:$0xff] %v2867
        %2966 = vst [vmem:[#allocation2 + $0x2c8] sm:$0xff] %v2869
        %2967 = vst [vmem:[#allocation2 + $0x2d0] sm:$0xff] %v2551
        %2968 = vst [vmem:[#allocation2 + $0x2d8] sm:$0xff] %v2553
        %2969 = vst [vmem:[#allocation2 + $0x2e0] sm:$0xff] %v2712
        %2970 = vst [vmem:[#allocation2 + $0x2e8] sm:$0xff] %v2714
        %2971 = vst [vmem:[#allocation2 + $0x2f0] sm:$0xff] %v2873
        %2972 = vst [vmem:[#allocation2 + $0x2f8] sm:$0xff] %v2875
        %v2973 = vld [vmem:[%s545] sm:$0xff]
        %v2974 = vld [vmem:[%s545 + $0x8] sm:$0xff]
        %v2975 = vld [vmem:[%s545 + $0x10] sm:$0xff]
        %v2976 = vld [vmem:[%s545 + $0x18] sm:$0xff]
        %v2977 = vld [vmem:[#allocation2] sm:$0xff]
        %v2978 = vld [vmem:[#allocation2 + $0x8] sm:$0xff]
        %v2979 = vld [vmem:[#allocation2 + $0x10] sm:$0xff]
        %v2980 = vld [vmem:[#allocation2 + $0x18] sm:$0xff]
        %v2981 = vld [vmem:[#allocation2 + $0x20] sm:$0xff]
        %v2982 = vld [vmem:[#allocation2 + $0x28] sm:$0xff]
        %v2983 = vld [vmem:[#allocation2 + $0x30] sm:$0xff]
        %v2984 = vld [vmem:[#allocation2 + $0x38] sm:$0xff]
        %v2985 = vld [vmem:[#allocation2 + $0x40] sm:$0xff]
        %v2986 = vld [vmem:[#allocation2 + $0x48] sm:$0xff]
        %v2987 = vld [vmem:[#allocation2 + $0x50] sm:$0xff]
        %v2988 = vld [vmem:[#allocation2 + $0x58] sm:$0xff]
        %v2989 = vld [vmem:[#allocation15] sm:$0xff]
        %v2990 = vld [vmem:[#allocation15 + $0x8] sm:$0xff]
        %v2991 = vld [vmem:[#allocation15 + $0x10] sm:$0xff]
        %v2992 = vld [vmem:[#allocation15 + $0x18] sm:$0xff]
        %v2993 = vld [vmem:[#allocation15 + $0x20] sm:$0xff]
        %v2994 = vld [vmem:[#allocation15 + $0x28] sm:$0xff]
        %v2995 = vld [vmem:[#allocation15 + $0x30] sm:$0xff]
        %v2996 = vld [vmem:[#allocation15 + $0x38] sm:$0xff]
        %v2997 = vld [vmem:[#allocation15 + $0x40] sm:$0xff]
        %v2998 = vld [vmem:[#allocation15 + $0x48] sm:$0xff]
        %v2999 = vld [vmem:[#allocation15 + $0x50] sm:$0xff]
        %v3000 = vld [vmem:[#allocation15 + $0x58] sm:$0xff]
        %v3001 = vld [vmem:[#allocation15 + $0x60] sm:$0xff]
        %v3002 = vld [vmem:[#allocation15 + $0x68] sm:$0xff]
        %v3003 = vld [vmem:[#allocation15 + $0x70] sm:$0xff]
        %v3004 = vld [vmem:[#allocation15 + $0x78] sm:$0xff]
        %v3005 = vld [vmem:[#allocation15 + $0x80] sm:$0xff]
        %v3006 = vld [vmem:[#allocation15 + $0x88] sm:$0xff]
        %v3007 = vld [vmem:[#allocation15 + $0x90] sm:$0xff]
        %v3008 = vld [vmem:[#allocation15 + $0x98] sm:$0xff]
        %v3009 = vld [vmem:[#allocation15 + $0xa0] sm:$0xff]
        %v3010 = vld [vmem:[#allocation15 + $0xa8] sm:$0xff]
        %v3011 = vld [vmem:[#allocation15 + $0xb0] sm:$0xff]
        %v3012 = vld [vmem:[#allocation15 + $0xb8] sm:$0xff]
        %v3013 = vld [vmem:[#allocation15 + $0xc0] sm:$0xff]
        %v3014 = vld [vmem:[#allocation15 + $0xc8] sm:$0xff]
        %v3015 = vld [vmem:[#allocation15 + $0xd0] sm:$0xff]
        %v3016 = vld [vmem:[#allocation15 + $0xd8] sm:$0xff]
        %v3017 = vld [vmem:[#allocation15 + $0xe0] sm:$0xff]
        %v3018 = vld [vmem:[#allocation15 + $0xe8] sm:$0xff]
        %v3019 = vld [vmem:[#allocation15 + $0xf0] sm:$0xff]
        %v3020 = vld [vmem:[#allocation15 + $0xf8] sm:$0xff]
        %v3021 = vld [vmem:[#allocation15 + $0x100] sm:$0xff]
        %v3022 = vld [vmem:[#allocation15 + $0x108] sm:$0xff]
        %v3023 = vld [vmem:[#allocation15 + $0x110] sm:$0xff]
        %v3024 = vld [vmem:[#allocation15 + $0x118] sm:$0xff]
        %v3025 = vld [vmem:[#allocation15 + $0x120] sm:$0xff]
        %v3026 = vld [vmem:[#allocation15 + $0x128] sm:$0xff]
        %v3027 = vld [vmem:[#allocation15 + $0x130] sm:$0xff]
        %v3028 = vld [vmem:[#allocation15 + $0x138] sm:$0xff]
        %v3029 = vld [vmem:[#allocation15 + $0x140] sm:$0xff]
        %v3030 = vld [vmem:[#allocation15 + $0x148] sm:$0xff]
        %v3031 = vld [vmem:[#allocation15 + $0x150] sm:$0xff]
        %v3032 = vld [vmem:[#allocation15 + $0x158] sm:$0xff]
        %v3033 = vld [vmem:[#allocation15 + $0x160] sm:$0xff]
        %v3034 = vld [vmem:[#allocation15 + $0x168] sm:$0xff]
        %v3035 = vld [vmem:[#allocation15 + $0x170] sm:$0xff]
        %v3036 = vld [vmem:[#allocation15 + $0x178] sm:$0xff]
        %v3037 = vld [vmem:[#allocation15 + $0x180] sm:$0xff]
        %v3038 = vld [vmem:[#allocation15 + $0x188] sm:$0xff]
        %v3039 = vld [vmem:[#allocation15 + $0x190] sm:$0xff]
        %v3040 = vld [vmem:[#allocation15 + $0x198] sm:$0xff]
        %v3041 = vld [vmem:[#allocation15 + $0x1a0] sm:$0xff]
        %v3042 = vld [vmem:[#allocation15 + $0x1a8] sm:$0xff]
        %v3043 = vld [vmem:[#allocation15 + $0x1b0] sm:$0xff]
        %v3044 = vld [vmem:[#allocation15 + $0x1b8] sm:$0xff]
        %v3045 = vld [vmem:[#allocation15 + $0x1c0] sm:$0xff]
        %v3046 = vld [vmem:[#allocation15 + $0x1c8] sm:$0xff]
        %v3047 = vld [vmem:[#allocation15 + $0x1d0] sm:$0xff]
        %v3048 = vld [vmem:[#allocation15 + $0x1d8] sm:$0xff]
        %v3049 = vld [vmem:[#allocation15 + $0x1e0] sm:$0xff]
        %v3050 = vld [vmem:[#allocation15 + $0x1e8] sm:$0xff]
        %v3051 = vld [vmem:[#allocation15 + $0x1f0] sm:$0xff]
        %v3052 = vld [vmem:[#allocation15 + $0x1f8] sm:$0xff]
        %v3053 = vld [vmem:[#allocation15 + $0x200] sm:$0xff]
        %v3054 = vld [vmem:[#allocation15 + $0x208] sm:$0xff]
        %v3055 = vld [vmem:[#allocation15 + $0x210] sm:$0xff]
        %v3056 = vld [vmem:[#allocation15 + $0x218] sm:$0xff]
        %v3057 = vld [vmem:[#allocation15 + $0x220] sm:$0xff]
        %v3058 = vld [vmem:[#allocation15 + $0x228] sm:$0xff]
        %v3059 = vld [vmem:[#allocation15 + $0x230] sm:$0xff]
        %v3060 = vld [vmem:[#allocation15 + $0x238] sm:$0xff]
        %v3061 = vld [vmem:[#allocation15 + $0x240] sm:$0xff]
        %v3062 = vld [vmem:[#allocation15 + $0x248] sm:$0xff]
        %v3063 = vld [vmem:[#allocation15 + $0x250] sm:$0xff]
        %v3064 = vld [vmem:[#allocation15 + $0x258] sm:$0xff]
        %v3065 = vld [vmem:[#allocation15 + $0x260] sm:$0xff]
        %v3066 = vld [vmem:[#allocation15 + $0x268] sm:$0xff]
        %v3067 = vld [vmem:[#allocation15 + $0x270] sm:$0xff]
        %v3068 = vld [vmem:[#allocation15 + $0x278] sm:$0xff]
        %v3069 = vld [vmem:[#allocation15 + $0x280] sm:$0xff]
        %v3070 = vld [vmem:[#allocation15 + $0x288] sm:$0xff]
        %v3071 = vld [vmem:[#allocation15 + $0x290] sm:$0xff]
        %v3072 = vld [vmem:[#allocation15 + $0x298] sm:$0xff]
        %v3073 = vld [vmem:[#allocation15 + $0x2a0] sm:$0xff]
        %v3074 = vld [vmem:[#allocation15 + $0x2a8] sm:$0xff]
        %v3075 = vld [vmem:[#allocation15 + $0x2b0] sm:$0xff]
        %v3076 = vld [vmem:[#allocation15 + $0x2b8] sm:$0xff]
        %v3077 = vld [vmem:[#allocation15 + $0x2c0] sm:$0xff]
        %v3078 = vld [vmem:[#allocation15 + $0x2c8] sm:$0xff]
        %v3079 = vld [vmem:[#allocation15 + $0x2d0] sm:$0xff]
        %v3080 = vld [vmem:[#allocation15 + $0x2d8] sm:$0xff]
        %v3081 = vld [vmem:[#allocation15 + $0x2e0] sm:$0xff]
        %v3082 = vld [vmem:[#allocation15 + $0x2e8] sm:$0xff]
        %v3083 = vld [vmem:[#allocation15 + $0x2f0] sm:$0xff]
        %v3084 = vld [vmem:[#allocation15 + $0x2f8] sm:$0xff]
        %v3085 = vld [vmem:[#allocation15 + $0x300] sm:$0xff]
        %v3086 = vld [vmem:[#allocation15 + $0x308] sm:$0xff]
        %v3087 = vld [vmem:[#allocation15 + $0x310] sm:$0xff]
        %v3088 = vld [vmem:[#allocation15 + $0x318] sm:$0xff]
        %v3089 = vld [vmem:[#allocation15 + $0x320] sm:$0xff]
        %v3090 = vld [vmem:[#allocation15 + $0x328] sm:$0xff]
        %v3091 = vld [vmem:[#allocation15 + $0x330] sm:$0xff]
        %v3092 = vld [vmem:[#allocation15 + $0x338] sm:$0xff]
        %v3093 = vld [vmem:[#allocation15 + $0x340] sm:$0xff]
        %v3094 = vld [vmem:[#allocation15 + $0x348] sm:$0xff]
        %v3095 = vld [vmem:[#allocation15 + $0x350] sm:$0xff]
        %v3096 = vld [vmem:[#allocation15 + $0x358] sm:$0xff]
        %v3097 = vld [vmem:[#allocation15 + $0x360] sm:$0xff]
        %v3098 = vld [vmem:[#allocation15 + $0x368] sm:$0xff]
        %v3099 = vld [vmem:[#allocation15 + $0x370] sm:$0xff]
        %v3100 = vld [vmem:[#allocation15 + $0x378] sm:$0xff]
        %v3101 = vld [vmem:[#allocation15 + $0x380] sm:$0xff]
        %v3102 = vld [vmem:[#allocation15 + $0x388] sm:$0xff]
        %v3103 = vld [vmem:[#allocation15 + $0x390] sm:$0xff]
        %v3104 = vld [vmem:[#allocation15 + $0x398] sm:$0xff]
        %v3105 = vld [vmem:[#allocation15 + $0x3a0] sm:$0xff]
        %v3106 = vld [vmem:[#allocation15 + $0x3a8] sm:$0xff]
        %v3107 = vld [vmem:[#allocation15 + $0x3b0] sm:$0xff]
        %v3108 = vld [vmem:[#allocation15 + $0x3b8] sm:$0xff]
        %v3109 = vld [vmem:[#allocation15 + $0x3c0] sm:$0xff]
        %v3110 = vld [vmem:[#allocation15 + $0x3c8] sm:$0xff]
        %v3111 = vld [vmem:[#allocation15 + $0x3d0] sm:$0xff]
        %v3112 = vld [vmem:[#allocation15 + $0x3d8] sm:$0xff]
        %v3113 = vld [vmem:[#allocation15 + $0x3e0] sm:$0xff]
        %v3114 = vld [vmem:[#allocation15 + $0x3e8] sm:$0xff]
        %v3115 = vld [vmem:[#allocation15 + $0x3f0] sm:$0xff]
        %v3116 = vld [vmem:[#allocation15 + $0x3f8] sm:$0xff]
        %v3117 = vld [vmem:[#allocation15 + $0x400] sm:$0xff]
        %v3118 = vld [vmem:[#allocation15 + $0x408] sm:$0xff]
        %v3119 = vld [vmem:[#allocation15 + $0x410] sm:$0xff]
        %v3120 = vld [vmem:[#allocation15 + $0x418] sm:$0xff]
        %v3121 = vld [vmem:[#allocation15 + $0x420] sm:$0xff]
        %v3122 = vld [vmem:[#allocation15 + $0x428] sm:$0xff]
        %v3123 = vld [vmem:[#allocation15 + $0x430] sm:$0xff]
        %v3124 = vld [vmem:[#allocation15 + $0x438] sm:$0xff]
        %v3125 = vld [vmem:[#allocation15 + $0x440] sm:$0xff]
        %v3126 = vld [vmem:[#allocation15 + $0x448] sm:$0xff]
        %v3127 = vld [vmem:[#allocation15 + $0x450] sm:$0xff]
        %v3128 = vld [vmem:[#allocation15 + $0x458] sm:$0xff]
        %v3129 = vld [vmem:[#allocation15 + $0x460] sm:$0xff]
        %v3130 = vld [vmem:[#allocation15 + $0x468] sm:$0xff]
        %v3131 = vld [vmem:[#allocation15 + $0x470] sm:$0xff]
        %v3132 = vld [vmem:[#allocation15 + $0x478] sm:$0xff]
        %v3133 = vld [vmem:[#allocation15 + $0x480] sm:$0xff]
        %v3134 = vld [vmem:[#allocation15 + $0x488] sm:$0xff]
        %v3135 = vld [vmem:[#allocation15 + $0x490] sm:$0xff]
        %v3136 = vld [vmem:[#allocation15 + $0x498] sm:$0xff]
        %v3137 = vld [vmem:[#allocation15 + $0x4a0] sm:$0xff]
        %v3138 = vld [vmem:[#allocation15 + $0x4a8] sm:$0xff]
        %v3139 = vld [vmem:[#allocation15 + $0x4b0] sm:$0xff]
        %v3140 = vld [vmem:[#allocation15 + $0x4b8] sm:$0xff]
        %v3141 = vld [vmem:[#allocation15 + $0x4c0] sm:$0xff]
        %v3142 = vld [vmem:[#allocation15 + $0x4c8] sm:$0xff]
        %v3143 = vld [vmem:[#allocation15 + $0x4d0] sm:$0xff]
        %v3144 = vld [vmem:[#allocation15 + $0x4d8] sm:$0xff]
        %v3145 = vld [vmem:[#allocation15 + $0x4e0] sm:$0xff]
        %v3146 = vld [vmem:[#allocation15 + $0x4e8] sm:$0xff]
        %v3147 = vld [vmem:[#allocation15 + $0x4f0] sm:$0xff]
        %v3148 = vld [vmem:[#allocation15 + $0x4f8] sm:$0xff]
        %v3149 = vld [vmem:[#allocation15 + $0x500] sm:$0xff]
        %v3150 = vld [vmem:[#allocation15 + $0x508] sm:$0xff]
        %v3151 = vld [vmem:[#allocation15 + $0x510] sm:$0xff]
        %v3152 = vld [vmem:[#allocation15 + $0x518] sm:$0xff]
        %v3153 = vld [vmem:[#allocation15 + $0x520] sm:$0xff]
        %v3154 = vld [vmem:[#allocation15 + $0x528] sm:$0xff]
        %v3155 = vld [vmem:[#allocation15 + $0x530] sm:$0xff]
        %v3156 = vld [vmem:[#allocation15 + $0x538] sm:$0xff]
        %v3157 = vld [vmem:[#allocation15 + $0x540] sm:$0xff]
        %v3158 = vld [vmem:[#allocation15 + $0x548] sm:$0xff]
        %v3159 = vld [vmem:[#allocation15 + $0x550] sm:$0xff]
        %v3160 = vld [vmem:[#allocation15 + $0x558] sm:$0xff]
        %v3161 = vld [vmem:[#allocation15 + $0x560] sm:$0xff]
        %v3162 = vld [vmem:[#allocation15 + $0x568] sm:$0xff]
        %v3163 = vld [vmem:[#allocation15 + $0x570] sm:$0xff]
        %v3164 = vld [vmem:[#allocation15 + $0x578] sm:$0xff]
        %v3165 = vld [vmem:[#allocation15 + $0x580] sm:$0xff]
        %v3166 = vld [vmem:[#allocation15 + $0x588] sm:$0xff]
        %v3167 = vld [vmem:[#allocation15 + $0x590] sm:$0xff]
        %v3168 = vld [vmem:[#allocation15 + $0x598] sm:$0xff]
        %v3169 = vld [vmem:[#allocation15 + $0x5a0] sm:$0xff]
        %v3170 = vld [vmem:[#allocation15 + $0x5a8] sm:$0xff]
        %v3171 = vld [vmem:[#allocation15 + $0x5b0] sm:$0xff]
        %v3172 = vld [vmem:[#allocation15 + $0x5b8] sm:$0xff]
        %v3173 = vld [vmem:[#allocation15 + $0x5c0] sm:$0xff]
        %v3174 = vld [vmem:[#allocation15 + $0x5c8] sm:$0xff]
        %v3175 = vld [vmem:[#allocation15 + $0x5d0] sm:$0xff]
        %v3176 = vld [vmem:[#allocation15 + $0x5d8] sm:$0xff]
        %v3177 = vld [vmem:[#allocation15 + $0x5e0] sm:$0xff]
        %v3178 = vld [vmem:[#allocation15 + $0x5e8] sm:$0xff]
        %v3179 = vld [vmem:[#allocation15 + $0x5f0] sm:$0xff]
        %v3180 = vld [vmem:[#allocation15 + $0x5f8] sm:$0xff]
        %v3181 = vld [vmem:[%s9] sm:$0x3f]
        %v3183 = vlaneseq
        %v3184 = vshrl.u32 %v3183, 7
        %v3185 = vsub.s32 0, %v3184
        %v3186 = vrot.slane %v3181, %v3185
        %v3187 = vlaneseq
        %v3188 = vshrl.u32 %v3187, 7
        %v3189 = vsub.s32 1, %v3188
        %v3190 = vrot.slane %v3181, %v3189
        %v3191 = vlaneseq
        %v3192 = vshrl.u32 %v3191, 7
        %v3193 = vsub.s32 2, %v3192
        %v3194 = vrot.slane %v3181, %v3193
        %v3195 = vlaneseq
        %v3196 = vshrl.u32 %v3195, 7
        %v3197 = vsub.s32 3, %v3196
        %v3198 = vrot.slane %v3181, %v3197
        %v3199 = vlaneseq
        %v3200 = vshrl.u32 %v3199, 7
        %v3201 = vsub.s32 4, %v3200
        %v3202 = vrot.slane %v3181, %v3201
        %v3203 = vlaneseq
        %v3204 = vshrl.u32 %v3203, 7
        %v3205 = vsub.s32 5, %v3204
        %v3206 = vrot.slane %v3181, %v3205
        %3213 = vmatprep.subr.mxu0 %v2990
        %3214 = vmatpush1.msra.mxu0 %v2989
        %3215 = vmatprep.subr.mxu0 %v2996
        %3216 = vmatpush1.msra.mxu0 %v2995
        %3217 = vmatprep.subr.mxu0 %v3002
        %3218 = vmatpush1.msra.mxu0 %v3001
        %3219 = vmatprep.subr.mxu0 %v3008
        %3220 = vmatpush1.msra.mxu0 %v3007
        %3221 = vmatprep.subr.mxu0 %v3014
        %3222 = vmatpush1.msra.mxu0 %v3013
        %3223 = vmatprep.subr.mxu0 %v3020
        %3224 = vmatpush1.msra.mxu0 %v3019
        %3225 = vmatprep.subr.mxu0 %v3026
        %3226 = vmatpush1.msra.mxu0 %v3025
        %3227 = vmatprep.subr.mxu0 %v3032
        %3228 = vmatpush1.msra.mxu0 %v3031
        %3229 = vmatprep.subr.mxu0 %v3038
        %3230 = vmatpush1.msra.mxu0 %v3037
        %3231 = vmatprep.subr.mxu0 %v3044
        %3232 = vmatpush1.msra.mxu0 %v3043
        %3233 = vmatprep.subr.mxu0 %v3050
        %3234 = vmatpush1.msra.mxu0 %v3049
        %3235 = vmatprep.subr.mxu0 %v3056
        %3236 = vmatpush1.msra.mxu0 %v3055
        %3237 = vmatprep.subr.mxu0 %v3062
        %3238 = vmatpush1.msra.mxu0 %v3061
        %3239 = vmatprep.subr.mxu0 %v3068
        %3240 = vmatpush1.msra.mxu0 %v3067
        %3241 = vmatprep.subr.mxu0 %v3074
        %3242 = vmatpush1.msra.mxu0 %v3073
        %3243 = vmatprep.subr.mxu0 %v3080
        %3244 = vmatpush1.msra.mxu0 %v3079
        %3245 = vmatprep.subr.mxu0 %v3086
        %3246 = vmatpush1.msra.mxu0 %v3085
        %3247 = vmatprep.subr.mxu0 %v3092
        %3248 = vmatpush1.msra.mxu0 %v3091
        %3249 = vmatprep.subr.mxu0 %v3098
        %3250 = vmatpush1.msra.mxu0 %v3097
        %3251 = vmatprep.subr.mxu0 %v3104
        %3252 = vmatpush1.msra.mxu0 %v3103
        %3253 = vmatprep.subr.mxu0 %v3110
        %3254 = vmatpush1.msra.mxu0 %v3109
        %3255 = vmatprep.subr.mxu0 %v3116
        %3256 = vmatpush1.msra.mxu0 %v3115
        %3257 = vmatprep.subr.mxu0 %v3122
        %3258 = vmatpush1.msra.mxu0 %v3121
        %3259 = vmatprep.subr.mxu0 %v3128
        %3260 = vmatpush1.msra.mxu0 %v3127
        %3261 = vmatprep.subr.mxu0 %v3134
        %3262 = vmatpush1.msra.mxu0 %v3133
        %3263 = vmatprep.subr.mxu0 %v3140
        %3264 = vmatpush1.msra.mxu0 %v3139
        %3265 = vmatprep.subr.mxu0 %v3146
        %3266 = vmatpush1.msra.mxu0 %v3145
        %3267 = vmatprep.subr.mxu0 %v3152
        %3268 = vmatpush1.msra.mxu0 %v3151
        %3269 = vmatprep.subr.mxu0 %v3158
        %3270 = vmatpush1.msra.mxu0 %v3157
        %3271 = vmatprep.subr.mxu0 %v3164
        %3272 = vmatpush1.msra.mxu0 %v3163
        %3273 = vmatprep.subr.mxu0 %v3170
        %3274 = vmatpush1.msra.mxu0 %v3169
        %3275 = vmatprep.subr.mxu0 %v3176
        %3276 = vmatpush1.msra.mxu0 %v3175
        %3277 = vmatprep.mubr.f32.mxu0 %v2974
        %3278 = vmatmul.mubr.f32.gmra.mrb[0].mxu0 %v2973
        %v3279 = vpop.f32.mrb[0].mxu0
        %v3280 = vadd.f32 %v3186, %v3279
        %v3281 = vpop.f32.mrb[0].mxu0
        %v3282 = vadd.f32 %v3190, %v3281
        %3283 = vmatprep.mubr.f32.mxu0 %v2976
        %3284 = vmatmul.mubr.f32.gmra.mrb[0].mxu0 %v2975
        %v3285 = vpop.f32.mrb[0].mxu0
        %v3286 = vadd.f32 %v3186, %v3285
        %v3287 = vpop.f32.mrb[0].mxu0
        %v3288 = vadd.f32 %v3190, %v3287
        %3289 = vdwg.mxu0
        %3290 = vmatprep.subr.mxu0 %v2992
        %3291 = vmatpush1.msra.mxu0 %v2991
        %3292 = vmatprep.subr.mxu0 %v2998
        %3293 = vmatpush1.msra.mxu0 %v2997
        %3294 = vmatprep.subr.mxu0 %v3004
        %3295 = vmatpush1.msra.mxu0 %v3003
        %3296 = vmatprep.subr.mxu0 %v3010
        %3297 = vmatpush1.msra.mxu0 %v3009
        %3298 = vmatprep.subr.mxu0 %v3016
        %3299 = vmatpush1.msra.mxu0 %v3015
        %3300 = vmatprep.subr.mxu0 %v3022
        %3301 = vmatpush1.msra.mxu0 %v3021
        %3302 = vmatprep.subr.mxu0 %v3028
        %3303 = vmatpush1.msra.mxu0 %v3027
        %3304 = vmatprep.subr.mxu0 %v3034
        %3305 = vmatpush1.msra.mxu0 %v3033
        %3306 = vmatprep.subr.mxu0 %v3040
        %3307 = vmatpush1.msra.mxu0 %v3039
        %3308 = vmatprep.subr.mxu0 %v3046
        %3309 = vmatpush1.msra.mxu0 %v3045
        %3310 = vmatprep.subr.mxu0 %v3052
        %3311 = vmatpush1.msra.mxu0 %v3051
        %3312 = vmatprep.subr.mxu0 %v3058
        %3313 = vmatpush1.msra.mxu0 %v3057
        %3314 = vmatprep.subr.mxu0 %v3064
        %3315 = vmatpush1.msra.mxu0 %v3063
        %3316 = vmatprep.subr.mxu0 %v3070
        %3317 = vmatpush1.msra.mxu0 %v3069
        %3318 = vmatprep.subr.mxu0 %v3076
        %3319 = vmatpush1.msra.mxu0 %v3075
        %3320 = vmatprep.subr.mxu0 %v3082
        %3321 = vmatpush1.msra.mxu0 %v3081
        %3322 = vmatprep.subr.mxu0 %v3088
        %3323 = vmatpush1.msra.mxu0 %v3087
        %3324 = vmatprep.subr.mxu0 %v3094
        %3325 = vmatpush1.msra.mxu0 %v3093
        %3326 = vmatprep.subr.mxu0 %v3100
        %3327 = vmatpush1.msra.mxu0 %v3099
        %3328 = vmatprep.subr.mxu0 %v3106
        %3329 = vmatpush1.msra.mxu0 %v3105
        %3330 = vmatprep.subr.mxu0 %v3112
        %3331 = vmatpush1.msra.mxu0 %v3111
        %3332 = vmatprep.subr.mxu0 %v3118
        %3333 = vmatpush1.msra.mxu0 %v3117
        %3334 = vmatprep.subr.mxu0 %v3124
        %3335 = vmatpush1.msra.mxu0 %v3123
        %3336 = vmatprep.subr.mxu0 %v3130
        %3337 = vmatpush1.msra.mxu0 %v3129
        %3338 = vmatprep.subr.mxu0 %v3136
        %3339 = vmatpush1.msra.mxu0 %v3135
        %3340 = vmatprep.subr.mxu0 %v3142
        %3341 = vmatpush1.msra.mxu0 %v3141
        %3342 = vmatprep.subr.mxu0 %v3148
        %3343 = vmatpush1.msra.mxu0 %v3147
        %3344 = vmatprep.subr.mxu0 %v3154
        %3345 = vmatpush1.msra.mxu0 %v3153
        %3346 = vmatprep.subr.mxu0 %v3160
        %3347 = vmatpush1.msra.mxu0 %v3159
        %3348 = vmatprep.subr.mxu0 %v3166
        %3349 = vmatpush1.msra.mxu0 %v3165
        %3350 = vmatprep.subr.mxu0 %v3172
        %3351 = vmatpush1.msra.mxu0 %v3171
        %3352 = vmatprep.subr.mxu0 %v3178
        %3353 = vmatpush1.msra.mxu0 %v3177
        %3354 = vmatprep.mubr.f32.mxu0 %v2974
        %3355 = vmatmul.mubr.f32.gmra.mrb[0].mxu0 %v2973
        %v3356 = vpop.f32.mrb[0].mxu0
        %v3357 = vadd.f32 %v3194, %v3356
        %v3358 = vpop.f32.mrb[0].mxu0
        %v3359 = vadd.f32 %v3198, %v3358
        %3360 = vmatprep.mubr.f32.mxu0 %v2976
        %3361 = vmatmul.mubr.f32.gmra.mrb[0].mxu0 %v2975
        %v3362 = vpop.f32.mrb[0].mxu0
        %v3363 = vadd.f32 %v3194, %v3362
        %v3364 = vpop.f32.mrb[0].mxu0
        %v3365 = vadd.f32 %v3198, %v3364
        %3366 = vdwg.mxu0
        %3367 = vmatprep.subr.mxu0 %v2994
        %3368 = vmatpush1.msra.mxu0 %v2993
        %3369 = vmatprep.subr.mxu0 %v3000
        %3370 = vmatpush1.msra.mxu0 %v2999
        %3371 = vmatprep.subr.mxu0 %v3006
        %3372 = vmatpush1.msra.mxu0 %v3005
        %3373 = vmatprep.subr.mxu0 %v3012
        %3374 = vmatpush1.msra.mxu0 %v3011
        %3375 = vmatprep.subr.mxu0 %v3018
        %3376 = vmatpush1.msra.mxu0 %v3017
        %3377 = vmatprep.subr.mxu0 %v3024
        %3378 = vmatpush1.msra.mxu0 %v3023
        %3379 = vmatprep.subr.mxu0 %v3030
        %3380 = vmatpush1.msra.mxu0 %v3029
        %3381 = vmatprep.subr.mxu0 %v3036
        %3382 = vmatpush1.msra.mxu0 %v3035
        %3383 = vmatprep.subr.mxu0 %v3042
        %3384 = vmatpush1.msra.mxu0 %v3041
        %3385 = vmatprep.subr.mxu0 %v3048
        %3386 = vmatpush1.msra.mxu0 %v3047
        %3387 = vmatprep.subr.mxu0 %v3054
        %3388 = vmatpush1.msra.mxu0 %v3053
        %3389 = vmatprep.subr.mxu0 %v3060
        %3390 = vmatpush1.msra.mxu0 %v3059
        %3391 = vmatprep.subr.mxu0 %v3066
        %3392 = vmatpush1.msra.mxu0 %v3065
        %3393 = vmatprep.subr.mxu0 %v3072
        %3394 = vmatpush1.msra.mxu0 %v3071
        %3395 = vmatprep.subr.mxu0 %v3078
        %3396 = vmatpush1.msra.mxu0 %v3077
        %3397 = vmatprep.subr.mxu0 %v3084
        %3398 = vmatpush1.msra.mxu0 %v3083
        %3399 = vmatprep.subr.mxu0 %v3090
        %3400 = vmatpush1.msra.mxu0 %v3089
        %3401 = vmatprep.subr.mxu0 %v3096
        %3402 = vmatpush1.msra.mxu0 %v3095
        %3403 = vmatprep.subr.mxu0 %v3102
        %3404 = vmatpush1.msra.mxu0 %v3101
        %3405 = vmatprep.subr.mxu0 %v3108
        %3406 = vmatpush1.msra.mxu0 %v3107
        %3407 = vmatprep.subr.mxu0 %v3114
        %3408 = vmatpush1.msra.mxu0 %v3113
        %3409 = vmatprep.subr.mxu0 %v3120
        %3410 = vmatpush1.msra.mxu0 %v3119
        %3411 = vmatprep.subr.mxu0 %v3126
        %3412 = vmatpush1.msra.mxu0 %v3125
        %3413 = vmatprep.subr.mxu0 %v3132
        %3414 = vmatpush1.msra.mxu0 %v3131
        %3415 = vmatprep.subr.mxu0 %v3138
        %3416 = vmatpush1.msra.mxu0 %v3137
        %3417 = vmatprep.subr.mxu0 %v3144
        %3418 = vmatpush1.msra.mxu0 %v3143
        %3419 = vmatprep.subr.mxu0 %v3150
        %3420 = vmatpush1.msra.mxu0 %v3149
        %3421 = vmatprep.subr.mxu0 %v3156
        %3422 = vmatpush1.msra.mxu0 %v3155
        %3423 = vmatprep.subr.mxu0 %v3162
        %3424 = vmatpush1.msra.mxu0 %v3161
        %3425 = vmatprep.subr.mxu0 %v3168
        %3426 = vmatpush1.msra.mxu0 %v3167
        %3427 = vmatprep.subr.mxu0 %v3174
        %3428 = vmatpush1.msra.mxu0 %v3173
        %3429 = vmatprep.subr.mxu0 %v3180
        %3430 = vmatpush1.msra.mxu0 %v3179
        %3431 = vmatprep.mubr.f32.mxu0 %v2974
        %3432 = vmatmul.mubr.f32.gmra.mrb[0].mxu0 %v2973
        %v3433 = vpop.f32.mrb[0].mxu0
        %v3434 = vadd.f32 %v3202, %v3433
        %v3435 = vpop.f32.mrb[0].mxu0
        %v3436 = vadd.f32 %v3206, %v3435
        %3437 = vmatprep.mubr.f32.mxu0 %v2976
        %3438 = vmatmul.mubr.f32.gmra.mrb[0].mxu0 %v2975
        %v3439 = vpop.f32.mrb[0].mxu0
        %v3440 = vadd.f32 %v3202, %v3439
        %v3441 = vpop.f32.mrb[0].mxu0
        %v3442 = vadd.f32 %v3206, %v3441
        %3443 = vdwg.mxu0
        %v3444 = vadd.f32 %v2977, %v3280
        %v3445 = vadd.f32 %v2978, %v3282
        %v3446 = vadd.f32 %v2983, %v3286
        %v3447 = vadd.f32 %v2984, %v3288
        %v3448 = vsub.f32 0.0, %v3444
        %v3449 = vsub.f32 0.0, %v3445
        %v3450 = vsub.f32 0.0, %v3446
        %v3451 = vsub.f32 0.0, %v3447
        %v3452 = vmul.f32 %v3448, 1.442695
        %v3453 = vpow.pop %v3452
        %v3454 = vmul.f32 %v3449, 1.442695
        %v3455 = vpow.pop %v3454
        %v3456 = vmul.f32 %v3450, 1.442695
        %v3457 = vpow.pop %v3456
        %v3458 = vmul.f32 %v3451, 1.442695
        %v3459 = vpow.pop %v3458
        %v3460 = vadd.f32 %v3453, 1.0
        %v3461 = vadd.f32 %v3455, 1.0
        %v3462 = vadd.f32 %v3457, 1.0
        %v3463 = vadd.f32 %v3459, 1.0
        %v3464 = vrcp.pop %v3460
        %v3465 = vrcp.pop %v3461
        %v3466 = vrcp.pop %v3462
        %v3467 = vrcp.pop %v3463
        %v3468 = vadd.f32 %v2979, %v3357
        %v3469 = vadd.f32 %v2980, %v3359
        %v3470 = vadd.f32 %v2985, %v3363
        %v3471 = vadd.f32 %v2986, %v3365
        %v3472 = vsub.f32 0.0, %v3468
        %v3473 = vsub.f32 0.0, %v3469
        %v3474 = vsub.f32 0.0, %v3470
        %v3475 = vsub.f32 0.0, %v3471
        %v3476 = vmul.f32 %v3472, 1.442695
        %v3477 = vpow.pop %v3476
        %v3478 = vmul.f32 %v3473, 1.442695
        %v3479 = vpow.pop %v3478
        %v3480 = vmul.f32 %v3474, 1.442695
        %v3481 = vpow.pop %v3480
        %v3482 = vmul.f32 %v3475, 1.442695
        %v3483 = vpow.pop %v3482
        %v3484 = vadd.f32 %v3477, 1.0
        %v3485 = vadd.f32 %v3479, 1.0
        %v3486 = vadd.f32 %v3481, 1.0
        %v3487 = vadd.f32 %v3483, 1.0
        %v3488 = vrcp.pop %v3484
        %v3489 = vrcp.pop %v3485
        %v3490 = vrcp.pop %v3486
        %v3491 = vrcp.pop %v3487
        %v3492 = vmul.f32 %v3464, %v3434
        %v3493 = vmul.f32 %v3465, %v3436
        %v3494 = vmul.f32 %v3466, %v3440
        %v3495 = vmul.f32 %v3467, %v3442
        %v3496 = vadd.f32 %v2981, %v3492
        %v3497 = vadd.f32 %v2982, %v3493
        %v3498 = vadd.f32 %v2987, %v3494
        %v3499 = vadd.f32 %v2988, %v3495
        %v3500 = vtanh.pop %v3496
        %v3501 = vtanh.pop %v3497
        %v3502 = vtanh.pop %v3498
        %v3503 = vtanh.pop %v3499
        %v3504 = vsub.f32 1.0, %v3488
        %v3505 = vsub.f32 1.0, %v3489
        %v3506 = vsub.f32 1.0, %v3490
        %v3507 = vsub.f32 1.0, %v3491
        %v3508 = vmul.f32 %v3504, %v3500
        %v3509 = vmul.f32 %v3505, %v3501
        %v3510 = vmul.f32 %v3506, %v3502
        %v3511 = vmul.f32 %v3507, %v3503
        %v3512 = vmul.f32 %v3488, %v2973
        %v3513 = vmul.f32 %v3489, %v2974
        %v3514 = vmul.f32 %v3490, %v2975
        %v3515 = vmul.f32 %v3491, %v2976
        %v3516 = vadd.f32 %v3508, %v3512
        %v3517 = vadd.f32 %v3509, %v3513
        %v3518 = vadd.f32 %v3510, %v3514
        %v3519 = vadd.f32 %v3511, %v3515
        %3520 = vst [vmem:[#allocation3] sm:$0xff] %v3516
        %3521 = vst [vmem:[#allocation3 + $0x8] sm:$0xff] %v3517
        %3522 = vst [vmem:[#allocation3 + $0x10] sm:$0xff] %v3518
        %3523 = vst [vmem:[#allocation3 + $0x18] sm:$0xff] %v3519
        %s3524 = scalar_lea.vmem [#allocation2], 96
        %v3525 = vld [vmem:[%s3524] sm:$0xff]
        %v3526 = vld [vmem:[%s3524 + $0x8] sm:$0xff]
        %v3527 = vld [vmem:[%s3524 + $0x10] sm:$0xff]
        %v3528 = vld [vmem:[%s3524 + $0x18] sm:$0xff]
        %v3529 = vld [vmem:[%s3524 + $0x20] sm:$0xff]
        %v3530 = vld [vmem:[%s3524 + $0x28] sm:$0xff]
        %v3531 = vld [vmem:[%s3524 + $0x30] sm:$0xff]
        %v3532 = vld [vmem:[%s3524 + $0x38] sm:$0xff]
        %v3533 = vld [vmem:[%s3524 + $0x40] sm:$0xff]
        %v3534 = vld [vmem:[%s3524 + $0x48] sm:$0xff]
        %v3535 = vld [vmem:[%s3524 + $0x50] sm:$0xff]
        %v3536 = vld [vmem:[%s3524 + $0x58] sm:$0xff]
        %v3537 = vld [vmem:[#allocation15] sm:$0xff]
        %v3538 = vld [vmem:[#allocation15 + $0x8] sm:$0xff]
        %v3539 = vld [vmem:[#allocation15 + $0x10] sm:$0xff]
        %v3540 = vld [vmem:[#allocation15 + $0x18] sm:$0xff]
        %v3541 = vld [vmem:[#allocation15 + $0x20] sm:$0xff]
        %v3542 = vld [vmem:[#allocation15 + $0x28] sm:$0xff]
        %v3543 = vld [vmem:[#allocation15 + $0x30] sm:$0xff]
        %v3544 = vld [vmem:[#allocation15 + $0x38] sm:$0xff]
        %v3545 = vld [vmem:[#allocation15 + $0x40] sm:$0xff]
        %v3546 = vld [vmem:[#allocation15 + $0x48] sm:$0xff]
        %v3547 = vld [vmem:[#allocation15 + $0x50] sm:$0xff]
        %v3548 = vld [vmem:[#allocation15 + $0x58] sm:$0xff]
        %v3549 = vld [vmem:[#allocation15 + $0x60] sm:$0xff]
        %v3550 = vld [vmem:[#allocation15 + $0x68] sm:$0xff]
        %v3551 = vld [vmem:[#allocation15 + $0x70] sm:$0xff]
        %v3552 = vld [vmem:[#allocation15 + $0x78] sm:$0xff]
        %v3553 = vld [vmem:[#allocation15 + $0x80] sm:$0xff]
        %v3554 = vld [vmem:[#allocation15 + $0x88] sm:$0xff]
        %v3555 = vld [vmem:[#allocation15 + $0x90] sm:$0xff]
        %v3556 = vld [vmem:[#allocation15 + $0x98] sm:$0xff]
        %v3557 = vld [vmem:[#allocation15 + $0xa0] sm:$0xff]
        %v3558 = vld [vmem:[#allocation15 + $0xa8] sm:$0xff]
        %v3559 = vld [vmem:[#allocation15 + $0xb0] sm:$0xff]
        %v3560 = vld [vmem:[#allocation15 + $0xb8] sm:$0xff]
        %v3561 = vld [vmem:[#allocation15 + $0xc0] sm:$0xff]
        %v3562 = vld [vmem:[#allocation15 + $0xc8] sm:$0xff]
        %v3563 = vld [vmem:[#allocation15 + $0xd0] sm:$0xff]
        %v3564 = vld [vmem:[#allocation15 + $0xd8] sm:$0xff]
        %v3565 = vld [vmem:[#allocation15 + $0xe0] sm:$0xff]
        %v3566 = vld [vmem:[#allocation15 + $0xe8] sm:$0xff]
        %v3567 = vld [vmem:[#allocation15 + $0xf0] sm:$0xff]
        %v3568 = vld [vmem:[#allocation15 + $0xf8] sm:$0xff]
        %v3569 = vld [vmem:[#allocation15 + $0x100] sm:$0xff]
        %v3570 = vld [vmem:[#allocation15 + $0x108] sm:$0xff]
        %v3571 = vld [vmem:[#allocation15 + $0x110] sm:$0xff]
        %v3572 = vld [vmem:[#allocation15 + $0x118] sm:$0xff]
        %v3573 = vld [vmem:[#allocation15 + $0x120] sm:$0xff]
        %v3574 = vld [vmem:[#allocation15 + $0x128] sm:$0xff]
        %v3575 = vld [vmem:[#allocation15 + $0x130] sm:$0xff]
        %v3576 = vld [vmem:[#allocation15 + $0x138] sm:$0xff]
        %v3577 = vld [vmem:[#allocation15 + $0x140] sm:$0xff]
        %v3578 = vld [vmem:[#allocation15 + $0x148] sm:$0xff]
        %v3579 = vld [vmem:[#allocation15 + $0x150] sm:$0xff]
        %v3580 = vld [vmem:[#allocation15 + $0x158] sm:$0xff]
        %v3581 = vld [vmem:[#allocation15 + $0x160] sm:$0xff]
        %v3582 = vld [vmem:[#allocation15 + $0x168] sm:$0xff]
        %v3583 = vld [vmem:[#allocation15 + $0x170] sm:$0xff]
        %v3584 = vld [vmem:[#allocation15 + $0x178] sm:$0xff]
        %v3585 = vld [vmem:[#allocation15 + $0x180] sm:$0xff]
        %v3586 = vld [vmem:[#allocation15 + $0x188] sm:$0xff]
        %v3587 = vld [vmem:[#allocation15 + $0x190] sm:$0xff]
        %v3588 = vld [vmem:[#allocation15 + $0x198] sm:$0xff]
        %v3589 = vld [vmem:[#allocation15 + $0x1a0] sm:$0xff]
        %v3590 = vld [vmem:[#allocation15 + $0x1a8] sm:$0xff]
        %v3591 = vld [vmem:[#allocation15 + $0x1b0] sm:$0xff]
        %v3592 = vld [vmem:[#allocation15 + $0x1b8] sm:$0xff]
        %v3593 = vld [vmem:[#allocation15 + $0x1c0] sm:$0xff]
        %v3594 = vld [vmem:[#allocation15 + $0x1c8] sm:$0xff]
        %v3595 = vld [vmem:[#allocation15 + $0x1d0] sm:$0xff]
        %v3596 = vld [vmem:[#allocation15 + $0x1d8] sm:$0xff]
        %v3597 = vld [vmem:[#allocation15 + $0x1e0] sm:$0xff]
        %v3598 = vld [vmem:[#allocation15 + $0x1e8] sm:$0xff]
        %v3599 = vld [vmem:[#allocation15 + $0x1f0] sm:$0xff]
        %v3600 = vld [vmem:[#allocation15 + $0x1f8] sm:$0xff]
        %v3601 = vld [vmem:[#allocation15 + $0x200] sm:$0xff]
        %v3602 = vld [vmem:[#allocation15 + $0x208] sm:$0xff]
        %v3603 = vld [vmem:[#allocation15 + $0x210] sm:$0xff]
        %v3604 = vld [vmem:[#allocation15 + $0x218] sm:$0xff]
        %v3605 = vld [vmem:[#allocation15 + $0x220] sm:$0xff]
        %v3606 = vld [vmem:[#allocation15 + $0x228] sm:$0xff]
        %v3607 = vld [vmem:[#allocation15 + $0x230] sm:$0xff]
        %v3608 = vld [vmem:[#allocation15 + $0x238] sm:$0xff]
        %v3609 = vld [vmem:[#allocation15 + $0x240] sm:$0xff]
        %v3610 = vld [vmem:[#allocation15 + $0x248] sm:$0xff]
        %v3611 = vld [vmem:[#allocation15 + $0x250] sm:$0xff]
        %v3612 = vld [vmem:[#allocation15 + $0x258] sm:$0xff]
        %v3613 = vld [vmem:[#allocation15 + $0x260] sm:$0xff]
        %v3614 = vld [vmem:[#allocation15 + $0x268] sm:$0xff]
        %v3615 = vld [vmem:[#allocation15 + $0x270] sm:$0xff]
        %v3616 = vld [vmem:[#allocation15 + $0x278] sm:$0xff]
        %v3617 = vld [vmem:[#allocation15 + $0x280] sm:$0xff]
        %v3618 = vld [vmem:[#allocation15 + $0x288] sm:$0xff]
        %v3619 = vld [vmem:[#allocation15 + $0x290] sm:$0xff]
        %v3620 = vld [vmem:[#allocation15 + $0x298] sm:$0xff]
        %v3621 = vld [vmem:[#allocation15 + $0x2a0] sm:$0xff]
        %v3622 = vld [vmem:[#allocation15 + $0x2a8] sm:$0xff]
        %v3623 = vld [vmem:[#allocation15 + $0x2b0] sm:$0xff]
        %v3624 = vld [vmem:[#allocation15 + $0x2b8] sm:$0xff]
        %v3625 = vld [vmem:[#allocation15 + $0x2c0] sm:$0xff]
        %v3626 = vld [vmem:[#allocation15 + $0x2c8] sm:$0xff]
        %v3627 = vld [vmem:[#allocation15 + $0x2d0] sm:$0xff]
        %v3628 = vld [vmem:[#allocation15 + $0x2d8] sm:$0xff]
        %v3629 = vld [vmem:[#allocation15 + $0x2e0] sm:$0xff]
        %v3630 = vld [vmem:[#allocation15 + $0x2e8] sm:$0xff]
        %v3631 = vld [vmem:[#allocation15 + $0x2f0] sm:$0xff]
        %v3632 = vld [vmem:[#allocation15 + $0x2f8] sm:$0xff]
        %v3633 = vld [vmem:[#allocation15 + $0x300] sm:$0xff]
        %v3634 = vld [vmem:[#allocation15 + $0x308] sm:$0xff]
        %v3635 = vld [vmem:[#allocation15 + $0x310] sm:$0xff]
        %v3636 = vld [vmem:[#allocation15 + $0x318] sm:$0xff]
        %v3637 = vld [vmem:[#allocation15 + $0x320] sm:$0xff]
        %v3638 = vld [vmem:[#allocation15 + $0x328] sm:$0xff]
        %v3639 = vld [vmem:[#allocation15 + $0x330] sm:$0xff]
        %v3640 = vld [vmem:[#allocation15 + $0x338] sm:$0xff]
        %v3641 = vld [vmem:[#allocation15 + $0x340] sm:$0xff]
        %v3642 = vld [vmem:[#allocation15 + $0x348] sm:$0xff]
        %v3643 = vld [vmem:[#allocation15 + $0x350] sm:$0xff]
        %v3644 = vld [vmem:[#allocation15 + $0x358] sm:$0xff]
        %v3645 = vld [vmem:[#allocation15 + $0x360] sm:$0xff]
        %v3646 = vld [vmem:[#allocation15 + $0x368] sm:$0xff]
        %v3647 = vld [vmem:[#allocation15 + $0x370] sm:$0xff]
        %v3648 = vld [vmem:[#allocation15 + $0x378] sm:$0xff]
        %v3649 = vld [vmem:[#allocation15 + $0x380] sm:$0xff]
        %v3650 = vld [vmem:[#allocation15 + $0x388] sm:$0xff]
        %v3651 = vld [vmem:[#allocation15 + $0x390] sm:$0xff]
        %v3652 = vld [vmem:[#allocation15 + $0x398] sm:$0xff]
        %v3653 = vld [vmem:[#allocation15 + $0x3a0] sm:$0xff]
        %v3654 = vld [vmem:[#allocation15 + $0x3a8] sm:$0xff]
        %v3655 = vld [vmem:[#allocation15 + $0x3b0] sm:$0xff]
        %v3656 = vld [vmem:[#allocation15 + $0x3b8] sm:$0xff]
        %v3657 = vld [vmem:[#allocation15 + $0x3c0] sm:$0xff]
        %v3658 = vld [vmem:[#allocation15 + $0x3c8] sm:$0xff]
        %v3659 = vld [vmem:[#allocation15 + $0x3d0] sm:$0xff]
        %v3660 = vld [vmem:[#allocation15 + $0x3d8] sm:$0xff]
        %v3661 = vld [vmem:[#allocation15 + $0x3e0] sm:$0xff]
        %v3662 = vld [vmem:[#allocation15 + $0x3e8] sm:$0xff]
        %v3663 = vld [vmem:[#allocation15 + $0x3f0] sm:$0xff]
        %v3664 = vld [vmem:[#allocation15 + $0x3f8] sm:$0xff]
        %v3665 = vld [vmem:[#allocation15 + $0x400] sm:$0xff]
        %v3666 = vld [vmem:[#allocation15 + $0x408] sm:$0xff]
        %v3667 = vld [vmem:[#allocation15 + $0x410] sm:$0xff]
        %v3668 = vld [vmem:[#allocation15 + $0x418] sm:$0xff]
        %v3669 = vld [vmem:[#allocation15 + $0x420] sm:$0xff]
        %v3670 = vld [vmem:[#allocation15 + $0x428] sm:$0xff]
        %v3671 = vld [vmem:[#allocation15 + $0x430] sm:$0xff]
        %v3672 = vld [vmem:[#allocation15 + $0x438] sm:$0xff]
        %v3673 = vld [vmem:[#allocation15 + $0x440] sm:$0xff]
        %v3674 = vld [vmem:[#allocation15 + $0x448] sm:$0xff]
        %v3675 = vld [vmem:[#allocation15 + $0x450] sm:$0xff]
        %v3676 = vld [vmem:[#allocation15 + $0x458] sm:$0xff]
        %v3677 = vld [vmem:[#allocation15 + $0x460] sm:$0xff]
        %v3678 = vld [vmem:[#allocation15 + $0x468] sm:$0xff]
        %v3679 = vld [vmem:[#allocation15 + $0x470] sm:$0xff]
        %v3680 = vld [vmem:[#allocation15 + $0x478] sm:$0xff]
        %v3681 = vld [vmem:[#allocation15 + $0x480] sm:$0xff]
        %v3682 = vld [vmem:[#allocation15 + $0x488] sm:$0xff]
        %v3683 = vld [vmem:[#allocation15 + $0x490] sm:$0xff]
        %v3684 = vld [vmem:[#allocation15 + $0x498] sm:$0xff]
        %v3685 = vld [vmem:[#allocation15 + $0x4a0] sm:$0xff]
        %v3686 = vld [vmem:[#allocation15 + $0x4a8] sm:$0xff]
        %v3687 = vld [vmem:[#allocation15 + $0x4b0] sm:$0xff]
        %v3688 = vld [vmem:[#allocation15 + $0x4b8] sm:$0xff]
        %v3689 = vld [vmem:[#allocation15 + $0x4c0] sm:$0xff]
        %v3690 = vld [vmem:[#allocation15 + $0x4c8] sm:$0xff]
        %v3691 = vld [vmem:[#allocation15 + $0x4d0] sm:$0xff]
        %v3692 = vld [vmem:[#allocation15 + $0x4d8] sm:$0xff]
        %v3693 = vld [vmem:[#allocation15 + $0x4e0] sm:$0xff]
        %v3694 = vld [vmem:[#allocation15 + $0x4e8] sm:$0xff]
        %v3695 = vld [vmem:[#allocation15 + $0x4f0] sm:$0xff]
        %v3696 = vld [vmem:[#allocation15 + $0x4f8] sm:$0xff]
        %v3697 = vld [vmem:[#allocation15 + $0x500] sm:$0xff]
        %v3698 = vld [vmem:[#allocation15 + $0x508] sm:$0xff]
        %v3699 = vld [vmem:[#allocation15 + $0x510] sm:$0xff]
        %v3700 = vld [vmem:[#allocation15 + $0x518] sm:$0xff]
        %v3701 = vld [vmem:[#allocation15 + $0x520] sm:$0xff]
        %v3702 = vld [vmem:[#allocation15 + $0x528] sm:$0xff]
        %v3703 = vld [vmem:[#allocation15 + $0x530] sm:$0xff]
        %v3704 = vld [vmem:[#allocation15 + $0x538] sm:$0xff]
        %v3705 = vld [vmem:[#allocation15 + $0x540] sm:$0xff]
        %v3706 = vld [vmem:[#allocation15 + $0x548] sm:$0xff]
        %v3707 = vld [vmem:[#allocation15 + $0x550] sm:$0xff]
        %v3708 = vld [vmem:[#allocation15 + $0x558] sm:$0xff]
        %v3709 = vld [vmem:[#allocation15 + $0x560] sm:$0xff]
        %v3710 = vld [vmem:[#allocation15 + $0x568] sm:$0xff]
        %v3711 = vld [vmem:[#allocation15 + $0x570] sm:$0xff]
        %v3712 = vld [vmem:[#allocation15 + $0x578] sm:$0xff]
        %v3713 = vld [vmem:[#allocation15 + $0x580] sm:$0xff]
        %v3714 = vld [vmem:[#allocation15 + $0x588] sm:$0xff]
        %v3715 = vld [vmem:[#allocation15 + $0x590] sm:$0xff]
        %v3716 = vld [vmem:[#allocation15 + $0x598] sm:$0xff]
        %v3717 = vld [vmem:[#allocation15 + $0x5a0] sm:$0xff]
        %v3718 = vld [vmem:[#allocation15 + $0x5a8] sm:$0xff]
        %v3719 = vld [vmem:[#allocation15 + $0x5b0] sm:$0xff]
        %v3720 = vld [vmem:[#allocation15 + $0x5b8] sm:$0xff]
        %v3721 = vld [vmem:[#allocation15 + $0x5c0] sm:$0xff]
        %v3722 = vld [vmem:[#allocation15 + $0x5c8] sm:$0xff]
        %v3723 = vld [vmem:[#allocation15 + $0x5d0] sm:$0xff]
        %v3724 = vld [vmem:[#allocation15 + $0x5d8] sm:$0xff]
        %v3725 = vld [vmem:[#allocation15 + $0x5e0] sm:$0xff]
        %v3726 = vld [vmem:[#allocation15 + $0x5e8] sm:$0xff]
        %v3727 = vld [vmem:[#allocation15 + $0x5f0] sm:$0xff]
        %v3728 = vld [vmem:[#allocation15 + $0x5f8] sm:$0xff]
        %v3729 = vld [vmem:[%s9] sm:$0x3f]
        %v3731 = vlaneseq
        %v3732 = vshrl.u32 %v3731, 7
        %v3733 = vsub.s32 0, %v3732
        %v3734 = vrot.slane %v3729, %v3733
        %v3735 = vlaneseq
        %v3736 = vshrl.u32 %v3735, 7
        %v3737 = vsub.s32 1, %v3736
        %v3738 = vrot.slane %v3729, %v3737
        %v3739 = vlaneseq
        %v3740 = vshrl.u32 %v3739, 7
        %v3741 = vsub.s32 2, %v3740
        %v3742 = vrot.slane %v3729, %v3741
        %v3743 = vlaneseq
        %v3744 = vshrl.u32 %v3743, 7
        %v3745 = vsub.s32 3, %v3744
        %v3746 = vrot.slane %v3729, %v3745
        %v3747 = vlaneseq
        %v3748 = vshrl.u32 %v3747, 7
        %v3749 = vsub.s32 4, %v3748
        %v3750 = vrot.slane %v3729, %v3749
        %v3751 = vlaneseq
        %v3752 = vshrl.u32 %v3751, 7
        %v3753 = vsub.s32 5, %v3752
        %v3754 = vrot.slane %v3729, %v3753
        %3761 = vmatprep.subr.mxu0 %v3538
        %3762 = vmatpush1.msra.mxu0 %v3537
        %3763 = vmatprep.subr.mxu0 %v3544
        %3764 = vmatpush1.msra.mxu0 %v3543
        %3765 = vmatprep.subr.mxu0 %v3550
        %3766 = vmatpush1.msra.mxu0 %v3549
        %3767 = vmatprep.subr.mxu0 %v3556
        %3768 = vmatpush1.msra.mxu0 %v3555
        %3769 = vmatprep.subr.mxu0 %v3562
        %3770 = vmatpush1.msra.mxu0 %v3561
        %3771 = vmatprep.subr.mxu0 %v3568
        %3772 = vmatpush1.msra.mxu0 %v3567
        %3773 = vmatprep.subr.mxu0 %v3574
        %3774 = vmatpush1.msra.mxu0 %v3573
        %3775 = vmatprep.subr.mxu0 %v3580
        %3776 = vmatpush1.msra.mxu0 %v3579
        %3777 = vmatprep.subr.mxu0 %v3586
        %3778 = vmatpush1.msra.mxu0 %v3585
        %3779 = vmatprep.subr.mxu0 %v3592
        %3780 = vmatpush1.msra.mxu0 %v3591
        %3781 = vmatprep.subr.mxu0 %v3598
        %3782 = vmatpush1.msra.mxu0 %v3597
        %3783 = vmatprep.subr.mxu0 %v3604
        %3784 = vmatpush1.msra.mxu0 %v3603
        %3785 = vmatprep.subr.mxu0 %v3610
        %3786 = vmatpush1.msra.mxu0 %v3609
        %3787 = vmatprep.subr.mxu0 %v3616
        %3788 = vmatpush1.msra.mxu0 %v3615
        %3789 = vmatprep.subr.mxu0 %v3622
        %3790 = vmatpush1.msra.mxu0 %v3621
        %3791 = vmatprep.subr.mxu0 %v3628
        %3792 = vmatpush1.msra.mxu0 %v3627
        %3793 = vmatprep.subr.mxu0 %v3634
        %3794 = vmatpush1.msra.mxu0 %v3633
        %3795 = vmatprep.subr.mxu0 %v3640
        %3796 = vmatpush1.msra.mxu0 %v3639
        %3797 = vmatprep.subr.mxu0 %v3646
        %3798 = vmatpush1.msra.mxu0 %v3645
        %3799 = vmatprep.subr.mxu0 %v3652
        %3800 = vmatpush1.msra.mxu0 %v3651
        %3801 = vmatprep.subr.mxu0 %v3658
        %3802 = vmatpush1.msra.mxu0 %v3657
        %3803 = vmatprep.subr.mxu0 %v3664
        %3804 = vmatpush1.msra.mxu0 %v3663
        %3805 = vmatprep.subr.mxu0 %v3670
        %3806 = vmatpush1.msra.mxu0 %v3669
        %3807 = vmatprep.subr.mxu0 %v3676
        %3808 = vmatpush1.msra.mxu0 %v3675
        %3809 = vmatprep.subr.mxu0 %v3682
        %3810 = vmatpush1.msra.mxu0 %v3681
        %3811 = vmatprep.subr.mxu0 %v3688
        %3812 = vmatpush1.msra.mxu0 %v3687
        %3813 = vmatprep.subr.mxu0 %v3694
        %3814 = vmatpush1.msra.mxu0 %v3693
        %3815 = vmatprep.subr.mxu0 %v3700
        %3816 = vmatpush1.msra.mxu0 %v3699
        %3817 = vmatprep.subr.mxu0 %v3706
        %3818 = vmatpush1.msra.mxu0 %v3705
        %3819 = vmatprep.subr.mxu0 %v3712
        %3820 = vmatpush1.msra.mxu0 %v3711
        %3821 = vmatprep.subr.mxu0 %v3718
        %3822 = vmatpush1.msra.mxu0 %v3717
        %3823 = vmatprep.subr.mxu0 %v3724
        %3824 = vmatpush1.msra.mxu0 %v3723
        %3825 = vmatprep.mubr.f32.mxu0 %v3517
        %3826 = vmatmul.mubr.f32.gmra.mrb[0].mxu0 %v3516
        %v3827 = vpop.f32.mrb[0].mxu0
        %v3828 = vadd.f32 %v3734, %v3827
        %v3829 = vpop.f32.mrb[0].mxu0
        %v3830 = vadd.f32 %v3738, %v3829
        %3831 = vmatprep.mubr.f32.mxu0 %v3519
        %3832 = vmatmul.mubr.f32.gmra.mrb[0].mxu0 %v3518
        %v3833 = vpop.f32.mrb[0].mxu0
        %v3834 = vadd.f32 %v3734, %v3833
        %v3835 = vpop.f32.mrb[0].mxu0
        %v3836 = vadd.f32 %v3738, %v3835
        %3837 = vdwg.mxu0
        %3838 = vmatprep.subr.mxu0 %v3540
        %3839 = vmatpush1.msra.mxu0 %v3539
        %3840 = vmatprep.subr.mxu0 %v3546
        %3841 = vmatpush1.msra.mxu0 %v3545
        %3842 = vmatprep.subr.mxu0 %v3552
        %3843 = vmatpush1.msra.mxu0 %v3551
        %3844 = vmatprep.subr.mxu0 %v3558
        %3845 = vmatpush1.msra.mxu0 %v3557
        %3846 = vmatprep.subr.mxu0 %v3564
        %3847 = vmatpush1.msra.mxu0 %v3563
        %3848 = vmatprep.subr.mxu0 %v3570
        %3849 = vmatpush1.msra.mxu0 %v3569
        %3850 = vmatprep.subr.mxu0 %v3576
        %3851 = vmatpush1.msra.mxu0 %v3575
        %3852 = vmatprep.subr.mxu0 %v3582
        %3853 = vmatpush1.msra.mxu0 %v3581
        %3854 = vmatprep.subr.mxu0 %v3588
        %3855 = vmatpush1.msra.mxu0 %v3587
        %3856 = vmatprep.subr.mxu0 %v3594
        %3857 = vmatpush1.msra.mxu0 %v3593
        %3858 = vmatprep.subr.mxu0 %v3600
        %3859 = vmatpush1.msra.mxu0 %v3599
        %3860 = vmatprep.subr.mxu0 %v3606
        %3861 = vmatpush1.msra.mxu0 %v3605
        %3862 = vmatprep.subr.mxu0 %v3612
        %3863 = vmatpush1.msra.mxu0 %v3611
        %3864 = vmatprep.subr.mxu0 %v3618
        %3865 = vmatpush1.msra.mxu0 %v3617
        %3866 = vmatprep.subr.mxu0 %v3624
        %3867 = vmatpush1.msra.mxu0 %v3623
        %3868 = vmatprep.subr.mxu0 %v3630
        %3869 = vmatpush1.msra.mxu0 %v3629
        %3870 = vmatprep.subr.mxu0 %v3636
        %3871 = vmatpush1.msra.mxu0 %v3635
        %3872 = vmatprep.subr.mxu0 %v3642
        %3873 = vmatpush1.msra.mxu0 %v3641
        %3874 = vmatprep.subr.mxu0 %v3648
        %3875 = vmatpush1.msra.mxu0 %v3647
        %3876 = vmatprep.subr.mxu0 %v3654
        %3877 = vmatpush1.msra.mxu0 %v3653
        %3878 = vmatprep.subr.mxu0 %v3660
        %3879 = vmatpush1.msra.mxu0 %v3659
        %3880 = vmatprep.subr.mxu0 %v3666
        %3881 = vmatpush1.msra.mxu0 %v3665
        %3882 = vmatprep.subr.mxu0 %v3672
        %3883 = vmatpush1.msra.mxu0 %v3671
        %3884 = vmatprep.subr.mxu0 %v3678
        %3885 = vmatpush1.msra.mxu0 %v3677
        %3886 = vmatprep.subr.mxu0 %v3684
        %3887 = vmatpush1.msra.mxu0 %v3683
        %3888 = vmatprep.subr.mxu0 %v3690
        %3889 = vmatpush1.msra.mxu0 %v3689
        %3890 = vmatprep.subr.mxu0 %v3696
        %3891 = vmatpush1.msra.mxu0 %v3695
        %3892 = vmatprep.subr.mxu0 %v3702
        %3893 = vmatpush1.msra.mxu0 %v3701
        %3894 = vmatprep.subr.mxu0 %v3708
        %3895 = vmatpush1.msra.mxu0 %v3707
        %3896 = vmatprep.subr.mxu0 %v3714
        %3897 = vmatpush1.msra.mxu0 %v3713
        %3898 = vmatprep.subr.mxu0 %v3720
        %3899 = vmatpush1.msra.mxu0 %v3719
        %3900 = vmatprep.subr.mxu0 %v3726
        %3901 = vmatpush1.msra.mxu0 %v3725
        %3902 = vmatprep.mubr.f32.mxu0 %v3517
        %3903 = vmatmul.mubr.f32.gmra.mrb[0].mxu0 %v3516
        %v3904 = vpop.f32.mrb[0].mxu0
        %v3905 = vadd.f32 %v3742, %v3904
        %v3906 = vpop.f32.mrb[0].mxu0
        %v3907 = vadd.f32 %v3746, %v3906
        %3908 = vmatprep.mubr.f32.mxu0 %v3519
        %3909 = vmatmul.mubr.f32.gmra.mrb[0].mxu0 %v3518
        %v3910 = vpop.f32.mrb[0].mxu0
        %v3911 = vadd.f32 %v3742, %v3910
        %v3912 = vpop.f32.mrb[0].mxu0
        %v3913 = vadd.f32 %v3746, %v3912
        %3914 = vdwg.mxu0
        %3915 = vmatprep.subr.mxu0 %v3542
        %3916 = vmatpush1.msra.mxu0 %v3541
        %3917 = vmatprep.subr.mxu0 %v3548
        %3918 = vmatpush1.msra.mxu0 %v3547
        %3919 = vmatprep.subr.mxu0 %v3554
        %3920 = vmatpush1.msra.mxu0 %v3553
        %3921 = vmatprep.subr.mxu0 %v3560
        %3922 = vmatpush1.msra.mxu0 %v3559
        %3923 = vmatprep.subr.mxu0 %v3566
        %3924 = vmatpush1.msra.mxu0 %v3565
        %3925 = vmatprep.subr.mxu0 %v3572
        %3926 = vmatpush1.msra.mxu0 %v3571
        %3927 = vmatprep.subr.mxu0 %v3578
        %3928 = vmatpush1.msra.mxu0 %v3577
        %3929 = vmatprep.subr.mxu0 %v3584
        %3930 = vmatpush1.msra.mxu0 %v3583
        %3931 = vmatprep.subr.mxu0 %v3590
        %3932 = vmatpush1.msra.mxu0 %v3589
        %3933 = vmatprep.subr.mxu0 %v3596
        %3934 = vmatpush1.msra.mxu0 %v3595
        %3935 = vmatprep.subr.mxu0 %v3602
        %3936 = vmatpush1.msra.mxu0 %v3601
        %3937 = vmatprep.subr.mxu0 %v3608
        %3938 = vmatpush1.msra.mxu0 %v3607
        %3939 = vmatprep.subr.mxu0 %v3614
        %3940 = vmatpush1.msra.mxu0 %v3613
        %3941 = vmatprep.subr.mxu0 %v3620
        %3942 = vmatpush1.msra.mxu0 %v3619
        %3943 = vmatprep.subr.mxu0 %v3626
        %3944 = vmatpush1.msra.mxu0 %v3625
        %3945 = vmatprep.subr.mxu0 %v3632
        %3946 = vmatpush1.msra.mxu0 %v3631
        %3947 = vmatprep.subr.mxu0 %v3638
        %3948 = vmatpush1.msra.mxu0 %v3637
        %3949 = vmatprep.subr.mxu0 %v3644
        %3950 = vmatpush1.msra.mxu0 %v3643
        %3951 = vmatprep.subr.mxu0 %v3650
        %3952 = vmatpush1.msra.mxu0 %v3649
        %3953 = vmatprep.subr.mxu0 %v3656
        %3954 = vmatpush1.msra.mxu0 %v3655
        %3955 = vmatprep.subr.mxu0 %v3662
        %3956 = vmatpush1.msra.mxu0 %v3661
        %3957 = vmatprep.subr.mxu0 %v3668
        %3958 = vmatpush1.msra.mxu0 %v3667
        %3959 = vmatprep.subr.mxu0 %v3674
        %3960 = vmatpush1.msra.mxu0 %v3673
        %3961 = vmatprep.subr.mxu0 %v3680
        %3962 = vmatpush1.msra.mxu0 %v3679
        %3963 = vmatprep.subr.mxu0 %v3686
        %3964 = vmatpush1.msra.mxu0 %v3685
        %3965 = vmatprep.subr.mxu0 %v3692
        %3966 = vmatpush1.msra.mxu0 %v3691
        %3967 = vmatprep.subr.mxu0 %v3698
        %3968 = vmatpush1.msra.mxu0 %v3697
        %3969 = vmatprep.subr.mxu0 %v3704
        %3970 = vmatpush1.msra.mxu0 %v3703
        %3971 = vmatprep.subr.mxu0 %v3710
        %3972 = vmatpush1.msra.mxu0 %v3709
        %3973 = vmatprep.subr.mxu0 %v3716
        %3974 = vmatpush1.msra.mxu0 %v3715
        %3975 = vmatprep.subr.mxu0 %v3722
        %3976 = vmatpush1.msra.mxu0 %v3721
        %3977 = vmatprep.subr.mxu0 %v3728
        %3978 = vmatpush1.msra.mxu0 %v3727
        %3979 = vmatprep.mubr.f32.mxu0 %v3517
        %3980 = vmatmul.mubr.f32.gmra.mrb[0].mxu0 %v3516
        %v3981 = vpop.f32.mrb[0].mxu0
        %v3982 = vadd.f32 %v3750, %v3981
        %v3983 = vpop.f32.mrb[0].mxu0
        %v3984 = vadd.f32 %v3754, %v3983
        %3985 = vmatprep.mubr.f32.mxu0 %v3519
        %3986 = vmatmul.mubr.f32.gmra.mrb[0].mxu0 %v3518
        %v3987 = vpop.f32.mrb[0].mxu0
        %v3988 = vadd.f32 %v3750, %v3987
        %v3989 = vpop.f32.mrb[0].mxu0
        %v3990 = vadd.f32 %v3754, %v3989
        %3991 = vdwg.mxu0
        %v3992 = vadd.f32 %v3525, %v3828
        %v3993 = vadd.f32 %v3526, %v3830
        %v3994 = vadd.f32 %v3531, %v3834
        %v3995 = vadd.f32 %v3532, %v3836
        %v3996 = vsub.f32 0.0, %v3992
        %v3997 = vsub.f32 0.0, %v3993
        %v3998 = vsub.f32 0.0, %v3994
        %v3999 = vsub.f32 0.0, %v3995
        %v4000 = vmul.f32 %v3996, 1.442695
        %v4001 = vpow.pop %v4000
        %v4002 = vmul.f32 %v3997, 1.442695
        %v4003 = vpow.pop %v4002
        %v4004 = vmul.f32 %v3998, 1.442695
        %v4005 = vpow.pop %v4004
        %v4006 = vmul.f32 %v3999, 1.442695
        %v4007 = vpow.pop %v4006
        %v4008 = vadd.f32 %v4001, 1.0
        %v4009 = vadd.f32 %v4003, 1.0
        %v4010 = vadd.f32 %v4005, 1.0
        %v4011 = vadd.f32 %v4007, 1.0
        %v4012 = vrcp.pop %v4008
        %v4013 = vrcp.pop %v4009
        %v4014 = vrcp.pop %v4010
        %v4015 = vrcp.pop %v4011
        %v4016 = vadd.f32 %v3527, %v3905
        %v4017 = vadd.f32 %v3528, %v3907
        %v4018 = vadd.f32 %v3533, %v3911
        %v4019 = vadd.f32 %v3534, %v3913
        %v4020 = vsub.f32 0.0, %v4016
        %v4021 = vsub.f32 0.0, %v4017
        %v4022 = vsub.f32 0.0, %v4018
        %v4023 = vsub.f32 0.0, %v4019
        %v4024 = vmul.f32 %v4020, 1.442695
        %v4025 = vpow.pop %v4024
        %v4026 = vmul.f32 %v4021, 1.442695
        %v4027 = vpow.pop %v4026
        %v4028 = vmul.f32 %v4022, 1.442695
        %v4029 = vpow.pop %v4028
        %v4030 = vmul.f32 %v4023, 1.442695
        %v4031 = vpow.pop %v4030
        %v4032 = vadd.f32 %v4025, 1.0
        %v4033 = vadd.f32 %v4027, 1.0
        %v4034 = vadd.f32 %v4029, 1.0
        %v4035 = vadd.f32 %v4031, 1.0
        %v4036 = vrcp.pop %v4032
        %v4037 = vrcp.pop %v4033
        %v4038 = vrcp.pop %v4034
        %v4039 = vrcp.pop %v4035
        %v4040 = vmul.f32 %v4012, %v3982
        %v4041 = vmul.f32 %v4013, %v3984
        %v4042 = vmul.f32 %v4014, %v3988
        %v4043 = vmul.f32 %v4015, %v3990
        %v4044 = vadd.f32 %v3529, %v4040
        %v4045 = vadd.f32 %v3530, %v4041
        %v4046 = vadd.f32 %v3535, %v4042
        %v4047 = vadd.f32 %v3536, %v4043
        %v4048 = vtanh.pop %v4044
        %v4049 = vtanh.pop %v4045
        %v4050 = vtanh.pop %v4046
        %v4051 = vtanh.pop %v4047
        %v4052 = vsub.f32 1.0, %v4036
        %v4053 = vsub.f32 1.0, %v4037
        %v4054 = vsub.f32 1.0, %v4038
        %v4055 = vsub.f32 1.0, %v4039
        %v4056 = vmul.f32 %v4052, %v4048
        %v4057 = vmul.f32 %v4053, %v4049
        %v4058 = vmul.f32 %v4054, %v4050
        %v4059 = vmul.f32 %v4055, %v4051
        %v4060 = vmul.f32 %v4036, %v3516
        %v4061 = vmul.f32 %v4037, %v3517
        %v4062 = vmul.f32 %v4038, %v3518
        %v4063 = vmul.f32 %v4039, %v3519
        %v4064 = vadd.f32 %v4056, %v4060
        %v4065 = vadd.f32 %v4057, %v4061
        %v4066 = vadd.f32 %v4058, %v4062
        %v4067 = vadd.f32 %v4059, %v4063
        %s4068 = scalar_lea.vmem [#allocation3], 32
        %4069 = vst [vmem:[%s4068] sm:$0xff] %v4064
        %4070 = vst [vmem:[%s4068 + $0x8] sm:$0xff] %v4065
        %4071 = vst [vmem:[%s4068 + $0x10] sm:$0xff] %v4066
        %4072 = vst [vmem:[%s4068 + $0x18] sm:$0xff] %v4067
        %s4073 = scalar_lea.vmem [#allocation2], 192
        %v4074 = vld [vmem:[%s4073] sm:$0xff]
        %v4075 = vld [vmem:[%s4073 + $0x8] sm:$0xff]
        %v4076 = vld [vmem:[%s4073 + $0x10] sm:$0xff]
        %v4077 = vld [vmem:[%s4073 + $0x18] sm:$0xff]
        %v4078 = vld [vmem:[%s4073 + $0x20] sm:$0xff]
        %v4079 = vld [vmem:[%s4073 + $0x28] sm:$0xff]
        %v4080 = vld [vmem:[%s4073 + $0x30] sm:$0xff]
        %v4081 = vld [vmem:[%s4073 + $0x38] sm:$0xff]
        %v4082 = vld [vmem:[%s4073 + $0x40] sm:$0xff]
        %v4083 = vld [vmem:[%s4073 + $0x48] sm:$0xff]
        %v4084 = vld [vmem:[%s4073 + $0x50] sm:$0xff]
        %v4085 = vld [vmem:[%s4073 + $0x58] sm:$0xff]
        %v4086 = vld [vmem:[#allocation15] sm:$0xff]
        %v4087 = vld [vmem:[#allocation15 + $0x8] sm:$0xff]
        %v4088 = vld [vmem:[#allocation15 + $0x10] sm:$0xff]
        %v4089 = vld [vmem:[#allocation15 + $0x18] sm:$0xff]
        %v4090 = vld [vmem:[#allocation15 + $0x20] sm:$0xff]
        %v4091 = vld [vmem:[#allocation15 + $0x28] sm:$0xff]
        %v4092 = vld [vmem:[#allocation15 + $0x30] sm:$0xff]
        %v4093 = vld [vmem:[#allocation15 + $0x38] sm:$0xff]
        %v4094 = vld [vmem:[#allocation15 + $0x40] sm:$0xff]
        %v4095 = vld [vmem:[#allocation15 + $0x48] sm:$0xff]
        %v4096 = vld [vmem:[#allocation15 + $0x50] sm:$0xff]
        %v4097 = vld [vmem:[#allocation15 + $0x58] sm:$0xff]
        %v4098 = vld [vmem:[#allocation15 + $0x60] sm:$0xff]
        %v4099 = vld [vmem:[#allocation15 + $0x68] sm:$0xff]
        %v4100 = vld [vmem:[#allocation15 + $0x70] sm:$0xff]
        %v4101 = vld [vmem:[#allocation15 + $0x78] sm:$0xff]
        %v4102 = vld [vmem:[#allocation15 + $0x80] sm:$0xff]
        %v4103 = vld [vmem:[#allocation15 + $0x88] sm:$0xff]
        %v4104 = vld [vmem:[#allocation15 + $0x90] sm:$0xff]
        %v4105 = vld [vmem:[#allocation15 + $0x98] sm:$0xff]
        %v4106 = vld [vmem:[#allocation15 + $0xa0] sm:$0xff]
        %v4107 = vld [vmem:[#allocation15 + $0xa8] sm:$0xff]
        %v4108 = vld [vmem:[#allocation15 + $0xb0] sm:$0xff]
        %v4109 = vld [vmem:[#allocation15 + $0xb8] sm:$0xff]
        %v4110 = vld [vmem:[#allocation15 + $0xc0] sm:$0xff]
        %v4111 = vld [vmem:[#allocation15 + $0xc8] sm:$0xff]
        %v4112 = vld [vmem:[#allocation15 + $0xd0] sm:$0xff]
        %v4113 = vld [vmem:[#allocation15 + $0xd8] sm:$0xff]
        %v4114 = vld [vmem:[#allocation15 + $0xe0] sm:$0xff]
        %v4115 = vld [vmem:[#allocation15 + $0xe8] sm:$0xff]
        %v4116 = vld [vmem:[#allocation15 + $0xf0] sm:$0xff]
        %v4117 = vld [vmem:[#allocation15 + $0xf8] sm:$0xff]
        %v4118 = vld [vmem:[#allocation15 + $0x100] sm:$0xff]
        %v4119 = vld [vmem:[#allocation15 + $0x108] sm:$0xff]
        %v4120 = vld [vmem:[#allocation15 + $0x110] sm:$0xff]
        %v4121 = vld [vmem:[#allocation15 + $0x118] sm:$0xff]
        %v4122 = vld [vmem:[#allocation15 + $0x120] sm:$0xff]
        %v4123 = vld [vmem:[#allocation15 + $0x128] sm:$0xff]
        %v4124 = vld [vmem:[#allocation15 + $0x130] sm:$0xff]
        %v4125 = vld [vmem:[#allocation15 + $0x138] sm:$0xff]
        %v4126 = vld [vmem:[#allocation15 + $0x140] sm:$0xff]
        %v4127 = vld [vmem:[#allocation15 + $0x148] sm:$0xff]
        %v4128 = vld [vmem:[#allocation15 + $0x150] sm:$0xff]
        %v4129 = vld [vmem:[#allocation15 + $0x158] sm:$0xff]
        %v4130 = vld [vmem:[#allocation15 + $0x160] sm:$0xff]
        %v4131 = vld [vmem:[#allocation15 + $0x168] sm:$0xff]
        %v4132 = vld [vmem:[#allocation15 + $0x170] sm:$0xff]
        %v4133 = vld [vmem:[#allocation15 + $0x178] sm:$0xff]
        %v4134 = vld [vmem:[#allocation15 + $0x180] sm:$0xff]
        %v4135 = vld [vmem:[#allocation15 + $0x188] sm:$0xff]
        %v4136 = vld [vmem:[#allocation15 + $0x190] sm:$0xff]
        %v4137 = vld [vmem:[#allocation15 + $0x198] sm:$0xff]
        %v4138 = vld [vmem:[#allocation15 + $0x1a0] sm:$0xff]
        %v4139 = vld [vmem:[#allocation15 + $0x1a8] sm:$0xff]
        %v4140 = vld [vmem:[#allocation15 + $0x1b0] sm:$0xff]
        %v4141 = vld [vmem:[#allocation15 + $0x1b8] sm:$0xff]
        %v4142 = vld [vmem:[#allocation15 + $0x1c0] sm:$0xff]
        %v4143 = vld [vmem:[#allocation15 + $0x1c8] sm:$0xff]
        %v4144 = vld [vmem:[#allocation15 + $0x1d0] sm:$0xff]
        %v4145 = vld [vmem:[#allocation15 + $0x1d8] sm:$0xff]
        %v4146 = vld [vmem:[#allocation15 + $0x1e0] sm:$0xff]
        %v4147 = vld [vmem:[#allocation15 + $0x1e8] sm:$0xff]
        %v4148 = vld [vmem:[#allocation15 + $0x1f0] sm:$0xff]
        %v4149 = vld [vmem:[#allocation15 + $0x1f8] sm:$0xff]
        %v4150 = vld [vmem:[#allocation15 + $0x200] sm:$0xff]
        %v4151 = vld [vmem:[#allocation15 + $0x208] sm:$0xff]
        %v4152 = vld [vmem:[#allocation15 + $0x210] sm:$0xff]
        %v4153 = vld [vmem:[#allocation15 + $0x218] sm:$0xff]
        %v4154 = vld [vmem:[#allocation15 + $0x220] sm:$0xff]
        %v4155 = vld [vmem:[#allocation15 + $0x228] sm:$0xff]
        %v4156 = vld [vmem:[#allocation15 + $0x230] sm:$0xff]
        %v4157 = vld [vmem:[#allocation15 + $0x238] sm:$0xff]
        %v4158 = vld [vmem:[#allocation15 + $0x240] sm:$0xff]
        %v4159 = vld [vmem:[#allocation15 + $0x248] sm:$0xff]
        %v4160 = vld [vmem:[#allocation15 + $0x250] sm:$0xff]
        %v4161 = vld [vmem:[#allocation15 + $0x258] sm:$0xff]
        %v4162 = vld [vmem:[#allocation15 + $0x260] sm:$0xff]
        %v4163 = vld [vmem:[#allocation15 + $0x268] sm:$0xff]
        %v4164 = vld [vmem:[#allocation15 + $0x270] sm:$0xff]
        %v4165 = vld [vmem:[#allocation15 + $0x278] sm:$0xff]
        %v4166 = vld [vmem:[#allocation15 + $0x280] sm:$0xff]
        %v4167 = vld [vmem:[#allocation15 + $0x288] sm:$0xff]
        %v4168 = vld [vmem:[#allocation15 + $0x290] sm:$0xff]
        %v4169 = vld [vmem:[#allocation15 + $0x298] sm:$0xff]
        %v4170 = vld [vmem:[#allocation15 + $0x2a0] sm:$0xff]
        %v4171 = vld [vmem:[#allocation15 + $0x2a8] sm:$0xff]
        %v4172 = vld [vmem:[#allocation15 + $0x2b0] sm:$0xff]
        %v4173 = vld [vmem:[#allocation15 + $0x2b8] sm:$0xff]
        %v4174 = vld [vmem:[#allocation15 + $0x2c0] sm:$0xff]
        %v4175 = vld [vmem:[#allocation15 + $0x2c8] sm:$0xff]
        %v4176 = vld [vmem:[#allocation15 + $0x2d0] sm:$0xff]
        %v4177 = vld [vmem:[#allocation15 + $0x2d8] sm:$0xff]
        %v4178 = vld [vmem:[#allocation15 + $0x2e0] sm:$0xff]
        %v4179 = vld [vmem:[#allocation15 + $0x2e8] sm:$0xff]
        %v4180 = vld [vmem:[#allocation15 + $0x2f0] sm:$0xff]
        %v4181 = vld [vmem:[#allocation15 + $0x2f8] sm:$0xff]
        %v4182 = vld [vmem:[#allocation15 + $0x300] sm:$0xff]
        %v4183 = vld [vmem:[#allocation15 + $0x308] sm:$0xff]
        %v4184 = vld [vmem:[#allocation15 + $0x310] sm:$0xff]
        %v4185 = vld [vmem:[#allocation15 + $0x318] sm:$0xff]
        %v4186 = vld [vmem:[#allocation15 + $0x320] sm:$0xff]
        %v4187 = vld [vmem:[#allocation15 + $0x328] sm:$0xff]
        %v4188 = vld [vmem:[#allocation15 + $0x330] sm:$0xff]
        %v4189 = vld [vmem:[#allocation15 + $0x338] sm:$0xff]
        %v4190 = vld [vmem:[#allocation15 + $0x340] sm:$0xff]
        %v4191 = vld [vmem:[#allocation15 + $0x348] sm:$0xff]
        %v4192 = vld [vmem:[#allocation15 + $0x350] sm:$0xff]
        %v4193 = vld [vmem:[#allocation15 + $0x358] sm:$0xff]
        %v4194 = vld [vmem:[#allocation15 + $0x360] sm:$0xff]
        %v4195 = vld [vmem:[#allocation15 + $0x368] sm:$0xff]
        %v4196 = vld [vmem:[#allocation15 + $0x370] sm:$0xff]
        %v4197 = vld [vmem:[#allocation15 + $0x378] sm:$0xff]
        %v4198 = vld [vmem:[#allocation15 + $0x380] sm:$0xff]
        %v4199 = vld [vmem:[#allocation15 + $0x388] sm:$0xff]
        %v4200 = vld [vmem:[#allocation15 + $0x390] sm:$0xff]
        %v4201 = vld [vmem:[#allocation15 + $0x398] sm:$0xff]
        %v4202 = vld [vmem:[#allocation15 + $0x3a0] sm:$0xff]
        %v4203 = vld [vmem:[#allocation15 + $0x3a8] sm:$0xff]
        %v4204 = vld [vmem:[#allocation15 + $0x3b0] sm:$0xff]
        %v4205 = vld [vmem:[#allocation15 + $0x3b8] sm:$0xff]
        %v4206 = vld [vmem:[#allocation15 + $0x3c0] sm:$0xff]
        %v4207 = vld [vmem:[#allocation15 + $0x3c8] sm:$0xff]
        %v4208 = vld [vmem:[#allocation15 + $0x3d0] sm:$0xff]
        %v4209 = vld [vmem:[#allocation15 + $0x3d8] sm:$0xff]
        %v4210 = vld [vmem:[#allocation15 + $0x3e0] sm:$0xff]
        %v4211 = vld [vmem:[#allocation15 + $0x3e8] sm:$0xff]
        %v4212 = vld [vmem:[#allocation15 + $0x3f0] sm:$0xff]
        %v4213 = vld [vmem:[#allocation15 + $0x3f8] sm:$0xff]
        %v4214 = vld [vmem:[#allocation15 + $0x400] sm:$0xff]
        %v4215 = vld [vmem:[#allocation15 + $0x408] sm:$0xff]
        %v4216 = vld [vmem:[#allocation15 + $0x410] sm:$0xff]
        %v4217 = vld [vmem:[#allocation15 + $0x418] sm:$0xff]
        %v4218 = vld [vmem:[#allocation15 + $0x420] sm:$0xff]
        %v4219 = vld [vmem:[#allocation15 + $0x428] sm:$0xff]
        %v4220 = vld [vmem:[#allocation15 + $0x430] sm:$0xff]
        %v4221 = vld [vmem:[#allocation15 + $0x438] sm:$0xff]
        %v4222 = vld [vmem:[#allocation15 + $0x440] sm:$0xff]
        %v4223 = vld [vmem:[#allocation15 + $0x448] sm:$0xff]
        %v4224 = vld [vmem:[#allocation15 + $0x450] sm:$0xff]
        %v4225 = vld [vmem:[#allocation15 + $0x458] sm:$0xff]
        %v4226 = vld [vmem:[#allocation15 + $0x460] sm:$0xff]
        %v4227 = vld [vmem:[#allocation15 + $0x468] sm:$0xff]
        %v4228 = vld [vmem:[#allocation15 + $0x470] sm:$0xff]
        %v4229 = vld [vmem:[#allocation15 + $0x478] sm:$0xff]
        %v4230 = vld [vmem:[#allocation15 + $0x480] sm:$0xff]
        %v4231 = vld [vmem:[#allocation15 + $0x488] sm:$0xff]
        %v4232 = vld [vmem:[#allocation15 + $0x490] sm:$0xff]
        %v4233 = vld [vmem:[#allocation15 + $0x498] sm:$0xff]
        %v4234 = vld [vmem:[#allocation15 + $0x4a0] sm:$0xff]
        %v4235 = vld [vmem:[#allocation15 + $0x4a8] sm:$0xff]
        %v4236 = vld [vmem:[#allocation15 + $0x4b0] sm:$0xff]
        %v4237 = vld [vmem:[#allocation15 + $0x4b8] sm:$0xff]
        %v4238 = vld [vmem:[#allocation15 + $0x4c0] sm:$0xff]
        %v4239 = vld [vmem:[#allocation15 + $0x4c8] sm:$0xff]
        %v4240 = vld [vmem:[#allocation15 + $0x4d0] sm:$0xff]
        %v4241 = vld [vmem:[#allocation15 + $0x4d8] sm:$0xff]
        %v4242 = vld [vmem:[#allocation15 + $0x4e0] sm:$0xff]
        %v4243 = vld [vmem:[#allocation15 + $0x4e8] sm:$0xff]
        %v4244 = vld [vmem:[#allocation15 + $0x4f0] sm:$0xff]
        %v4245 = vld [vmem:[#allocation15 + $0x4f8] sm:$0xff]
        %v4246 = vld [vmem:[#allocation15 + $0x500] sm:$0xff]
        %v4247 = vld [vmem:[#allocation15 + $0x508] sm:$0xff]
        %v4248 = vld [vmem:[#allocation15 + $0x510] sm:$0xff]
        %v4249 = vld [vmem:[#allocation15 + $0x518] sm:$0xff]
        %v4250 = vld [vmem:[#allocation15 + $0x520] sm:$0xff]
        %v4251 = vld [vmem:[#allocation15 + $0x528] sm:$0xff]
        %v4252 = vld [vmem:[#allocation15 + $0x530] sm:$0xff]
        %v4253 = vld [vmem:[#allocation15 + $0x538] sm:$0xff]
        %v4254 = vld [vmem:[#allocation15 + $0x540] sm:$0xff]
        %v4255 = vld [vmem:[#allocation15 + $0x548] sm:$0xff]
        %v4256 = vld [vmem:[#allocation15 + $0x550] sm:$0xff]
        %v4257 = vld [vmem:[#allocation15 + $0x558] sm:$0xff]
        %v4258 = vld [vmem:[#allocation15 + $0x560] sm:$0xff]
        %v4259 = vld [vmem:[#allocation15 + $0x568] sm:$0xff]
        %v4260 = vld [vmem:[#allocation15 + $0x570] sm:$0xff]
        %v4261 = vld [vmem:[#allocation15 + $0x578] sm:$0xff]
        %v4262 = vld [vmem:[#allocation15 + $0x580] sm:$0xff]
        %v4263 = vld [vmem:[#allocation15 + $0x588] sm:$0xff]
        %v4264 = vld [vmem:[#allocation15 + $0x590] sm:$0xff]
        %v4265 = vld [vmem:[#allocation15 + $0x598] sm:$0xff]
        %v4266 = vld [vmem:[#allocation15 + $0x5a0] sm:$0xff]
        %v4267 = vld [vmem:[#allocation15 + $0x5a8] sm:$0xff]
        %v4268 = vld [vmem:[#allocation15 + $0x5b0] sm:$0xff]
        %v4269 = vld [vmem:[#allocation15 + $0x5b8] sm:$0xff]
        %v4270 = vld [vmem:[#allocation15 + $0x5c0] sm:$0xff]
        %v4271 = vld [vmem:[#allocation15 + $0x5c8] sm:$0xff]
        %v4272 = vld [vmem:[#allocation15 + $0x5d0] sm:$0xff]
        %v4273 = vld [vmem:[#allocation15 + $0x5d8] sm:$0xff]
        %v4274 = vld [vmem:[#allocation15 + $0x5e0] sm:$0xff]
        %v4275 = vld [vmem:[#allocation15 + $0x5e8] sm:$0xff]
        %v4276 = vld [vmem:[#allocation15 + $0x5f0] sm:$0xff]
        %v4277 = vld [vmem:[#allocation15 + $0x5f8] sm:$0xff]
        %v4278 = vld [vmem:[%s9] sm:$0x3f]
        %v4280 = vlaneseq
        %v4281 = vshrl.u32 %v4280, 7
        %v4282 = vsub.s32 0, %v4281
        %v4283 = vrot.slane %v4278, %v4282
        %v4284 = vlaneseq
        %v4285 = vshrl.u32 %v4284, 7
        %v4286 = vsub.s32 1, %v4285
        %v4287 = vrot.slane %v4278, %v4286
        %v4288 = vlaneseq
        %v4289 = vshrl.u32 %v4288, 7
        %v4290 = vsub.s32 2, %v4289
        %v4291 = vrot.slane %v4278, %v4290
        %v4292 = vlaneseq
        %v4293 = vshrl.u32 %v4292, 7
        %v4294 = vsub.s32 3, %v4293
        %v4295 = vrot.slane %v4278, %v4294
        %v4296 = vlaneseq
        %v4297 = vshrl.u32 %v4296, 7
        %v4298 = vsub.s32 4, %v4297
        %v4299 = vrot.slane %v4278, %v4298
        %v4300 = vlaneseq
        %v4301 = vshrl.u32 %v4300, 7
        %v4302 = vsub.s32 5, %v4301
        %v4303 = vrot.slane %v4278, %v4302
        %4310 = vmatprep.subr.mxu0 %v4087
        %4311 = vmatpush1.msra.mxu0 %v4086
        %4312 = vmatprep.subr.mxu0 %v4093
        %4313 = vmatpush1.msra.mxu0 %v4092
        %4314 = vmatprep.subr.mxu0 %v4099
        %4315 = vmatpush1.msra.mxu0 %v4098
        %4316 = vmatprep.subr.mxu0 %v4105
        %4317 = vmatpush1.msra.mxu0 %v4104
        %4318 = vmatprep.subr.mxu0 %v4111
        %4319 = vmatpush1.msra.mxu0 %v4110
        %4320 = vmatprep.subr.mxu0 %v4117
        %4321 = vmatpush1.msra.mxu0 %v4116
        %4322 = vmatprep.subr.mxu0 %v4123
        %4323 = vmatpush1.msra.mxu0 %v4122
        %4324 = vmatprep.subr.mxu0 %v4129
        %4325 = vmatpush1.msra.mxu0 %v4128
        %4326 = vmatprep.subr.mxu0 %v4135
        %4327 = vmatpush1.msra.mxu0 %v4134
        %4328 = vmatprep.subr.mxu0 %v4141
        %4329 = vmatpush1.msra.mxu0 %v4140
        %4330 = vmatprep.subr.mxu0 %v4147
        %4331 = vmatpush1.msra.mxu0 %v4146
        %4332 = vmatprep.subr.mxu0 %v4153
        %4333 = vmatpush1.msra.mxu0 %v4152
        %4334 = vmatprep.subr.mxu0 %v4159
        %4335 = vmatpush1.msra.mxu0 %v4158
        %4336 = vmatprep.subr.mxu0 %v4165
        %4337 = vmatpush1.msra.mxu0 %v4164
        %4338 = vmatprep.subr.mxu0 %v4171
        %4339 = vmatpush1.msra.mxu0 %v4170
        %4340 = vmatprep.subr.mxu0 %v4177
        %4341 = vmatpush1.msra.mxu0 %v4176
        %4342 = vmatprep.subr.mxu0 %v4183
        %4343 = vmatpush1.msra.mxu0 %v4182
        %4344 = vmatprep.subr.mxu0 %v4189
        %4345 = vmatpush1.msra.mxu0 %v4188
        %4346 = vmatprep.subr.mxu0 %v4195
        %4347 = vmatpush1.msra.mxu0 %v4194
        %4348 = vmatprep.subr.mxu0 %v4201
        %4349 = vmatpush1.msra.mxu0 %v4200
        %4350 = vmatprep.subr.mxu0 %v4207
        %4351 = vmatpush1.msra.mxu0 %v4206
        %4352 = vmatprep.subr.mxu0 %v4213
        %4353 = vmatpush1.msra.mxu0 %v4212
        %4354 = vmatprep.subr.mxu0 %v4219
        %4355 = vmatpush1.msra.mxu0 %v4218
        %4356 = vmatprep.subr.mxu0 %v4225
        %4357 = vmatpush1.msra.mxu0 %v4224
        %4358 = vmatprep.subr.mxu0 %v4231
        %4359 = vmatpush1.msra.mxu0 %v4230
        %4360 = vmatprep.subr.mxu0 %v4237
        %4361 = vmatpush1.msra.mxu0 %v4236
        %4362 = vmatprep.subr.mxu0 %v4243
        %4363 = vmatpush1.msra.mxu0 %v4242
        %4364 = vmatprep.subr.mxu0 %v4249
        %4365 = vmatpush1.msra.mxu0 %v4248
        %4366 = vmatprep.subr.mxu0 %v4255
        %4367 = vmatpush1.msra.mxu0 %v4254
        %4368 = vmatprep.subr.mxu0 %v4261
        %4369 = vmatpush1.msra.mxu0 %v4260
        %4370 = vmatprep.subr.mxu0 %v4267
        %4371 = vmatpush1.msra.mxu0 %v4266
        %4372 = vmatprep.subr.mxu0 %v4273
        %4373 = vmatpush1.msra.mxu0 %v4272
        %4374 = vmatprep.mubr.f32.mxu0 %v4065
        %4375 = vmatmul.mubr.f32.gmra.mrb[0].mxu0 %v4064
        %v4376 = vpop.f32.mrb[0].mxu0
        %v4377 = vadd.f32 %v4283, %v4376
        %v4378 = vpop.f32.mrb[0].mxu0
        %v4379 = vadd.f32 %v4287, %v4378
        %4380 = vmatprep.mubr.f32.mxu0 %v4067
        %4381 = vmatmul.mubr.f32.gmra.mrb[0].mxu0 %v4066
        %v4382 = vpop.f32.mrb[0].mxu0
        %v4383 = vadd.f32 %v4283, %v4382
        %v4384 = vpop.f32.mrb[0].mxu0
        %v4385 = vadd.f32 %v4287, %v4384
        %4386 = vdwg.mxu0
        %4387 = vmatprep.subr.mxu0 %v4089
        %4388 = vmatpush1.msra.mxu0 %v4088
        %4389 = vmatprep.subr.mxu0 %v4095
        %4390 = vmatpush1.msra.mxu0 %v4094
        %4391 = vmatprep.subr.mxu0 %v4101
        %4392 = vmatpush1.msra.mxu0 %v4100
        %4393 = vmatprep.subr.mxu0 %v4107
        %4394 = vmatpush1.msra.mxu0 %v4106
        %4395 = vmatprep.subr.mxu0 %v4113
        %4396 = vmatpush1.msra.mxu0 %v4112
        %4397 = vmatprep.subr.mxu0 %v4119
        %4398 = vmatpush1.msra.mxu0 %v4118
        %4399 = vmatprep.subr.mxu0 %v4125
        %4400 = vmatpush1.msra.mxu0 %v4124
        %4401 = vmatprep.subr.mxu0 %v4131
        %4402 = vmatpush1.msra.mxu0 %v4130
        %4403 = vmatprep.subr.mxu0 %v4137
        %4404 = vmatpush1.msra.mxu0 %v4136
        %4405 = vmatprep.subr.mxu0 %v4143
        %4406 = vmatpush1.msra.mxu0 %v4142
        %4407 = vmatprep.subr.mxu0 %v4149
        %4408 = vmatpush1.msra.mxu0 %v4148
        %4409 = vmatprep.subr.mxu0 %v4155
        %4410 = vmatpush1.msra.mxu0 %v4154
        %4411 = vmatprep.subr.mxu0 %v4161
        %4412 = vmatpush1.msra.mxu0 %v4160
        %4413 = vmatprep.subr.mxu0 %v4167
        %4414 = vmatpush1.msra.mxu0 %v4166
        %4415 = vmatprep.subr.mxu0 %v4173
        %4416 = vmatpush1.msra.mxu0 %v4172
        %4417 = vmatprep.subr.mxu0 %v4179
        %4418 = vmatpush1.msra.mxu0 %v4178
        %4419 = vmatprep.subr.mxu0 %v4185
        %4420 = vmatpush1.msra.mxu0 %v4184
        %4421 = vmatprep.subr.mxu0 %v4191
        %4422 = vmatpush1.msra.mxu0 %v4190
        %4423 = vmatprep.subr.mxu0 %v4197
        %4424 = vmatpush1.msra.mxu0 %v4196
        %4425 = vmatprep.subr.mxu0 %v4203
        %4426 = vmatpush1.msra.mxu0 %v4202
        %4427 = vmatprep.subr.mxu0 %v4209
        %4428 = vmatpush1.msra.mxu0 %v4208
        %4429 = vmatprep.subr.mxu0 %v4215
        %4430 = vmatpush1.msra.mxu0 %v4214
        %4431 = vmatprep.subr.mxu0 %v4221
        %4432 = vmatpush1.msra.mxu0 %v4220
        %4433 = vmatprep.subr.mxu0 %v4227
        %4434 = vmatpush1.msra.mxu0 %v4226
        %4435 = vmatprep.subr.mxu0 %v4233
        %4436 = vmatpush1.msra.mxu0 %v4232
        %4437 = vmatprep.subr.mxu0 %v4239
        %4438 = vmatpush1.msra.mxu0 %v4238
        %4439 = vmatprep.subr.mxu0 %v4245
        %4440 = vmatpush1.msra.mxu0 %v4244
        %4441 = vmatprep.subr.mxu0 %v4251
        %4442 = vmatpush1.msra.mxu0 %v4250
        %4443 = vmatprep.subr.mxu0 %v4257
        %4444 = vmatpush1.msra.mxu0 %v4256
        %4445 = vmatprep.subr.mxu0 %v4263
        %4446 = vmatpush1.msra.mxu0 %v4262
        %4447 = vmatprep.subr.mxu0 %v4269
        %4448 = vmatpush1.msra.mxu0 %v4268
        %4449 = vmatprep.subr.mxu0 %v4275
        %4450 = vmatpush1.msra.mxu0 %v4274
        %4451 = vmatprep.mubr.f32.mxu0 %v4065
        %4452 = vmatmul.mubr.f32.gmra.mrb[0].mxu0 %v4064
        %v4453 = vpop.f32.mrb[0].mxu0
        %v4454 = vadd.f32 %v4291, %v4453
        %v4455 = vpop.f32.mrb[0].mxu0
        %v4456 = vadd.f32 %v4295, %v4455
        %4457 = vmatprep.mubr.f32.mxu0 %v4067
        %4458 = vmatmul.mubr.f32.gmra.mrb[0].mxu0 %v4066
        %v4459 = vpop.f32.mrb[0].mxu0
        %v4460 = vadd.f32 %v4291, %v4459
        %v4461 = vpop.f32.mrb[0].mxu0
        %v4462 = vadd.f32 %v4295, %v4461
        %4463 = vdwg.mxu0
        %4464 = vmatprep.subr.mxu0 %v4091
        %4465 = vmatpush1.msra.mxu0 %v4090
        %4466 = vmatprep.subr.mxu0 %v4097
        %4467 = vmatpush1.msra.mxu0 %v4096
        %4468 = vmatprep.subr.mxu0 %v4103
        %4469 = vmatpush1.msra.mxu0 %v4102
        %4470 = vmatprep.subr.mxu0 %v4109
        %4471 = vmatpush1.msra.mxu0 %v4108
        %4472 = vmatprep.subr.mxu0 %v4115
        %4473 = vmatpush1.msra.mxu0 %v4114
        %4474 = vmatprep.subr.mxu0 %v4121
        %4475 = vmatpush1.msra.mxu0 %v4120
        %4476 = vmatprep.subr.mxu0 %v4127
        %4477 = vmatpush1.msra.mxu0 %v4126
        %4478 = vmatprep.subr.mxu0 %v4133
        %4479 = vmatpush1.msra.mxu0 %v4132
        %4480 = vmatprep.subr.mxu0 %v4139
        %4481 = vmatpush1.msra.mxu0 %v4138
        %4482 = vmatprep.subr.mxu0 %v4145
        %4483 = vmatpush1.msra.mxu0 %v4144
        %4484 = vmatprep.subr.mxu0 %v4151
        %4485 = vmatpush1.msra.mxu0 %v4150
        %4486 = vmatprep.subr.mxu0 %v4157
        %4487 = vmatpush1.msra.mxu0 %v4156
        %4488 = vmatprep.subr.mxu0 %v4163
        %4489 = vmatpush1.msra.mxu0 %v4162
        %4490 = vmatprep.subr.mxu0 %v4169
        %4491 = vmatpush1.msra.mxu0 %v4168
        %4492 = vmatprep.subr.mxu0 %v4175
        %4493 = vmatpush1.msra.mxu0 %v4174
        %4494 = vmatprep.subr.mxu0 %v4181
        %4495 = vmatpush1.msra.mxu0 %v4180
        %4496 = vmatprep.subr.mxu0 %v4187
        %4497 = vmatpush1.msra.mxu0 %v4186
        %4498 = vmatprep.subr.mxu0 %v4193
        %4499 = vmatpush1.msra.mxu0 %v4192
        %4500 = vmatprep.subr.mxu0 %v4199
        %4501 = vmatpush1.msra.mxu0 %v4198
        %4502 = vmatprep.subr.mxu0 %v4205
        %4503 = vmatpush1.msra.mxu0 %v4204
        %4504 = vmatprep.subr.mxu0 %v4211
        %4505 = vmatpush1.msra.mxu0 %v4210
        %4506 = vmatprep.subr.mxu0 %v4217
        %4507 = vmatpush1.msra.mxu0 %v4216
        %4508 = vmatprep.subr.mxu0 %v4223
        %4509 = vmatpush1.msra.mxu0 %v4222
        %4510 = vmatprep.subr.mxu0 %v4229
        %4511 = vmatpush1.msra.mxu0 %v4228
        %4512 = vmatprep.subr.mxu0 %v4235
        %4513 = vmatpush1.msra.mxu0 %v4234
        %4514 = vmatprep.subr.mxu0 %v4241
        %4515 = vmatpush1.msra.mxu0 %v4240
        %4516 = vmatprep.subr.mxu0 %v4247
        %4517 = vmatpush1.msra.mxu0 %v4246
        %4518 = vmatprep.subr.mxu0 %v4253
        %4519 = vmatpush1.msra.mxu0 %v4252
        %4520 = vmatprep.subr.mxu0 %v4259
        %4521 = vmatpush1.msra.mxu0 %v4258
        %4522 = vmatprep.subr.mxu0 %v4265
        %4523 = vmatpush1.msra.mxu0 %v4264
        %4524 = vmatprep.subr.mxu0 %v4271
        %4525 = vmatpush1.msra.mxu0 %v4270
        %4526 = vmatprep.subr.mxu0 %v4277
        %4527 = vmatpush1.msra.mxu0 %v4276
        %4528 = vmatprep.mubr.f32.mxu0 %v4065
        %4529 = vmatmul.mubr.f32.gmra.mrb[0].mxu0 %v4064
        %v4530 = vpop.f32.mrb[0].mxu0
        %v4531 = vadd.f32 %v4299, %v4530
        %v4532 = vpop.f32.mrb[0].mxu0
        %v4533 = vadd.f32 %v4303, %v4532
        %4534 = vmatprep.mubr.f32.mxu0 %v4067
        %4535 = vmatmul.mubr.f32.gmra.mrb[0].mxu0 %v4066
        %v4536 = vpop.f32.mrb[0].mxu0
        %v4537 = vadd.f32 %v4299, %v4536
        %v4538 = vpop.f32.mrb[0].mxu0
        %v4539 = vadd.f32 %v4303, %v4538
        %4540 = vdwg.mxu0
        %v4541 = vadd.f32 %v4074, %v4377
        %v4542 = vadd.f32 %v4075, %v4379
        %v4543 = vadd.f32 %v4080, %v4383
        %v4544 = vadd.f32 %v4081, %v4385
        %v4545 = vsub.f32 0.0, %v4541
        %v4546 = vsub.f32 0.0, %v4542
        %v4547 = vsub.f32 0.0, %v4543
        %v4548 = vsub.f32 0.0, %v4544
        %v4549 = vmul.f32 %v4545, 1.442695
        %v4550 = vpow.pop %v4549
        %v4551 = vmul.f32 %v4546, 1.442695
        %v4552 = vpow.pop %v4551
        %v4553 = vmul.f32 %v4547, 1.442695
        %v4554 = vpow.pop %v4553
        %v4555 = vmul.f32 %v4548, 1.442695
        %v4556 = vpow.pop %v4555
        %v4557 = vadd.f32 %v4550, 1.0
        %v4558 = vadd.f32 %v4552, 1.0
        %v4559 = vadd.f32 %v4554, 1.0
        %v4560 = vadd.f32 %v4556, 1.0
        %v4561 = vrcp.pop %v4557
        %v4562 = vrcp.pop %v4558
        %v4563 = vrcp.pop %v4559
        %v4564 = vrcp.pop %v4560
        %v4565 = vadd.f32 %v4076, %v4454
        %v4566 = vadd.f32 %v4077, %v4456
        %v4567 = vadd.f32 %v4082, %v4460
        %v4568 = vadd.f32 %v4083, %v4462
        %v4569 = vsub.f32 0.0, %v4565
        %v4570 = vsub.f32 0.0, %v4566
        %v4571 = vsub.f32 0.0, %v4567
        %v4572 = vsub.f32 0.0, %v4568
        %v4573 = vmul.f32 %v4569, 1.442695
        %v4574 = vpow.pop %v4573
        %v4575 = vmul.f32 %v4570, 1.442695
        %v4576 = vpow.pop %v4575
        %v4577 = vmul.f32 %v4571, 1.442695
        %v4578 = vpow.pop %v4577
        %v4579 = vmul.f32 %v4572, 1.442695
        %v4580 = vpow.pop %v4579
        %v4581 = vadd.f32 %v4574, 1.0
        %v4582 = vadd.f32 %v4576, 1.0
        %v4583 = vadd.f32 %v4578, 1.0
        %v4584 = vadd.f32 %v4580, 1.0
        %v4585 = vrcp.pop %v4581
        %v4586 = vrcp.pop %v4582
        %v4587 = vrcp.pop %v4583
        %v4588 = vrcp.pop %v4584
        %v4589 = vmul.f32 %v4561, %v4531
        %v4590 = vmul.f32 %v4562, %v4533
        %v4591 = vmul.f32 %v4563, %v4537
        %v4592 = vmul.f32 %v4564, %v4539
        %v4593 = vadd.f32 %v4078, %v4589
        %v4594 = vadd.f32 %v4079, %v4590
        %v4595 = vadd.f32 %v4084, %v4591
        %v4596 = vadd.f32 %v4085, %v4592
        %v4597 = vtanh.pop %v4593
        %v4598 = vtanh.pop %v4594
        %v4599 = vtanh.pop %v4595
        %v4600 = vtanh.pop %v4596
        %v4601 = vsub.f32 1.0, %v4585
        %v4602 = vsub.f32 1.0, %v4586
        %v4603 = vsub.f32 1.0, %v4587
        %v4604 = vsub.f32 1.0, %v4588
        %v4605 = vmul.f32 %v4601, %v4597
        %v4606 = vmul.f32 %v4602, %v4598
        %v4607 = vmul.f32 %v4603, %v4599
        %v4608 = vmul.f32 %v4604, %v4600
        %v4609 = vmul.f32 %v4585, %v4064
        %v4610 = vmul.f32 %v4586, %v4065
        %v4611 = vmul.f32 %v4587, %v4066
        %v4612 = vmul.f32 %v4588, %v4067
        %v4613 = vadd.f32 %v4605, %v4609
        %v4614 = vadd.f32 %v4606, %v4610
        %v4615 = vadd.f32 %v4607, %v4611
        %v4616 = vadd.f32 %v4608, %v4612
        %s4617 = scalar_lea.vmem [#allocation3], 64
        %4618 = vst [vmem:[%s4617] sm:$0xff] %v4613
        %4619 = vst [vmem:[%s4617 + $0x8] sm:$0xff] %v4614
        %4620 = vst [vmem:[%s4617 + $0x10] sm:$0xff] %v4615
        %4621 = vst [vmem:[%s4617 + $0x18] sm:$0xff] %v4616
        %s4622 = scalar_lea.vmem [#allocation2], 288
        %v4623 = vld [vmem:[%s4622] sm:$0xff]
        %v4624 = vld [vmem:[%s4622 + $0x8] sm:$0xff]
        %v4625 = vld [vmem:[%s4622 + $0x10] sm:$0xff]
        %v4626 = vld [vmem:[%s4622 + $0x18] sm:$0xff]
        %v4627 = vld [vmem:[%s4622 + $0x20] sm:$0xff]
        %v4628 = vld [vmem:[%s4622 + $0x28] sm:$0xff]
        %v4629 = vld [vmem:[%s4622 + $0x30] sm:$0xff]
        %v4630 = vld [vmem:[%s4622 + $0x38] sm:$0xff]
        %v4631 = vld [vmem:[%s4622 + $0x40] sm:$0xff]
        %v4632 = vld [vmem:[%s4622 + $0x48] sm:$0xff]
        %v4633 = vld [vmem:[%s4622 + $0x50] sm:$0xff]
        %v4634 = vld [vmem:[%s4622 + $0x58] sm:$0xff]
        %v4635 = vld [vmem:[#allocation15] sm:$0xff]
        %v4636 = vld [vmem:[#allocation15 + $0x8] sm:$0xff]
        %v4637 = vld [vmem:[#allocation15 + $0x10] sm:$0xff]
        %v4638 = vld [vmem:[#allocation15 + $0x18] sm:$0xff]
        %v4639 = vld [vmem:[#allocation15 + $0x20] sm:$0xff]
        %v4640 = vld [vmem:[#allocation15 + $0x28] sm:$0xff]
        %v4641 = vld [vmem:[#allocation15 + $0x30] sm:$0xff]
        %v4642 = vld [vmem:[#allocation15 + $0x38] sm:$0xff]
        %v4643 = vld [vmem:[#allocation15 + $0x40] sm:$0xff]
        %v4644 = vld [vmem:[#allocation15 + $0x48] sm:$0xff]
        %v4645 = vld [vmem:[#allocation15 + $0x50] sm:$0xff]
        %v4646 = vld [vmem:[#allocation15 + $0x58] sm:$0xff]
        %v4647 = vld [vmem:[#allocation15 + $0x60] sm:$0xff]
        %v4648 = vld [vmem:[#allocation15 + $0x68] sm:$0xff]
        %v4649 = vld [vmem:[#allocation15 + $0x70] sm:$0xff]
        %v4650 = vld [vmem:[#allocation15 + $0x78] sm:$0xff]
        %v4651 = vld [vmem:[#allocation15 + $0x80] sm:$0xff]
        %v4652 = vld [vmem:[#allocation15 + $0x88] sm:$0xff]
        %v4653 = vld [vmem:[#allocation15 + $0x90] sm:$0xff]
        %v4654 = vld [vmem:[#allocation15 + $0x98] sm:$0xff]
        %v4655 = vld [vmem:[#allocation15 + $0xa0] sm:$0xff]
        %v4656 = vld [vmem:[#allocation15 + $0xa8] sm:$0xff]
        %v4657 = vld [vmem:[#allocation15 + $0xb0] sm:$0xff]
        %v4658 = vld [vmem:[#allocation15 + $0xb8] sm:$0xff]
        %v4659 = vld [vmem:[#allocation15 + $0xc0] sm:$0xff]
        %v4660 = vld [vmem:[#allocation15 + $0xc8] sm:$0xff]
        %v4661 = vld [vmem:[#allocation15 + $0xd0] sm:$0xff]
        %v4662 = vld [vmem:[#allocation15 + $0xd8] sm:$0xff]
        %v4663 = vld [vmem:[#allocation15 + $0xe0] sm:$0xff]
        %v4664 = vld [vmem:[#allocation15 + $0xe8] sm:$0xff]
        %v4665 = vld [vmem:[#allocation15 + $0xf0] sm:$0xff]
        %v4666 = vld [vmem:[#allocation15 + $0xf8] sm:$0xff]
        %v4667 = vld [vmem:[#allocation15 + $0x100] sm:$0xff]
        %v4668 = vld [vmem:[#allocation15 + $0x108] sm:$0xff]
        %v4669 = vld [vmem:[#allocation15 + $0x110] sm:$0xff]
        %v4670 = vld [vmem:[#allocation15 + $0x118] sm:$0xff]
        %v4671 = vld [vmem:[#allocation15 + $0x120] sm:$0xff]
        %v4672 = vld [vmem:[#allocation15 + $0x128] sm:$0xff]
        %v4673 = vld [vmem:[#allocation15 + $0x130] sm:$0xff]
        %v4674 = vld [vmem:[#allocation15 + $0x138] sm:$0xff]
        %v4675 = vld [vmem:[#allocation15 + $0x140] sm:$0xff]
        %v4676 = vld [vmem:[#allocation15 + $0x148] sm:$0xff]
        %v4677 = vld [vmem:[#allocation15 + $0x150] sm:$0xff]
        %v4678 = vld [vmem:[#allocation15 + $0x158] sm:$0xff]
        %v4679 = vld [vmem:[#allocation15 + $0x160] sm:$0xff]
        %v4680 = vld [vmem:[#allocation15 + $0x168] sm:$0xff]
        %v4681 = vld [vmem:[#allocation15 + $0x170] sm:$0xff]
        %v4682 = vld [vmem:[#allocation15 + $0x178] sm:$0xff]
        %v4683 = vld [vmem:[#allocation15 + $0x180] sm:$0xff]
        %v4684 = vld [vmem:[#allocation15 + $0x188] sm:$0xff]
        %v4685 = vld [vmem:[#allocation15 + $0x190] sm:$0xff]
        %v4686 = vld [vmem:[#allocation15 + $0x198] sm:$0xff]
        %v4687 = vld [vmem:[#allocation15 + $0x1a0] sm:$0xff]
        %v4688 = vld [vmem:[#allocation15 + $0x1a8] sm:$0xff]
        %v4689 = vld [vmem:[#allocation15 + $0x1b0] sm:$0xff]
        %v4690 = vld [vmem:[#allocation15 + $0x1b8] sm:$0xff]
        %v4691 = vld [vmem:[#allocation15 + $0x1c0] sm:$0xff]
        %v4692 = vld [vmem:[#allocation15 + $0x1c8] sm:$0xff]
        %v4693 = vld [vmem:[#allocation15 + $0x1d0] sm:$0xff]
        %v4694 = vld [vmem:[#allocation15 + $0x1d8] sm:$0xff]
        %v4695 = vld [vmem:[#allocation15 + $0x1e0] sm:$0xff]
        %v4696 = vld [vmem:[#allocation15 + $0x1e8] sm:$0xff]
        %v4697 = vld [vmem:[#allocation15 + $0x1f0] sm:$0xff]
        %v4698 = vld [vmem:[#allocation15 + $0x1f8] sm:$0xff]
        %v4699 = vld [vmem:[#allocation15 + $0x200] sm:$0xff]
        %v4700 = vld [vmem:[#allocation15 + $0x208] sm:$0xff]
        %v4701 = vld [vmem:[#allocation15 + $0x210] sm:$0xff]
        %v4702 = vld [vmem:[#allocation15 + $0x218] sm:$0xff]
        %v4703 = vld [vmem:[#allocation15 + $0x220] sm:$0xff]
        %v4704 = vld [vmem:[#allocation15 + $0x228] sm:$0xff]
        %v4705 = vld [vmem:[#allocation15 + $0x230] sm:$0xff]
        %v4706 = vld [vmem:[#allocation15 + $0x238] sm:$0xff]
        %v4707 = vld [vmem:[#allocation15 + $0x240] sm:$0xff]
        %v4708 = vld [vmem:[#allocation15 + $0x248] sm:$0xff]
        %v4709 = vld [vmem:[#allocation15 + $0x250] sm:$0xff]
        %v4710 = vld [vmem:[#allocation15 + $0x258] sm:$0xff]
        %v4711 = vld [vmem:[#allocation15 + $0x260] sm:$0xff]
        %v4712 = vld [vmem:[#allocation15 + $0x268] sm:$0xff]
        %v4713 = vld [vmem:[#allocation15 + $0x270] sm:$0xff]
        %v4714 = vld [vmem:[#allocation15 + $0x278] sm:$0xff]
        %v4715 = vld [vmem:[#allocation15 + $0x280] sm:$0xff]
        %v4716 = vld [vmem:[#allocation15 + $0x288] sm:$0xff]
        %v4717 = vld [vmem:[#allocation15 + $0x290] sm:$0xff]
        %v4718 = vld [vmem:[#allocation15 + $0x298] sm:$0xff]
        %v4719 = vld [vmem:[#allocation15 + $0x2a0] sm:$0xff]
        %v4720 = vld [vmem:[#allocation15 + $0x2a8] sm:$0xff]
        %v4721 = vld [vmem:[#allocation15 + $0x2b0] sm:$0xff]
        %v4722 = vld [vmem:[#allocation15 + $0x2b8] sm:$0xff]
        %v4723 = vld [vmem:[#allocation15 + $0x2c0] sm:$0xff]
        %v4724 = vld [vmem:[#allocation15 + $0x2c8] sm:$0xff]
        %v4725 = vld [vmem:[#allocation15 + $0x2d0] sm:$0xff]
        %v4726 = vld [vmem:[#allocation15 + $0x2d8] sm:$0xff]
        %v4727 = vld [vmem:[#allocation15 + $0x2e0] sm:$0xff]
        %v4728 = vld [vmem:[#allocation15 + $0x2e8] sm:$0xff]
        %v4729 = vld [vmem:[#allocation15 + $0x2f0] sm:$0xff]
        %v4730 = vld [vmem:[#allocation15 + $0x2f8] sm:$0xff]
        %v4731 = vld [vmem:[#allocation15 + $0x300] sm:$0xff]
        %v4732 = vld [vmem:[#allocation15 + $0x308] sm:$0xff]
        %v4733 = vld [vmem:[#allocation15 + $0x310] sm:$0xff]
        %v4734 = vld [vmem:[#allocation15 + $0x318] sm:$0xff]
        %v4735 = vld [vmem:[#allocation15 + $0x320] sm:$0xff]
        %v4736 = vld [vmem:[#allocation15 + $0x328] sm:$0xff]
        %v4737 = vld [vmem:[#allocation15 + $0x330] sm:$0xff]
        %v4738 = vld [vmem:[#allocation15 + $0x338] sm:$0xff]
        %v4739 = vld [vmem:[#allocation15 + $0x340] sm:$0xff]
        %v4740 = vld [vmem:[#allocation15 + $0x348] sm:$0xff]
        %v4741 = vld [vmem:[#allocation15 + $0x350] sm:$0xff]
        %v4742 = vld [vmem:[#allocation15 + $0x358] sm:$0xff]
        %v4743 = vld [vmem:[#allocation15 + $0x360] sm:$0xff]
        %v4744 = vld [vmem:[#allocation15 + $0x368] sm:$0xff]
        %v4745 = vld [vmem:[#allocation15 + $0x370] sm:$0xff]
        %v4746 = vld [vmem:[#allocation15 + $0x378] sm:$0xff]
        %v4747 = vld [vmem:[#allocation15 + $0x380] sm:$0xff]
        %v4748 = vld [vmem:[#allocation15 + $0x388] sm:$0xff]
        %v4749 = vld [vmem:[#allocation15 + $0x390] sm:$0xff]
        %v4750 = vld [vmem:[#allocation15 + $0x398] sm:$0xff]
        %v4751 = vld [vmem:[#allocation15 + $0x3a0] sm:$0xff]
        %v4752 = vld [vmem:[#allocation15 + $0x3a8] sm:$0xff]
        %v4753 = vld [vmem:[#allocation15 + $0x3b0] sm:$0xff]
        %v4754 = vld [vmem:[#allocation15 + $0x3b8] sm:$0xff]
        %v4755 = vld [vmem:[#allocation15 + $0x3c0] sm:$0xff]
        %v4756 = vld [vmem:[#allocation15 + $0x3c8] sm:$0xff]
        %v4757 = vld [vmem:[#allocation15 + $0x3d0] sm:$0xff]
        %v4758 = vld [vmem:[#allocation15 + $0x3d8] sm:$0xff]
        %v4759 = vld [vmem:[#allocation15 + $0x3e0] sm:$0xff]
        %v4760 = vld [vmem:[#allocation15 + $0x3e8] sm:$0xff]
        %v4761 = vld [vmem:[#allocation15 + $0x3f0] sm:$0xff]
        %v4762 = vld [vmem:[#allocation15 + $0x3f8] sm:$0xff]
        %v4763 = vld [vmem:[#allocation15 + $0x400] sm:$0xff]
        %v4764 = vld [vmem:[#allocation15 + $0x408] sm:$0xff]
        %v4765 = vld [vmem:[#allocation15 + $0x410] sm:$0xff]
        %v4766 = vld [vmem:[#allocation15 + $0x418] sm:$0xff]
        %v4767 = vld [vmem:[#allocation15 + $0x420] sm:$0xff]
        %v4768 = vld [vmem:[#allocation15 + $0x428] sm:$0xff]
        %v4769 = vld [vmem:[#allocation15 + $0x430] sm:$0xff]
        %v4770 = vld [vmem:[#allocation15 + $0x438] sm:$0xff]
        %v4771 = vld [vmem:[#allocation15 + $0x440] sm:$0xff]
        %v4772 = vld [vmem:[#allocation15 + $0x448] sm:$0xff]
        %v4773 = vld [vmem:[#allocation15 + $0x450] sm:$0xff]
        %v4774 = vld [vmem:[#allocation15 + $0x458] sm:$0xff]
        %v4775 = vld [vmem:[#allocation15 + $0x460] sm:$0xff]
        %v4776 = vld [vmem:[#allocation15 + $0x468] sm:$0xff]
        %v4777 = vld [vmem:[#allocation15 + $0x470] sm:$0xff]
        %v4778 = vld [vmem:[#allocation15 + $0x478] sm:$0xff]
        %v4779 = vld [vmem:[#allocation15 + $0x480] sm:$0xff]
        %v4780 = vld [vmem:[#allocation15 + $0x488] sm:$0xff]
        %v4781 = vld [vmem:[#allocation15 + $0x490] sm:$0xff]
        %v4782 = vld [vmem:[#allocation15 + $0x498] sm:$0xff]
        %v4783 = vld [vmem:[#allocation15 + $0x4a0] sm:$0xff]
        %v4784 = vld [vmem:[#allocation15 + $0x4a8] sm:$0xff]
        %v4785 = vld [vmem:[#allocation15 + $0x4b0] sm:$0xff]
        %v4786 = vld [vmem:[#allocation15 + $0x4b8] sm:$0xff]
        %v4787 = vld [vmem:[#allocation15 + $0x4c0] sm:$0xff]
        %v4788 = vld [vmem:[#allocation15 + $0x4c8] sm:$0xff]
        %v4789 = vld [vmem:[#allocation15 + $0x4d0] sm:$0xff]
        %v4790 = vld [vmem:[#allocation15 + $0x4d8] sm:$0xff]
        %v4791 = vld [vmem:[#allocation15 + $0x4e0] sm:$0xff]
        %v4792 = vld [vmem:[#allocation15 + $0x4e8] sm:$0xff]
        %v4793 = vld [vmem:[#allocation15 + $0x4f0] sm:$0xff]
        %v4794 = vld [vmem:[#allocation15 + $0x4f8] sm:$0xff]
        %v4795 = vld [vmem:[#allocation15 + $0x500] sm:$0xff]
        %v4796 = vld [vmem:[#allocation15 + $0x508] sm:$0xff]
        %v4797 = vld [vmem:[#allocation15 + $0x510] sm:$0xff]
        %v4798 = vld [vmem:[#allocation15 + $0x518] sm:$0xff]
        %v4799 = vld [vmem:[#allocation15 + $0x520] sm:$0xff]
        %v4800 = vld [vmem:[#allocation15 + $0x528] sm:$0xff]
        %v4801 = vld [vmem:[#allocation15 + $0x530] sm:$0xff]
        %v4802 = vld [vmem:[#allocation15 + $0x538] sm:$0xff]
        %v4803 = vld [vmem:[#allocation15 + $0x540] sm:$0xff]
        %v4804 = vld [vmem:[#allocation15 + $0x548] sm:$0xff]
        %v4805 = vld [vmem:[#allocation15 + $0x550] sm:$0xff]
        %v4806 = vld [vmem:[#allocation15 + $0x558] sm:$0xff]
        %v4807 = vld [vmem:[#allocation15 + $0x560] sm:$0xff]
        %v4808 = vld [vmem:[#allocation15 + $0x568] sm:$0xff]
        %v4809 = vld [vmem:[#allocation15 + $0x570] sm:$0xff]
        %v4810 = vld [vmem:[#allocation15 + $0x578] sm:$0xff]
        %v4811 = vld [vmem:[#allocation15 + $0x580] sm:$0xff]
        %v4812 = vld [vmem:[#allocation15 + $0x588] sm:$0xff]
        %v4813 = vld [vmem:[#allocation15 + $0x590] sm:$0xff]
        %v4814 = vld [vmem:[#allocation15 + $0x598] sm:$0xff]
        %v4815 = vld [vmem:[#allocation15 + $0x5a0] sm:$0xff]
        %v4816 = vld [vmem:[#allocation15 + $0x5a8] sm:$0xff]
        %v4817 = vld [vmem:[#allocation15 + $0x5b0] sm:$0xff]
        %v4818 = vld [vmem:[#allocation15 + $0x5b8] sm:$0xff]
        %v4819 = vld [vmem:[#allocation15 + $0x5c0] sm:$0xff]
        %v4820 = vld [vmem:[#allocation15 + $0x5c8] sm:$0xff]
        %v4821 = vld [vmem:[#allocation15 + $0x5d0] sm:$0xff]
        %v4822 = vld [vmem:[#allocation15 + $0x5d8] sm:$0xff]
        %v4823 = vld [vmem:[#allocation15 + $0x5e0] sm:$0xff]
        %v4824 = vld [vmem:[#allocation15 + $0x5e8] sm:$0xff]
        %v4825 = vld [vmem:[#allocation15 + $0x5f0] sm:$0xff]
        %v4826 = vld [vmem:[#allocation15 + $0x5f8] sm:$0xff]
        %v4827 = vld [vmem:[%s9] sm:$0x3f]
        %v4829 = vlaneseq
        %v4830 = vshrl.u32 %v4829, 7
        %v4831 = vsub.s32 0, %v4830
        %v4832 = vrot.slane %v4827, %v4831
        %v4833 = vlaneseq
        %v4834 = vshrl.u32 %v4833, 7
        %v4835 = vsub.s32 1, %v4834
        %v4836 = vrot.slane %v4827, %v4835
        %v4837 = vlaneseq
        %v4838 = vshrl.u32 %v4837, 7
        %v4839 = vsub.s32 2, %v4838
        %v4840 = vrot.slane %v4827, %v4839
        %v4841 = vlaneseq
        %v4842 = vshrl.u32 %v4841, 7
        %v4843 = vsub.s32 3, %v4842
        %v4844 = vrot.slane %v4827, %v4843
        %v4845 = vlaneseq
        %v4846 = vshrl.u32 %v4845, 7
        %v4847 = vsub.s32 4, %v4846
        %v4848 = vrot.slane %v4827, %v4847
        %v4849 = vlaneseq
        %v4850 = vshrl.u32 %v4849, 7
        %v4851 = vsub.s32 5, %v4850
        %v4852 = vrot.slane %v4827, %v4851
        %4859 = vmatprep.subr.mxu0 %v4636
        %4860 = vmatpush1.msra.mxu0 %v4635
        %4861 = vmatprep.subr.mxu0 %v4642
        %4862 = vmatpush1.msra.mxu0 %v4641
        %4863 = vmatprep.subr.mxu0 %v4648
        %4864 = vmatpush1.msra.mxu0 %v4647
        %4865 = vmatprep.subr.mxu0 %v4654
        %4866 = vmatpush1.msra.mxu0 %v4653
        %4867 = vmatprep.subr.mxu0 %v4660
        %4868 = vmatpush1.msra.mxu0 %v4659
        %4869 = vmatprep.subr.mxu0 %v4666
        %4870 = vmatpush1.msra.mxu0 %v4665
        %4871 = vmatprep.subr.mxu0 %v4672
        %4872 = vmatpush1.msra.mxu0 %v4671
        %4873 = vmatprep.subr.mxu0 %v4678
        %4874 = vmatpush1.msra.mxu0 %v4677
        %4875 = vmatprep.subr.mxu0 %v4684
        %4876 = vmatpush1.msra.mxu0 %v4683
        %4877 = vmatprep.subr.mxu0 %v4690
        %4878 = vmatpush1.msra.mxu0 %v4689
        %4879 = vmatprep.subr.mxu0 %v4696
        %4880 = vmatpush1.msra.mxu0 %v4695
        %4881 = vmatprep.subr.mxu0 %v4702
        %4882 = vmatpush1.msra.mxu0 %v4701
        %4883 = vmatprep.subr.mxu0 %v4708
        %4884 = vmatpush1.msra.mxu0 %v4707
        %4885 = vmatprep.subr.mxu0 %v4714
        %4886 = vmatpush1.msra.mxu0 %v4713
        %4887 = vmatprep.subr.mxu0 %v4720
        %4888 = vmatpush1.msra.mxu0 %v4719
        %4889 = vmatprep.subr.mxu0 %v4726
        %4890 = vmatpush1.msra.mxu0 %v4725
        %4891 = vmatprep.subr.mxu0 %v4732
        %4892 = vmatpush1.msra.mxu0 %v4731
        %4893 = vmatprep.subr.mxu0 %v4738
        %4894 = vmatpush1.msra.mxu0 %v4737
        %4895 = vmatprep.subr.mxu0 %v4744
        %4896 = vmatpush1.msra.mxu0 %v4743
        %4897 = vmatprep.subr.mxu0 %v4750
        %4898 = vmatpush1.msra.mxu0 %v4749
        %4899 = vmatprep.subr.mxu0 %v4756
        %4900 = vmatpush1.msra.mxu0 %v4755
        %4901 = vmatprep.subr.mxu0 %v4762
        %4902 = vmatpush1.msra.mxu0 %v4761
        %4903 = vmatprep.subr.mxu0 %v4768
        %4904 = vmatpush1.msra.mxu0 %v4767
        %4905 = vmatprep.subr.mxu0 %v4774
        %4906 = vmatpush1.msra.mxu0 %v4773
        %4907 = vmatprep.subr.mxu0 %v4780
        %4908 = vmatpush1.msra.mxu0 %v4779
        %4909 = vmatprep.subr.mxu0 %v4786
        %4910 = vmatpush1.msra.mxu0 %v4785
        %4911 = vmatprep.subr.mxu0 %v4792
        %4912 = vmatpush1.msra.mxu0 %v4791
        %4913 = vmatprep.subr.mxu0 %v4798
        %4914 = vmatpush1.msra.mxu0 %v4797
        %4915 = vmatprep.subr.mxu0 %v4804
        %4916 = vmatpush1.msra.mxu0 %v4803
        %4917 = vmatprep.subr.mxu0 %v4810
        %4918 = vmatpush1.msra.mxu0 %v4809
        %4919 = vmatprep.subr.mxu0 %v4816
        %4920 = vmatpush1.msra.mxu0 %v4815
        %4921 = vmatprep.subr.mxu0 %v4822
        %4922 = vmatpush1.msra.mxu0 %v4821
        %4923 = vmatprep.mubr.f32.mxu0 %v4614
        %4924 = vmatmul.mubr.f32.gmra.mrb[0].mxu0 %v4613
        %v4925 = vpop.f32.mrb[0].mxu0
        %v4926 = vadd.f32 %v4832, %v4925
        %v4927 = vpop.f32.mrb[0].mxu0
        %v4928 = vadd.f32 %v4836, %v4927
        %4929 = vmatprep.mubr.f32.mxu0 %v4616
        %4930 = vmatmul.mubr.f32.gmra.mrb[0].mxu0 %v4615
        %v4931 = vpop.f32.mrb[0].mxu0
        %v4932 = vadd.f32 %v4832, %v4931
        %v4933 = vpop.f32.mrb[0].mxu0
        %v4934 = vadd.f32 %v4836, %v4933
        %4935 = vdwg.mxu0
        %4936 = vmatprep.subr.mxu0 %v4638
        %4937 = vmatpush1.msra.mxu0 %v4637
        %4938 = vmatprep.subr.mxu0 %v4644
        %4939 = vmatpush1.msra.mxu0 %v4643
        %4940 = vmatprep.subr.mxu0 %v4650
        %4941 = vmatpush1.msra.mxu0 %v4649
        %4942 = vmatprep.subr.mxu0 %v4656
        %4943 = vmatpush1.msra.mxu0 %v4655
        %4944 = vmatprep.subr.mxu0 %v4662
        %4945 = vmatpush1.msra.mxu0 %v4661
        %4946 = vmatprep.subr.mxu0 %v4668
        %4947 = vmatpush1.msra.mxu0 %v4667
        %4948 = vmatprep.subr.mxu0 %v4674
        %4949 = vmatpush1.msra.mxu0 %v4673
        %4950 = vmatprep.subr.mxu0 %v4680
        %4951 = vmatpush1.msra.mxu0 %v4679
        %4952 = vmatprep.subr.mxu0 %v4686
        %4953 = vmatpush1.msra.mxu0 %v4685
        %4954 = vmatprep.subr.mxu0 %v4692
        %4955 = vmatpush1.msra.mxu0 %v4691
        %4956 = vmatprep.subr.mxu0 %v4698
        %4957 = vmatpush1.msra.mxu0 %v4697
        %4958 = vmatprep.subr.mxu0 %v4704
        %4959 = vmatpush1.msra.mxu0 %v4703
        %4960 = vmatprep.subr.mxu0 %v4710
        %4961 = vmatpush1.msra.mxu0 %v4709
        %4962 = vmatprep.subr.mxu0 %v4716
        %4963 = vmatpush1.msra.mxu0 %v4715
        %4964 = vmatprep.subr.mxu0 %v4722
        %4965 = vmatpush1.msra.mxu0 %v4721
        %4966 = vmatprep.subr.mxu0 %v4728
        %4967 = vmatpush1.msra.mxu0 %v4727
        %4968 = vmatprep.subr.mxu0 %v4734
        %4969 = vmatpush1.msra.mxu0 %v4733
        %4970 = vmatprep.subr.mxu0 %v4740
        %4971 = vmatpush1.msra.mxu0 %v4739
        %4972 = vmatprep.subr.mxu0 %v4746
        %4973 = vmatpush1.msra.mxu0 %v4745
        %4974 = vmatprep.subr.mxu0 %v4752
        %4975 = vmatpush1.msra.mxu0 %v4751
        %4976 = vmatprep.subr.mxu0 %v4758
        %4977 = vmatpush1.msra.mxu0 %v4757
        %4978 = vmatprep.subr.mxu0 %v4764
        %4979 = vmatpush1.msra.mxu0 %v4763
        %4980 = vmatprep.subr.mxu0 %v4770
        %4981 = vmatpush1.msra.mxu0 %v4769
        %4982 = vmatprep.subr.mxu0 %v4776
        %4983 = vmatpush1.msra.mxu0 %v4775
        %4984 = vmatprep.subr.mxu0 %v4782
        %4985 = vmatpush1.msra.mxu0 %v4781
        %4986 = vmatprep.subr.mxu0 %v4788
        %4987 = vmatpush1.msra.mxu0 %v4787
        %4988 = vmatprep.subr.mxu0 %v4794
        %4989 = vmatpush1.msra.mxu0 %v4793
        %4990 = vmatprep.subr.mxu0 %v4800
        %4991 = vmatpush1.msra.mxu0 %v4799
        %4992 = vmatprep.subr.mxu0 %v4806
        %4993 = vmatpush1.msra.mxu0 %v4805
        %4994 = vmatprep.subr.mxu0 %v4812
        %4995 = vmatpush1.msra.mxu0 %v4811
        %4996 = vmatprep.subr.mxu0 %v4818
        %4997 = vmatpush1.msra.mxu0 %v4817
        %4998 = vmatprep.subr.mxu0 %v4824
        %4999 = vmatpush1.msra.mxu0 %v4823
        %5000 = vmatprep.mubr.f32.mxu0 %v4614
        %5001 = vmatmul.mubr.f32.gmra.mrb[0].mxu0 %v4613
        %v5002 = vpop.f32.mrb[0].mxu0
        %v5003 = vadd.f32 %v4840, %v5002
        %v5004 = vpop.f32.mrb[0].mxu0
        %v5005 = vadd.f32 %v4844, %v5004
        %5006 = vmatprep.mubr.f32.mxu0 %v4616
        %5007 = vmatmul.mubr.f32.gmra.mrb[0].mxu0 %v4615
        %v5008 = vpop.f32.mrb[0].mxu0
        %v5009 = vadd.f32 %v4840, %v5008
        %v5010 = vpop.f32.mrb[0].mxu0
        %v5011 = vadd.f32 %v4844, %v5010
        %5012 = vdwg.mxu0
        %5013 = vmatprep.subr.mxu0 %v4640
        %5014 = vmatpush1.msra.mxu0 %v4639
        %5015 = vmatprep.subr.mxu0 %v4646
        %5016 = vmatpush1.msra.mxu0 %v4645
        %5017 = vmatprep.subr.mxu0 %v4652
        %5018 = vmatpush1.msra.mxu0 %v4651
        %5019 = vmatprep.subr.mxu0 %v4658
        %5020 = vmatpush1.msra.mxu0 %v4657
        %5021 = vmatprep.subr.mxu0 %v4664
        %5022 = vmatpush1.msra.mxu0 %v4663
        %5023 = vmatprep.subr.mxu0 %v4670
        %5024 = vmatpush1.msra.mxu0 %v4669
        %5025 = vmatprep.subr.mxu0 %v4676
        %5026 = vmatpush1.msra.mxu0 %v4675
        %5027 = vmatprep.subr.mxu0 %v4682
        %5028 = vmatpush1.msra.mxu0 %v4681
        %5029 = vmatprep.subr.mxu0 %v4688
        %5030 = vmatpush1.msra.mxu0 %v4687
        %5031 = vmatprep.subr.mxu0 %v4694
        %5032 = vmatpush1.msra.mxu0 %v4693
        %5033 = vmatprep.subr.mxu0 %v4700
        %5034 = vmatpush1.msra.mxu0 %v4699
        %5035 = vmatprep.subr.mxu0 %v4706
        %5036 = vmatpush1.msra.mxu0 %v4705
        %5037 = vmatprep.subr.mxu0 %v4712
        %5038 = vmatpush1.msra.mxu0 %v4711
        %5039 = vmatprep.subr.mxu0 %v4718
        %5040 = vmatpush1.msra.mxu0 %v4717
        %5041 = vmatprep.subr.mxu0 %v4724
        %5042 = vmatpush1.msra.mxu0 %v4723
        %5043 = vmatprep.subr.mxu0 %v4730
        %5044 = vmatpush1.msra.mxu0 %v4729
        %5045 = vmatprep.subr.mxu0 %v4736
        %5046 = vmatpush1.msra.mxu0 %v4735
        %5047 = vmatprep.subr.mxu0 %v4742
        %5048 = vmatpush1.msra.mxu0 %v4741
        %5049 = vmatprep.subr.mxu0 %v4748
        %5050 = vmatpush1.msra.mxu0 %v4747
        %5051 = vmatprep.subr.mxu0 %v4754
        %5052 = vmatpush1.msra.mxu0 %v4753
        %5053 = vmatprep.subr.mxu0 %v4760
        %5054 = vmatpush1.msra.mxu0 %v4759
        %5055 = vmatprep.subr.mxu0 %v4766
        %5056 = vmatpush1.msra.mxu0 %v4765
        %5057 = vmatprep.subr.mxu0 %v4772
        %5058 = vmatpush1.msra.mxu0 %v4771
        %5059 = vmatprep.subr.mxu0 %v4778
        %5060 = vmatpush1.msra.mxu0 %v4777
        %5061 = vmatprep.subr.mxu0 %v4784
        %5062 = vmatpush1.msra.mxu0 %v4783
        %5063 = vmatprep.subr.mxu0 %v4790
        %5064 = vmatpush1.msra.mxu0 %v4789
        %5065 = vmatprep.subr.mxu0 %v4796
        %5066 = vmatpush1.msra.mxu0 %v4795
        %5067 = vmatprep.subr.mxu0 %v4802
        %5068 = vmatpush1.msra.mxu0 %v4801
        %5069 = vmatprep.subr.mxu0 %v4808
        %5070 = vmatpush1.msra.mxu0 %v4807
        %5071 = vmatprep.subr.mxu0 %v4814
        %5072 = vmatpush1.msra.mxu0 %v4813
        %5073 = vmatprep.subr.mxu0 %v4820
        %5074 = vmatpush1.msra.mxu0 %v4819
        %5075 = vmatprep.subr.mxu0 %v4826
        %5076 = vmatpush1.msra.mxu0 %v4825
        %5077 = vmatprep.mubr.f32.mxu0 %v4614
        %5078 = vmatmul.mubr.f32.gmra.mrb[0].mxu0 %v4613
        %v5079 = vpop.f32.mrb[0].mxu0
        %v5080 = vadd.f32 %v4848, %v5079
        %v5081 = vpop.f32.mrb[0].mxu0
        %v5082 = vadd.f32 %v4852, %v5081
        %5083 = vmatprep.mubr.f32.mxu0 %v4616
        %5084 = vmatmul.mubr.f32.gmra.mrb[0].mxu0 %v4615
        %v5085 = vpop.f32.mrb[0].mxu0
        %v5086 = vadd.f32 %v4848, %v5085
        %v5087 = vpop.f32.mrb[0].mxu0
        %v5088 = vadd.f32 %v4852, %v5087
        %5089 = vdwg.mxu0
        %v5090 = vadd.f32 %v4623, %v4926
        %v5091 = vadd.f32 %v4624, %v4928
        %v5092 = vadd.f32 %v4629, %v4932
        %v5093 = vadd.f32 %v4630, %v4934
        %v5094 = vsub.f32 0.0, %v5090
        %v5095 = vsub.f32 0.0, %v5091
        %v5096 = vsub.f32 0.0, %v5092
        %v5097 = vsub.f32 0.0, %v5093
        %v5098 = vmul.f32 %v5094, 1.442695
        %v5099 = vpow.pop %v5098
        %v5100 = vmul.f32 %v5095, 1.442695
        %v5101 = vpow.pop %v5100
        %v5102 = vmul.f32 %v5096, 1.442695
        %v5103 = vpow.pop %v5102
        %v5104 = vmul.f32 %v5097, 1.442695
        %v5105 = vpow.pop %v5104
        %v5106 = vadd.f32 %v5099, 1.0
        %v5107 = vadd.f32 %v5101, 1.0
        %v5108 = vadd.f32 %v5103, 1.0
        %v5109 = vadd.f32 %v5105, 1.0
        %v5110 = vrcp.pop %v5106
        %v5111 = vrcp.pop %v5107
        %v5112 = vrcp.pop %v5108
        %v5113 = vrcp.pop %v5109
        %v5114 = vadd.f32 %v4625, %v5003
        %v5115 = vadd.f32 %v4626, %v5005
        %v5116 = vadd.f32 %v4631, %v5009
        %v5117 = vadd.f32 %v4632, %v5011
        %v5118 = vsub.f32 0.0, %v5114
        %v5119 = vsub.f32 0.0, %v5115
        %v5120 = vsub.f32 0.0, %v5116
        %v5121 = vsub.f32 0.0, %v5117
        %v5122 = vmul.f32 %v5118, 1.442695
        %v5123 = vpow.pop %v5122
        %v5124 = vmul.f32 %v5119, 1.442695
        %v5125 = vpow.pop %v5124
        %v5126 = vmul.f32 %v5120, 1.442695
        %v5127 = vpow.pop %v5126
        %v5128 = vmul.f32 %v5121, 1.442695
        %v5129 = vpow.pop %v5128
        %v5130 = vadd.f32 %v5123, 1.0
        %v5131 = vadd.f32 %v5125, 1.0
        %v5132 = vadd.f32 %v5127, 1.0
        %v5133 = vadd.f32 %v5129, 1.0
        %v5134 = vrcp.pop %v5130
        %v5135 = vrcp.pop %v5131
        %v5136 = vrcp.pop %v5132
        %v5137 = vrcp.pop %v5133
        %v5138 = vmul.f32 %v5110, %v5080
        %v5139 = vmul.f32 %v5111, %v5082
        %v5140 = vmul.f32 %v5112, %v5086
        %v5141 = vmul.f32 %v5113, %v5088
        %v5142 = vadd.f32 %v4627, %v5138
        %v5143 = vadd.f32 %v4628, %v5139
        %v5144 = vadd.f32 %v4633, %v5140
        %v5145 = vadd.f32 %v4634, %v5141
        %v5146 = vtanh.pop %v5142
        %v5147 = vtanh.pop %v5143
        %v5148 = vtanh.pop %v5144
        %v5149 = vtanh.pop %v5145
        %v5150 = vsub.f32 1.0, %v5134
        %v5151 = vsub.f32 1.0, %v5135
        %v5152 = vsub.f32 1.0, %v5136
        %v5153 = vsub.f32 1.0, %v5137
        %v5154 = vmul.f32 %v5150, %v5146
        %v5155 = vmul.f32 %v5151, %v5147
        %v5156 = vmul.f32 %v5152, %v5148
        %v5157 = vmul.f32 %v5153, %v5149
        %v5158 = vmul.f32 %v5134, %v4613
        %v5159 = vmul.f32 %v5135, %v4614
        %v5160 = vmul.f32 %v5136, %v4615
        %v5161 = vmul.f32 %v5137, %v4616
        %v5162 = vadd.f32 %v5154, %v5158
        %v5163 = vadd.f32 %v5155, %v5159
        %v5164 = vadd.f32 %v5156, %v5160
        %v5165 = vadd.f32 %v5157, %v5161
        %s5166 = scalar_lea.vmem [#allocation3], 96
        %5167 = vst [vmem:[%s5166] sm:$0xff] %v5162
        %5168 = vst [vmem:[%s5166 + $0x8] sm:$0xff] %v5163
        %5169 = vst [vmem:[%s5166 + $0x10] sm:$0xff] %v5164
        %5170 = vst [vmem:[%s5166 + $0x18] sm:$0xff] %v5165
        %s5171 = scalar_lea.vmem [#allocation2], 384
        %v5172 = vld [vmem:[%s5171] sm:$0xff]
        %v5173 = vld [vmem:[%s5171 + $0x8] sm:$0xff]
        %v5174 = vld [vmem:[%s5171 + $0x10] sm:$0xff]
        %v5175 = vld [vmem:[%s5171 + $0x18] sm:$0xff]
        %v5176 = vld [vmem:[%s5171 + $0x20] sm:$0xff]
        %v5177 = vld [vmem:[%s5171 + $0x28] sm:$0xff]
        %v5178 = vld [vmem:[%s5171 + $0x30] sm:$0xff]
        %v5179 = vld [vmem:[%s5171 + $0x38] sm:$0xff]
        %v5180 = vld [vmem:[%s5171 + $0x40] sm:$0xff]
        %v5181 = vld [vmem:[%s5171 + $0x48] sm:$0xff]
        %v5182 = vld [vmem:[%s5171 + $0x50] sm:$0xff]
        %v5183 = vld [vmem:[%s5171 + $0x58] sm:$0xff]
        %v5184 = vld [vmem:[#allocation15] sm:$0xff]
        %v5185 = vld [vmem:[#allocation15 + $0x8] sm:$0xff]
        %v5186 = vld [vmem:[#allocation15 + $0x10] sm:$0xff]
        %v5187 = vld [vmem:[#allocation15 + $0x18] sm:$0xff]
        %v5188 = vld [vmem:[#allocation15 + $0x20] sm:$0xff]
        %v5189 = vld [vmem:[#allocation15 + $0x28] sm:$0xff]
        %v5190 = vld [vmem:[#allocation15 + $0x30] sm:$0xff]
        %v5191 = vld [vmem:[#allocation15 + $0x38] sm:$0xff]
        %v5192 = vld [vmem:[#allocation15 + $0x40] sm:$0xff]
        %v5193 = vld [vmem:[#allocation15 + $0x48] sm:$0xff]
        %v5194 = vld [vmem:[#allocation15 + $0x50] sm:$0xff]
        %v5195 = vld [vmem:[#allocation15 + $0x58] sm:$0xff]
        %v5196 = vld [vmem:[#allocation15 + $0x60] sm:$0xff]
        %v5197 = vld [vmem:[#allocation15 + $0x68] sm:$0xff]
        %v5198 = vld [vmem:[#allocation15 + $0x70] sm:$0xff]
        %v5199 = vld [vmem:[#allocation15 + $0x78] sm:$0xff]
        %v5200 = vld [vmem:[#allocation15 + $0x80] sm:$0xff]
        %v5201 = vld [vmem:[#allocation15 + $0x88] sm:$0xff]
        %v5202 = vld [vmem:[#allocation15 + $0x90] sm:$0xff]
        %v5203 = vld [vmem:[#allocation15 + $0x98] sm:$0xff]
        %v5204 = vld [vmem:[#allocation15 + $0xa0] sm:$0xff]
        %v5205 = vld [vmem:[#allocation15 + $0xa8] sm:$0xff]
        %v5206 = vld [vmem:[#allocation15 + $0xb0] sm:$0xff]
        %v5207 = vld [vmem:[#allocation15 + $0xb8] sm:$0xff]
        %v5208 = vld [vmem:[#allocation15 + $0xc0] sm:$0xff]
        %v5209 = vld [vmem:[#allocation15 + $0xc8] sm:$0xff]
        %v5210 = vld [vmem:[#allocation15 + $0xd0] sm:$0xff]
        %v5211 = vld [vmem:[#allocation15 + $0xd8] sm:$0xff]
        %v5212 = vld [vmem:[#allocation15 + $0xe0] sm:$0xff]
        %v5213 = vld [vmem:[#allocation15 + $0xe8] sm:$0xff]
        %v5214 = vld [vmem:[#allocation15 + $0xf0] sm:$0xff]
        %v5215 = vld [vmem:[#allocation15 + $0xf8] sm:$0xff]
        %v5216 = vld [vmem:[#allocation15 + $0x100] sm:$0xff]
        %v5217 = vld [vmem:[#allocation15 + $0x108] sm:$0xff]
        %v5218 = vld [vmem:[#allocation15 + $0x110] sm:$0xff]
        %v5219 = vld [vmem:[#allocation15 + $0x118] sm:$0xff]
        %v5220 = vld [vmem:[#allocation15 + $0x120] sm:$0xff]
        %v5221 = vld [vmem:[#allocation15 + $0x128] sm:$0xff]
        %v5222 = vld [vmem:[#allocation15 + $0x130] sm:$0xff]
        %v5223 = vld [vmem:[#allocation15 + $0x138] sm:$0xff]
        %v5224 = vld [vmem:[#allocation15 + $0x140] sm:$0xff]
        %v5225 = vld [vmem:[#allocation15 + $0x148] sm:$0xff]
        %v5226 = vld [vmem:[#allocation15 + $0x150] sm:$0xff]
        %v5227 = vld [vmem:[#allocation15 + $0x158] sm:$0xff]
        %v5228 = vld [vmem:[#allocation15 + $0x160] sm:$0xff]
        %v5229 = vld [vmem:[#allocation15 + $0x168] sm:$0xff]
        %v5230 = vld [vmem:[#allocation15 + $0x170] sm:$0xff]
        %v5231 = vld [vmem:[#allocation15 + $0x178] sm:$0xff]
        %v5232 = vld [vmem:[#allocation15 + $0x180] sm:$0xff]
        %v5233 = vld [vmem:[#allocation15 + $0x188] sm:$0xff]
        %v5234 = vld [vmem:[#allocation15 + $0x190] sm:$0xff]
        %v5235 = vld [vmem:[#allocation15 + $0x198] sm:$0xff]
        %v5236 = vld [vmem:[#allocation15 + $0x1a0] sm:$0xff]
        %v5237 = vld [vmem:[#allocation15 + $0x1a8] sm:$0xff]
        %v5238 = vld [vmem:[#allocation15 + $0x1b0] sm:$0xff]
        %v5239 = vld [vmem:[#allocation15 + $0x1b8] sm:$0xff]
        %v5240 = vld [vmem:[#allocation15 + $0x1c0] sm:$0xff]
        %v5241 = vld [vmem:[#allocation15 + $0x1c8] sm:$0xff]
        %v5242 = vld [vmem:[#allocation15 + $0x1d0] sm:$0xff]
        %v5243 = vld [vmem:[#allocation15 + $0x1d8] sm:$0xff]
        %v5244 = vld [vmem:[#allocation15 + $0x1e0] sm:$0xff]
        %v5245 = vld [vmem:[#allocation15 + $0x1e8] sm:$0xff]
        %v5246 = vld [vmem:[#allocation15 + $0x1f0] sm:$0xff]
        %v5247 = vld [vmem:[#allocation15 + $0x1f8] sm:$0xff]
        %v5248 = vld [vmem:[#allocation15 + $0x200] sm:$0xff]
        %v5249 = vld [vmem:[#allocation15 + $0x208] sm:$0xff]
        %v5250 = vld [vmem:[#allocation15 + $0x210] sm:$0xff]
        %v5251 = vld [vmem:[#allocation15 + $0x218] sm:$0xff]
        %v5252 = vld [vmem:[#allocation15 + $0x220] sm:$0xff]
        %v5253 = vld [vmem:[#allocation15 + $0x228] sm:$0xff]
        %v5254 = vld [vmem:[#allocation15 + $0x230] sm:$0xff]
        %v5255 = vld [vmem:[#allocation15 + $0x238] sm:$0xff]
        %v5256 = vld [vmem:[#allocation15 + $0x240] sm:$0xff]
        %v5257 = vld [vmem:[#allocation15 + $0x248] sm:$0xff]
        %v5258 = vld [vmem:[#allocation15 + $0x250] sm:$0xff]
        %v5259 = vld [vmem:[#allocation15 + $0x258] sm:$0xff]
        %v5260 = vld [vmem:[#allocation15 + $0x260] sm:$0xff]
        %v5261 = vld [vmem:[#allocation15 + $0x268] sm:$0xff]
        %v5262 = vld [vmem:[#allocation15 + $0x270] sm:$0xff]
        %v5263 = vld [vmem:[#allocation15 + $0x278] sm:$0xff]
        %v5264 = vld [vmem:[#allocation15 + $0x280] sm:$0xff]
        %v5265 = vld [vmem:[#allocation15 + $0x288] sm:$0xff]
        %v5266 = vld [vmem:[#allocation15 + $0x290] sm:$0xff]
        %v5267 = vld [vmem:[#allocation15 + $0x298] sm:$0xff]
        %v5268 = vld [vmem:[#allocation15 + $0x2a0] sm:$0xff]
        %v5269 = vld [vmem:[#allocation15 + $0x2a8] sm:$0xff]
        %v5270 = vld [vmem:[#allocation15 + $0x2b0] sm:$0xff]
        %v5271 = vld [vmem:[#allocation15 + $0x2b8] sm:$0xff]
        %v5272 = vld [vmem:[#allocation15 + $0x2c0] sm:$0xff]
        %v5273 = vld [vmem:[#allocation15 + $0x2c8] sm:$0xff]
        %v5274 = vld [vmem:[#allocation15 + $0x2d0] sm:$0xff]
        %v5275 = vld [vmem:[#allocation15 + $0x2d8] sm:$0xff]
        %v5276 = vld [vmem:[#allocation15 + $0x2e0] sm:$0xff]
        %v5277 = vld [vmem:[#allocation15 + $0x2e8] sm:$0xff]
        %v5278 = vld [vmem:[#allocation15 + $0x2f0] sm:$0xff]
        %v5279 = vld [vmem:[#allocation15 + $0x2f8] sm:$0xff]
        %v5280 = vld [vmem:[#allocation15 + $0x300] sm:$0xff]
        %v5281 = vld [vmem:[#allocation15 + $0x308] sm:$0xff]
        %v5282 = vld [vmem:[#allocation15 + $0x310] sm:$0xff]
        %v5283 = vld [vmem:[#allocation15 + $0x318] sm:$0xff]
        %v5284 = vld [vmem:[#allocation15 + $0x320] sm:$0xff]
        %v5285 = vld [vmem:[#allocation15 + $0x328] sm:$0xff]
        %v5286 = vld [vmem:[#allocation15 + $0x330] sm:$0xff]
        %v5287 = vld [vmem:[#allocation15 + $0x338] sm:$0xff]
        %v5288 = vld [vmem:[#allocation15 + $0x340] sm:$0xff]
        %v5289 = vld [vmem:[#allocation15 + $0x348] sm:$0xff]
        %v5290 = vld [vmem:[#allocation15 + $0x350] sm:$0xff]
        %v5291 = vld [vmem:[#allocation15 + $0x358] sm:$0xff]
        %v5292 = vld [vmem:[#allocation15 + $0x360] sm:$0xff]
        %v5293 = vld [vmem:[#allocation15 + $0x368] sm:$0xff]
        %v5294 = vld [vmem:[#allocation15 + $0x370] sm:$0xff]
        %v5295 = vld [vmem:[#allocation15 + $0x378] sm:$0xff]
        %v5296 = vld [vmem:[#allocation15 + $0x380] sm:$0xff]
        %v5297 = vld [vmem:[#allocation15 + $0x388] sm:$0xff]
        %v5298 = vld [vmem:[#allocation15 + $0x390] sm:$0xff]
        %v5299 = vld [vmem:[#allocation15 + $0x398] sm:$0xff]
        %v5300 = vld [vmem:[#allocation15 + $0x3a0] sm:$0xff]
        %v5301 = vld [vmem:[#allocation15 + $0x3a8] sm:$0xff]
        %v5302 = vld [vmem:[#allocation15 + $0x3b0] sm:$0xff]
        %v5303 = vld [vmem:[#allocation15 + $0x3b8] sm:$0xff]
        %v5304 = vld [vmem:[#allocation15 + $0x3c0] sm:$0xff]
        %v5305 = vld [vmem:[#allocation15 + $0x3c8] sm:$0xff]
        %v5306 = vld [vmem:[#allocation15 + $0x3d0] sm:$0xff]
        %v5307 = vld [vmem:[#allocation15 + $0x3d8] sm:$0xff]
        %v5308 = vld [vmem:[#allocation15 + $0x3e0] sm:$0xff]
        %v5309 = vld [vmem:[#allocation15 + $0x3e8] sm:$0xff]
        %v5310 = vld [vmem:[#allocation15 + $0x3f0] sm:$0xff]
        %v5311 = vld [vmem:[#allocation15 + $0x3f8] sm:$0xff]
        %v5312 = vld [vmem:[#allocation15 + $0x400] sm:$0xff]
        %v5313 = vld [vmem:[#allocation15 + $0x408] sm:$0xff]
        %v5314 = vld [vmem:[#allocation15 + $0x410] sm:$0xff]
        %v5315 = vld [vmem:[#allocation15 + $0x418] sm:$0xff]
        %v5316 = vld [vmem:[#allocation15 + $0x420] sm:$0xff]
        %v5317 = vld [vmem:[#allocation15 + $0x428] sm:$0xff]
        %v5318 = vld [vmem:[#allocation15 + $0x430] sm:$0xff]
        %v5319 = vld [vmem:[#allocation15 + $0x438] sm:$0xff]
        %v5320 = vld [vmem:[#allocation15 + $0x440] sm:$0xff]
        %v5321 = vld [vmem:[#allocation15 + $0x448] sm:$0xff]
        %v5322 = vld [vmem:[#allocation15 + $0x450] sm:$0xff]
        %v5323 = vld [vmem:[#allocation15 + $0x458] sm:$0xff]
        %v5324 = vld [vmem:[#allocation15 + $0x460] sm:$0xff]
        %v5325 = vld [vmem:[#allocation15 + $0x468] sm:$0xff]
        %v5326 = vld [vmem:[#allocation15 + $0x470] sm:$0xff]
        %v5327 = vld [vmem:[#allocation15 + $0x478] sm:$0xff]
        %v5328 = vld [vmem:[#allocation15 + $0x480] sm:$0xff]
        %v5329 = vld [vmem:[#allocation15 + $0x488] sm:$0xff]
        %v5330 = vld [vmem:[#allocation15 + $0x490] sm:$0xff]
        %v5331 = vld [vmem:[#allocation15 + $0x498] sm:$0xff]
        %v5332 = vld [vmem:[#allocation15 + $0x4a0] sm:$0xff]
        %v5333 = vld [vmem:[#allocation15 + $0x4a8] sm:$0xff]
        %v5334 = vld [vmem:[#allocation15 + $0x4b0] sm:$0xff]
        %v5335 = vld [vmem:[#allocation15 + $0x4b8] sm:$0xff]
        %v5336 = vld [vmem:[#allocation15 + $0x4c0] sm:$0xff]
        %v5337 = vld [vmem:[#allocation15 + $0x4c8] sm:$0xff]
        %v5338 = vld [vmem:[#allocation15 + $0x4d0] sm:$0xff]
        %v5339 = vld [vmem:[#allocation15 + $0x4d8] sm:$0xff]
        %v5340 = vld [vmem:[#allocation15 + $0x4e0] sm:$0xff]
        %v5341 = vld [vmem:[#allocation15 + $0x4e8] sm:$0xff]
        %v5342 = vld [vmem:[#allocation15 + $0x4f0] sm:$0xff]
        %v5343 = vld [vmem:[#allocation15 + $0x4f8] sm:$0xff]
        %v5344 = vld [vmem:[#allocation15 + $0x500] sm:$0xff]
        %v5345 = vld [vmem:[#allocation15 + $0x508] sm:$0xff]
        %v5346 = vld [vmem:[#allocation15 + $0x510] sm:$0xff]
        %v5347 = vld [vmem:[#allocation15 + $0x518] sm:$0xff]
        %v5348 = vld [vmem:[#allocation15 + $0x520] sm:$0xff]
        %v5349 = vld [vmem:[#allocation15 + $0x528] sm:$0xff]
        %v5350 = vld [vmem:[#allocation15 + $0x530] sm:$0xff]
        %v5351 = vld [vmem:[#allocation15 + $0x538] sm:$0xff]
        %v5352 = vld [vmem:[#allocation15 + $0x540] sm:$0xff]
        %v5353 = vld [vmem:[#allocation15 + $0x548] sm:$0xff]
        %v5354 = vld [vmem:[#allocation15 + $0x550] sm:$0xff]
        %v5355 = vld [vmem:[#allocation15 + $0x558] sm:$0xff]
        %v5356 = vld [vmem:[#allocation15 + $0x560] sm:$0xff]
        %v5357 = vld [vmem:[#allocation15 + $0x568] sm:$0xff]
        %v5358 = vld [vmem:[#allocation15 + $0x570] sm:$0xff]
        %v5359 = vld [vmem:[#allocation15 + $0x578] sm:$0xff]
        %v5360 = vld [vmem:[#allocation15 + $0x580] sm:$0xff]
        %v5361 = vld [vmem:[#allocation15 + $0x588] sm:$0xff]
        %v5362 = vld [vmem:[#allocation15 + $0x590] sm:$0xff]
        %v5363 = vld [vmem:[#allocation15 + $0x598] sm:$0xff]
        %v5364 = vld [vmem:[#allocation15 + $0x5a0] sm:$0xff]
        %v5365 = vld [vmem:[#allocation15 + $0x5a8] sm:$0xff]
        %v5366 = vld [vmem:[#allocation15 + $0x5b0] sm:$0xff]
        %v5367 = vld [vmem:[#allocation15 + $0x5b8] sm:$0xff]
        %v5368 = vld [vmem:[#allocation15 + $0x5c0] sm:$0xff]
        %v5369 = vld [vmem:[#allocation15 + $0x5c8] sm:$0xff]
        %v5370 = vld [vmem:[#allocation15 + $0x5d0] sm:$0xff]
        %v5371 = vld [vmem:[#allocation15 + $0x5d8] sm:$0xff]
        %v5372 = vld [vmem:[#allocation15 + $0x5e0] sm:$0xff]
        %v5373 = vld [vmem:[#allocation15 + $0x5e8] sm:$0xff]
        %v5374 = vld [vmem:[#allocation15 + $0x5f0] sm:$0xff]
        %v5375 = vld [vmem:[#allocation15 + $0x5f8] sm:$0xff]
        %v5376 = vld [vmem:[%s9] sm:$0x3f]
        %v5378 = vlaneseq
        %v5379 = vshrl.u32 %v5378, 7
        %v5380 = vsub.s32 0, %v5379
        %v5381 = vrot.slane %v5376, %v5380
        %v5382 = vlaneseq
        %v5383 = vshrl.u32 %v5382, 7
        %v5384 = vsub.s32 1, %v5383
        %v5385 = vrot.slane %v5376, %v5384
        %v5386 = vlaneseq
        %v5387 = vshrl.u32 %v5386, 7
        %v5388 = vsub.s32 2, %v5387
        %v5389 = vrot.slane %v5376, %v5388
        %v5390 = vlaneseq
        %v5391 = vshrl.u32 %v5390, 7
        %v5392 = vsub.s32 3, %v5391
        %v5393 = vrot.slane %v5376, %v5392
        %v5394 = vlaneseq
        %v5395 = vshrl.u32 %v5394, 7
        %v5396 = vsub.s32 4, %v5395
        %v5397 = vrot.slane %v5376, %v5396
        %v5398 = vlaneseq
        %v5399 = vshrl.u32 %v5398, 7
        %v5400 = vsub.s32 5, %v5399
        %v5401 = vrot.slane %v5376, %v5400
        %5408 = vmatprep.subr.mxu0 %v5185
        %5409 = vmatpush1.msra.mxu0 %v5184
        %5410 = vmatprep.subr.mxu0 %v5191
        %5411 = vmatpush1.msra.mxu0 %v5190
        %5412 = vmatprep.subr.mxu0 %v5197
        %5413 = vmatpush1.msra.mxu0 %v5196
        %5414 = vmatprep.subr.mxu0 %v5203
        %5415 = vmatpush1.msra.mxu0 %v5202
        %5416 = vmatprep.subr.mxu0 %v5209
        %5417 = vmatpush1.msra.mxu0 %v5208
        %5418 = vmatprep.subr.mxu0 %v5215
        %5419 = vmatpush1.msra.mxu0 %v5214
        %5420 = vmatprep.subr.mxu0 %v5221
        %5421 = vmatpush1.msra.mxu0 %v5220
        %5422 = vmatprep.subr.mxu0 %v5227
        %5423 = vmatpush1.msra.mxu0 %v5226
        %5424 = vmatprep.subr.mxu0 %v5233
        %5425 = vmatpush1.msra.mxu0 %v5232
        %5426 = vmatprep.subr.mxu0 %v5239
        %5427 = vmatpush1.msra.mxu0 %v5238
        %5428 = vmatprep.subr.mxu0 %v5245
        %5429 = vmatpush1.msra.mxu0 %v5244
        %5430 = vmatprep.subr.mxu0 %v5251
        %5431 = vmatpush1.msra.mxu0 %v5250
        %5432 = vmatprep.subr.mxu0 %v5257
        %5433 = vmatpush1.msra.mxu0 %v5256
        %5434 = vmatprep.subr.mxu0 %v5263
        %5435 = vmatpush1.msra.mxu0 %v5262
        %5436 = vmatprep.subr.mxu0 %v5269
        %5437 = vmatpush1.msra.mxu0 %v5268
        %5438 = vmatprep.subr.mxu0 %v5275
        %5439 = vmatpush1.msra.mxu0 %v5274
        %5440 = vmatprep.subr.mxu0 %v5281
        %5441 = vmatpush1.msra.mxu0 %v5280
        %5442 = vmatprep.subr.mxu0 %v5287
        %5443 = vmatpush1.msra.mxu0 %v5286
        %5444 = vmatprep.subr.mxu0 %v5293
        %5445 = vmatpush1.msra.mxu0 %v5292
        %5446 = vmatprep.subr.mxu0 %v5299
        %5447 = vmatpush1.msra.mxu0 %v5298
        %5448 = vmatprep.subr.mxu0 %v5305
        %5449 = vmatpush1.msra.mxu0 %v5304
        %5450 = vmatprep.subr.mxu0 %v5311
        %5451 = vmatpush1.msra.mxu0 %v5310
        %5452 = vmatprep.subr.mxu0 %v5317
        %5453 = vmatpush1.msra.mxu0 %v5316
        %5454 = vmatprep.subr.mxu0 %v5323
        %5455 = vmatpush1.msra.mxu0 %v5322
        %5456 = vmatprep.subr.mxu0 %v5329
        %5457 = vmatpush1.msra.mxu0 %v5328
        %5458 = vmatprep.subr.mxu0 %v5335
        %5459 = vmatpush1.msra.mxu0 %v5334
        %5460 = vmatprep.subr.mxu0 %v5341
        %5461 = vmatpush1.msra.mxu0 %v5340
        %5462 = vmatprep.subr.mxu0 %v5347
        %5463 = vmatpush1.msra.mxu0 %v5346
        %5464 = vmatprep.subr.mxu0 %v5353
        %5465 = vmatpush1.msra.mxu0 %v5352
        %5466 = vmatprep.subr.mxu0 %v5359
        %5467 = vmatpush1.msra.mxu0 %v5358
        %5468 = vmatprep.subr.mxu0 %v5365
        %5469 = vmatpush1.msra.mxu0 %v5364
        %5470 = vmatprep.subr.mxu0 %v5371
        %5471 = vmatpush1.msra.mxu0 %v5370
        %5472 = vmatprep.mubr.f32.mxu0 %v5163
        %5473 = vmatmul.mubr.f32.gmra.mrb[0].mxu0 %v5162
        %v5474 = vpop.f32.mrb[0].mxu0
        %v5475 = vadd.f32 %v5381, %v5474
        %v5476 = vpop.f32.mrb[0].mxu0
        %v5477 = vadd.f32 %v5385, %v5476
        %5478 = vmatprep.mubr.f32.mxu0 %v5165
        %5479 = vmatmul.mubr.f32.gmra.mrb[0].mxu0 %v5164
        %v5480 = vpop.f32.mrb[0].mxu0
        %v5481 = vadd.f32 %v5381, %v5480
        %v5482 = vpop.f32.mrb[0].mxu0
        %v5483 = vadd.f32 %v5385, %v5482
        %5484 = vdwg.mxu0
        %5485 = vmatprep.subr.mxu0 %v5187
        %5486 = vmatpush1.msra.mxu0 %v5186
        %5487 = vmatprep.subr.mxu0 %v5193
        %5488 = vmatpush1.msra.mxu0 %v5192
        %5489 = vmatprep.subr.mxu0 %v5199
        %5490 = vmatpush1.msra.mxu0 %v5198
        %5491 = vmatprep.subr.mxu0 %v5205
        %5492 = vmatpush1.msra.mxu0 %v5204
        %5493 = vmatprep.subr.mxu0 %v5211
        %5494 = vmatpush1.msra.mxu0 %v5210
        %5495 = vmatprep.subr.mxu0 %v5217
        %5496 = vmatpush1.msra.mxu0 %v5216
        %5497 = vmatprep.subr.mxu0 %v5223
        %5498 = vmatpush1.msra.mxu0 %v5222
        %5499 = vmatprep.subr.mxu0 %v5229
        %5500 = vmatpush1.msra.mxu0 %v5228
        %5501 = vmatprep.subr.mxu0 %v5235
        %5502 = vmatpush1.msra.mxu0 %v5234
        %5503 = vmatprep.subr.mxu0 %v5241
        %5504 = vmatpush1.msra.mxu0 %v5240
        %5505 = vmatprep.subr.mxu0 %v5247
        %5506 = vmatpush1.msra.mxu0 %v5246
        %5507 = vmatprep.subr.mxu0 %v5253
        %5508 = vmatpush1.msra.mxu0 %v5252
        %5509 = vmatprep.subr.mxu0 %v5259
        %5510 = vmatpush1.msra.mxu0 %v5258
        %5511 = vmatprep.subr.mxu0 %v5265
        %5512 = vmatpush1.msra.mxu0 %v5264
        %5513 = vmatprep.subr.mxu0 %v5271
        %5514 = vmatpush1.msra.mxu0 %v5270
        %5515 = vmatprep.subr.mxu0 %v5277
        %5516 = vmatpush1.msra.mxu0 %v5276
        %5517 = vmatprep.subr.mxu0 %v5283
        %5518 = vmatpush1.msra.mxu0 %v5282
        %5519 = vmatprep.subr.mxu0 %v5289
        %5520 = vmatpush1.msra.mxu0 %v5288
        %5521 = vmatprep.subr.mxu0 %v5295
        %5522 = vmatpush1.msra.mxu0 %v5294
        %5523 = vmatprep.subr.mxu0 %v5301
        %5524 = vmatpush1.msra.mxu0 %v5300
        %5525 = vmatprep.subr.mxu0 %v5307
        %5526 = vmatpush1.msra.mxu0 %v5306
        %5527 = vmatprep.subr.mxu0 %v5313
        %5528 = vmatpush1.msra.mxu0 %v5312
        %5529 = vmatprep.subr.mxu0 %v5319
        %5530 = vmatpush1.msra.mxu0 %v5318
        %5531 = vmatprep.subr.mxu0 %v5325
        %5532 = vmatpush1.msra.mxu0 %v5324
        %5533 = vmatprep.subr.mxu0 %v5331
        %5534 = vmatpush1.msra.mxu0 %v5330
        %5535 = vmatprep.subr.mxu0 %v5337
        %5536 = vmatpush1.msra.mxu0 %v5336
        %5537 = vmatprep.subr.mxu0 %v5343
        %5538 = vmatpush1.msra.mxu0 %v5342
        %5539 = vmatprep.subr.mxu0 %v5349
        %5540 = vmatpush1.msra.mxu0 %v5348
        %5541 = vmatprep.subr.mxu0 %v5355
        %5542 = vmatpush1.msra.mxu0 %v5354
        %5543 = vmatprep.subr.mxu0 %v5361
        %5544 = vmatpush1.msra.mxu0 %v5360
        %5545 = vmatprep.subr.mxu0 %v5367
        %5546 = vmatpush1.msra.mxu0 %v5366
        %5547 = vmatprep.subr.mxu0 %v5373
        %5548 = vmatpush1.msra.mxu0 %v5372
        %5549 = vmatprep.mubr.f32.mxu0 %v5163
        %5550 = vmatmul.mubr.f32.gmra.mrb[0].mxu0 %v5162
        %v5551 = vpop.f32.mrb[0].mxu0
        %v5552 = vadd.f32 %v5389, %v5551
        %v5553 = vpop.f32.mrb[0].mxu0
        %v5554 = vadd.f32 %v5393, %v5553
        %5555 = vmatprep.mubr.f32.mxu0 %v5165
        %5556 = vmatmul.mubr.f32.gmra.mrb[0].mxu0 %v5164
        %v5557 = vpop.f32.mrb[0].mxu0
        %v5558 = vadd.f32 %v5389, %v5557
        %v5559 = vpop.f32.mrb[0].mxu0
        %v5560 = vadd.f32 %v5393, %v5559
        %5561 = vdwg.mxu0
        %5562 = vmatprep.subr.mxu0 %v5189
        %5563 = vmatpush1.msra.mxu0 %v5188
        %5564 = vmatprep.subr.mxu0 %v5195
        %5565 = vmatpush1.msra.mxu0 %v5194
        %5566 = vmatprep.subr.mxu0 %v5201
        %5567 = vmatpush1.msra.mxu0 %v5200
        %5568 = vmatprep.subr.mxu0 %v5207
        %5569 = vmatpush1.msra.mxu0 %v5206
        %5570 = vmatprep.subr.mxu0 %v5213
        %5571 = vmatpush1.msra.mxu0 %v5212
        %5572 = vmatprep.subr.mxu0 %v5219
        %5573 = vmatpush1.msra.mxu0 %v5218
        %5574 = vmatprep.subr.mxu0 %v5225
        %5575 = vmatpush1.msra.mxu0 %v5224
        %5576 = vmatprep.subr.mxu0 %v5231
        %5577 = vmatpush1.msra.mxu0 %v5230
        %5578 = vmatprep.subr.mxu0 %v5237
        %5579 = vmatpush1.msra.mxu0 %v5236
        %5580 = vmatprep.subr.mxu0 %v5243
        %5581 = vmatpush1.msra.mxu0 %v5242
        %5582 = vmatprep.subr.mxu0 %v5249
        %5583 = vmatpush1.msra.mxu0 %v5248
        %5584 = vmatprep.subr.mxu0 %v5255
        %5585 = vmatpush1.msra.mxu0 %v5254
        %5586 = vmatprep.subr.mxu0 %v5261
        %5587 = vmatpush1.msra.mxu0 %v5260
        %5588 = vmatprep.subr.mxu0 %v5267
        %5589 = vmatpush1.msra.mxu0 %v5266
        %5590 = vmatprep.subr.mxu0 %v5273
        %5591 = vmatpush1.msra.mxu0 %v5272
        %5592 = vmatprep.subr.mxu0 %v5279
        %5593 = vmatpush1.msra.mxu0 %v5278
        %5594 = vmatprep.subr.mxu0 %v5285
        %5595 = vmatpush1.msra.mxu0 %v5284
        %5596 = vmatprep.subr.mxu0 %v5291
        %5597 = vmatpush1.msra.mxu0 %v5290
        %5598 = vmatprep.subr.mxu0 %v5297
        %5599 = vmatpush1.msra.mxu0 %v5296
        %5600 = vmatprep.subr.mxu0 %v5303
        %5601 = vmatpush1.msra.mxu0 %v5302
        %5602 = vmatprep.subr.mxu0 %v5309
        %5603 = vmatpush1.msra.mxu0 %v5308
        %5604 = vmatprep.subr.mxu0 %v5315
        %5605 = vmatpush1.msra.mxu0 %v5314
        %5606 = vmatprep.subr.mxu0 %v5321
        %5607 = vmatpush1.msra.mxu0 %v5320
        %5608 = vmatprep.subr.mxu0 %v5327
        %5609 = vmatpush1.msra.mxu0 %v5326
        %5610 = vmatprep.subr.mxu0 %v5333
        %5611 = vmatpush1.msra.mxu0 %v5332
        %5612 = vmatprep.subr.mxu0 %v5339
        %5613 = vmatpush1.msra.mxu0 %v5338
        %5614 = vmatprep.subr.mxu0 %v5345
        %5615 = vmatpush1.msra.mxu0 %v5344
        %5616 = vmatprep.subr.mxu0 %v5351
        %5617 = vmatpush1.msra.mxu0 %v5350
        %5618 = vmatprep.subr.mxu0 %v5357
        %5619 = vmatpush1.msra.mxu0 %v5356
        %5620 = vmatprep.subr.mxu0 %v5363
        %5621 = vmatpush1.msra.mxu0 %v5362
        %5622 = vmatprep.subr.mxu0 %v5369
        %5623 = vmatpush1.msra.mxu0 %v5368
        %5624 = vmatprep.subr.mxu0 %v5375
        %5625 = vmatpush1.msra.mxu0 %v5374
        %5626 = vmatprep.mubr.f32.mxu0 %v5163
        %5627 = vmatmul.mubr.f32.gmra.mrb[0].mxu0 %v5162
        %v5628 = vpop.f32.mrb[0].mxu0
        %v5629 = vadd.f32 %v5397, %v5628
        %v5630 = vpop.f32.mrb[0].mxu0
        %v5631 = vadd.f32 %v5401, %v5630
        %5632 = vmatprep.mubr.f32.mxu0 %v5165
        %5633 = vmatmul.mubr.f32.gmra.mrb[0].mxu0 %v5164
        %v5634 = vpop.f32.mrb[0].mxu0
        %v5635 = vadd.f32 %v5397, %v5634
        %v5636 = vpop.f32.mrb[0].mxu0
        %v5637 = vadd.f32 %v5401, %v5636
        %5638 = vdwg.mxu0
        %v5639 = vadd.f32 %v5172, %v5475
        %v5640 = vadd.f32 %v5173, %v5477
        %v5641 = vadd.f32 %v5178, %v5481
        %v5642 = vadd.f32 %v5179, %v5483
        %v5643 = vsub.f32 0.0, %v5639
        %v5644 = vsub.f32 0.0, %v5640
        %v5645 = vsub.f32 0.0, %v5641
        %v5646 = vsub.f32 0.0, %v5642
        %v5647 = vmul.f32 %v5643, 1.442695
        %v5648 = vpow.pop %v5647
        %v5649 = vmul.f32 %v5644, 1.442695
        %v5650 = vpow.pop %v5649
        %v5651 = vmul.f32 %v5645, 1.442695
        %v5652 = vpow.pop %v5651
        %v5653 = vmul.f32 %v5646, 1.442695
        %v5654 = vpow.pop %v5653
        %v5655 = vadd.f32 %v5648, 1.0
        %v5656 = vadd.f32 %v5650, 1.0
        %v5657 = vadd.f32 %v5652, 1.0
        %v5658 = vadd.f32 %v5654, 1.0
        %v5659 = vrcp.pop %v5655
        %v5660 = vrcp.pop %v5656
        %v5661 = vrcp.pop %v5657
        %v5662 = vrcp.pop %v5658
        %v5663 = vadd.f32 %v5174, %v5552
        %v5664 = vadd.f32 %v5175, %v5554
        %v5665 = vadd.f32 %v5180, %v5558
        %v5666 = vadd.f32 %v5181, %v5560
        %v5667 = vsub.f32 0.0, %v5663
        %v5668 = vsub.f32 0.0, %v5664
        %v5669 = vsub.f32 0.0, %v5665
        %v5670 = vsub.f32 0.0, %v5666
        %v5671 = vmul.f32 %v5667, 1.442695
        %v5672 = vpow.pop %v5671
        %v5673 = vmul.f32 %v5668, 1.442695
        %v5674 = vpow.pop %v5673
        %v5675 = vmul.f32 %v5669, 1.442695
        %v5676 = vpow.pop %v5675
        %v5677 = vmul.f32 %v5670, 1.442695
        %v5678 = vpow.pop %v5677
        %v5679 = vadd.f32 %v5672, 1.0
        %v5680 = vadd.f32 %v5674, 1.0
        %v5681 = vadd.f32 %v5676, 1.0
        %v5682 = vadd.f32 %v5678, 1.0
        %v5683 = vrcp.pop %v5679
        %v5684 = vrcp.pop %v5680
        %v5685 = vrcp.pop %v5681
        %v5686 = vrcp.pop %v5682
        %v5687 = vmul.f32 %v5659, %v5629
        %v5688 = vmul.f32 %v5660, %v5631
        %v5689 = vmul.f32 %v5661, %v5635
        %v5690 = vmul.f32 %v5662, %v5637
        %v5691 = vadd.f32 %v5176, %v5687
        %v5692 = vadd.f32 %v5177, %v5688
        %v5693 = vadd.f32 %v5182, %v5689
        %v5694 = vadd.f32 %v5183, %v5690
        %v5695 = vtanh.pop %v5691
        %v5696 = vtanh.pop %v5692
        %v5697 = vtanh.pop %v5693
        %v5698 = vtanh.pop %v5694
        %v5699 = vsub.f32 1.0, %v5683
        %v5700 = vsub.f32 1.0, %v5684
        %v5701 = vsub.f32 1.0, %v5685
        %v5702 = vsub.f32 1.0, %v5686
        %v5703 = vmul.f32 %v5699, %v5695
        %v5704 = vmul.f32 %v5700, %v5696
        %v5705 = vmul.f32 %v5701, %v5697
        %v5706 = vmul.f32 %v5702, %v5698
        %v5707 = vmul.f32 %v5683, %v5162
        %v5708 = vmul.f32 %v5684, %v5163
        %v5709 = vmul.f32 %v5685, %v5164
        %v5710 = vmul.f32 %v5686, %v5165
        %v5711 = vadd.f32 %v5703, %v5707
        %v5712 = vadd.f32 %v5704, %v5708
        %v5713 = vadd.f32 %v5705, %v5709
        %v5714 = vadd.f32 %v5706, %v5710
        %s5715 = scalar_lea.vmem [#allocation3], 128
        %5716 = vst [vmem:[%s5715] sm:$0xff] %v5711
        %5717 = vst [vmem:[%s5715 + $0x8] sm:$0xff] %v5712
        %5718 = vst [vmem:[%s5715 + $0x10] sm:$0xff] %v5713
        %5719 = vst [vmem:[%s5715 + $0x18] sm:$0xff] %v5714
        %s5720 = scalar_lea.vmem [#allocation2], 480
        %v5721 = vld [vmem:[%s5720] sm:$0xff]
        %v5722 = vld [vmem:[%s5720 + $0x8] sm:$0xff]
        %v5723 = vld [vmem:[%s5720 + $0x10] sm:$0xff]
        %v5724 = vld [vmem:[%s5720 + $0x18] sm:$0xff]
        %v5725 = vld [vmem:[%s5720 + $0x20] sm:$0xff]
        %v5726 = vld [vmem:[%s5720 + $0x28] sm:$0xff]
        %v5727 = vld [vmem:[%s5720 + $0x30] sm:$0xff]
        %v5728 = vld [vmem:[%s5720 + $0x38] sm:$0xff]
        %v5729 = vld [vmem:[%s5720 + $0x40] sm:$0xff]
        %v5730 = vld [vmem:[%s5720 + $0x48] sm:$0xff]
        %v5731 = vld [vmem:[%s5720 + $0x50] sm:$0xff]
        %v5732 = vld [vmem:[%s5720 + $0x58] sm:$0xff]
        %v5733 = vld [vmem:[#allocation15] sm:$0xff]
        %v5734 = vld [vmem:[#allocation15 + $0x8] sm:$0xff]
        %v5735 = vld [vmem:[#allocation15 + $0x10] sm:$0xff]
        %v5736 = vld [vmem:[#allocation15 + $0x18] sm:$0xff]
        %v5737 = vld [vmem:[#allocation15 + $0x20] sm:$0xff]
        %v5738 = vld [vmem:[#allocation15 + $0x28] sm:$0xff]
        %v5739 = vld [vmem:[#allocation15 + $0x30] sm:$0xff]
        %v5740 = vld [vmem:[#allocation15 + $0x38] sm:$0xff]
        %v5741 = vld [vmem:[#allocation15 + $0x40] sm:$0xff]
        %v5742 = vld [vmem:[#allocation15 + $0x48] sm:$0xff]
        %v5743 = vld [vmem:[#allocation15 + $0x50] sm:$0xff]
        %v5744 = vld [vmem:[#allocation15 + $0x58] sm:$0xff]
        %v5745 = vld [vmem:[#allocation15 + $0x60] sm:$0xff]
        %v5746 = vld [vmem:[#allocation15 + $0x68] sm:$0xff]
        %v5747 = vld [vmem:[#allocation15 + $0x70] sm:$0xff]
        %v5748 = vld [vmem:[#allocation15 + $0x78] sm:$0xff]
        %v5749 = vld [vmem:[#allocation15 + $0x80] sm:$0xff]
        %v5750 = vld [vmem:[#allocation15 + $0x88] sm:$0xff]
        %v5751 = vld [vmem:[#allocation15 + $0x90] sm:$0xff]
        %v5752 = vld [vmem:[#allocation15 + $0x98] sm:$0xff]
        %v5753 = vld [vmem:[#allocation15 + $0xa0] sm:$0xff]
        %v5754 = vld [vmem:[#allocation15 + $0xa8] sm:$0xff]
        %v5755 = vld [vmem:[#allocation15 + $0xb0] sm:$0xff]
        %v5756 = vld [vmem:[#allocation15 + $0xb8] sm:$0xff]
        %v5757 = vld [vmem:[#allocation15 + $0xc0] sm:$0xff]
        %v5758 = vld [vmem:[#allocation15 + $0xc8] sm:$0xff]
        %v5759 = vld [vmem:[#allocation15 + $0xd0] sm:$0xff]
        %v5760 = vld [vmem:[#allocation15 + $0xd8] sm:$0xff]
        %v5761 = vld [vmem:[#allocation15 + $0xe0] sm:$0xff]
        %v5762 = vld [vmem:[#allocation15 + $0xe8] sm:$0xff]
        %v5763 = vld [vmem:[#allocation15 + $0xf0] sm:$0xff]
        %v5764 = vld [vmem:[#allocation15 + $0xf8] sm:$0xff]
        %v5765 = vld [vmem:[#allocation15 + $0x100] sm:$0xff]
        %v5766 = vld [vmem:[#allocation15 + $0x108] sm:$0xff]
        %v5767 = vld [vmem:[#allocation15 + $0x110] sm:$0xff]
        %v5768 = vld [vmem:[#allocation15 + $0x118] sm:$0xff]
        %v5769 = vld [vmem:[#allocation15 + $0x120] sm:$0xff]
        %v5770 = vld [vmem:[#allocation15 + $0x128] sm:$0xff]
        %v5771 = vld [vmem:[#allocation15 + $0x130] sm:$0xff]
        %v5772 = vld [vmem:[#allocation15 + $0x138] sm:$0xff]
        %v5773 = vld [vmem:[#allocation15 + $0x140] sm:$0xff]
        %v5774 = vld [vmem:[#allocation15 + $0x148] sm:$0xff]
        %v5775 = vld [vmem:[#allocation15 + $0x150] sm:$0xff]
        %v5776 = vld [vmem:[#allocation15 + $0x158] sm:$0xff]
        %v5777 = vld [vmem:[#allocation15 + $0x160] sm:$0xff]
        %v5778 = vld [vmem:[#allocation15 + $0x168] sm:$0xff]
        %v5779 = vld [vmem:[#allocation15 + $0x170] sm:$0xff]
        %v5780 = vld [vmem:[#allocation15 + $0x178] sm:$0xff]
        %v5781 = vld [vmem:[#allocation15 + $0x180] sm:$0xff]
        %v5782 = vld [vmem:[#allocation15 + $0x188] sm:$0xff]
        %v5783 = vld [vmem:[#allocation15 + $0x190] sm:$0xff]
        %v5784 = vld [vmem:[#allocation15 + $0x198] sm:$0xff]
        %v5785 = vld [vmem:[#allocation15 + $0x1a0] sm:$0xff]
        %v5786 = vld [vmem:[#allocation15 + $0x1a8] sm:$0xff]
        %v5787 = vld [vmem:[#allocation15 + $0x1b0] sm:$0xff]
        %v5788 = vld [vmem:[#allocation15 + $0x1b8] sm:$0xff]
        %v5789 = vld [vmem:[#allocation15 + $0x1c0] sm:$0xff]
        %v5790 = vld [vmem:[#allocation15 + $0x1c8] sm:$0xff]
        %v5791 = vld [vmem:[#allocation15 + $0x1d0] sm:$0xff]
        %v5792 = vld [vmem:[#allocation15 + $0x1d8] sm:$0xff]
        %v5793 = vld [vmem:[#allocation15 + $0x1e0] sm:$0xff]
        %v5794 = vld [vmem:[#allocation15 + $0x1e8] sm:$0xff]
        %v5795 = vld [vmem:[#allocation15 + $0x1f0] sm:$0xff]
        %v5796 = vld [vmem:[#allocation15 + $0x1f8] sm:$0xff]
        %v5797 = vld [vmem:[#allocation15 + $0x200] sm:$0xff]
        %v5798 = vld [vmem:[#allocation15 + $0x208] sm:$0xff]
        %v5799 = vld [vmem:[#allocation15 + $0x210] sm:$0xff]
        %v5800 = vld [vmem:[#allocation15 + $0x218] sm:$0xff]
        %v5801 = vld [vmem:[#allocation15 + $0x220] sm:$0xff]
        %v5802 = vld [vmem:[#allocation15 + $0x228] sm:$0xff]
        %v5803 = vld [vmem:[#allocation15 + $0x230] sm:$0xff]
        %v5804 = vld [vmem:[#allocation15 + $0x238] sm:$0xff]
        %v5805 = vld [vmem:[#allocation15 + $0x240] sm:$0xff]
        %v5806 = vld [vmem:[#allocation15 + $0x248] sm:$0xff]
        %v5807 = vld [vmem:[#allocation15 + $0x250] sm:$0xff]
        %v5808 = vld [vmem:[#allocation15 + $0x258] sm:$0xff]
        %v5809 = vld [vmem:[#allocation15 + $0x260] sm:$0xff]
        %v5810 = vld [vmem:[#allocation15 + $0x268] sm:$0xff]
        %v5811 = vld [vmem:[#allocation15 + $0x270] sm:$0xff]
        %v5812 = vld [vmem:[#allocation15 + $0x278] sm:$0xff]
        %v5813 = vld [vmem:[#allocation15 + $0x280] sm:$0xff]
        %v5814 = vld [vmem:[#allocation15 + $0x288] sm:$0xff]
        %v5815 = vld [vmem:[#allocation15 + $0x290] sm:$0xff]
        %v5816 = vld [vmem:[#allocation15 + $0x298] sm:$0xff]
        %v5817 = vld [vmem:[#allocation15 + $0x2a0] sm:$0xff]
        %v5818 = vld [vmem:[#allocation15 + $0x2a8] sm:$0xff]
        %v5819 = vld [vmem:[#allocation15 + $0x2b0] sm:$0xff]
        %v5820 = vld [vmem:[#allocation15 + $0x2b8] sm:$0xff]
        %v5821 = vld [vmem:[#allocation15 + $0x2c0] sm:$0xff]
        %v5822 = vld [vmem:[#allocation15 + $0x2c8] sm:$0xff]
        %v5823 = vld [vmem:[#allocation15 + $0x2d0] sm:$0xff]
        %v5824 = vld [vmem:[#allocation15 + $0x2d8] sm:$0xff]
        %v5825 = vld [vmem:[#allocation15 + $0x2e0] sm:$0xff]
        %v5826 = vld [vmem:[#allocation15 + $0x2e8] sm:$0xff]
        %v5827 = vld [vmem:[#allocation15 + $0x2f0] sm:$0xff]
        %v5828 = vld [vmem:[#allocation15 + $0x2f8] sm:$0xff]
        %v5829 = vld [vmem:[#allocation15 + $0x300] sm:$0xff]
        %v5830 = vld [vmem:[#allocation15 + $0x308] sm:$0xff]
        %v5831 = vld [vmem:[#allocation15 + $0x310] sm:$0xff]
        %v5832 = vld [vmem:[#allocation15 + $0x318] sm:$0xff]
        %v5833 = vld [vmem:[#allocation15 + $0x320] sm:$0xff]
        %v5834 = vld [vmem:[#allocation15 + $0x328] sm:$0xff]
        %v5835 = vld [vmem:[#allocation15 + $0x330] sm:$0xff]
        %v5836 = vld [vmem:[#allocation15 + $0x338] sm:$0xff]
        %v5837 = vld [vmem:[#allocation15 + $0x340] sm:$0xff]
        %v5838 = vld [vmem:[#allocation15 + $0x348] sm:$0xff]
        %v5839 = vld [vmem:[#allocation15 + $0x350] sm:$0xff]
        %v5840 = vld [vmem:[#allocation15 + $0x358] sm:$0xff]
        %v5841 = vld [vmem:[#allocation15 + $0x360] sm:$0xff]
        %v5842 = vld [vmem:[#allocation15 + $0x368] sm:$0xff]
        %v5843 = vld [vmem:[#allocation15 + $0x370] sm:$0xff]
        %v5844 = vld [vmem:[#allocation15 + $0x378] sm:$0xff]
        %v5845 = vld [vmem:[#allocation15 + $0x380] sm:$0xff]
        %v5846 = vld [vmem:[#allocation15 + $0x388] sm:$0xff]
        %v5847 = vld [vmem:[#allocation15 + $0x390] sm:$0xff]
        %v5848 = vld [vmem:[#allocation15 + $0x398] sm:$0xff]
        %v5849 = vld [vmem:[#allocation15 + $0x3a0] sm:$0xff]
        %v5850 = vld [vmem:[#allocation15 + $0x3a8] sm:$0xff]
        %v5851 = vld [vmem:[#allocation15 + $0x3b0] sm:$0xff]
        %v5852 = vld [vmem:[#allocation15 + $0x3b8] sm:$0xff]
        %v5853 = vld [vmem:[#allocation15 + $0x3c0] sm:$0xff]
        %v5854 = vld [vmem:[#allocation15 + $0x3c8] sm:$0xff]
        %v5855 = vld [vmem:[#allocation15 + $0x3d0] sm:$0xff]
        %v5856 = vld [vmem:[#allocation15 + $0x3d8] sm:$0xff]
        %v5857 = vld [vmem:[#allocation15 + $0x3e0] sm:$0xff]
        %v5858 = vld [vmem:[#allocation15 + $0x3e8] sm:$0xff]
        %v5859 = vld [vmem:[#allocation15 + $0x3f0] sm:$0xff]
        %v5860 = vld [vmem:[#allocation15 + $0x3f8] sm:$0xff]
        %v5861 = vld [vmem:[#allocation15 + $0x400] sm:$0xff]
        %v5862 = vld [vmem:[#allocation15 + $0x408] sm:$0xff]
        %v5863 = vld [vmem:[#allocation15 + $0x410] sm:$0xff]
        %v5864 = vld [vmem:[#allocation15 + $0x418] sm:$0xff]
        %v5865 = vld [vmem:[#allocation15 + $0x420] sm:$0xff]
        %v5866 = vld [vmem:[#allocation15 + $0x428] sm:$0xff]
        %v5867 = vld [vmem:[#allocation15 + $0x430] sm:$0xff]
        %v5868 = vld [vmem:[#allocation15 + $0x438] sm:$0xff]
        %v5869 = vld [vmem:[#allocation15 + $0x440] sm:$0xff]
        %v5870 = vld [vmem:[#allocation15 + $0x448] sm:$0xff]
        %v5871 = vld [vmem:[#allocation15 + $0x450] sm:$0xff]
        %v5872 = vld [vmem:[#allocation15 + $0x458] sm:$0xff]
        %v5873 = vld [vmem:[#allocation15 + $0x460] sm:$0xff]
        %v5874 = vld [vmem:[#allocation15 + $0x468] sm:$0xff]
        %v5875 = vld [vmem:[#allocation15 + $0x470] sm:$0xff]
        %v5876 = vld [vmem:[#allocation15 + $0x478] sm:$0xff]
        %v5877 = vld [vmem:[#allocation15 + $0x480] sm:$0xff]
        %v5878 = vld [vmem:[#allocation15 + $0x488] sm:$0xff]
        %v5879 = vld [vmem:[#allocation15 + $0x490] sm:$0xff]
        %v5880 = vld [vmem:[#allocation15 + $0x498] sm:$0xff]
        %v5881 = vld [vmem:[#allocation15 + $0x4a0] sm:$0xff]
        %v5882 = vld [vmem:[#allocation15 + $0x4a8] sm:$0xff]
        %v5883 = vld [vmem:[#allocation15 + $0x4b0] sm:$0xff]
        %v5884 = vld [vmem:[#allocation15 + $0x4b8] sm:$0xff]
        %v5885 = vld [vmem:[#allocation15 + $0x4c0] sm:$0xff]
        %v5886 = vld [vmem:[#allocation15 + $0x4c8] sm:$0xff]
        %v5887 = vld [vmem:[#allocation15 + $0x4d0] sm:$0xff]
        %v5888 = vld [vmem:[#allocation15 + $0x4d8] sm:$0xff]
        %v5889 = vld [vmem:[#allocation15 + $0x4e0] sm:$0xff]
        %v5890 = vld [vmem:[#allocation15 + $0x4e8] sm:$0xff]
        %v5891 = vld [vmem:[#allocation15 + $0x4f0] sm:$0xff]
        %v5892 = vld [vmem:[#allocation15 + $0x4f8] sm:$0xff]
        %v5893 = vld [vmem:[#allocation15 + $0x500] sm:$0xff]
        %v5894 = vld [vmem:[#allocation15 + $0x508] sm:$0xff]
        %v5895 = vld [vmem:[#allocation15 + $0x510] sm:$0xff]
        %v5896 = vld [vmem:[#allocation15 + $0x518] sm:$0xff]
        %v5897 = vld [vmem:[#allocation15 + $0x520] sm:$0xff]
        %v5898 = vld [vmem:[#allocation15 + $0x528] sm:$0xff]
        %v5899 = vld [vmem:[#allocation15 + $0x530] sm:$0xff]
        %v5900 = vld [vmem:[#allocation15 + $0x538] sm:$0xff]
        %v5901 = vld [vmem:[#allocation15 + $0x540] sm:$0xff]
        %v5902 = vld [vmem:[#allocation15 + $0x548] sm:$0xff]
        %v5903 = vld [vmem:[#allocation15 + $0x550] sm:$0xff]
        %v5904 = vld [vmem:[#allocation15 + $0x558] sm:$0xff]
        %v5905 = vld [vmem:[#allocation15 + $0x560] sm:$0xff]
        %v5906 = vld [vmem:[#allocation15 + $0x568] sm:$0xff]
        %v5907 = vld [vmem:[#allocation15 + $0x570] sm:$0xff]
        %v5908 = vld [vmem:[#allocation15 + $0x578] sm:$0xff]
        %v5909 = vld [vmem:[#allocation15 + $0x580] sm:$0xff]
        %v5910 = vld [vmem:[#allocation15 + $0x588] sm:$0xff]
        %v5911 = vld [vmem:[#allocation15 + $0x590] sm:$0xff]
        %v5912 = vld [vmem:[#allocation15 + $0x598] sm:$0xff]
        %v5913 = vld [vmem:[#allocation15 + $0x5a0] sm:$0xff]
        %v5914 = vld [vmem:[#allocation15 + $0x5a8] sm:$0xff]
        %v5915 = vld [vmem:[#allocation15 + $0x5b0] sm:$0xff]
        %v5916 = vld [vmem:[#allocation15 + $0x5b8] sm:$0xff]
        %v5917 = vld [vmem:[#allocation15 + $0x5c0] sm:$0xff]
        %v5918 = vld [vmem:[#allocation15 + $0x5c8] sm:$0xff]
        %v5919 = vld [vmem:[#allocation15 + $0x5d0] sm:$0xff]
        %v5920 = vld [vmem:[#allocation15 + $0x5d8] sm:$0xff]
        %v5921 = vld [vmem:[#allocation15 + $0x5e0] sm:$0xff]
        %v5922 = vld [vmem:[#allocation15 + $0x5e8] sm:$0xff]
        %v5923 = vld [vmem:[#allocation15 + $0x5f0] sm:$0xff]
        %v5924 = vld [vmem:[#allocation15 + $0x5f8] sm:$0xff]
        %v5925 = vld [vmem:[%s9] sm:$0x3f]
        %v5927 = vlaneseq
        %v5928 = vshrl.u32 %v5927, 7
        %v5929 = vsub.s32 0, %v5928
        %v5930 = vrot.slane %v5925, %v5929
        %v5931 = vlaneseq
        %v5932 = vshrl.u32 %v5931, 7
        %v5933 = vsub.s32 1, %v5932
        %v5934 = vrot.slane %v5925, %v5933
        %v5935 = vlaneseq
        %v5936 = vshrl.u32 %v5935, 7
        %v5937 = vsub.s32 2, %v5936
        %v5938 = vrot.slane %v5925, %v5937
        %v5939 = vlaneseq
        %v5940 = vshrl.u32 %v5939, 7
        %v5941 = vsub.s32 3, %v5940
        %v5942 = vrot.slane %v5925, %v5941
        %v5943 = vlaneseq
        %v5944 = vshrl.u32 %v5943, 7
        %v5945 = vsub.s32 4, %v5944
        %v5946 = vrot.slane %v5925, %v5945
        %v5947 = vlaneseq
        %v5948 = vshrl.u32 %v5947, 7
        %v5949 = vsub.s32 5, %v5948
        %v5950 = vrot.slane %v5925, %v5949
        %5957 = vmatprep.subr.mxu0 %v5734
        %5958 = vmatpush1.msra.mxu0 %v5733
        %5959 = vmatprep.subr.mxu0 %v5740
        %5960 = vmatpush1.msra.mxu0 %v5739
        %5961 = vmatprep.subr.mxu0 %v5746
        %5962 = vmatpush1.msra.mxu0 %v5745
        %5963 = vmatprep.subr.mxu0 %v5752
        %5964 = vmatpush1.msra.mxu0 %v5751
        %5965 = vmatprep.subr.mxu0 %v5758
        %5966 = vmatpush1.msra.mxu0 %v5757
        %5967 = vmatprep.subr.mxu0 %v5764
        %5968 = vmatpush1.msra.mxu0 %v5763
        %5969 = vmatprep.subr.mxu0 %v5770
        %5970 = vmatpush1.msra.mxu0 %v5769
        %5971 = vmatprep.subr.mxu0 %v5776
        %5972 = vmatpush1.msra.mxu0 %v5775
        %5973 = vmatprep.subr.mxu0 %v5782
        %5974 = vmatpush1.msra.mxu0 %v5781
        %5975 = vmatprep.subr.mxu0 %v5788
        %5976 = vmatpush1.msra.mxu0 %v5787
        %5977 = vmatprep.subr.mxu0 %v5794
        %5978 = vmatpush1.msra.mxu0 %v5793
        %5979 = vmatprep.subr.mxu0 %v5800
        %5980 = vmatpush1.msra.mxu0 %v5799
        %5981 = vmatprep.subr.mxu0 %v5806
        %5982 = vmatpush1.msra.mxu0 %v5805
        %5983 = vmatprep.subr.mxu0 %v5812
        %5984 = vmatpush1.msra.mxu0 %v5811
        %5985 = vmatprep.subr.mxu0 %v5818
        %5986 = vmatpush1.msra.mxu0 %v5817
        %5987 = vmatprep.subr.mxu0 %v5824
        %5988 = vmatpush1.msra.mxu0 %v5823
        %5989 = vmatprep.subr.mxu0 %v5830
        %5990 = vmatpush1.msra.mxu0 %v5829
        %5991 = vmatprep.subr.mxu0 %v5836
        %5992 = vmatpush1.msra.mxu0 %v5835
        %5993 = vmatprep.subr.mxu0 %v5842
        %5994 = vmatpush1.msra.mxu0 %v5841
        %5995 = vmatprep.subr.mxu0 %v5848
        %5996 = vmatpush1.msra.mxu0 %v5847
        %5997 = vmatprep.subr.mxu0 %v5854
        %5998 = vmatpush1.msra.mxu0 %v5853
        %5999 = vmatprep.subr.mxu0 %v5860
        %6000 = vmatpush1.msra.mxu0 %v5859
        %6001 = vmatprep.subr.mxu0 %v5866
        %6002 = vmatpush1.msra.mxu0 %v5865
        %6003 = vmatprep.subr.mxu0 %v5872
        %6004 = vmatpush1.msra.mxu0 %v5871
        %6005 = vmatprep.subr.mxu0 %v5878
        %6006 = vmatpush1.msra.mxu0 %v5877
        %6007 = vmatprep.subr.mxu0 %v5884
        %6008 = vmatpush1.msra.mxu0 %v5883
        %6009 = vmatprep.subr.mxu0 %v5890
        %6010 = vmatpush1.msra.mxu0 %v5889
        %6011 = vmatprep.subr.mxu0 %v5896
        %6012 = vmatpush1.msra.mxu0 %v5895
        %6013 = vmatprep.subr.mxu0 %v5902
        %6014 = vmatpush1.msra.mxu0 %v5901
        %6015 = vmatprep.subr.mxu0 %v5908
        %6016 = vmatpush1.msra.mxu0 %v5907
        %6017 = vmatprep.subr.mxu0 %v5914
        %6018 = vmatpush1.msra.mxu0 %v5913
        %6019 = vmatprep.subr.mxu0 %v5920
        %6020 = vmatpush1.msra.mxu0 %v5919
        %6021 = vmatprep.mubr.f32.mxu0 %v5712
        %6022 = vmatmul.mubr.f32.gmra.mrb[0].mxu0 %v5711
        %v6023 = vpop.f32.mrb[0].mxu0
        %v6024 = vadd.f32 %v5930, %v6023
        %v6025 = vpop.f32.mrb[0].mxu0
        %v6026 = vadd.f32 %v5934, %v6025
        %6027 = vmatprep.mubr.f32.mxu0 %v5714
        %6028 = vmatmul.mubr.f32.gmra.mrb[0].mxu0 %v5713
        %v6029 = vpop.f32.mrb[0].mxu0
        %v6030 = vadd.f32 %v5930, %v6029
        %v6031 = vpop.f32.mrb[0].mxu0
        %v6032 = vadd.f32 %v5934, %v6031
        %6033 = vdwg.mxu0
        %6034 = vmatprep.subr.mxu0 %v5736
        %6035 = vmatpush1.msra.mxu0 %v5735
        %6036 = vmatprep.subr.mxu0 %v5742
        %6037 = vmatpush1.msra.mxu0 %v5741
        %6038 = vmatprep.subr.mxu0 %v5748
        %6039 = vmatpush1.msra.mxu0 %v5747
        %6040 = vmatprep.subr.mxu0 %v5754
        %6041 = vmatpush1.msra.mxu0 %v5753
        %6042 = vmatprep.subr.mxu0 %v5760
        %6043 = vmatpush1.msra.mxu0 %v5759
        %6044 = vmatprep.subr.mxu0 %v5766
        %6045 = vmatpush1.msra.mxu0 %v5765
        %6046 = vmatprep.subr.mxu0 %v5772
        %6047 = vmatpush1.msra.mxu0 %v5771
        %6048 = vmatprep.subr.mxu0 %v5778
        %6049 = vmatpush1.msra.mxu0 %v5777
        %6050 = vmatprep.subr.mxu0 %v5784
        %6051 = vmatpush1.msra.mxu0 %v5783
        %6052 = vmatprep.subr.mxu0 %v5790
        %6053 = vmatpush1.msra.mxu0 %v5789
        %6054 = vmatprep.subr.mxu0 %v5796
        %6055 = vmatpush1.msra.mxu0 %v5795
        %6056 = vmatprep.subr.mxu0 %v5802
        %6057 = vmatpush1.msra.mxu0 %v5801
        %6058 = vmatprep.subr.mxu0 %v5808
        %6059 = vmatpush1.msra.mxu0 %v5807
        %6060 = vmatprep.subr.mxu0 %v5814
        %6061 = vmatpush1.msra.mxu0 %v5813
        %6062 = vmatprep.subr.mxu0 %v5820
        %6063 = vmatpush1.msra.mxu0 %v5819
        %6064 = vmatprep.subr.mxu0 %v5826
        %6065 = vmatpush1.msra.mxu0 %v5825
        %6066 = vmatprep.subr.mxu0 %v5832
        %6067 = vmatpush1.msra.mxu0 %v5831
        %6068 = vmatprep.subr.mxu0 %v5838
        %6069 = vmatpush1.msra.mxu0 %v5837
        %6070 = vmatprep.subr.mxu0 %v5844
        %6071 = vmatpush1.msra.mxu0 %v5843
        %6072 = vmatprep.subr.mxu0 %v5850
        %6073 = vmatpush1.msra.mxu0 %v5849
        %6074 = vmatprep.subr.mxu0 %v5856
        %6075 = vmatpush1.msra.mxu0 %v5855
        %6076 = vmatprep.subr.mxu0 %v5862
        %6077 = vmatpush1.msra.mxu0 %v5861
        %6078 = vmatprep.subr.mxu0 %v5868
        %6079 = vmatpush1.msra.mxu0 %v5867
        %6080 = vmatprep.subr.mxu0 %v5874
        %6081 = vmatpush1.msra.mxu0 %v5873
        %6082 = vmatprep.subr.mxu0 %v5880
        %6083 = vmatpush1.msra.mxu0 %v5879
        %6084 = vmatprep.subr.mxu0 %v5886
        %6085 = vmatpush1.msra.mxu0 %v5885
        %6086 = vmatprep.subr.mxu0 %v5892
        %6087 = vmatpush1.msra.mxu0 %v5891
        %6088 = vmatprep.subr.mxu0 %v5898
        %6089 = vmatpush1.msra.mxu0 %v5897
        %6090 = vmatprep.subr.mxu0 %v5904
        %6091 = vmatpush1.msra.mxu0 %v5903
        %6092 = vmatprep.subr.mxu0 %v5910
        %6093 = vmatpush1.msra.mxu0 %v5909
        %6094 = vmatprep.subr.mxu0 %v5916
        %6095 = vmatpush1.msra.mxu0 %v5915
        %6096 = vmatprep.subr.mxu0 %v5922
        %6097 = vmatpush1.msra.mxu0 %v5921
        %6098 = vmatprep.mubr.f32.mxu0 %v5712
        %6099 = vmatmul.mubr.f32.gmra.mrb[0].mxu0 %v5711
        %v6100 = vpop.f32.mrb[0].mxu0
        %v6101 = vadd.f32 %v5938, %v6100
        %v6102 = vpop.f32.mrb[0].mxu0
        %v6103 = vadd.f32 %v5942, %v6102
        %6104 = vmatprep.mubr.f32.mxu0 %v5714
        %6105 = vmatmul.mubr.f32.gmra.mrb[0].mxu0 %v5713
        %v6106 = vpop.f32.mrb[0].mxu0
        %v6107 = vadd.f32 %v5938, %v6106
        %v6108 = vpop.f32.mrb[0].mxu0
        %v6109 = vadd.f32 %v5942, %v6108
        %6110 = vdwg.mxu0
        %6111 = vmatprep.subr.mxu0 %v5738
        %6112 = vmatpush1.msra.mxu0 %v5737
        %6113 = vmatprep.subr.mxu0 %v5744
        %6114 = vmatpush1.msra.mxu0 %v5743
        %6115 = vmatprep.subr.mxu0 %v5750
        %6116 = vmatpush1.msra.mxu0 %v5749
        %6117 = vmatprep.subr.mxu0 %v5756
        %6118 = vmatpush1.msra.mxu0 %v5755
        %6119 = vmatprep.subr.mxu0 %v5762
        %6120 = vmatpush1.msra.mxu0 %v5761
        %6121 = vmatprep.subr.mxu0 %v5768
        %6122 = vmatpush1.msra.mxu0 %v5767
        %6123 = vmatprep.subr.mxu0 %v5774
        %6124 = vmatpush1.msra.mxu0 %v5773
        %6125 = vmatprep.subr.mxu0 %v5780
        %6126 = vmatpush1.msra.mxu0 %v5779
        %6127 = vmatprep.subr.mxu0 %v5786
        %6128 = vmatpush1.msra.mxu0 %v5785
        %6129 = vmatprep.subr.mxu0 %v5792
        %6130 = vmatpush1.msra.mxu0 %v5791
        %6131 = vmatprep.subr.mxu0 %v5798
        %6132 = vmatpush1.msra.mxu0 %v5797
        %6133 = vmatprep.subr.mxu0 %v5804
        %6134 = vmatpush1.msra.mxu0 %v5803
        %6135 = vmatprep.subr.mxu0 %v5810
        %6136 = vmatpush1.msra.mxu0 %v5809
        %6137 = vmatprep.subr.mxu0 %v5816
        %6138 = vmatpush1.msra.mxu0 %v5815
        %6139 = vmatprep.subr.mxu0 %v5822
        %6140 = vmatpush1.msra.mxu0 %v5821
        %6141 = vmatprep.subr.mxu0 %v5828
        %6142 = vmatpush1.msra.mxu0 %v5827
        %6143 = vmatprep.subr.mxu0 %v5834
        %6144 = vmatpush1.msra.mxu0 %v5833
        %6145 = vmatprep.subr.mxu0 %v5840
        %6146 = vmatpush1.msra.mxu0 %v5839
        %6147 = vmatprep.subr.mxu0 %v5846
        %6148 = vmatpush1.msra.mxu0 %v5845
        %6149 = vmatprep.subr.mxu0 %v5852
        %6150 = vmatpush1.msra.mxu0 %v5851
        %6151 = vmatprep.subr.mxu0 %v5858
        %6152 = vmatpush1.msra.mxu0 %v5857
        %6153 = vmatprep.subr.mxu0 %v5864
        %6154 = vmatpush1.msra.mxu0 %v5863
        %6155 = vmatprep.subr.mxu0 %v5870
        %6156 = vmatpush1.msra.mxu0 %v5869
        %6157 = vmatprep.subr.mxu0 %v5876
        %6158 = vmatpush1.msra.mxu0 %v5875
        %6159 = vmatprep.subr.mxu0 %v5882
        %6160 = vmatpush1.msra.mxu0 %v5881
        %6161 = vmatprep.subr.mxu0 %v5888
        %6162 = vmatpush1.msra.mxu0 %v5887
        %6163 = vmatprep.subr.mxu0 %v5894
        %6164 = vmatpush1.msra.mxu0 %v5893
        %6165 = vmatprep.subr.mxu0 %v5900
        %6166 = vmatpush1.msra.mxu0 %v5899
        %6167 = vmatprep.subr.mxu0 %v5906
        %6168 = vmatpush1.msra.mxu0 %v5905
        %6169 = vmatprep.subr.mxu0 %v5912
        %6170 = vmatpush1.msra.mxu0 %v5911
        %6171 = vmatprep.subr.mxu0 %v5918
        %6172 = vmatpush1.msra.mxu0 %v5917
        %6173 = vmatprep.subr.mxu0 %v5924
        %6174 = vmatpush1.msra.mxu0 %v5923
        %6175 = vmatprep.mubr.f32.mxu0 %v5712
        %6176 = vmatmul.mubr.f32.gmra.mrb[0].mxu0 %v5711
        %v6177 = vpop.f32.mrb[0].mxu0
        %v6178 = vadd.f32 %v5946, %v6177
        %v6179 = vpop.f32.mrb[0].mxu0
        %v6180 = vadd.f32 %v5950, %v6179
        %6181 = vmatprep.mubr.f32.mxu0 %v5714
        %6182 = vmatmul.mubr.f32.gmra.mrb[0].mxu0 %v5713
        %v6183 = vpop.f32.mrb[0].mxu0
        %v6184 = vadd.f32 %v5946, %v6183
        %v6185 = vpop.f32.mrb[0].mxu0
        %v6186 = vadd.f32 %v5950, %v6185
        %6187 = vdwg.mxu0
        %v6188 = vadd.f32 %v5721, %v6024
        %v6189 = vadd.f32 %v5722, %v6026
        %v6190 = vadd.f32 %v5727, %v6030
        %v6191 = vadd.f32 %v5728, %v6032
        %v6192 = vsub.f32 0.0, %v6188
        %v6193 = vsub.f32 0.0, %v6189
        %v6194 = vsub.f32 0.0, %v6190
        %v6195 = vsub.f32 0.0, %v6191
        %v6196 = vmul.f32 %v6192, 1.442695
        %v6197 = vpow.pop %v6196
        %v6198 = vmul.f32 %v6193, 1.442695
        %v6199 = vpow.pop %v6198
        %v6200 = vmul.f32 %v6194, 1.442695
        %v6201 = vpow.pop %v6200
        %v6202 = vmul.f32 %v6195, 1.442695
        %v6203 = vpow.pop %v6202
        %v6204 = vadd.f32 %v6197, 1.0
        %v6205 = vadd.f32 %v6199, 1.0
        %v6206 = vadd.f32 %v6201, 1.0
        %v6207 = vadd.f32 %v6203, 1.0
        %v6208 = vrcp.pop %v6204
        %v6209 = vrcp.pop %v6205
        %v6210 = vrcp.pop %v6206
        %v6211 = vrcp.pop %v6207
        %v6212 = vadd.f32 %v5723, %v6101
        %v6213 = vadd.f32 %v5724, %v6103
        %v6214 = vadd.f32 %v5729, %v6107
        %v6215 = vadd.f32 %v5730, %v6109
        %v6216 = vsub.f32 0.0, %v6212
        %v6217 = vsub.f32 0.0, %v6213
        %v6218 = vsub.f32 0.0, %v6214
        %v6219 = vsub.f32 0.0, %v6215
        %v6220 = vmul.f32 %v6216, 1.442695
        %v6221 = vpow.pop %v6220
        %v6222 = vmul.f32 %v6217, 1.442695
        %v6223 = vpow.pop %v6222
        %v6224 = vmul.f32 %v6218, 1.442695
        %v6225 = vpow.pop %v6224
        %v6226 = vmul.f32 %v6219, 1.442695
        %v6227 = vpow.pop %v6226
        %v6228 = vadd.f32 %v6221, 1.0
        %v6229 = vadd.f32 %v6223, 1.0
        %v6230 = vadd.f32 %v6225, 1.0
        %v6231 = vadd.f32 %v6227, 1.0
        %v6232 = vrcp.pop %v6228
        %v6233 = vrcp.pop %v6229
        %v6234 = vrcp.pop %v6230
        %v6235 = vrcp.pop %v6231
        %v6236 = vmul.f32 %v6208, %v6178
        %v6237 = vmul.f32 %v6209, %v6180
        %v6238 = vmul.f32 %v6210, %v6184
        %v6239 = vmul.f32 %v6211, %v6186
        %v6240 = vadd.f32 %v5725, %v6236
        %v6241 = vadd.f32 %v5726, %v6237
        %v6242 = vadd.f32 %v5731, %v6238
        %v6243 = vadd.f32 %v5732, %v6239
        %v6244 = vtanh.pop %v6240
        %v6245 = vtanh.pop %v6241
        %v6246 = vtanh.pop %v6242
        %v6247 = vtanh.pop %v6243
        %v6248 = vsub.f32 1.0, %v6232
        %v6249 = vsub.f32 1.0, %v6233
        %v6250 = vsub.f32 1.0, %v6234
        %v6251 = vsub.f32 1.0, %v6235
        %v6252 = vmul.f32 %v6248, %v6244
        %v6253 = vmul.f32 %v6249, %v6245
        %v6254 = vmul.f32 %v6250, %v6246
        %v6255 = vmul.f32 %v6251, %v6247
        %v6256 = vmul.f32 %v6232, %v5711
        %v6257 = vmul.f32 %v6233, %v5712
        %v6258 = vmul.f32 %v6234, %v5713
        %v6259 = vmul.f32 %v6235, %v5714
        %v6260 = vadd.f32 %v6252, %v6256
        %v6261 = vadd.f32 %v6253, %v6257
        %v6262 = vadd.f32 %v6254, %v6258
        %v6263 = vadd.f32 %v6255, %v6259
        %s6264 = scalar_lea.vmem [#allocation3], 160
        %6265 = vst [vmem:[%s6264] sm:$0xff] %v6260
        %6266 = vst [vmem:[%s6264 + $0x8] sm:$0xff] %v6261
        %6267 = vst [vmem:[%s6264 + $0x10] sm:$0xff] %v6262
        %6268 = vst [vmem:[%s6264 + $0x18] sm:$0xff] %v6263
        %s6269 = scalar_lea.vmem [#allocation2], 576
        %v6270 = vld [vmem:[%s6269] sm:$0xff]
        %v6271 = vld [vmem:[%s6269 + $0x8] sm:$0xff]
        %v6272 = vld [vmem:[%s6269 + $0x10] sm:$0xff]
        %v6273 = vld [vmem:[%s6269 + $0x18] sm:$0xff]
        %v6274 = vld [vmem:[%s6269 + $0x20] sm:$0xff]
        %v6275 = vld [vmem:[%s6269 + $0x28] sm:$0xff]
        %v6276 = vld [vmem:[%s6269 + $0x30] sm:$0xff]
        %v6277 = vld [vmem:[%s6269 + $0x38] sm:$0xff]
        %v6278 = vld [vmem:[%s6269 + $0x40] sm:$0xff]
        %v6279 = vld [vmem:[%s6269 + $0x48] sm:$0xff]
        %v6280 = vld [vmem:[%s6269 + $0x50] sm:$0xff]
        %v6281 = vld [vmem:[%s6269 + $0x58] sm:$0xff]
        %v6282 = vld [vmem:[#allocation15] sm:$0xff]
        %v6283 = vld [vmem:[#allocation15 + $0x8] sm:$0xff]
        %v6284 = vld [vmem:[#allocation15 + $0x10] sm:$0xff]
        %v6285 = vld [vmem:[#allocation15 + $0x18] sm:$0xff]
        %v6286 = vld [vmem:[#allocation15 + $0x20] sm:$0xff]
        %v6287 = vld [vmem:[#allocation15 + $0x28] sm:$0xff]
        %v6288 = vld [vmem:[#allocation15 + $0x30] sm:$0xff]
        %v6289 = vld [vmem:[#allocation15 + $0x38] sm:$0xff]
        %v6290 = vld [vmem:[#allocation15 + $0x40] sm:$0xff]
        %v6291 = vld [vmem:[#allocation15 + $0x48] sm:$0xff]
        %v6292 = vld [vmem:[#allocation15 + $0x50] sm:$0xff]
        %v6293 = vld [vmem:[#allocation15 + $0x58] sm:$0xff]
        %v6294 = vld [vmem:[#allocation15 + $0x60] sm:$0xff]
        %v6295 = vld [vmem:[#allocation15 + $0x68] sm:$0xff]
        %v6296 = vld [vmem:[#allocation15 + $0x70] sm:$0xff]
        %v6297 = vld [vmem:[#allocation15 + $0x78] sm:$0xff]
        %v6298 = vld [vmem:[#allocation15 + $0x80] sm:$0xff]
        %v6299 = vld [vmem:[#allocation15 + $0x88] sm:$0xff]
        %v6300 = vld [vmem:[#allocation15 + $0x90] sm:$0xff]
        %v6301 = vld [vmem:[#allocation15 + $0x98] sm:$0xff]
        %v6302 = vld [vmem:[#allocation15 + $0xa0] sm:$0xff]
        %v6303 = vld [vmem:[#allocation15 + $0xa8] sm:$0xff]
        %v6304 = vld [vmem:[#allocation15 + $0xb0] sm:$0xff]
        %v6305 = vld [vmem:[#allocation15 + $0xb8] sm:$0xff]
        %v6306 = vld [vmem:[#allocation15 + $0xc0] sm:$0xff]
        %v6307 = vld [vmem:[#allocation15 + $0xc8] sm:$0xff]
        %v6308 = vld [vmem:[#allocation15 + $0xd0] sm:$0xff]
        %v6309 = vld [vmem:[#allocation15 + $0xd8] sm:$0xff]
        %v6310 = vld [vmem:[#allocation15 + $0xe0] sm:$0xff]
        %v6311 = vld [vmem:[#allocation15 + $0xe8] sm:$0xff]
        %v6312 = vld [vmem:[#allocation15 + $0xf0] sm:$0xff]
        %v6313 = vld [vmem:[#allocation15 + $0xf8] sm:$0xff]
        %v6314 = vld [vmem:[#allocation15 + $0x100] sm:$0xff]
        %v6315 = vld [vmem:[#allocation15 + $0x108] sm:$0xff]
        %v6316 = vld [vmem:[#allocation15 + $0x110] sm:$0xff]
        %v6317 = vld [vmem:[#allocation15 + $0x118] sm:$0xff]
        %v6318 = vld [vmem:[#allocation15 + $0x120] sm:$0xff]
        %v6319 = vld [vmem:[#allocation15 + $0x128] sm:$0xff]
        %v6320 = vld [vmem:[#allocation15 + $0x130] sm:$0xff]
        %v6321 = vld [vmem:[#allocation15 + $0x138] sm:$0xff]
        %v6322 = vld [vmem:[#allocation15 + $0x140] sm:$0xff]
        %v6323 = vld [vmem:[#allocation15 + $0x148] sm:$0xff]
        %v6324 = vld [vmem:[#allocation15 + $0x150] sm:$0xff]
        %v6325 = vld [vmem:[#allocation15 + $0x158] sm:$0xff]
        %v6326 = vld [vmem:[#allocation15 + $0x160] sm:$0xff]
        %v6327 = vld [vmem:[#allocation15 + $0x168] sm:$0xff]
        %v6328 = vld [vmem:[#allocation15 + $0x170] sm:$0xff]
        %v6329 = vld [vmem:[#allocation15 + $0x178] sm:$0xff]
        %v6330 = vld [vmem:[#allocation15 + $0x180] sm:$0xff]
        %v6331 = vld [vmem:[#allocation15 + $0x188] sm:$0xff]
        %v6332 = vld [vmem:[#allocation15 + $0x190] sm:$0xff]
        %v6333 = vld [vmem:[#allocation15 + $0x198] sm:$0xff]
        %v6334 = vld [vmem:[#allocation15 + $0x1a0] sm:$0xff]
        %v6335 = vld [vmem:[#allocation15 + $0x1a8] sm:$0xff]
        %v6336 = vld [vmem:[#allocation15 + $0x1b0] sm:$0xff]
        %v6337 = vld [vmem:[#allocation15 + $0x1b8] sm:$0xff]
        %v6338 = vld [vmem:[#allocation15 + $0x1c0] sm:$0xff]
        %v6339 = vld [vmem:[#allocation15 + $0x1c8] sm:$0xff]
        %v6340 = vld [vmem:[#allocation15 + $0x1d0] sm:$0xff]
        %v6341 = vld [vmem:[#allocation15 + $0x1d8] sm:$0xff]
        %v6342 = vld [vmem:[#allocation15 + $0x1e0] sm:$0xff]
        %v6343 = vld [vmem:[#allocation15 + $0x1e8] sm:$0xff]
        %v6344 = vld [vmem:[#allocation15 + $0x1f0] sm:$0xff]
        %v6345 = vld [vmem:[#allocation15 + $0x1f8] sm:$0xff]
        %v6346 = vld [vmem:[#allocation15 + $0x200] sm:$0xff]
        %v6347 = vld [vmem:[#allocation15 + $0x208] sm:$0xff]
        %v6348 = vld [vmem:[#allocation15 + $0x210] sm:$0xff]
        %v6349 = vld [vmem:[#allocation15 + $0x218] sm:$0xff]
        %v6350 = vld [vmem:[#allocation15 + $0x220] sm:$0xff]
        %v6351 = vld [vmem:[#allocation15 + $0x228] sm:$0xff]
        %v6352 = vld [vmem:[#allocation15 + $0x230] sm:$0xff]
        %v6353 = vld [vmem:[#allocation15 + $0x238] sm:$0xff]
        %v6354 = vld [vmem:[#allocation15 + $0x240] sm:$0xff]
        %v6355 = vld [vmem:[#allocation15 + $0x248] sm:$0xff]
        %v6356 = vld [vmem:[#allocation15 + $0x250] sm:$0xff]
        %v6357 = vld [vmem:[#allocation15 + $0x258] sm:$0xff]
        %v6358 = vld [vmem:[#allocation15 + $0x260] sm:$0xff]
        %v6359 = vld [vmem:[#allocation15 + $0x268] sm:$0xff]
        %v6360 = vld [vmem:[#allocation15 + $0x270] sm:$0xff]
        %v6361 = vld [vmem:[#allocation15 + $0x278] sm:$0xff]
        %v6362 = vld [vmem:[#allocation15 + $0x280] sm:$0xff]
        %v6363 = vld [vmem:[#allocation15 + $0x288] sm:$0xff]
        %v6364 = vld [vmem:[#allocation15 + $0x290] sm:$0xff]
        %v6365 = vld [vmem:[#allocation15 + $0x298] sm:$0xff]
        %v6366 = vld [vmem:[#allocation15 + $0x2a0] sm:$0xff]
        %v6367 = vld [vmem:[#allocation15 + $0x2a8] sm:$0xff]
        %v6368 = vld [vmem:[#allocation15 + $0x2b0] sm:$0xff]
        %v6369 = vld [vmem:[#allocation15 + $0x2b8] sm:$0xff]
        %v6370 = vld [vmem:[#allocation15 + $0x2c0] sm:$0xff]
        %v6371 = vld [vmem:[#allocation15 + $0x2c8] sm:$0xff]
        %v6372 = vld [vmem:[#allocation15 + $0x2d0] sm:$0xff]
        %v6373 = vld [vmem:[#allocation15 + $0x2d8] sm:$0xff]
        %v6374 = vld [vmem:[#allocation15 + $0x2e0] sm:$0xff]
        %v6375 = vld [vmem:[#allocation15 + $0x2e8] sm:$0xff]
        %v6376 = vld [vmem:[#allocation15 + $0x2f0] sm:$0xff]
        %v6377 = vld [vmem:[#allocation15 + $0x2f8] sm:$0xff]
        %v6378 = vld [vmem:[#allocation15 + $0x300] sm:$0xff]
        %v6379 = vld [vmem:[#allocation15 + $0x308] sm:$0xff]
        %v6380 = vld [vmem:[#allocation15 + $0x310] sm:$0xff]
        %v6381 = vld [vmem:[#allocation15 + $0x318] sm:$0xff]
        %v6382 = vld [vmem:[#allocation15 + $0x320] sm:$0xff]
        %v6383 = vld [vmem:[#allocation15 + $0x328] sm:$0xff]
        %v6384 = vld [vmem:[#allocation15 + $0x330] sm:$0xff]
        %v6385 = vld [vmem:[#allocation15 + $0x338] sm:$0xff]
        %v6386 = vld [vmem:[#allocation15 + $0x340] sm:$0xff]
        %v6387 = vld [vmem:[#allocation15 + $0x348] sm:$0xff]
        %v6388 = vld [vmem:[#allocation15 + $0x350] sm:$0xff]
        %v6389 = vld [vmem:[#allocation15 + $0x358] sm:$0xff]
        %v6390 = vld [vmem:[#allocation15 + $0x360] sm:$0xff]
        %v6391 = vld [vmem:[#allocation15 + $0x368] sm:$0xff]
        %v6392 = vld [vmem:[#allocation15 + $0x370] sm:$0xff]
        %v6393 = vld [vmem:[#allocation15 + $0x378] sm:$0xff]
        %v6394 = vld [vmem:[#allocation15 + $0x380] sm:$0xff]
        %v6395 = vld [vmem:[#allocation15 + $0x388] sm:$0xff]
        %v6396 = vld [vmem:[#allocation15 + $0x390] sm:$0xff]
        %v6397 = vld [vmem:[#allocation15 + $0x398] sm:$0xff]
        %v6398 = vld [vmem:[#allocation15 + $0x3a0] sm:$0xff]
        %v6399 = vld [vmem:[#allocation15 + $0x3a8] sm:$0xff]
        %v6400 = vld [vmem:[#allocation15 + $0x3b0] sm:$0xff]
        %v6401 = vld [vmem:[#allocation15 + $0x3b8] sm:$0xff]
        %v6402 = vld [vmem:[#allocation15 + $0x3c0] sm:$0xff]
        %v6403 = vld [vmem:[#allocation15 + $0x3c8] sm:$0xff]
        %v6404 = vld [vmem:[#allocation15 + $0x3d0] sm:$0xff]
        %v6405 = vld [vmem:[#allocation15 + $0x3d8] sm:$0xff]
        %v6406 = vld [vmem:[#allocation15 + $0x3e0] sm:$0xff]
        %v6407 = vld [vmem:[#allocation15 + $0x3e8] sm:$0xff]
        %v6408 = vld [vmem:[#allocation15 + $0x3f0] sm:$0xff]
        %v6409 = vld [vmem:[#allocation15 + $0x3f8] sm:$0xff]
        %v6410 = vld [vmem:[#allocation15 + $0x400] sm:$0xff]
        %v6411 = vld [vmem:[#allocation15 + $0x408] sm:$0xff]
        %v6412 = vld [vmem:[#allocation15 + $0x410] sm:$0xff]
        %v6413 = vld [vmem:[#allocation15 + $0x418] sm:$0xff]
        %v6414 = vld [vmem:[#allocation15 + $0x420] sm:$0xff]
        %v6415 = vld [vmem:[#allocation15 + $0x428] sm:$0xff]
        %v6416 = vld [vmem:[#allocation15 + $0x430] sm:$0xff]
        %v6417 = vld [vmem:[#allocation15 + $0x438] sm:$0xff]
        %v6418 = vld [vmem:[#allocation15 + $0x440] sm:$0xff]
        %v6419 = vld [vmem:[#allocation15 + $0x448] sm:$0xff]
        %v6420 = vld [vmem:[#allocation15 + $0x450] sm:$0xff]
        %v6421 = vld [vmem:[#allocation15 + $0x458] sm:$0xff]
        %v6422 = vld [vmem:[#allocation15 + $0x460] sm:$0xff]
        %v6423 = vld [vmem:[#allocation15 + $0x468] sm:$0xff]
        %v6424 = vld [vmem:[#allocation15 + $0x470] sm:$0xff]
        %v6425 = vld [vmem:[#allocation15 + $0x478] sm:$0xff]
        %v6426 = vld [vmem:[#allocation15 + $0x480] sm:$0xff]
        %v6427 = vld [vmem:[#allocation15 + $0x488] sm:$0xff]
        %v6428 = vld [vmem:[#allocation15 + $0x490] sm:$0xff]
        %v6429 = vld [vmem:[#allocation15 + $0x498] sm:$0xff]
        %v6430 = vld [vmem:[#allocation15 + $0x4a0] sm:$0xff]
        %v6431 = vld [vmem:[#allocation15 + $0x4a8] sm:$0xff]
        %v6432 = vld [vmem:[#allocation15 + $0x4b0] sm:$0xff]
        %v6433 = vld [vmem:[#allocation15 + $0x4b8] sm:$0xff]
        %v6434 = vld [vmem:[#allocation15 + $0x4c0] sm:$0xff]
        %v6435 = vld [vmem:[#allocation15 + $0x4c8] sm:$0xff]
        %v6436 = vld [vmem:[#allocation15 + $0x4d0] sm:$0xff]
        %v6437 = vld [vmem:[#allocation15 + $0x4d8] sm:$0xff]
        %v6438 = vld [vmem:[#allocation15 + $0x4e0] sm:$0xff]
        %v6439 = vld [vmem:[#allocation15 + $0x4e8] sm:$0xff]
        %v6440 = vld [vmem:[#allocation15 + $0x4f0] sm:$0xff]
        %v6441 = vld [vmem:[#allocation15 + $0x4f8] sm:$0xff]
        %v6442 = vld [vmem:[#allocation15 + $0x500] sm:$0xff]
        %v6443 = vld [vmem:[#allocation15 + $0x508] sm:$0xff]
        %v6444 = vld [vmem:[#allocation15 + $0x510] sm:$0xff]
        %v6445 = vld [vmem:[#allocation15 + $0x518] sm:$0xff]
        %v6446 = vld [vmem:[#allocation15 + $0x520] sm:$0xff]
        %v6447 = vld [vmem:[#allocation15 + $0x528] sm:$0xff]
        %v6448 = vld [vmem:[#allocation15 + $0x530] sm:$0xff]
        %v6449 = vld [vmem:[#allocation15 + $0x538] sm:$0xff]
        %v6450 = vld [vmem:[#allocation15 + $0x540] sm:$0xff]
        %v6451 = vld [vmem:[#allocation15 + $0x548] sm:$0xff]
        %v6452 = vld [vmem:[#allocation15 + $0x550] sm:$0xff]
        %v6453 = vld [vmem:[#allocation15 + $0x558] sm:$0xff]
        %v6454 = vld [vmem:[#allocation15 + $0x560] sm:$0xff]
        %v6455 = vld [vmem:[#allocation15 + $0x568] sm:$0xff]
        %v6456 = vld [vmem:[#allocation15 + $0x570] sm:$0xff]
        %v6457 = vld [vmem:[#allocation15 + $0x578] sm:$0xff]
        %v6458 = vld [vmem:[#allocation15 + $0x580] sm:$0xff]
        %v6459 = vld [vmem:[#allocation15 + $0x588] sm:$0xff]
        %v6460 = vld [vmem:[#allocation15 + $0x590] sm:$0xff]
        %v6461 = vld [vmem:[#allocation15 + $0x598] sm:$0xff]
        %v6462 = vld [vmem:[#allocation15 + $0x5a0] sm:$0xff]
        %v6463 = vld [vmem:[#allocation15 + $0x5a8] sm:$0xff]
        %v6464 = vld [vmem:[#allocation15 + $0x5b0] sm:$0xff]
        %v6465 = vld [vmem:[#allocation15 + $0x5b8] sm:$0xff]
        %v6466 = vld [vmem:[#allocation15 + $0x5c0] sm:$0xff]
        %v6467 = vld [vmem:[#allocation15 + $0x5c8] sm:$0xff]
        %v6468 = vld [vmem:[#allocation15 + $0x5d0] sm:$0xff]
        %v6469 = vld [vmem:[#allocation15 + $0x5d8] sm:$0xff]
        %v6470 = vld [vmem:[#allocation15 + $0x5e0] sm:$0xff]
        %v6471 = vld [vmem:[#allocation15 + $0x5e8] sm:$0xff]
        %v6472 = vld [vmem:[#allocation15 + $0x5f0] sm:$0xff]
        %v6473 = vld [vmem:[#allocation15 + $0x5f8] sm:$0xff]
        %v6474 = vld [vmem:[%s9] sm:$0x3f]
        %v6476 = vlaneseq
        %v6477 = vshrl.u32 %v6476, 7
        %v6478 = vsub.s32 0, %v6477
        %v6479 = vrot.slane %v6474, %v6478
        %v6480 = vlaneseq
        %v6481 = vshrl.u32 %v6480, 7
        %v6482 = vsub.s32 1, %v6481
        %v6483 = vrot.slane %v6474, %v6482
        %v6484 = vlaneseq
        %v6485 = vshrl.u32 %v6484, 7
        %v6486 = vsub.s32 2, %v6485
        %v6487 = vrot.slane %v6474, %v6486
        %v6488 = vlaneseq
        %v6489 = vshrl.u32 %v6488, 7
        %v6490 = vsub.s32 3, %v6489
        %v6491 = vrot.slane %v6474, %v6490
        %v6492 = vlaneseq
        %v6493 = vshrl.u32 %v6492, 7
        %v6494 = vsub.s32 4, %v6493
        %v6495 = vrot.slane %v6474, %v6494
        %v6496 = vlaneseq
        %v6497 = vshrl.u32 %v6496, 7
        %v6498 = vsub.s32 5, %v6497
        %v6499 = vrot.slane %v6474, %v6498
        %6506 = vmatprep.subr.mxu0 %v6283
        %6507 = vmatpush1.msra.mxu0 %v6282
        %6508 = vmatprep.subr.mxu0 %v6289
        %6509 = vmatpush1.msra.mxu0 %v6288
        %6510 = vmatprep.subr.mxu0 %v6295
        %6511 = vmatpush1.msra.mxu0 %v6294
        %6512 = vmatprep.subr.mxu0 %v6301
        %6513 = vmatpush1.msra.mxu0 %v6300
        %6514 = vmatprep.subr.mxu0 %v6307
        %6515 = vmatpush1.msra.mxu0 %v6306
        %6516 = vmatprep.subr.mxu0 %v6313
        %6517 = vmatpush1.msra.mxu0 %v6312
        %6518 = vmatprep.subr.mxu0 %v6319
        %6519 = vmatpush1.msra.mxu0 %v6318
        %6520 = vmatprep.subr.mxu0 %v6325
        %6521 = vmatpush1.msra.mxu0 %v6324
        %6522 = vmatprep.subr.mxu0 %v6331
        %6523 = vmatpush1.msra.mxu0 %v6330
        %6524 = vmatprep.subr.mxu0 %v6337
        %6525 = vmatpush1.msra.mxu0 %v6336
        %6526 = vmatprep.subr.mxu0 %v6343
        %6527 = vmatpush1.msra.mxu0 %v6342
        %6528 = vmatprep.subr.mxu0 %v6349
        %6529 = vmatpush1.msra.mxu0 %v6348
        %6530 = vmatprep.subr.mxu0 %v6355
        %6531 = vmatpush1.msra.mxu0 %v6354
        %6532 = vmatprep.subr.mxu0 %v6361
        %6533 = vmatpush1.msra.mxu0 %v6360
        %6534 = vmatprep.subr.mxu0 %v6367
        %6535 = vmatpush1.msra.mxu0 %v6366
        %6536 = vmatprep.subr.mxu0 %v6373
        %6537 = vmatpush1.msra.mxu0 %v6372
        %6538 = vmatprep.subr.mxu0 %v6379
        %6539 = vmatpush1.msra.mxu0 %v6378
        %6540 = vmatprep.subr.mxu0 %v6385
        %6541 = vmatpush1.msra.mxu0 %v6384
        %6542 = vmatprep.subr.mxu0 %v6391
        %6543 = vmatpush1.msra.mxu0 %v6390
        %6544 = vmatprep.subr.mxu0 %v6397
        %6545 = vmatpush1.msra.mxu0 %v6396
        %6546 = vmatprep.subr.mxu0 %v6403
        %6547 = vmatpush1.msra.mxu0 %v6402
        %6548 = vmatprep.subr.mxu0 %v6409
        %6549 = vmatpush1.msra.mxu0 %v6408
        %6550 = vmatprep.subr.mxu0 %v6415
        %6551 = vmatpush1.msra.mxu0 %v6414
        %6552 = vmatprep.subr.mxu0 %v6421
        %6553 = vmatpush1.msra.mxu0 %v6420
        %6554 = vmatprep.subr.mxu0 %v6427
        %6555 = vmatpush1.msra.mxu0 %v6426
        %6556 = vmatprep.subr.mxu0 %v6433
        %6557 = vmatpush1.msra.mxu0 %v6432
        %6558 = vmatprep.subr.mxu0 %v6439
        %6559 = vmatpush1.msra.mxu0 %v6438
        %6560 = vmatprep.subr.mxu0 %v6445
        %6561 = vmatpush1.msra.mxu0 %v6444
        %6562 = vmatprep.subr.mxu0 %v6451
        %6563 = vmatpush1.msra.mxu0 %v6450
        %6564 = vmatprep.subr.mxu0 %v6457
        %6565 = vmatpush1.msra.mxu0 %v6456
        %6566 = vmatprep.subr.mxu0 %v6463
        %6567 = vmatpush1.msra.mxu0 %v6462
        %6568 = vmatprep.subr.mxu0 %v6469
        %6569 = vmatpush1.msra.mxu0 %v6468
        %6570 = vmatprep.mubr.f32.mxu0 %v6261
        %6571 = vmatmul.mubr.f32.gmra.mrb[0].mxu0 %v6260
        %v6572 = vpop.f32.mrb[0].mxu0
        %v6573 = vadd.f32 %v6479, %v6572
        %v6574 = vpop.f32.mrb[0].mxu0
        %v6575 = vadd.f32 %v6483, %v6574
        %6576 = vmatprep.mubr.f32.mxu0 %v6263
        %6577 = vmatmul.mubr.f32.gmra.mrb[0].mxu0 %v6262
        %v6578 = vpop.f32.mrb[0].mxu0
        %v6579 = vadd.f32 %v6479, %v6578
        %v6580 = vpop.f32.mrb[0].mxu0
        %v6581 = vadd.f32 %v6483, %v6580
        %6582 = vdwg.mxu0
        %6583 = vmatprep.subr.mxu0 %v6285
        %6584 = vmatpush1.msra.mxu0 %v6284
        %6585 = vmatprep.subr.mxu0 %v6291
        %6586 = vmatpush1.msra.mxu0 %v6290
        %6587 = vmatprep.subr.mxu0 %v6297
        %6588 = vmatpush1.msra.mxu0 %v6296
        %6589 = vmatprep.subr.mxu0 %v6303
        %6590 = vmatpush1.msra.mxu0 %v6302
        %6591 = vmatprep.subr.mxu0 %v6309
        %6592 = vmatpush1.msra.mxu0 %v6308
        %6593 = vmatprep.subr.mxu0 %v6315
        %6594 = vmatpush1.msra.mxu0 %v6314
        %6595 = vmatprep.subr.mxu0 %v6321
        %6596 = vmatpush1.msra.mxu0 %v6320
        %6597 = vmatprep.subr.mxu0 %v6327
        %6598 = vmatpush1.msra.mxu0 %v6326
        %6599 = vmatprep.subr.mxu0 %v6333
        %6600 = vmatpush1.msra.mxu0 %v6332
        %6601 = vmatprep.subr.mxu0 %v6339
        %6602 = vmatpush1.msra.mxu0 %v6338
        %6603 = vmatprep.subr.mxu0 %v6345
        %6604 = vmatpush1.msra.mxu0 %v6344
        %6605 = vmatprep.subr.mxu0 %v6351
        %6606 = vmatpush1.msra.mxu0 %v6350
        %6607 = vmatprep.subr.mxu0 %v6357
        %6608 = vmatpush1.msra.mxu0 %v6356
        %6609 = vmatprep.subr.mxu0 %v6363
        %6610 = vmatpush1.msra.mxu0 %v6362
        %6611 = vmatprep.subr.mxu0 %v6369
        %6612 = vmatpush1.msra.mxu0 %v6368
        %6613 = vmatprep.subr.mxu0 %v6375
        %6614 = vmatpush1.msra.mxu0 %v6374
        %6615 = vmatprep.subr.mxu0 %v6381
        %6616 = vmatpush1.msra.mxu0 %v6380
        %6617 = vmatprep.subr.mxu0 %v6387
        %6618 = vmatpush1.msra.mxu0 %v6386
        %6619 = vmatprep.subr.mxu0 %v6393
        %6620 = vmatpush1.msra.mxu0 %v6392
        %6621 = vmatprep.subr.mxu0 %v6399
        %6622 = vmatpush1.msra.mxu0 %v6398
        %6623 = vmatprep.subr.mxu0 %v6405
        %6624 = vmatpush1.msra.mxu0 %v6404
        %6625 = vmatprep.subr.mxu0 %v6411
        %6626 = vmatpush1.msra.mxu0 %v6410
        %6627 = vmatprep.subr.mxu0 %v6417
        %6628 = vmatpush1.msra.mxu0 %v6416
        %6629 = vmatprep.subr.mxu0 %v6423
        %6630 = vmatpush1.msra.mxu0 %v6422
        %6631 = vmatprep.subr.mxu0 %v6429
        %6632 = vmatpush1.msra.mxu0 %v6428
        %6633 = vmatprep.subr.mxu0 %v6435
        %6634 = vmatpush1.msra.mxu0 %v6434
        %6635 = vmatprep.subr.mxu0 %v6441
        %6636 = vmatpush1.msra.mxu0 %v6440
        %6637 = vmatprep.subr.mxu0 %v6447
        %6638 = vmatpush1.msra.mxu0 %v6446
        %6639 = vmatprep.subr.mxu0 %v6453
        %6640 = vmatpush1.msra.mxu0 %v6452
        %6641 = vmatprep.subr.mxu0 %v6459
        %6642 = vmatpush1.msra.mxu0 %v6458
        %6643 = vmatprep.subr.mxu0 %v6465
        %6644 = vmatpush1.msra.mxu0 %v6464
        %6645 = vmatprep.subr.mxu0 %v6471
        %6646 = vmatpush1.msra.mxu0 %v6470
        %6647 = vmatprep.mubr.f32.mxu0 %v6261
        %6648 = vmatmul.mubr.f32.gmra.mrb[0].mxu0 %v6260
        %v6649 = vpop.f32.mrb[0].mxu0
        %v6650 = vadd.f32 %v6487, %v6649
        %v6651 = vpop.f32.mrb[0].mxu0
        %v6652 = vadd.f32 %v6491, %v6651
        %6653 = vmatprep.mubr.f32.mxu0 %v6263
        %6654 = vmatmul.mubr.f32.gmra.mrb[0].mxu0 %v6262
        %v6655 = vpop.f32.mrb[0].mxu0
        %v6656 = vadd.f32 %v6487, %v6655
        %v6657 = vpop.f32.mrb[0].mxu0
        %v6658 = vadd.f32 %v6491, %v6657
        %6659 = vdwg.mxu0
        %6660 = vmatprep.subr.mxu0 %v6287
        %6661 = vmatpush1.msra.mxu0 %v6286
        %6662 = vmatprep.subr.mxu0 %v6293
        %6663 = vmatpush1.msra.mxu0 %v6292
        %6664 = vmatprep.subr.mxu0 %v6299
        %6665 = vmatpush1.msra.mxu0 %v6298
        %6666 = vmatprep.subr.mxu0 %v6305
        %6667 = vmatpush1.msra.mxu0 %v6304
        %6668 = vmatprep.subr.mxu0 %v6311
        %6669 = vmatpush1.msra.mxu0 %v6310
        %6670 = vmatprep.subr.mxu0 %v6317
        %6671 = vmatpush1.msra.mxu0 %v6316
        %6672 = vmatprep.subr.mxu0 %v6323
        %6673 = vmatpush1.msra.mxu0 %v6322
        %6674 = vmatprep.subr.mxu0 %v6329
        %6675 = vmatpush1.msra.mxu0 %v6328
        %6676 = vmatprep.subr.mxu0 %v6335
        %6677 = vmatpush1.msra.mxu0 %v6334
        %6678 = vmatprep.subr.mxu0 %v6341
        %6679 = vmatpush1.msra.mxu0 %v6340
        %6680 = vmatprep.subr.mxu0 %v6347
        %6681 = vmatpush1.msra.mxu0 %v6346
        %6682 = vmatprep.subr.mxu0 %v6353
        %6683 = vmatpush1.msra.mxu0 %v6352
        %6684 = vmatprep.subr.mxu0 %v6359
        %6685 = vmatpush1.msra.mxu0 %v6358
        %6686 = vmatprep.subr.mxu0 %v6365
        %6687 = vmatpush1.msra.mxu0 %v6364
        %6688 = vmatprep.subr.mxu0 %v6371
        %6689 = vmatpush1.msra.mxu0 %v6370
        %6690 = vmatprep.subr.mxu0 %v6377
        %6691 = vmatpush1.msra.mxu0 %v6376
        %6692 = vmatprep.subr.mxu0 %v6383
        %6693 = vmatpush1.msra.mxu0 %v6382
        %6694 = vmatprep.subr.mxu0 %v6389
        %6695 = vmatpush1.msra.mxu0 %v6388
        %6696 = vmatprep.subr.mxu0 %v6395
        %6697 = vmatpush1.msra.mxu0 %v6394
        %6698 = vmatprep.subr.mxu0 %v6401
        %6699 = vmatpush1.msra.mxu0 %v6400
        %6700 = vmatprep.subr.mxu0 %v6407
        %6701 = vmatpush1.msra.mxu0 %v6406
        %6702 = vmatprep.subr.mxu0 %v6413
        %6703 = vmatpush1.msra.mxu0 %v6412
        %6704 = vmatprep.subr.mxu0 %v6419
        %6705 = vmatpush1.msra.mxu0 %v6418
        %6706 = vmatprep.subr.mxu0 %v6425
        %6707 = vmatpush1.msra.mxu0 %v6424
        %6708 = vmatprep.subr.mxu0 %v6431
        %6709 = vmatpush1.msra.mxu0 %v6430
        %6710 = vmatprep.subr.mxu0 %v6437
        %6711 = vmatpush1.msra.mxu0 %v6436
        %6712 = vmatprep.subr.mxu0 %v6443
        %6713 = vmatpush1.msra.mxu0 %v6442
        %6714 = vmatprep.subr.mxu0 %v6449
        %6715 = vmatpush1.msra.mxu0 %v6448
        %6716 = vmatprep.subr.mxu0 %v6455
        %6717 = vmatpush1.msra.mxu0 %v6454
        %6718 = vmatprep.subr.mxu0 %v6461
        %6719 = vmatpush1.msra.mxu0 %v6460
        %6720 = vmatprep.subr.mxu0 %v6467
        %6721 = vmatpush1.msra.mxu0 %v6466
        %6722 = vmatprep.subr.mxu0 %v6473
        %6723 = vmatpush1.msra.mxu0 %v6472
        %6724 = vmatprep.mubr.f32.mxu0 %v6261
        %6725 = vmatmul.mubr.f32.gmra.mrb[0].mxu0 %v6260
        %v6726 = vpop.f32.mrb[0].mxu0
        %v6727 = vadd.f32 %v6495, %v6726
        %v6728 = vpop.f32.mrb[0].mxu0
        %v6729 = vadd.f32 %v6499, %v6728
        %6730 = vmatprep.mubr.f32.mxu0 %v6263
        %6731 = vmatmul.mubr.f32.gmra.mrb[0].mxu0 %v6262
        %v6732 = vpop.f32.mrb[0].mxu0
        %v6733 = vadd.f32 %v6495, %v6732
        %v6734 = vpop.f32.mrb[0].mxu0
        %v6735 = vadd.f32 %v6499, %v6734
        %6736 = vdwg.mxu0
        %v6737 = vadd.f32 %v6270, %v6573
        %v6738 = vadd.f32 %v6271, %v6575
        %v6739 = vadd.f32 %v6276, %v6579
        %v6740 = vadd.f32 %v6277, %v6581
        %v6741 = vsub.f32 0.0, %v6737
        %v6742 = vsub.f32 0.0, %v6738
        %v6743 = vsub.f32 0.0, %v6739
        %v6744 = vsub.f32 0.0, %v6740
        %v6745 = vmul.f32 %v6741, 1.442695
        %v6746 = vpow.pop %v6745
        %v6747 = vmul.f32 %v6742, 1.442695
        %v6748 = vpow.pop %v6747
        %v6749 = vmul.f32 %v6743, 1.442695
        %v6750 = vpow.pop %v6749
        %v6751 = vmul.f32 %v6744, 1.442695
        %v6752 = vpow.pop %v6751
        %v6753 = vadd.f32 %v6746, 1.0
        %v6754 = vadd.f32 %v6748, 1.0
        %v6755 = vadd.f32 %v6750, 1.0
        %v6756 = vadd.f32 %v6752, 1.0
        %v6757 = vrcp.pop %v6753
        %v6758 = vrcp.pop %v6754
        %v6759 = vrcp.pop %v6755
        %v6760 = vrcp.pop %v6756
        %v6761 = vadd.f32 %v6272, %v6650
        %v6762 = vadd.f32 %v6273, %v6652
        %v6763 = vadd.f32 %v6278, %v6656
        %v6764 = vadd.f32 %v6279, %v6658
        %v6765 = vsub.f32 0.0, %v6761
        %v6766 = vsub.f32 0.0, %v6762
        %v6767 = vsub.f32 0.0, %v6763
        %v6768 = vsub.f32 0.0, %v6764
        %v6769 = vmul.f32 %v6765, 1.442695
        %v6770 = vpow.pop %v6769
        %v6771 = vmul.f32 %v6766, 1.442695
        %v6772 = vpow.pop %v6771
        %v6773 = vmul.f32 %v6767, 1.442695
        %v6774 = vpow.pop %v6773
        %v6775 = vmul.f32 %v6768, 1.442695
        %v6776 = vpow.pop %v6775
        %v6777 = vadd.f32 %v6770, 1.0
        %v6778 = vadd.f32 %v6772, 1.0
        %v6779 = vadd.f32 %v6774, 1.0
        %v6780 = vadd.f32 %v6776, 1.0
        %v6781 = vrcp.pop %v6777
        %v6782 = vrcp.pop %v6778
        %v6783 = vrcp.pop %v6779
        %v6784 = vrcp.pop %v6780
        %v6785 = vmul.f32 %v6757, %v6727
        %v6786 = vmul.f32 %v6758, %v6729
        %v6787 = vmul.f32 %v6759, %v6733
        %v6788 = vmul.f32 %v6760, %v6735
        %v6789 = vadd.f32 %v6274, %v6785
        %v6790 = vadd.f32 %v6275, %v6786
        %v6791 = vadd.f32 %v6280, %v6787
        %v6792 = vadd.f32 %v6281, %v6788
        %v6793 = vtanh.pop %v6789
        %v6794 = vtanh.pop %v6790
        %v6795 = vtanh.pop %v6791
        %v6796 = vtanh.pop %v6792
        %v6797 = vsub.f32 1.0, %v6781
        %v6798 = vsub.f32 1.0, %v6782
        %v6799 = vsub.f32 1.0, %v6783
        %v6800 = vsub.f32 1.0, %v6784
        %v6801 = vmul.f32 %v6797, %v6793
        %v6802 = vmul.f32 %v6798, %v6794
        %v6803 = vmul.f32 %v6799, %v6795
        %v6804 = vmul.f32 %v6800, %v6796
        %v6805 = vmul.f32 %v6781, %v6260
        %v6806 = vmul.f32 %v6782, %v6261
        %v6807 = vmul.f32 %v6783, %v6262
        %v6808 = vmul.f32 %v6784, %v6263
        %v6809 = vadd.f32 %v6801, %v6805
        %v6810 = vadd.f32 %v6802, %v6806
        %v6811 = vadd.f32 %v6803, %v6807
        %v6812 = vadd.f32 %v6804, %v6808
        %s6813 = scalar_lea.vmem [#allocation3], 192
        %6814 = vst [vmem:[%s6813] sm:$0xff] %v6809
        %6815 = vst [vmem:[%s6813 + $0x8] sm:$0xff] %v6810
        %6816 = vst [vmem:[%s6813 + $0x10] sm:$0xff] %v6811
        %6817 = vst [vmem:[%s6813 + $0x18] sm:$0xff] %v6812
        %s6818 = scalar_lea.vmem [#allocation2], 672
        %v6819 = vld [vmem:[%s6818] sm:$0xff]
        %v6820 = vld [vmem:[%s6818 + $0x8] sm:$0xff]
        %v6821 = vld [vmem:[%s6818 + $0x10] sm:$0xff]
        %v6822 = vld [vmem:[%s6818 + $0x18] sm:$0xff]
        %v6823 = vld [vmem:[%s6818 + $0x20] sm:$0xff]
        %v6824 = vld [vmem:[%s6818 + $0x28] sm:$0xff]
        %v6825 = vld [vmem:[%s6818 + $0x30] sm:$0xff]
        %v6826 = vld [vmem:[%s6818 + $0x38] sm:$0xff]
        %v6827 = vld [vmem:[%s6818 + $0x40] sm:$0xff]
        %v6828 = vld [vmem:[%s6818 + $0x48] sm:$0xff]
        %v6829 = vld [vmem:[%s6818 + $0x50] sm:$0xff]
        %v6830 = vld [vmem:[%s6818 + $0x58] sm:$0xff]
        %v6831 = vld [vmem:[#allocation15] sm:$0xff]
        %v6832 = vld [vmem:[#allocation15 + $0x8] sm:$0xff]
        %v6833 = vld [vmem:[#allocation15 + $0x10] sm:$0xff]
        %v6834 = vld [vmem:[#allocation15 + $0x18] sm:$0xff]
        %v6835 = vld [vmem:[#allocation15 + $0x20] sm:$0xff]
        %v6836 = vld [vmem:[#allocation15 + $0x28] sm:$0xff]
        %v6837 = vld [vmem:[#allocation15 + $0x30] sm:$0xff]
        %v6838 = vld [vmem:[#allocation15 + $0x38] sm:$0xff]
        %v6839 = vld [vmem:[#allocation15 + $0x40] sm:$0xff]
        %v6840 = vld [vmem:[#allocation15 + $0x48] sm:$0xff]
        %v6841 = vld [vmem:[#allocation15 + $0x50] sm:$0xff]
        %v6842 = vld [vmem:[#allocation15 + $0x58] sm:$0xff]
        %v6843 = vld [vmem:[#allocation15 + $0x60] sm:$0xff]
        %v6844 = vld [vmem:[#allocation15 + $0x68] sm:$0xff]
        %v6845 = vld [vmem:[#allocation15 + $0x70] sm:$0xff]
        %v6846 = vld [vmem:[#allocation15 + $0x78] sm:$0xff]
        %v6847 = vld [vmem:[#allocation15 + $0x80] sm:$0xff]
        %v6848 = vld [vmem:[#allocation15 + $0x88] sm:$0xff]
        %v6849 = vld [vmem:[#allocation15 + $0x90] sm:$0xff]
        %v6850 = vld [vmem:[#allocation15 + $0x98] sm:$0xff]
        %v6851 = vld [vmem:[#allocation15 + $0xa0] sm:$0xff]
        %v6852 = vld [vmem:[#allocation15 + $0xa8] sm:$0xff]
        %v6853 = vld [vmem:[#allocation15 + $0xb0] sm:$0xff]
        %v6854 = vld [vmem:[#allocation15 + $0xb8] sm:$0xff]
        %v6855 = vld [vmem:[#allocation15 + $0xc0] sm:$0xff]
        %v6856 = vld [vmem:[#allocation15 + $0xc8] sm:$0xff]
        %v6857 = vld [vmem:[#allocation15 + $0xd0] sm:$0xff]
        %v6858 = vld [vmem:[#allocation15 + $0xd8] sm:$0xff]
        %v6859 = vld [vmem:[#allocation15 + $0xe0] sm:$0xff]
        %v6860 = vld [vmem:[#allocation15 + $0xe8] sm:$0xff]
        %v6861 = vld [vmem:[#allocation15 + $0xf0] sm:$0xff]
        %v6862 = vld [vmem:[#allocation15 + $0xf8] sm:$0xff]
        %v6863 = vld [vmem:[#allocation15 + $0x100] sm:$0xff]
        %v6864 = vld [vmem:[#allocation15 + $0x108] sm:$0xff]
        %v6865 = vld [vmem:[#allocation15 + $0x110] sm:$0xff]
        %v6866 = vld [vmem:[#allocation15 + $0x118] sm:$0xff]
        %v6867 = vld [vmem:[#allocation15 + $0x120] sm:$0xff]
        %v6868 = vld [vmem:[#allocation15 + $0x128] sm:$0xff]
        %v6869 = vld [vmem:[#allocation15 + $0x130] sm:$0xff]
        %v6870 = vld [vmem:[#allocation15 + $0x138] sm:$0xff]
        %v6871 = vld [vmem:[#allocation15 + $0x140] sm:$0xff]
        %v6872 = vld [vmem:[#allocation15 + $0x148] sm:$0xff]
        %v6873 = vld [vmem:[#allocation15 + $0x150] sm:$0xff]
        %v6874 = vld [vmem:[#allocation15 + $0x158] sm:$0xff]
        %v6875 = vld [vmem:[#allocation15 + $0x160] sm:$0xff]
        %v6876 = vld [vmem:[#allocation15 + $0x168] sm:$0xff]
        %v6877 = vld [vmem:[#allocation15 + $0x170] sm:$0xff]
        %v6878 = vld [vmem:[#allocation15 + $0x178] sm:$0xff]
        %v6879 = vld [vmem:[#allocation15 + $0x180] sm:$0xff]
        %v6880 = vld [vmem:[#allocation15 + $0x188] sm:$0xff]
        %v6881 = vld [vmem:[#allocation15 + $0x190] sm:$0xff]
        %v6882 = vld [vmem:[#allocation15 + $0x198] sm:$0xff]
        %v6883 = vld [vmem:[#allocation15 + $0x1a0] sm:$0xff]
        %v6884 = vld [vmem:[#allocation15 + $0x1a8] sm:$0xff]
        %v6885 = vld [vmem:[#allocation15 + $0x1b0] sm:$0xff]
        %v6886 = vld [vmem:[#allocation15 + $0x1b8] sm:$0xff]
        %v6887 = vld [vmem:[#allocation15 + $0x1c0] sm:$0xff]
        %v6888 = vld [vmem:[#allocation15 + $0x1c8] sm:$0xff]
        %v6889 = vld [vmem:[#allocation15 + $0x1d0] sm:$0xff]
        %v6890 = vld [vmem:[#allocation15 + $0x1d8] sm:$0xff]
        %v6891 = vld [vmem:[#allocation15 + $0x1e0] sm:$0xff]
        %v6892 = vld [vmem:[#allocation15 + $0x1e8] sm:$0xff]
        %v6893 = vld [vmem:[#allocation15 + $0x1f0] sm:$0xff]
        %v6894 = vld [vmem:[#allocation15 + $0x1f8] sm:$0xff]
        %v6895 = vld [vmem:[#allocation15 + $0x200] sm:$0xff]
        %v6896 = vld [vmem:[#allocation15 + $0x208] sm:$0xff]
        %v6897 = vld [vmem:[#allocation15 + $0x210] sm:$0xff]
        %v6898 = vld [vmem:[#allocation15 + $0x218] sm:$0xff]
        %v6899 = vld [vmem:[#allocation15 + $0x220] sm:$0xff]
        %v6900 = vld [vmem:[#allocation15 + $0x228] sm:$0xff]
        %v6901 = vld [vmem:[#allocation15 + $0x230] sm:$0xff]
        %v6902 = vld [vmem:[#allocation15 + $0x238] sm:$0xff]
        %v6903 = vld [vmem:[#allocation15 + $0x240] sm:$0xff]
        %v6904 = vld [vmem:[#allocation15 + $0x248] sm:$0xff]
        %v6905 = vld [vmem:[#allocation15 + $0x250] sm:$0xff]
        %v6906 = vld [vmem:[#allocation15 + $0x258] sm:$0xff]
        %v6907 = vld [vmem:[#allocation15 + $0x260] sm:$0xff]
        %v6908 = vld [vmem:[#allocation15 + $0x268] sm:$0xff]
        %v6909 = vld [vmem:[#allocation15 + $0x270] sm:$0xff]
        %v6910 = vld [vmem:[#allocation15 + $0x278] sm:$0xff]
        %v6911 = vld [vmem:[#allocation15 + $0x280] sm:$0xff]
        %v6912 = vld [vmem:[#allocation15 + $0x288] sm:$0xff]
        %v6913 = vld [vmem:[#allocation15 + $0x290] sm:$0xff]
        %v6914 = vld [vmem:[#allocation15 + $0x298] sm:$0xff]
        %v6915 = vld [vmem:[#allocation15 + $0x2a0] sm:$0xff]
        %v6916 = vld [vmem:[#allocation15 + $0x2a8] sm:$0xff]
        %v6917 = vld [vmem:[#allocation15 + $0x2b0] sm:$0xff]
        %v6918 = vld [vmem:[#allocation15 + $0x2b8] sm:$0xff]
        %v6919 = vld [vmem:[#allocation15 + $0x2c0] sm:$0xff]
        %v6920 = vld [vmem:[#allocation15 + $0x2c8] sm:$0xff]
        %v6921 = vld [vmem:[#allocation15 + $0x2d0] sm:$0xff]
        %v6922 = vld [vmem:[#allocation15 + $0x2d8] sm:$0xff]
        %v6923 = vld [vmem:[#allocation15 + $0x2e0] sm:$0xff]
        %v6924 = vld [vmem:[#allocation15 + $0x2e8] sm:$0xff]
        %v6925 = vld [vmem:[#allocation15 + $0x2f0] sm:$0xff]
        %v6926 = vld [vmem:[#allocation15 + $0x2f8] sm:$0xff]
        %v6927 = vld [vmem:[#allocation15 + $0x300] sm:$0xff]
        %v6928 = vld [vmem:[#allocation15 + $0x308] sm:$0xff]
        %v6929 = vld [vmem:[#allocation15 + $0x310] sm:$0xff]
        %v6930 = vld [vmem:[#allocation15 + $0x318] sm:$0xff]
        %v6931 = vld [vmem:[#allocation15 + $0x320] sm:$0xff]
        %v6932 = vld [vmem:[#allocation15 + $0x328] sm:$0xff]
        %v6933 = vld [vmem:[#allocation15 + $0x330] sm:$0xff]
        %v6934 = vld [vmem:[#allocation15 + $0x338] sm:$0xff]
        %v6935 = vld [vmem:[#allocation15 + $0x340] sm:$0xff]
        %v6936 = vld [vmem:[#allocation15 + $0x348] sm:$0xff]
        %v6937 = vld [vmem:[#allocation15 + $0x350] sm:$0xff]
        %v6938 = vld [vmem:[#allocation15 + $0x358] sm:$0xff]
        %v6939 = vld [vmem:[#allocation15 + $0x360] sm:$0xff]
        %v6940 = vld [vmem:[#allocation15 + $0x368] sm:$0xff]
        %v6941 = vld [vmem:[#allocation15 + $0x370] sm:$0xff]
        %v6942 = vld [vmem:[#allocation15 + $0x378] sm:$0xff]
        %v6943 = vld [vmem:[#allocation15 + $0x380] sm:$0xff]
        %v6944 = vld [vmem:[#allocation15 + $0x388] sm:$0xff]
        %v6945 = vld [vmem:[#allocation15 + $0x390] sm:$0xff]
        %v6946 = vld [vmem:[#allocation15 + $0x398] sm:$0xff]
        %v6947 = vld [vmem:[#allocation15 + $0x3a0] sm:$0xff]
        %v6948 = vld [vmem:[#allocation15 + $0x3a8] sm:$0xff]
        %v6949 = vld [vmem:[#allocation15 + $0x3b0] sm:$0xff]
        %v6950 = vld [vmem:[#allocation15 + $0x3b8] sm:$0xff]
        %v6951 = vld [vmem:[#allocation15 + $0x3c0] sm:$0xff]
        %v6952 = vld [vmem:[#allocation15 + $0x3c8] sm:$0xff]
        %v6953 = vld [vmem:[#allocation15 + $0x3d0] sm:$0xff]
        %v6954 = vld [vmem:[#allocation15 + $0x3d8] sm:$0xff]
        %v6955 = vld [vmem:[#allocation15 + $0x3e0] sm:$0xff]
        %v6956 = vld [vmem:[#allocation15 + $0x3e8] sm:$0xff]
        %v6957 = vld [vmem:[#allocation15 + $0x3f0] sm:$0xff]
        %v6958 = vld [vmem:[#allocation15 + $0x3f8] sm:$0xff]
        %v6959 = vld [vmem:[#allocation15 + $0x400] sm:$0xff]
        %v6960 = vld [vmem:[#allocation15 + $0x408] sm:$0xff]
        %v6961 = vld [vmem:[#allocation15 + $0x410] sm:$0xff]
        %v6962 = vld [vmem:[#allocation15 + $0x418] sm:$0xff]
        %v6963 = vld [vmem:[#allocation15 + $0x420] sm:$0xff]
        %v6964 = vld [vmem:[#allocation15 + $0x428] sm:$0xff]
        %v6965 = vld [vmem:[#allocation15 + $0x430] sm:$0xff]
        %v6966 = vld [vmem:[#allocation15 + $0x438] sm:$0xff]
        %v6967 = vld [vmem:[#allocation15 + $0x440] sm:$0xff]
        %v6968 = vld [vmem:[#allocation15 + $0x448] sm:$0xff]
        %v6969 = vld [vmem:[#allocation15 + $0x450] sm:$0xff]
        %v6970 = vld [vmem:[#allocation15 + $0x458] sm:$0xff]
        %v6971 = vld [vmem:[#allocation15 + $0x460] sm:$0xff]
        %v6972 = vld [vmem:[#allocation15 + $0x468] sm:$0xff]
        %v6973 = vld [vmem:[#allocation15 + $0x470] sm:$0xff]
        %v6974 = vld [vmem:[#allocation15 + $0x478] sm:$0xff]
        %v6975 = vld [vmem:[#allocation15 + $0x480] sm:$0xff]
        %v6976 = vld [vmem:[#allocation15 + $0x488] sm:$0xff]
        %v6977 = vld [vmem:[#allocation15 + $0x490] sm:$0xff]
        %v6978 = vld [vmem:[#allocation15 + $0x498] sm:$0xff]
        %v6979 = vld [vmem:[#allocation15 + $0x4a0] sm:$0xff]
        %v6980 = vld [vmem:[#allocation15 + $0x4a8] sm:$0xff]
        %v6981 = vld [vmem:[#allocation15 + $0x4b0] sm:$0xff]
        %v6982 = vld [vmem:[#allocation15 + $0x4b8] sm:$0xff]
        %v6983 = vld [vmem:[#allocation15 + $0x4c0] sm:$0xff]
        %v6984 = vld [vmem:[#allocation15 + $0x4c8] sm:$0xff]
        %v6985 = vld [vmem:[#allocation15 + $0x4d0] sm:$0xff]
        %v6986 = vld [vmem:[#allocation15 + $0x4d8] sm:$0xff]
        %v6987 = vld [vmem:[#allocation15 + $0x4e0] sm:$0xff]
        %v6988 = vld [vmem:[#allocation15 + $0x4e8] sm:$0xff]
        %v6989 = vld [vmem:[#allocation15 + $0x4f0] sm:$0xff]
        %v6990 = vld [vmem:[#allocation15 + $0x4f8] sm:$0xff]
        %v6991 = vld [vmem:[#allocation15 + $0x500] sm:$0xff]
        %v6992 = vld [vmem:[#allocation15 + $0x508] sm:$0xff]
        %v6993 = vld [vmem:[#allocation15 + $0x510] sm:$0xff]
        %v6994 = vld [vmem:[#allocation15 + $0x518] sm:$0xff]
        %v6995 = vld [vmem:[#allocation15 + $0x520] sm:$0xff]
        %v6996 = vld [vmem:[#allocation15 + $0x528] sm:$0xff]
        %v6997 = vld [vmem:[#allocation15 + $0x530] sm:$0xff]
        %v6998 = vld [vmem:[#allocation15 + $0x538] sm:$0xff]
        %v6999 = vld [vmem:[#allocation15 + $0x540] sm:$0xff]
        %v7000 = vld [vmem:[#allocation15 + $0x548] sm:$0xff]
        %v7001 = vld [vmem:[#allocation15 + $0x550] sm:$0xff]
        %v7002 = vld [vmem:[#allocation15 + $0x558] sm:$0xff]
        %v7003 = vld [vmem:[#allocation15 + $0x560] sm:$0xff]
        %v7004 = vld [vmem:[#allocation15 + $0x568] sm:$0xff]
        %v7005 = vld [vmem:[#allocation15 + $0x570] sm:$0xff]
        %v7006 = vld [vmem:[#allocation15 + $0x578] sm:$0xff]
        %v7007 = vld [vmem:[#allocation15 + $0x580] sm:$0xff]
        %v7008 = vld [vmem:[#allocation15 + $0x588] sm:$0xff]
        %v7009 = vld [vmem:[#allocation15 + $0x590] sm:$0xff]
        %v7010 = vld [vmem:[#allocation15 + $0x598] sm:$0xff]
        %v7011 = vld [vmem:[#allocation15 + $0x5a0] sm:$0xff]
        %v7012 = vld [vmem:[#allocation15 + $0x5a8] sm:$0xff]
        %v7013 = vld [vmem:[#allocation15 + $0x5b0] sm:$0xff]
        %v7014 = vld [vmem:[#allocation15 + $0x5b8] sm:$0xff]
        %v7015 = vld [vmem:[#allocation15 + $0x5c0] sm:$0xff]
        %v7016 = vld [vmem:[#allocation15 + $0x5c8] sm:$0xff]
        %v7017 = vld [vmem:[#allocation15 + $0x5d0] sm:$0xff]
        %v7018 = vld [vmem:[#allocation15 + $0x5d8] sm:$0xff]
        %v7019 = vld [vmem:[#allocation15 + $0x5e0] sm:$0xff]
        %v7020 = vld [vmem:[#allocation15 + $0x5e8] sm:$0xff]
        %v7021 = vld [vmem:[#allocation15 + $0x5f0] sm:$0xff]
        %v7022 = vld [vmem:[#allocation15 + $0x5f8] sm:$0xff]
        %v7023 = vld [vmem:[%s9] sm:$0x3f]
        %v7025 = vlaneseq
        %v7026 = vshrl.u32 %v7025, 7
        %v7027 = vsub.s32 0, %v7026
        %v7028 = vrot.slane %v7023, %v7027
        %v7029 = vlaneseq
        %v7030 = vshrl.u32 %v7029, 7
        %v7031 = vsub.s32 1, %v7030
        %v7032 = vrot.slane %v7023, %v7031
        %v7033 = vlaneseq
        %v7034 = vshrl.u32 %v7033, 7
        %v7035 = vsub.s32 2, %v7034
        %v7036 = vrot.slane %v7023, %v7035
        %v7037 = vlaneseq
        %v7038 = vshrl.u32 %v7037, 7
        %v7039 = vsub.s32 3, %v7038
        %v7040 = vrot.slane %v7023, %v7039
        %v7041 = vlaneseq
        %v7042 = vshrl.u32 %v7041, 7
        %v7043 = vsub.s32 4, %v7042
        %v7044 = vrot.slane %v7023, %v7043
        %v7045 = vlaneseq
        %v7046 = vshrl.u32 %v7045, 7
        %v7047 = vsub.s32 5, %v7046
        %v7048 = vrot.slane %v7023, %v7047
        %7055 = vmatprep.subr.mxu0 %v6832
        %7056 = vmatpush1.msra.mxu0 %v6831
        %7057 = vmatprep.subr.mxu0 %v6838
        %7058 = vmatpush1.msra.mxu0 %v6837
        %7059 = vmatprep.subr.mxu0 %v6844
        %7060 = vmatpush1.msra.mxu0 %v6843
        %7061 = vmatprep.subr.mxu0 %v6850
        %7062 = vmatpush1.msra.mxu0 %v6849
        %7063 = vmatprep.subr.mxu0 %v6856
        %7064 = vmatpush1.msra.mxu0 %v6855
        %7065 = vmatprep.subr.mxu0 %v6862
        %7066 = vmatpush1.msra.mxu0 %v6861
        %7067 = vmatprep.subr.mxu0 %v6868
        %7068 = vmatpush1.msra.mxu0 %v6867
        %7069 = vmatprep.subr.mxu0 %v6874
        %7070 = vmatpush1.msra.mxu0 %v6873
        %7071 = vmatprep.subr.mxu0 %v6880
        %7072 = vmatpush1.msra.mxu0 %v6879
        %7073 = vmatprep.subr.mxu0 %v6886
        %7074 = vmatpush1.msra.mxu0 %v6885
        %7075 = vmatprep.subr.mxu0 %v6892
        %7076 = vmatpush1.msra.mxu0 %v6891
        %7077 = vmatprep.subr.mxu0 %v6898
        %7078 = vmatpush1.msra.mxu0 %v6897
        %7079 = vmatprep.subr.mxu0 %v6904
        %7080 = vmatpush1.msra.mxu0 %v6903
        %7081 = vmatprep.subr.mxu0 %v6910
        %7082 = vmatpush1.msra.mxu0 %v6909
        %7083 = vmatprep.subr.mxu0 %v6916
        %7084 = vmatpush1.msra.mxu0 %v6915
        %7085 = vmatprep.subr.mxu0 %v6922
        %7086 = vmatpush1.msra.mxu0 %v6921
        %7087 = vmatprep.subr.mxu0 %v6928
        %7088 = vmatpush1.msra.mxu0 %v6927
        %7089 = vmatprep.subr.mxu0 %v6934
        %7090 = vmatpush1.msra.mxu0 %v6933
        %7091 = vmatprep.subr.mxu0 %v6940
        %7092 = vmatpush1.msra.mxu0 %v6939
        %7093 = vmatprep.subr.mxu0 %v6946
        %7094 = vmatpush1.msra.mxu0 %v6945
        %7095 = vmatprep.subr.mxu0 %v6952
        %7096 = vmatpush1.msra.mxu0 %v6951
        %7097 = vmatprep.subr.mxu0 %v6958
        %7098 = vmatpush1.msra.mxu0 %v6957
        %7099 = vmatprep.subr.mxu0 %v6964
        %7100 = vmatpush1.msra.mxu0 %v6963
        %7101 = vmatprep.subr.mxu0 %v6970
        %7102 = vmatpush1.msra.mxu0 %v6969
        %7103 = vmatprep.subr.mxu0 %v6976
        %7104 = vmatpush1.msra.mxu0 %v6975
        %7105 = vmatprep.subr.mxu0 %v6982
        %7106 = vmatpush1.msra.mxu0 %v6981
        %7107 = vmatprep.subr.mxu0 %v6988
        %7108 = vmatpush1.msra.mxu0 %v6987
        %7109 = vmatprep.subr.mxu0 %v6994
        %7110 = vmatpush1.msra.mxu0 %v6993
        %7111 = vmatprep.subr.mxu0 %v7000
        %7112 = vmatpush1.msra.mxu0 %v6999
        %7113 = vmatprep.subr.mxu0 %v7006
        %7114 = vmatpush1.msra.mxu0 %v7005
        %7115 = vmatprep.subr.mxu0 %v7012
        %7116 = vmatpush1.msra.mxu0 %v7011
        %7117 = vmatprep.subr.mxu0 %v7018
        %7118 = vmatpush1.msra.mxu0 %v7017
        %7119 = vmatprep.mubr.f32.mxu0 %v6810
        %7120 = vmatmul.mubr.f32.gmra.mrb[0].mxu0 %v6809
        %v7121 = vpop.f32.mrb[0].mxu0
        %v7122 = vadd.f32 %v7028, %v7121
        %v7123 = vpop.f32.mrb[0].mxu0
        %v7124 = vadd.f32 %v7032, %v7123
        %7125 = vmatprep.mubr.f32.mxu0 %v6812
        %7126 = vmatmul.mubr.f32.gmra.mrb[0].mxu0 %v6811
        %v7127 = vpop.f32.mrb[0].mxu0
        %v7128 = vadd.f32 %v7028, %v7127
        %v7129 = vpop.f32.mrb[0].mxu0
        %v7130 = vadd.f32 %v7032, %v7129
        %7131 = vdwg.mxu0
        %7132 = vmatprep.subr.mxu0 %v6834
        %7133 = vmatpush1.msra.mxu0 %v6833
        %7134 = vmatprep.subr.mxu0 %v6840
        %7135 = vmatpush1.msra.mxu0 %v6839
        %7136 = vmatprep.subr.mxu0 %v6846
        %7137 = vmatpush1.msra.mxu0 %v6845
        %7138 = vmatprep.subr.mxu0 %v6852
        %7139 = vmatpush1.msra.mxu0 %v6851
        %7140 = vmatprep.subr.mxu0 %v6858
        %7141 = vmatpush1.msra.mxu0 %v6857
        %7142 = vmatprep.subr.mxu0 %v6864
        %7143 = vmatpush1.msra.mxu0 %v6863
        %7144 = vmatprep.subr.mxu0 %v6870
        %7145 = vmatpush1.msra.mxu0 %v6869
        %7146 = vmatprep.subr.mxu0 %v6876
        %7147 = vmatpush1.msra.mxu0 %v6875
        %7148 = vmatprep.subr.mxu0 %v6882
        %7149 = vmatpush1.msra.mxu0 %v6881
        %7150 = vmatprep.subr.mxu0 %v6888
        %7151 = vmatpush1.msra.mxu0 %v6887
        %7152 = vmatprep.subr.mxu0 %v6894
        %7153 = vmatpush1.msra.mxu0 %v6893
        %7154 = vmatprep.subr.mxu0 %v6900
        %7155 = vmatpush1.msra.mxu0 %v6899
        %7156 = vmatprep.subr.mxu0 %v6906
        %7157 = vmatpush1.msra.mxu0 %v6905
        %7158 = vmatprep.subr.mxu0 %v6912
        %7159 = vmatpush1.msra.mxu0 %v6911
        %7160 = vmatprep.subr.mxu0 %v6918
        %7161 = vmatpush1.msra.mxu0 %v6917
        %7162 = vmatprep.subr.mxu0 %v6924
        %7163 = vmatpush1.msra.mxu0 %v6923
        %7164 = vmatprep.subr.mxu0 %v6930
        %7165 = vmatpush1.msra.mxu0 %v6929
        %7166 = vmatprep.subr.mxu0 %v6936
        %7167 = vmatpush1.msra.mxu0 %v6935
        %7168 = vmatprep.subr.mxu0 %v6942
        %7169 = vmatpush1.msra.mxu0 %v6941
        %7170 = vmatprep.subr.mxu0 %v6948
        %7171 = vmatpush1.msra.mxu0 %v6947
        %7172 = vmatprep.subr.mxu0 %v6954
        %7173 = vmatpush1.msra.mxu0 %v6953
        %7174 = vmatprep.subr.mxu0 %v6960
        %7175 = vmatpush1.msra.mxu0 %v6959
        %7176 = vmatprep.subr.mxu0 %v6966
        %7177 = vmatpush1.msra.mxu0 %v6965
        %7178 = vmatprep.subr.mxu0 %v6972
        %7179 = vmatpush1.msra.mxu0 %v6971
        %7180 = vmatprep.subr.mxu0 %v6978
        %7181 = vmatpush1.msra.mxu0 %v6977
        %7182 = vmatprep.subr.mxu0 %v6984
        %7183 = vmatpush1.msra.mxu0 %v6983
        %7184 = vmatprep.subr.mxu0 %v6990
        %7185 = vmatpush1.msra.mxu0 %v6989
        %7186 = vmatprep.subr.mxu0 %v6996
        %7187 = vmatpush1.msra.mxu0 %v6995
        %7188 = vmatprep.subr.mxu0 %v7002
        %7189 = vmatpush1.msra.mxu0 %v7001
        %7190 = vmatprep.subr.mxu0 %v7008
        %7191 = vmatpush1.msra.mxu0 %v7007
        %7192 = vmatprep.subr.mxu0 %v7014
        %7193 = vmatpush1.msra.mxu0 %v7013
        %7194 = vmatprep.subr.mxu0 %v7020
        %7195 = vmatpush1.msra.mxu0 %v7019
        %7196 = vmatprep.mubr.f32.mxu0 %v6810
        %7197 = vmatmul.mubr.f32.gmra.mrb[0].mxu0 %v6809
        %v7198 = vpop.f32.mrb[0].mxu0
        %v7199 = vadd.f32 %v7036, %v7198
        %v7200 = vpop.f32.mrb[0].mxu0
        %v7201 = vadd.f32 %v7040, %v7200
        %7202 = vmatprep.mubr.f32.mxu0 %v6812
        %7203 = vmatmul.mubr.f32.gmra.mrb[0].mxu0 %v6811
        %v7204 = vpop.f32.mrb[0].mxu0
        %v7205 = vadd.f32 %v7036, %v7204
        %v7206 = vpop.f32.mrb[0].mxu0
        %v7207 = vadd.f32 %v7040, %v7206
        %7208 = vdwg.mxu0
        %7209 = vmatprep.subr.mxu0 %v6836
        %7210 = vmatpush1.msra.mxu0 %v6835
        %7211 = vmatprep.subr.mxu0 %v6842
        %7212 = vmatpush1.msra.mxu0 %v6841
        %7213 = vmatprep.subr.mxu0 %v6848
        %7214 = vmatpush1.msra.mxu0 %v6847
        %7215 = vmatprep.subr.mxu0 %v6854
        %7216 = vmatpush1.msra.mxu0 %v6853
        %7217 = vmatprep.subr.mxu0 %v6860
        %7218 = vmatpush1.msra.mxu0 %v6859
        %7219 = vmatprep.subr.mxu0 %v6866
        %7220 = vmatpush1.msra.mxu0 %v6865
        %7221 = vmatprep.subr.mxu0 %v6872
        %7222 = vmatpush1.msra.mxu0 %v6871
        %7223 = vmatprep.subr.mxu0 %v6878
        %7224 = vmatpush1.msra.mxu0 %v6877
        %7225 = vmatprep.subr.mxu0 %v6884
        %7226 = vmatpush1.msra.mxu0 %v6883
        %7227 = vmatprep.subr.mxu0 %v6890
        %7228 = vmatpush1.msra.mxu0 %v6889
        %7229 = vmatprep.subr.mxu0 %v6896
        %7230 = vmatpush1.msra.mxu0 %v6895
        %7231 = vmatprep.subr.mxu0 %v6902
        %7232 = vmatpush1.msra.mxu0 %v6901
        %7233 = vmatprep.subr.mxu0 %v6908
        %7234 = vmatpush1.msra.mxu0 %v6907
        %7235 = vmatprep.subr.mxu0 %v6914
        %7236 = vmatpush1.msra.mxu0 %v6913
        %7237 = vmatprep.subr.mxu0 %v6920
        %7238 = vmatpush1.msra.mxu0 %v6919
        %7239 = vmatprep.subr.mxu0 %v6926
        %7240 = vmatpush1.msra.mxu0 %v6925
        %7241 = vmatprep.subr.mxu0 %v6932
        %7242 = vmatpush1.msra.mxu0 %v6931
        %7243 = vmatprep.subr.mxu0 %v6938
        %7244 = vmatpush1.msra.mxu0 %v6937
        %7245 = vmatprep.subr.mxu0 %v6944
        %7246 = vmatpush1.msra.mxu0 %v6943
        %7247 = vmatprep.subr.mxu0 %v6950
        %7248 = vmatpush1.msra.mxu0 %v6949
        %7249 = vmatprep.subr.mxu0 %v6956
        %7250 = vmatpush1.msra.mxu0 %v6955
        %7251 = vmatprep.subr.mxu0 %v6962
        %7252 = vmatpush1.msra.mxu0 %v6961
        %7253 = vmatprep.subr.mxu0 %v6968
        %7254 = vmatpush1.msra.mxu0 %v6967
        %7255 = vmatprep.subr.mxu0 %v6974
        %7256 = vmatpush1.msra.mxu0 %v6973
        %7257 = vmatprep.subr.mxu0 %v6980
        %7258 = vmatpush1.msra.mxu0 %v6979
        %7259 = vmatprep.subr.mxu0 %v6986
        %7260 = vmatpush1.msra.mxu0 %v6985
        %7261 = vmatprep.subr.mxu0 %v6992
        %7262 = vmatpush1.msra.mxu0 %v6991
        %7263 = vmatprep.subr.mxu0 %v6998
        %7264 = vmatpush1.msra.mxu0 %v6997
        %7265 = vmatprep.subr.mxu0 %v7004
        %7266 = vmatpush1.msra.mxu0 %v7003
        %7267 = vmatprep.subr.mxu0 %v7010
        %7268 = vmatpush1.msra.mxu0 %v7009
        %7269 = vmatprep.subr.mxu0 %v7016
        %7270 = vmatpush1.msra.mxu0 %v7015
        %7271 = vmatprep.subr.mxu0 %v7022
        %7272 = vmatpush1.msra.mxu0 %v7021
        %7273 = vmatprep.mubr.f32.mxu0 %v6810
        %7274 = vmatmul.mubr.f32.gmra.mrb[0].mxu0 %v6809
        %v7275 = vpop.f32.mrb[0].mxu0
        %v7276 = vadd.f32 %v7044, %v7275
        %v7277 = vpop.f32.mrb[0].mxu0
        %v7278 = vadd.f32 %v7048, %v7277
        %7279 = vmatprep.mubr.f32.mxu0 %v6812
        %7280 = vmatmul.mubr.f32.gmra.mrb[0].mxu0 %v6811
        %v7281 = vpop.f32.mrb[0].mxu0
        %v7282 = vadd.f32 %v7044, %v7281
        %v7283 = vpop.f32.mrb[0].mxu0
        %v7284 = vadd.f32 %v7048, %v7283
        %7285 = vdwg.mxu0
        %v7286 = vadd.f32 %v6819, %v7122
        %v7287 = vadd.f32 %v6820, %v7124
        %v7288 = vadd.f32 %v6825, %v7128
        %v7289 = vadd.f32 %v6826, %v7130
        %v7290 = vsub.f32 0.0, %v7286
        %v7291 = vsub.f32 0.0, %v7287
        %v7292 = vsub.f32 0.0, %v7288
        %v7293 = vsub.f32 0.0, %v7289
        %v7294 = vmul.f32 %v7290, 1.442695
        %v7295 = vpow.pop %v7294
        %v7296 = vmul.f32 %v7291, 1.442695
        %v7297 = vpow.pop %v7296
        %v7298 = vmul.f32 %v7292, 1.442695
        %v7299 = vpow.pop %v7298
        %v7300 = vmul.f32 %v7293, 1.442695
        %v7301 = vpow.pop %v7300
        %v7302 = vadd.f32 %v7295, 1.0
        %v7303 = vadd.f32 %v7297, 1.0
        %v7304 = vadd.f32 %v7299, 1.0
        %v7305 = vadd.f32 %v7301, 1.0
        %v7306 = vrcp.pop %v7302
        %v7307 = vrcp.pop %v7303
        %v7308 = vrcp.pop %v7304
        %v7309 = vrcp.pop %v7305
        %v7310 = vadd.f32 %v6821, %v7199
        %v7311 = vadd.f32 %v6822, %v7201
        %v7312 = vadd.f32 %v6827, %v7205
        %v7313 = vadd.f32 %v6828, %v7207
        %v7314 = vsub.f32 0.0, %v7310
        %v7315 = vsub.f32 0.0, %v7311
        %v7316 = vsub.f32 0.0, %v7312
        %v7317 = vsub.f32 0.0, %v7313
        %v7318 = vmul.f32 %v7314, 1.442695
        %v7319 = vpow.pop %v7318
        %v7320 = vmul.f32 %v7315, 1.442695
        %v7321 = vpow.pop %v7320
        %v7322 = vmul.f32 %v7316, 1.442695
        %v7323 = vpow.pop %v7322
        %v7324 = vmul.f32 %v7317, 1.442695
        %v7325 = vpow.pop %v7324
        %v7326 = vadd.f32 %v7319, 1.0
        %v7327 = vadd.f32 %v7321, 1.0
        %v7328 = vadd.f32 %v7323, 1.0
        %v7329 = vadd.f32 %v7325, 1.0
        %v7330 = vrcp.pop %v7326
        %v7331 = vrcp.pop %v7327
        %v7332 = vrcp.pop %v7328
        %v7333 = vrcp.pop %v7329
        %v7334 = vmul.f32 %v7306, %v7276
        %v7335 = vmul.f32 %v7307, %v7278
        %v7336 = vmul.f32 %v7308, %v7282
        %v7337 = vmul.f32 %v7309, %v7284
        %v7338 = vadd.f32 %v6823, %v7334
        %v7339 = vadd.f32 %v6824, %v7335
        %v7340 = vadd.f32 %v6829, %v7336
        %v7341 = vadd.f32 %v6830, %v7337
        %v7342 = vtanh.pop %v7338
        %v7343 = vtanh.pop %v7339
        %v7344 = vtanh.pop %v7340
        %v7345 = vtanh.pop %v7341
        %v7346 = vsub.f32 1.0, %v7330
        %v7347 = vsub.f32 1.0, %v7331
        %v7348 = vsub.f32 1.0, %v7332
        %v7349 = vsub.f32 1.0, %v7333
        %v7350 = vmul.f32 %v7346, %v7342
        %v7351 = vmul.f32 %v7347, %v7343
        %v7352 = vmul.f32 %v7348, %v7344
        %v7353 = vmul.f32 %v7349, %v7345
        %v7354 = vmul.f32 %v7330, %v6809
        %v7355 = vmul.f32 %v7331, %v6810
        %v7356 = vmul.f32 %v7332, %v6811
        %v7357 = vmul.f32 %v7333, %v6812
        %v7358 = vadd.f32 %v7350, %v7354
        %v7359 = vadd.f32 %v7351, %v7355
        %v7360 = vadd.f32 %v7352, %v7356
        %v7361 = vadd.f32 %v7353, %v7357
        %s7362 = scalar_lea.vmem [#allocation3], 224
        %7363 = vst [vmem:[%s7362] sm:$0xff] %v7358
        %7364 = vst [vmem:[%s7362 + $0x8] sm:$0xff] %v7359
        %7365 = vst [vmem:[%s7362 + $0x10] sm:$0xff] %v7360
        %7366 = vst [vmem:[%s7362 + $0x18] sm:$0xff] %v7361
        %7367 = vst [vmem:[%s621] sm:$0xff] %v7358
        %7368 = vst [vmem:[%s621 + $0x8] sm:$0xff] %v7359
        %7369 = vst [vmem:[%s621 + $0x10] sm:$0xff] %v7360
        %7370 = vst [vmem:[%s621 + $0x18] sm:$0xff] %v7361
        %v7371 = vld [vmem:[#allocation3] sm:$0xff]
        %v7372 = vld [vmem:[#allocation3 + $0x8] sm:$0xff]
        %v7373 = vld [vmem:[#allocation3 + $0x10] sm:$0xff]
        %v7374 = vld [vmem:[#allocation3 + $0x18] sm:$0xff]
        %v7375 = vld [vmem:[#allocation3 + $0x20] sm:$0xff]
        %v7376 = vld [vmem:[#allocation3 + $0x28] sm:$0xff]
        %v7377 = vld [vmem:[#allocation3 + $0x30] sm:$0xff]
        %v7378 = vld [vmem:[#allocation3 + $0x38] sm:$0xff]
        %v7379 = vld [vmem:[#allocation3 + $0x40] sm:$0xff]
        %v7380 = vld [vmem:[#allocation3 + $0x48] sm:$0xff]
        %v7381 = vld [vmem:[#allocation3 + $0x50] sm:$0xff]
        %v7382 = vld [vmem:[#allocation3 + $0x58] sm:$0xff]
        %v7383 = vld [vmem:[#allocation3 + $0x60] sm:$0xff]
        %v7384 = vld [vmem:[#allocation3 + $0x68] sm:$0xff]
        %v7385 = vld [vmem:[#allocation3 + $0x70] sm:$0xff]
        %v7386 = vld [vmem:[#allocation3 + $0x78] sm:$0xff]
        %v7387 = vld [vmem:[#allocation3 + $0x80] sm:$0xff]
        %v7388 = vld [vmem:[#allocation3 + $0x88] sm:$0xff]
        %v7389 = vld [vmem:[#allocation3 + $0x90] sm:$0xff]
        %v7390 = vld [vmem:[#allocation3 + $0x98] sm:$0xff]
        %v7391 = vld [vmem:[#allocation3 + $0xa0] sm:$0xff]
        %v7392 = vld [vmem:[#allocation3 + $0xa8] sm:$0xff]
        %v7393 = vld [vmem:[#allocation3 + $0xb0] sm:$0xff]
        %v7394 = vld [vmem:[#allocation3 + $0xb8] sm:$0xff]
        %v7395 = vld [vmem:[#allocation3 + $0xc0] sm:$0xff]
        %v7396 = vld [vmem:[#allocation3 + $0xc8] sm:$0xff]
        %v7397 = vld [vmem:[#allocation3 + $0xd0] sm:$0xff]
        %v7398 = vld [vmem:[#allocation3 + $0xd8] sm:$0xff]
        %v7399 = vld [vmem:[#allocation3 + $0xe0] sm:$0xff]
        %v7400 = vld [vmem:[#allocation3 + $0xe8] sm:$0xff]
        %v7401 = vld [vmem:[#allocation3 + $0xf0] sm:$0xff]
        %v7402 = vld [vmem:[#allocation3 + $0xf8] sm:$0xff]
        %v7403 = vld [vmem:[#allocation16] sm:$0xff]
        %v7404 = vld [vmem:[#allocation16 + $0x8] sm:$0xff]
        %v7405 = vld [vmem:[#allocation16 + $0x10] sm:$0xff]
        %v7406 = vld [vmem:[#allocation16 + $0x18] sm:$0xff]
        %v7407 = vld [vmem:[#allocation16 + $0x20] sm:$0xff]
        %v7408 = vld [vmem:[#allocation16 + $0x28] sm:$0xff]
        %v7409 = vld [vmem:[#allocation16 + $0x30] sm:$0xff]
        %v7410 = vld [vmem:[#allocation16 + $0x38] sm:$0xff]
        %v7411 = vld [vmem:[#allocation16 + $0x40] sm:$0xff]
        %v7412 = vld [vmem:[#allocation16 + $0x48] sm:$0xff]
        %v7413 = vld [vmem:[#allocation16 + $0x50] sm:$0xff]
        %v7414 = vld [vmem:[#allocation16 + $0x58] sm:$0xff]
        %v7415 = vld [vmem:[#allocation16 + $0x60] sm:$0xff]
        %v7416 = vld [vmem:[#allocation16 + $0x68] sm:$0xff]
        %v7417 = vld [vmem:[#allocation16 + $0x70] sm:$0xff]
        %v7418 = vld [vmem:[#allocation16 + $0x78] sm:$0xff]
        %v7419 = vld [vmem:[#allocation16 + $0x80] sm:$0xff]
        %v7420 = vld [vmem:[#allocation16 + $0x88] sm:$0xff]
        %v7421 = vld [vmem:[#allocation16 + $0x90] sm:$0xff]
        %v7422 = vld [vmem:[#allocation16 + $0x98] sm:$0xff]
        %v7423 = vld [vmem:[#allocation16 + $0xa0] sm:$0xff]
        %v7424 = vld [vmem:[#allocation16 + $0xa8] sm:$0xff]
        %v7425 = vld [vmem:[#allocation16 + $0xb0] sm:$0xff]
        %v7426 = vld [vmem:[#allocation16 + $0xb8] sm:$0xff]
        %v7427 = vld [vmem:[#allocation16 + $0xc0] sm:$0xff]
        %v7428 = vld [vmem:[#allocation16 + $0xc8] sm:$0xff]
        %v7429 = vld [vmem:[#allocation16 + $0xd0] sm:$0xff]
        %v7430 = vld [vmem:[#allocation16 + $0xd8] sm:$0xff]
        %v7431 = vld [vmem:[#allocation16 + $0xe0] sm:$0xff]
        %v7432 = vld [vmem:[#allocation16 + $0xe8] sm:$0xff]
        %v7433 = vld [vmem:[#allocation16 + $0xf0] sm:$0xff]
        %v7434 = vld [vmem:[#allocation16 + $0xf8] sm:$0xff]
        %v7435 = vld [vmem:[%s11] sm:$0x1]
        %v7437 = vlaneseq
        %v7438 = vshrl.u32 %v7437, 7
        %v7439 = vsub.s32 0, %v7438
        %v7440 = vrot.slane %v7435, %v7439
        %7442 = vmatprep.subr.mxu0 0.0
        %7443 = vmatpush1.msra.mxu0 %v7403
        %7444 = vmatprep.subr.mxu0 0.0
        %7445 = vmatpush1.msra.mxu0 %v7404
        %7446 = vmatprep.subr.mxu0 0.0
        %7447 = vmatpush1.msra.mxu0 %v7405
        %7448 = vmatprep.subr.mxu0 0.0
        %7449 = vmatpush1.msra.mxu0 %v7406
        %7450 = vmatprep.subr.mxu0 0.0
        %7451 = vmatpush1.msra.mxu0 %v7407
        %7452 = vmatprep.subr.mxu0 0.0
        %7453 = vmatpush1.msra.mxu0 %v7408
        %7454 = vmatprep.subr.mxu0 0.0
        %7455 = vmatpush1.msra.mxu0 %v7409
        %7456 = vmatprep.subr.mxu0 0.0
        %7457 = vmatpush1.msra.mxu0 %v7410
        %7458 = vmatprep.subr.mxu0 0.0
        %7459 = vmatpush1.msra.mxu0 %v7411
        %7460 = vmatprep.subr.mxu0 0.0
        %7461 = vmatpush1.msra.mxu0 %v7412
        %7462 = vmatprep.subr.mxu0 0.0
        %7463 = vmatpush1.msra.mxu0 %v7413
        %7464 = vmatprep.subr.mxu0 0.0
        %7465 = vmatpush1.msra.mxu0 %v7414
        %7466 = vmatprep.subr.mxu0 0.0
        %7467 = vmatpush1.msra.mxu0 %v7415
        %7468 = vmatprep.subr.mxu0 0.0
        %7469 = vmatpush1.msra.mxu0 %v7416
        %7470 = vmatprep.subr.mxu0 0.0
        %7471 = vmatpush1.msra.mxu0 %v7417
        %7472 = vmatprep.subr.mxu0 0.0
        %7473 = vmatpush1.msra.mxu0 %v7418
        %7474 = vmatprep.subr.mxu0 0.0
        %7475 = vmatpush1.msra.mxu0 %v7419
        %7476 = vmatprep.subr.mxu0 0.0
        %7477 = vmatpush1.msra.mxu0 %v7420
        %7478 = vmatprep.subr.mxu0 0.0
        %7479 = vmatpush1.msra.mxu0 %v7421
        %7480 = vmatprep.subr.mxu0 0.0
        %7481 = vmatpush1.msra.mxu0 %v7422
        %7482 = vmatprep.subr.mxu0 0.0
        %7483 = vmatpush1.msra.mxu0 %v7423
        %7484 = vmatprep.subr.mxu0 0.0
        %7485 = vmatpush1.msra.mxu0 %v7424
        %7486 = vmatprep.subr.mxu0 0.0
        %7487 = vmatpush1.msra.mxu0 %v7425
        %7488 = vmatprep.subr.mxu0 0.0
        %7489 = vmatpush1.msra.mxu0 %v7426
        %7490 = vmatprep.subr.mxu0 0.0
        %7491 = vmatpush1.msra.mxu0 %v7427
        %7492 = vmatprep.subr.mxu0 0.0
        %7493 = vmatpush1.msra.mxu0 %v7428
        %7494 = vmatprep.subr.mxu0 0.0
        %7495 = vmatpush1.msra.mxu0 %v7429
        %7496 = vmatprep.subr.mxu0 0.0
        %7497 = vmatpush1.msra.mxu0 %v7430
        %7498 = vmatprep.subr.mxu0 0.0
        %7499 = vmatpush1.msra.mxu0 %v7431
        %7500 = vmatprep.subr.mxu0 0.0
        %7501 = vmatpush1.msra.mxu0 %v7432
        %7502 = vmatprep.subr.mxu0 0.0
        %7503 = vmatpush1.msra.mxu0 %v7433
        %7504 = vmatprep.subr.mxu0 0.0
        %7505 = vmatpush1.msra.mxu0 %v7434
        %7506 = vmatprep.mubr.f32.mxu0 %v7372
        %7507 = vmatmul.mubr.f32.gmra.mrb[0].mxu0 %v7371
        %v7508 = vpop.f32.mrb[0].mxu0
        %v7509 = vadd.f32 %v7440, %v7508
        %v7510 = vpop.f32.mrb[0].mxu0
        %7511 = vmatprep.mubr.f32.mxu0 %v7374
        %7512 = vmatmul.mubr.f32.gmra.mrb[0].mxu0 %v7373
        %v7513 = vpop.f32.mrb[0].mxu0
        %v7514 = vadd.f32 %v7440, %v7513
        %v7515 = vpop.f32.mrb[0].mxu0
        %7516 = vmatprep.mubr.f32.mxu0 %v7376
        %7517 = vmatmul.mubr.f32.gmra.mrb[0].mxu0 %v7375
        %v7518 = vpop.f32.mrb[0].mxu0
        %v7519 = vadd.f32 %v7440, %v7518
        %v7520 = vpop.f32.mrb[0].mxu0
        %7521 = vmatprep.mubr.f32.mxu0 %v7378
        %7522 = vmatmul.mubr.f32.gmra.mrb[0].mxu0 %v7377
        %v7523 = vpop.f32.mrb[0].mxu0
        %v7524 = vadd.f32 %v7440, %v7523
        %v7525 = vpop.f32.mrb[0].mxu0
        %7526 = vmatprep.mubr.f32.mxu0 %v7380
        %7527 = vmatmul.mubr.f32.gmra.mrb[0].mxu0 %v7379
        %v7528 = vpop.f32.mrb[0].mxu0
        %v7529 = vadd.f32 %v7440, %v7528
        %v7530 = vpop.f32.mrb[0].mxu0
        %7531 = vmatprep.mubr.f32.mxu0 %v7382
        %7532 = vmatmul.mubr.f32.gmra.mrb[0].mxu0 %v7381
        %v7533 = vpop.f32.mrb[0].mxu0
        %v7534 = vadd.f32 %v7440, %v7533
        %v7535 = vpop.f32.mrb[0].mxu0
        %7536 = vmatprep.mubr.f32.mxu0 %v7384
        %7537 = vmatmul.mubr.f32.gmra.mrb[0].mxu0 %v7383
        %v7538 = vpop.f32.mrb[0].mxu0
        %v7539 = vadd.f32 %v7440, %v7538
        %v7540 = vpop.f32.mrb[0].mxu0
        %7541 = vmatprep.mubr.f32.mxu0 %v7386
        %7542 = vmatmul.mubr.f32.gmra.mrb[0].mxu0 %v7385
        %v7543 = vpop.f32.mrb[0].mxu0
        %v7544 = vadd.f32 %v7440, %v7543
        %v7545 = vpop.f32.mrb[0].mxu0
        %7546 = vmatprep.mubr.f32.mxu0 %v7388
        %7547 = vmatmul.mubr.f32.gmra.mrb[0].mxu0 %v7387
        %v7548 = vpop.f32.mrb[0].mxu0
        %v7549 = vadd.f32 %v7440, %v7548
        %v7550 = vpop.f32.mrb[0].mxu0
        %7551 = vmatprep.mubr.f32.mxu0 %v7390
        %7552 = vmatmul.mubr.f32.gmra.mrb[0].mxu0 %v7389
        %v7553 = vpop.f32.mrb[0].mxu0
        %v7554 = vadd.f32 %v7440, %v7553
        %v7555 = vpop.f32.mrb[0].mxu0
        %7556 = vmatprep.mubr.f32.mxu0 %v7392
        %7557 = vmatmul.mubr.f32.gmra.mrb[0].mxu0 %v7391
        %v7558 = vpop.f32.mrb[0].mxu0
        %v7559 = vadd.f32 %v7440, %v7558
        %v7560 = vpop.f32.mrb[0].mxu0
        %7561 = vmatprep.mubr.f32.mxu0 %v7394
        %7562 = vmatmul.mubr.f32.gmra.mrb[0].mxu0 %v7393
        %v7563 = vpop.f32.mrb[0].mxu0
        %v7564 = vadd.f32 %v7440, %v7563
        %v7565 = vpop.f32.mrb[0].mxu0
        %7566 = vmatprep.mubr.f32.mxu0 %v7396
        %7567 = vmatmul.mubr.f32.gmra.mrb[0].mxu0 %v7395
        %v7568 = vpop.f32.mrb[0].mxu0
        %v7569 = vadd.f32 %v7440, %v7568
        %v7570 = vpop.f32.mrb[0].mxu0
        %7571 = vmatprep.mubr.f32.mxu0 %v7398
        %7572 = vmatmul.mubr.f32.gmra.mrb[0].mxu0 %v7397
        %v7573 = vpop.f32.mrb[0].mxu0
        %v7574 = vadd.f32 %v7440, %v7573
        %v7575 = vpop.f32.mrb[0].mxu0
        %7576 = vmatprep.mubr.f32.mxu0 %v7400
        %7577 = vmatmul.mubr.f32.gmra.mrb[0].mxu0 %v7399
        %v7578 = vpop.f32.mrb[0].mxu0
        %v7579 = vadd.f32 %v7440, %v7578
        %v7580 = vpop.f32.mrb[0].mxu0
        %7581 = vmatprep.mubr.f32.mxu0 %v7402
        %7582 = vmatmul.mubr.f32.gmra.mrb[0].mxu0 %v7401
        %v7583 = vpop.f32.mrb[0].mxu0
        %v7584 = vadd.f32 %v7440, %v7583
        %v7585 = vpop.f32.mrb[0].mxu0
        %7586 = vdwg.mxu0
        %7587 = vst [vmem:[%s614] sm:$0xff] %v7509
        %7588 = vst [vmem:[%s614 + $0x8] sm:$0xff] %v7514
        %7589 = vst [vmem:[%s614 + $0x10] sm:$0xff] %v7519
        %7590 = vst [vmem:[%s614 + $0x18] sm:$0xff] %v7524
        %7591 = vst [vmem:[%s614 + $0x20] sm:$0xff] %v7529
        %7592 = vst [vmem:[%s614 + $0x28] sm:$0xff] %v7534
        %7593 = vst [vmem:[%s614 + $0x30] sm:$0xff] %v7539
        %7594 = vst [vmem:[%s614 + $0x38] sm:$0xff] %v7544
        %7595 = vst [vmem:[%s614 + $0x40] sm:$0xff] %v7549
        %7596 = vst [vmem:[%s614 + $0x48] sm:$0xff] %v7554
        %7597 = vst [vmem:[%s614 + $0x50] sm:$0xff] %v7559
        %7598 = vst [vmem:[%s614 + $0x58] sm:$0xff] %v7564
        %7599 = vst [vmem:[%s614 + $0x60] sm:$0xff] %v7569
        %7600 = vst [vmem:[%s614 + $0x68] sm:$0xff] %v7574
        %7601 = vst [vmem:[%s614 + $0x70] sm:$0xff] %v7579
        %7602 = vst [vmem:[%s614 + $0x78] sm:$0xff] %v7584
        %s7603 = sand.u32 %s310, 1
        %s7604 = scalar_lea.sflag [#allocation6], %s7603
        %s7605 = sand.u32 %s310, 1
        %s7606 = smul.addr %s7605, 128
        %s7607 = scalar_lea.vmem [#allocation18], %s7606
        %s7608 = sand.u32 %s336, 1
        %s7609 = scalar_lea.sflag [#allocation20], %s7608
        %s7610 = sand.u32 %s336, 1
        %s7611 = smul.addr %s7610, 32
        %s7612 = scalar_lea.vmem [#allocation19], %s7611
        // Predicated region
        $region101: #{tpu_custom_call.1} parent=67 // pred_check
          %p7613 = pneg %p320
        $region102: #{tpu_custom_call.1} parent=67 // pred_check_branch
          %7615 = sbr.rel (%p7613) target = $region104
        $region103: #{tpu_custom_call.1} parent=67 // pred_region
          #allocation24 [shape = 'u32[6]{0}', space=smem, size = 0x18, scoped, tag = 'DMA stride descriptor']
          %s7616 = smul.u32 2, %s40
          %s7618 = ssub.s32 2048, 2048
          %7619 = vsyncadd %s7604, %s7618
          %s7620 = smul.addr %s7616, 128
          %s7621 = scalar_lea.hbm %s12, %s7620
          %s7623 = sshll.u32 1, 14
          %s7624 = sxor.u32 4294967295, %s7623
          %s7627 = sshll.u32 7, 18
          %s7628 = sxor.u32 4294967295, %s7627
          %s7629 = sand.u32 0, %s7628
          %s7631 = sor.u32 %s7629, 0
          %s7633 = sshll.u32 3, 24
          %s7634 = sxor.u32 4294967295, %s7633
          %s7635 = sand.u32 %s7631, %s7634
          %s7637 = sor.u32 %s7635, 0
          %s7638 = sshll.u32 %s7607, 4
          %s7639 = int_to_ptr.vmem [resolvable:$true] %s7638
          %7645 = sst [smem:[#allocation24]] 256
          %s7646 = scalar_lea.smem [#allocation24], 1
          %7647 = sst [smem:[%s7646]] 512
          %s7648 = scalar_lea.smem [#allocation24], 2
          %7649 = sst [smem:[%s7648]] 2
          %s7650 = scalar_lea.smem [#allocation24], 3
          %7651 = sst [smem:[%s7650]] 128
          %s7652 = scalar_lea.smem [#allocation24], 4
          %7653 = sst [smem:[%s7652]] 128
          %s7654 = scalar_lea.smem [#allocation24], 5
          %7655 = sst [smem:[%s7654]] 8
          %7657 = dma.general %s7639, 2048, %s7621, %s7604, [#allocation23], [#allocation24], %s7637, 0
        $region104: #{tpu_custom_call.1} parent=67 // pred_fallthru
          _
        // Predicated region
        $region105: #{tpu_custom_call.1} parent=67 // pred_check
          %p7658 = pneg %p346
        $region106: #{tpu_custom_call.1} parent=67 // pred_check_branch
          %7660 = sbr.rel (%p7658) target = $region108
        $region107: #{tpu_custom_call.1} parent=67 // pred_region
          %s7661 = smul.u32 2, %s40
          %s7663 = ssub.s32 512, 512
          %7664 = vsyncadd %s7609, %s7663
          %s7665 = smul.addr %s7661, 2
          %s7666 = smul.addr %s7665, 128
          %s7667 = scalar_lea.hbm %s13, %s7666
          %s7668 = sshll.u32 %s7612, 4
          %s7669 = int_to_ptr.vmem [resolvable:$true] %s7668
          %7674 = dma.vmem_to_hbm [thread:$0]  %s7669, 512, %s7667, %s7609, 256, 256, 16
        $region108: #{tpu_custom_call.1} parent=67 // pred_fallthru
          _
      $region68: #{tpu_custom_call.1} parent=5 // pred_fallthru
        _
      %p7675 = scmp.le.s32.totalorder 2, %s35
      // Predicated region
      $region109: #{tpu_custom_call.1} parent=5 // pred_check
        %p7676 = pneg %p7675
      $region110: #{tpu_custom_call.1} parent=5 // pred_check_branch
        %7678 = sbr.rel (%p7676) target = $region112
      $region111: #{tpu_custom_call.1} parent=5 // pred_region
        %s7679 = ssub.s32 %s35, 2
        // Predicated region
        $region113: #{tpu_custom_call.1} parent=111 // pred_check
          %p7680 = pneg %p326
        $region114: #{tpu_custom_call.1} parent=111 // pred_check_branch
          %7682 = sbr.rel (%p7680) target = $region116
        $region115: #{tpu_custom_call.1} parent=111 // pred_region
          %s7683 = sand.u32 %s311, 1
          %s7684 = scalar_lea.sflag [#allocation6], %s7683
          %s7685 = sand.u32 %s311, 1
          %s7686 = smul.addr %s7685, 128
          %s7687 = scalar_lea.vmem [#allocation18], %s7686
          %7688 = dma.done %s7684, 2048
        $region116: #{tpu_custom_call.1} parent=111 // pred_fallthru
          _
        // Predicated region
        $region117: #{tpu_custom_call.1} parent=111 // pred_check
          %p7689 = pneg %p352
        $region118: #{tpu_custom_call.1} parent=111 // pred_check_branch
          %7691 = sbr.rel (%p7689) target = $region120
        $region119: #{tpu_custom_call.1} parent=111 // pred_region
          %s7692 = sand.u32 %s337, 1
          %s7693 = scalar_lea.sflag [#allocation20], %s7692
          %s7694 = sand.u32 %s337, 1
          %s7695 = smul.addr %s7694, 32
          %s7696 = scalar_lea.vmem [#allocation19], %s7695
          %7697 = dma.done %s7693, 512
        $region120: #{tpu_custom_call.1} parent=111 // pred_fallthru
          _
      $region112: #{tpu_custom_call.1} parent=5 // pred_fallthru
        _
    $region6: #{tpu_custom_call.1} parent=1 // loop_footer
      %s39 = sadd.s32 1, %s35
    $region7: #{tpu_custom_call.1} parent=1 // loop_footer_branch
      %34 = sbr.rel target = $region3
    $region8: #{tpu_custom_call.1} parent=1 // loop_exit
      _
    %7698 = vsyncpa [#allocation5], 1
    %s7699 = scalar_lea.sflag [#allocation5], 1
    %7700 = vsyncpa %s7699, 1
    %7701 = vsyncpa [#allocation8], 1
    %s7702 = scalar_lea.sflag [#allocation8], 1
    %7703 = vsyncpa %s7702, 1
    %7704 = vsyncpa [#allocation11], 1
    %7705 = vsyncpa [#allocation14], 1
    %7706 = vsyncpa [#allocation17], 1
    %7707 = vsyncpa [#allocation6], 1
    %s7708 = scalar_lea.sflag [#allocation6], 1
    %7709 = vsyncpa %s7708, 1
    %7710 = vsyncpa [#allocation20], 1
    %s7711 = scalar_lea.sflag [#allocation20], 1
    %7712 = vsyncpa %s7711, 1

</llo_original>
